<compile_context>
chip_gen: v7x
topology: tpu7x:2x2x1
jax: 0.10.0
libtpu: 0.0.40
codegen_flags: <defaults>
</compile_context>

<pallas_src>
import jax
import jax.numpy as jnp
from jax.experimental import pallas as pl
from jax.experimental.pallas import tpu as pltpu


def _conv3x3_bn_relu(x, w_ref, b_ref, g_ref, be_ref, eps):
    """One (3x3 conv + bias) -> BN(train) -> ReLU stage on a channel-last value.

    x      : (B, H, W, Cin) f32 value (already in registers/VMEM)
    w_ref  : (9*Cin, Cout) tap matrix, rows ordered (ky, kx, cin)
    b_ref, g_ref, be_ref : (1, Cout)
    returns: (B, H, W, Cout) f32 value
    """
    B, H, W, Cin = x.shape
    Cout = w_ref.shape[1]

    # --- build the three H-shifted variants once (leading-axis concat: free) --
    zrow = jnp.zeros((B, 1, W, Cin), jnp.float32)
    x_hm1 = jnp.concatenate([zrow, x[:, : H - 1]], axis=1)   # x[h-1], zero at h=0
    x_hp1 = jnp.concatenate([x[:, 1:], zrow], axis=1)        # x[h+1], zero at h=H-1
    h_shift = {-1: x_hm1, 0: x, 1: x_hp1}

    # --- W-validity masks (hoisted iota, computed once per dx) ---------------
    wi = jax.lax.broadcasted_iota(jnp.int32, (1, 1, W, Cin), 2)

    # --- stack the 9 shifted taps along lanes -> im2col patch ---------------
    cols = []
    for dy in (-1, 0, 1):
        xh = h_shift[dy]
        for dx in (-1, 0, 1):
            if dx == 0:
                cols.append(xh)
            else:
                # shifted[w] = xh[w + dx]  (XLU sublane rotation, then mask)
                rolled = pltpu.roll(xh, shift=(-dx) % W, axis=2)
                valid = jnp.logical_and(wi + dx >= 0, wi + dx < W)
                cols.append(jnp.where(valid, rolled, 0.0))
    patch = jnp.concatenate(cols, axis=-1)                   # (B, H, W, 9*Cin)

    # --- one MXU matmul for the whole conv layer -----------------------------
    n = B * H * W
    patch2d = patch.reshape(n, 9 * Cin)                      # leading collapse
    conv = jnp.dot(patch2d, w_ref[...],
                   preferred_element_type=jnp.float32)       # (n, Cout)
    conv = conv + b_ref[...]                                 # (1, Cout) bcast

    # --- fused single-pass BatchNorm (training mode, biased variance) --------
    # f32 accumulators; var = E[x^2] - E[x]^2 (validated vs two-pass reference).
    inv_n = 1.0 / n
    s = jnp.sum(conv, axis=0, keepdims=True)                 # (1, Cout)
    ss = jnp.sum(conv * conv, axis=0, keepdims=True)         # (1, Cout)
    mean = s * inv_n
    var = ss * inv_n - mean * mean
    inv_std = jax.lax.rsqrt(var + eps)
    y = (conv - mean) * (inv_std * g_ref[...]) + be_ref[...]

    # --- ReLU -----------------------------------------------------------------
    y = jnp.maximum(y, 0.0)
    return y.reshape(B, H, W, Cout)


def _double_conv_kernel(x_ref, w1_ref, b1_ref, g1_ref, be1_ref,
                        w2_ref, b2_ref, g2_ref, be2_ref, o_ref):
    eps = 1e-5
    x = x_ref[...]
    y1 = _conv3x3_bn_relu(x, w1_ref, b1_ref, g1_ref, be1_ref, eps)
    y2 = _conv3x3_bn_relu(y1, w2_ref, b2_ref, g2_ref, be2_ref, eps)
    o_ref[...] = y2.astype(o_ref.dtype)                      # single store pass


def double_conv(x_nchw, params):
    """Forward pass of DoubleConv. Input / output are NCHW float32."""
    B, Cin, H, W = x_nchw.shape
    K = 3

    w1, b1 = params["conv1_w"], params["conv1_b"]
    g1, be1 = params["bn1_gamma"], params["bn1_beta"]
    w2, b2 = params["conv2_w"], params["conv2_b"]
    g2, be2 = params["bn2_gamma"], params["bn2_beta"]
    Cmid = w1.shape[0]
    Cout = w2.shape[0]

    # NCHW -> NHWC (layout plumbing kept in the wrapper).
    x = jnp.transpose(x_nchw, (0, 2, 3, 1)).astype(jnp.float32)

    # PyTorch OIHW conv weight -> (ky, kx, cin, cout) -> (9*Cin, Cout) tap matrix.
    w1t = jnp.transpose(w1, (2, 3, 1, 0)).reshape(K * K * Cin, Cmid)
    w2t = jnp.transpose(w2, (2, 3, 1, 0)).reshape(K * K * Cmid, Cout)

    out_nhwc = pl.pallas_call(
        _double_conv_kernel,
        out_shape=jax.ShapeDtypeStruct((B, H, W, Cout), jnp.float32),
        in_specs=[pl.BlockSpec(memory_space=pltpu.MemorySpace.VMEM)] * 9,
        out_specs=pl.BlockSpec(memory_space=pltpu.MemorySpace.VMEM),
        compiler_params=pltpu.CompilerParams(
            vmem_limit_bytes=64 * 1024 * 1024),
    )(x, w1t,
      b1.reshape(1, Cmid), g1.reshape(1, Cmid), be1.reshape(1, Cmid),
      w2t,
      b2.reshape(1, Cout), g2.reshape(1, Cout), be2.reshape(1, Cout))

    return jnp.transpose(out_nhwc, (0, 3, 1, 2))             # back to NCHW


def _reference_forward(x_nchw, params):
    """Pure-JAX reference (independent path via lax.conv_general_dilated)."""
    x = jnp.transpose(x_nchw, (0, 2, 3, 1)).astype(jnp.float32)

    def stage(x, w, b, g, be):
        rhs = jnp.transpose(w, (2, 3, 1, 0))                 # OIHW -> HWIO
        conv = jax.lax.conv_general_dilated(
            x, rhs, (1, 1), ((1, 1), (1, 1)),
            dimension_numbers=("NHWC", "HWIO", "NHWC"),
            precision=jax.lax.Precision.HIGHEST) + b
        mean = conv.mean(axis=(0, 1, 2), keepdims=True)
        var = ((conv - mean) ** 2).mean(axis=(0, 1, 2), keepdims=True)
        y = (conv - mean) / jnp.sqrt(var + 1e-5) * g + be
        return jnp.maximum(y, 0.0)

    y = stage(x, params["conv1_w"], params["conv1_b"],
              params["bn1_gamma"], params["bn1_beta"])
    y = stage(y, params["conv2_w"], params["conv2_b"],
              params["bn2_gamma"], params["bn2_beta"])
    return jnp.transpose(y, (0, 3, 1, 2))


if __name__ == "__main__":
    B, Cin, H, W = 2, 4, 16, 16
    Cout = 8           # mid_channels defaults to out_channels in the module
    Cmid = Cout
    K = 3

    key = jax.random.PRNGKey(0)
    (kx, kw1, kb1, kg1, kbe1, kw2, kb2, kg2, kbe2) = jax.random.split(key, 9)

    x = jax.random.normal(kx, (B, Cin, H, W), dtype=jnp.float32)
    params = {
        "conv1_w": 0.2 * jax.random.normal(kw1, (Cmid, Cin, K, K), jnp.float32),
        "conv1_b": 0.1 * jax.random.normal(kb1, (Cmid,), jnp.float32),
        "bn1_gamma": 1.0 + 0.1 * jax.random.normal(kg1, (Cmid,), jnp.float32),
        "bn1_beta": 0.1 * jax.random.normal(kbe1, (Cmid,), jnp.float32),
        "conv2_w": 0.2 * jax.random.normal(kw2, (Cout, Cmid, K, K), jnp.float32),
        "conv2_b": 0.1 * jax.random.normal(kb2, (Cout,), jnp.float32),
        "bn2_gamma": 1.0 + 0.1 * jax.random.normal(kg2, (Cout,), jnp.float32),
        "bn2_beta": 0.1 * jax.random.normal(kbe2, (Cout,), jnp.float32),
    }

    out = jax.block_until_ready(double_conv(x, params))
    ref = jax.block_until_ready(_reference_forward(x, params))

    assert out.shape == (B, Cout, H, W)
    max_err = float(jnp.max(jnp.abs(out - ref)))
    assert jnp.allclose(out, ref, atol=2e-3, rtol=2e-3), max_err

    print("KERNEL_OK")
</pallas_src>

<mosaic_0001>
module attributes {stable_mosaic.version = 11 : i64} {
  func.func @_double_conv_kernel(%arg0: memref<2x16x16x4xf32, #tpu.memory_space<vmem>>, %arg1: memref<36x8xf32, #tpu.memory_space<vmem>>, %arg2: memref<1x8xf32, #tpu.memory_space<vmem>>, %arg3: memref<1x8xf32, #tpu.memory_space<vmem>>, %arg4: memref<1x8xf32, #tpu.memory_space<vmem>>, %arg5: memref<72x8xf32, #tpu.memory_space<vmem>>, %arg6: memref<1x8xf32, #tpu.memory_space<vmem>>, %arg7: memref<1x8xf32, #tpu.memory_space<vmem>>, %arg8: memref<1x8xf32, #tpu.memory_space<vmem>>, %arg9: memref<2x16x16x8xf32, #tpu.memory_space<vmem>>) attributes {dimension_semantics = [], scalar_prefetch = 0 : i64, scratch_operands = 0 : i64, tpu.core_type = #tpu.core_type<tc>} {
    %c0 = arith.constant 0 : index
    %c0_0 = arith.constant 0 : index
    %c0_1 = arith.constant 0 : index
    %c0_2 = arith.constant 0 : index
    %0 = vector.load %arg0[%c0, %c0_0, %c0_1, %c0_2] : memref<2x16x16x4xf32, #tpu.memory_space<vmem>>, vector<2x16x16x4xf32>
    %cst = arith.constant 0.000000e+00 : f32
    %1 = vector.broadcast %cst : f32 to vector<2x1x16x4xf32>
    %2 = vector.extract_strided_slice %0 {offsets = [0, 0, 0, 0], sizes = [2, 15, 16, 4], strides = [1, 1, 1, 1]} : vector<2x16x16x4xf32> to vector<2x15x16x4xf32>
    %3 = tpu.concatenate %1, %2 in 1 : vector<2x1x16x4xf32>, vector<2x15x16x4xf32> -> vector<2x16x16x4xf32>
    %4 = vector.extract_strided_slice %0 {offsets = [0, 1, 0, 0], sizes = [2, 15, 16, 4], strides = [1, 1, 1, 1]} : vector<2x16x16x4xf32> to vector<2x15x16x4xf32>
    %5 = tpu.concatenate %4, %1 in 1 : vector<2x15x16x4xf32>, vector<2x1x16x4xf32> -> vector<2x16x16x4xf32>
    %6 = tpu.iota {dimensions = array<i32: 2>} : vector<1x1x16x4xi32>
    %c1_i32 = arith.constant 1 : i32
    %7 = tpu.dynamic_rotate %3 by %c1_i32 dim 2 : vector<2x16x16x4xf32>, i32 -> vector<2x16x16x4xf32>
    %c-1_i32 = arith.constant -1 : i32
    %8 = vector.broadcast %c-1_i32 : i32 to vector<1x1x16x4xi32>
    %9 = arith.addi %6, %8 : vector<1x1x16x4xi32>
    %c0_i32 = arith.constant 0 : i32
    %10 = vector.broadcast %c0_i32 : i32 to vector<1x1x16x4xi32>
    %11 = arith.cmpi sge, %9, %10 : vector<1x1x16x4xi32>
    %c-1_i32_3 = arith.constant -1 : i32
    %12 = vector.broadcast %c-1_i32_3 : i32 to vector<1x1x16x4xi32>
    %13 = arith.addi %6, %12 : vector<1x1x16x4xi32>
    %c16_i32 = arith.constant 16 : i32
    %14 = vector.broadcast %c16_i32 : i32 to vector<1x1x16x4xi32>
    %15 = arith.cmpi slt, %13, %14 : vector<1x1x16x4xi32>
    %16 = arith.andi %11, %15 : vector<1x1x16x4xi1>
    %cst_4 = arith.constant 0.000000e+00 : f32
    %17 = vector.shape_cast %16 : vector<1x1x16x4xi1> to vector<1x1x16x4xi1>
    %18 = vector.broadcast %17 : vector<1x1x16x4xi1> to vector<2x16x16x4xi1>
    %19 = vector.broadcast %cst_4 : f32 to vector<2x16x16x4xf32>
    %20 = arith.select %18, %7, %19 : vector<2x16x16x4xi1>, vector<2x16x16x4xf32>
    %c15_i32 = arith.constant 15 : i32
    %21 = tpu.dynamic_rotate %3 by %c15_i32 dim 2 : vector<2x16x16x4xf32>, i32 -> vector<2x16x16x4xf32>
    %c1_i32_5 = arith.constant 1 : i32
    %22 = vector.broadcast %c1_i32_5 : i32 to vector<1x1x16x4xi32>
    %23 = arith.addi %6, %22 : vector<1x1x16x4xi32>
    %c0_i32_6 = arith.constant 0 : i32
    %24 = vector.broadcast %c0_i32_6 : i32 to vector<1x1x16x4xi32>
    %25 = arith.cmpi sge, %23, %24 : vector<1x1x16x4xi32>
    %c1_i32_7 = arith.constant 1 : i32
    %26 = vector.broadcast %c1_i32_7 : i32 to vector<1x1x16x4xi32>
    %27 = arith.addi %6, %26 : vector<1x1x16x4xi32>
    %c16_i32_8 = arith.constant 16 : i32
    %28 = vector.broadcast %c16_i32_8 : i32 to vector<1x1x16x4xi32>
    %29 = arith.cmpi slt, %27, %28 : vector<1x1x16x4xi32>
    %30 = arith.andi %25, %29 : vector<1x1x16x4xi1>
    %cst_9 = arith.constant 0.000000e+00 : f32
    %31 = vector.shape_cast %30 : vector<1x1x16x4xi1> to vector<1x1x16x4xi1>
    %32 = vector.broadcast %31 : vector<1x1x16x4xi1> to vector<2x16x16x4xi1>
    %33 = vector.broadcast %cst_9 : f32 to vector<2x16x16x4xf32>
    %34 = arith.select %32, %21, %33 : vector<2x16x16x4xi1>, vector<2x16x16x4xf32>
    %c1_i32_10 = arith.constant 1 : i32
    %35 = tpu.dynamic_rotate %0 by %c1_i32_10 dim 2 : vector<2x16x16x4xf32>, i32 -> vector<2x16x16x4xf32>
    %c-1_i32_11 = arith.constant -1 : i32
    %36 = vector.broadcast %c-1_i32_11 : i32 to vector<1x1x16x4xi32>
    %37 = arith.addi %6, %36 : vector<1x1x16x4xi32>
    %c0_i32_12 = arith.constant 0 : i32
    %38 = vector.broadcast %c0_i32_12 : i32 to vector<1x1x16x4xi32>
    %39 = arith.cmpi sge, %37, %38 : vector<1x1x16x4xi32>
    %c-1_i32_13 = arith.constant -1 : i32
    %40 = vector.broadcast %c-1_i32_13 : i32 to vector<1x1x16x4xi32>
    %41 = arith.addi %6, %40 : vector<1x1x16x4xi32>
    %c16_i32_14 = arith.constant 16 : i32
    %42 = vector.broadcast %c16_i32_14 : i32 to vector<1x1x16x4xi32>
    %43 = arith.cmpi slt, %41, %42 : vector<1x1x16x4xi32>
    %44 = arith.andi %39, %43 : vector<1x1x16x4xi1>
    %cst_15 = arith.constant 0.000000e+00 : f32
    %45 = vector.shape_cast %44 : vector<1x1x16x4xi1> to vector<1x1x16x4xi1>
    %46 = vector.broadcast %45 : vector<1x1x16x4xi1> to vector<2x16x16x4xi1>
    %47 = vector.broadcast %cst_15 : f32 to vector<2x16x16x4xf32>
    %48 = arith.select %46, %35, %47 : vector<2x16x16x4xi1>, vector<2x16x16x4xf32>
    %c15_i32_16 = arith.constant 15 : i32
    %49 = tpu.dynamic_rotate %0 by %c15_i32_16 dim 2 : vector<2x16x16x4xf32>, i32 -> vector<2x16x16x4xf32>
    %c1_i32_17 = arith.constant 1 : i32
    %50 = vector.broadcast %c1_i32_17 : i32 to vector<1x1x16x4xi32>
    %51 = arith.addi %6, %50 : vector<1x1x16x4xi32>
    %c0_i32_18 = arith.constant 0 : i32
    %52 = vector.broadcast %c0_i32_18 : i32 to vector<1x1x16x4xi32>
    %53 = arith.cmpi sge, %51, %52 : vector<1x1x16x4xi32>
    %c1_i32_19 = arith.constant 1 : i32
    %54 = vector.broadcast %c1_i32_19 : i32 to vector<1x1x16x4xi32>
    %55 = arith.addi %6, %54 : vector<1x1x16x4xi32>
    %c16_i32_20 = arith.constant 16 : i32
    %56 = vector.broadcast %c16_i32_20 : i32 to vector<1x1x16x4xi32>
    %57 = arith.cmpi slt, %55, %56 : vector<1x1x16x4xi32>
    %58 = arith.andi %53, %57 : vector<1x1x16x4xi1>
    %cst_21 = arith.constant 0.000000e+00 : f32
    %59 = vector.shape_cast %58 : vector<1x1x16x4xi1> to vector<1x1x16x4xi1>
    %60 = vector.broadcast %59 : vector<1x1x16x4xi1> to vector<2x16x16x4xi1>
    %61 = vector.broadcast %cst_21 : f32 to vector<2x16x16x4xf32>
    %62 = arith.select %60, %49, %61 : vector<2x16x16x4xi1>, vector<2x16x16x4xf32>
    %c1_i32_22 = arith.constant 1 : i32
    %63 = tpu.dynamic_rotate %5 by %c1_i32_22 dim 2 : vector<2x16x16x4xf32>, i32 -> vector<2x16x16x4xf32>
    %c-1_i32_23 = arith.constant -1 : i32
    %64 = vector.broadcast %c-1_i32_23 : i32 to vector<1x1x16x4xi32>
    %65 = arith.addi %6, %64 : vector<1x1x16x4xi32>
    %c0_i32_24 = arith.constant 0 : i32
    %66 = vector.broadcast %c0_i32_24 : i32 to vector<1x1x16x4xi32>
    %67 = arith.cmpi sge, %65, %66 : vector<1x1x16x4xi32>
    %c-1_i32_25 = arith.constant -1 : i32
    %68 = vector.broadcast %c-1_i32_25 : i32 to vector<1x1x16x4xi32>
    %69 = arith.addi %6, %68 : vector<1x1x16x4xi32>
    %c16_i32_26 = arith.constant 16 : i32
    %70 = vector.broadcast %c16_i32_26 : i32 to vector<1x1x16x4xi32>
    %71 = arith.cmpi slt, %69, %70 : vector<1x1x16x4xi32>
    %72 = arith.andi %67, %71 : vector<1x1x16x4xi1>
    %cst_27 = arith.constant 0.000000e+00 : f32
    %73 = vector.shape_cast %72 : vector<1x1x16x4xi1> to vector<1x1x16x4xi1>
    %74 = vector.broadcast %73 : vector<1x1x16x4xi1> to vector<2x16x16x4xi1>
    %75 = vector.broadcast %cst_27 : f32 to vector<2x16x16x4xf32>
    %76 = arith.select %74, %63, %75 : vector<2x16x16x4xi1>, vector<2x16x16x4xf32>
    %c15_i32_28 = arith.constant 15 : i32
    %77 = tpu.dynamic_rotate %5 by %c15_i32_28 dim 2 : vector<2x16x16x4xf32>, i32 -> vector<2x16x16x4xf32>
    %c1_i32_29 = arith.constant 1 : i32
    %78 = vector.broadcast %c1_i32_29 : i32 to vector<1x1x16x4xi32>
    %79 = arith.addi %6, %78 : vector<1x1x16x4xi32>
    %c0_i32_30 = arith.constant 0 : i32
    %80 = vector.broadcast %c0_i32_30 : i32 to vector<1x1x16x4xi32>
    %81 = arith.cmpi sge, %79, %80 : vector<1x1x16x4xi32>
    %c1_i32_31 = arith.constant 1 : i32
    %82 = vector.broadcast %c1_i32_31 : i32 to vector<1x1x16x4xi32>
    %83 = arith.addi %6, %82 : vector<1x1x16x4xi32>
    %c16_i32_32 = arith.constant 16 : i32
    %84 = vector.broadcast %c16_i32_32 : i32 to vector<1x1x16x4xi32>
    %85 = arith.cmpi slt, %83, %84 : vector<1x1x16x4xi32>
    %86 = arith.andi %81, %85 : vector<1x1x16x4xi1>
    %cst_33 = arith.constant 0.000000e+00 : f32
    %87 = vector.shape_cast %86 : vector<1x1x16x4xi1> to vector<1x1x16x4xi1>
    %88 = vector.broadcast %87 : vector<1x1x16x4xi1> to vector<2x16x16x4xi1>
    %89 = vector.broadcast %cst_33 : f32 to vector<2x16x16x4xf32>
    %90 = arith.select %88, %77, %89 : vector<2x16x16x4xi1>, vector<2x16x16x4xf32>
    %91 = tpu.concatenate %20, %3, %34, %48, %0, %62, %76, %5, %90 in 3 : vector<2x16x16x4xf32>, vector<2x16x16x4xf32>, vector<2x16x16x4xf32>, vector<2x16x16x4xf32>, vector<2x16x16x4xf32>, vector<2x16x16x4xf32>, vector<2x16x16x4xf32>, vector<2x16x16x4xf32>, vector<2x16x16x4xf32> -> vector<2x16x16x36xf32>
    %92 = vector.shape_cast %91 : vector<2x16x16x36xf32> to vector<512x36xf32>
    %c0_34 = arith.constant 0 : index
    %c0_35 = arith.constant 0 : index
    %93 = vector.load %arg1[%c0_34, %c0_35] : memref<36x8xf32, #tpu.memory_space<vmem>>, vector<36x8xf32>
    %cst_36 = arith.constant dense<0.000000e+00> : vector<512x8xf32>
    %94 = tpu.matmul %92, %93, %cst_36 {dimension_numbers = #tpu.dot_dimension_numbers<[1], [0], [0], [1], [0, 0, 1, 1], [], []>} : vector<512x36xf32>, vector<36x8xf32>, vector<512x8xf32> -> vector<512x8xf32>
    %c0_37 = arith.constant 0 : index
    %c0_38 = arith.constant 0 : index
    %95 = vector.load %arg2[%c0_37, %c0_38] : memref<1x8xf32, #tpu.memory_space<vmem>>, vector<1x8xf32>
    %96 = vector.broadcast %95 : vector<1x8xf32> to vector<512x8xf32>
    %97 = arith.addf %94, %96 : vector<512x8xf32>
    %cst_39 = arith.constant dense<0.000000e+00> : vector<8xf32>
    %98 = vector.multi_reduction <add>, %97, %cst_39 [0] : vector<512x8xf32> to vector<8xf32>
    %99 = vector.shape_cast %98 : vector<8xf32> to vector<1x8xf32>
    %100 = arith.mulf %97, %97 : vector<512x8xf32>
    %cst_40 = arith.constant dense<0.000000e+00> : vector<8xf32>
    %101 = vector.multi_reduction <add>, %100, %cst_40 [0] : vector<512x8xf32> to vector<8xf32>
    %102 = vector.shape_cast %101 : vector<8xf32> to vector<1x8xf32>
    %cst_41 = arith.constant 0.001953125 : f32
    %103 = vector.broadcast %cst_41 : f32 to vector<1x8xf32>
    %104 = arith.mulf %99, %103 : vector<1x8xf32>
    %cst_42 = arith.constant 0.001953125 : f32
    %105 = vector.broadcast %cst_42 : f32 to vector<1x8xf32>
    %106 = arith.mulf %102, %105 : vector<1x8xf32>
    %107 = arith.mulf %104, %104 : vector<1x8xf32>
    %108 = arith.subf %106, %107 : vector<1x8xf32>
    %cst_43 = arith.constant 9.99999974E-6 : f32
    %109 = vector.broadcast %cst_43 : f32 to vector<1x8xf32>
    %110 = arith.addf %108, %109 : vector<1x8xf32>
    %111 = math.rsqrt %110 : vector<1x8xf32>
    %112 = vector.broadcast %104 : vector<1x8xf32> to vector<512x8xf32>
    %113 = arith.subf %97, %112 : vector<512x8xf32>
    %c0_44 = arith.constant 0 : index
    %c0_45 = arith.constant 0 : index
    %114 = vector.load %arg3[%c0_44, %c0_45] : memref<1x8xf32, #tpu.memory_space<vmem>>, vector<1x8xf32>
    %115 = arith.mulf %111, %114 : vector<1x8xf32>
    %116 = vector.broadcast %115 : vector<1x8xf32> to vector<512x8xf32>
    %117 = arith.mulf %113, %116 : vector<512x8xf32>
    %c0_46 = arith.constant 0 : index
    %c0_47 = arith.constant 0 : index
    %118 = vector.load %arg4[%c0_46, %c0_47] : memref<1x8xf32, #tpu.memory_space<vmem>>, vector<1x8xf32>
    %119 = vector.broadcast %118 : vector<1x8xf32> to vector<512x8xf32>
    %120 = arith.addf %117, %119 : vector<512x8xf32>
    %cst_48 = arith.constant 0.000000e+00 : f32
    %121 = vector.broadcast %cst_48 : f32 to vector<512x8xf32>
    %122 = arith.maximumf %120, %121 : vector<512x8xf32>
    %123 = vector.shape_cast %122 : vector<512x8xf32> to vector<2x16x16x8xf32>
    %cst_49 = arith.constant 0.000000e+00 : f32
    %124 = vector.broadcast %cst_49 : f32 to vector<2x1x16x8xf32>
    %125 = vector.extract_strided_slice %123 {offsets = [0, 0, 0, 0], sizes = [2, 15, 16, 8], strides = [1, 1, 1, 1]} : vector<2x16x16x8xf32> to vector<2x15x16x8xf32>
    %126 = tpu.concatenate %124, %125 in 1 : vector<2x1x16x8xf32>, vector<2x15x16x8xf32> -> vector<2x16x16x8xf32>
    %127 = vector.extract_strided_slice %123 {offsets = [0, 1, 0, 0], sizes = [2, 15, 16, 8], strides = [1, 1, 1, 1]} : vector<2x16x16x8xf32> to vector<2x15x16x8xf32>
    %128 = tpu.concatenate %127, %124 in 1 : vector<2x15x16x8xf32>, vector<2x1x16x8xf32> -> vector<2x16x16x8xf32>
    %129 = tpu.iota {dimensions = array<i32: 2>} : vector<1x1x16x8xi32>
    %c1_i32_50 = arith.constant 1 : i32
    %130 = tpu.dynamic_rotate %126 by %c1_i32_50 dim 2 : vector<2x16x16x8xf32>, i32 -> vector<2x16x16x8xf32>
    %c-1_i32_51 = arith.constant -1 : i32
    %131 = vector.broadcast %c-1_i32_51 : i32 to vector<1x1x16x8xi32>
    %132 = arith.addi %129, %131 : vector<1x1x16x8xi32>
    %c0_i32_52 = arith.constant 0 : i32
    %133 = vector.broadcast %c0_i32_52 : i32 to vector<1x1x16x8xi32>
    %134 = arith.cmpi sge, %132, %133 : vector<1x1x16x8xi32>
    %c-1_i32_53 = arith.constant -1 : i32
    %135 = vector.broadcast %c-1_i32_53 : i32 to vector<1x1x16x8xi32>
    %136 = arith.addi %129, %135 : vector<1x1x16x8xi32>
    %c16_i32_54 = arith.constant 16 : i32
    %137 = vector.broadcast %c16_i32_54 : i32 to vector<1x1x16x8xi32>
    %138 = arith.cmpi slt, %136, %137 : vector<1x1x16x8xi32>
    %139 = arith.andi %134, %138 : vector<1x1x16x8xi1>
    %cst_55 = arith.constant 0.000000e+00 : f32
    %140 = vector.shape_cast %139 : vector<1x1x16x8xi1> to vector<1x1x16x8xi1>
    %141 = vector.broadcast %140 : vector<1x1x16x8xi1> to vector<2x16x16x8xi1>
    %142 = vector.broadcast %cst_55 : f32 to vector<2x16x16x8xf32>
    %143 = arith.select %141, %130, %142 : vector<2x16x16x8xi1>, vector<2x16x16x8xf32>
    %c15_i32_56 = arith.constant 15 : i32
    %144 = tpu.dynamic_rotate %126 by %c15_i32_56 dim 2 : vector<2x16x16x8xf32>, i32 -> vector<2x16x16x8xf32>
    %c1_i32_57 = arith.constant 1 : i32
    %145 = vector.broadcast %c1_i32_57 : i32 to vector<1x1x16x8xi32>
    %146 = arith.addi %129, %145 : vector<1x1x16x8xi32>
    %c0_i32_58 = arith.constant 0 : i32
    %147 = vector.broadcast %c0_i32_58 : i32 to vector<1x1x16x8xi32>
    %148 = arith.cmpi sge, %146, %147 : vector<1x1x16x8xi32>
    %c1_i32_59 = arith.constant 1 : i32
    %149 = vector.broadcast %c1_i32_59 : i32 to vector<1x1x16x8xi32>
    %150 = arith.addi %129, %149 : vector<1x1x16x8xi32>
    %c16_i32_60 = arith.constant 16 : i32
    %151 = vector.broadcast %c16_i32_60 : i32 to vector<1x1x16x8xi32>
    %152 = arith.cmpi slt, %150, %151 : vector<1x1x16x8xi32>
    %153 = arith.andi %148, %152 : vector<1x1x16x8xi1>
    %cst_61 = arith.constant 0.000000e+00 : f32
    %154 = vector.shape_cast %153 : vector<1x1x16x8xi1> to vector<1x1x16x8xi1>
    %155 = vector.broadcast %154 : vector<1x1x16x8xi1> to vector<2x16x16x8xi1>
    %156 = vector.broadcast %cst_61 : f32 to vector<2x16x16x8xf32>
    %157 = arith.select %155, %144, %156 : vector<2x16x16x8xi1>, vector<2x16x16x8xf32>
    %c1_i32_62 = arith.constant 1 : i32
    %158 = tpu.dynamic_rotate %123 by %c1_i32_62 dim 2 : vector<2x16x16x8xf32>, i32 -> vector<2x16x16x8xf32>
    %c-1_i32_63 = arith.constant -1 : i32
    %159 = vector.broadcast %c-1_i32_63 : i32 to vector<1x1x16x8xi32>
    %160 = arith.addi %129, %159 : vector<1x1x16x8xi32>
    %c0_i32_64 = arith.constant 0 : i32
    %161 = vector.broadcast %c0_i32_64 : i32 to vector<1x1x16x8xi32>
    %162 = arith.cmpi sge, %160, %161 : vector<1x1x16x8xi32>
    %c-1_i32_65 = arith.constant -1 : i32
    %163 = vector.broadcast %c-1_i32_65 : i32 to vector<1x1x16x8xi32>
    %164 = arith.addi %129, %163 : vector<1x1x16x8xi32>
    %c16_i32_66 = arith.constant 16 : i32
    %165 = vector.broadcast %c16_i32_66 : i32 to vector<1x1x16x8xi32>
    %166 = arith.cmpi slt, %164, %165 : vector<1x1x16x8xi32>
    %167 = arith.andi %162, %166 : vector<1x1x16x8xi1>
    %cst_67 = arith.constant 0.000000e+00 : f32
    %168 = vector.shape_cast %167 : vector<1x1x16x8xi1> to vector<1x1x16x8xi1>
    %169 = vector.broadcast %168 : vector<1x1x16x8xi1> to vector<2x16x16x8xi1>
    %170 = vector.broadcast %cst_67 : f32 to vector<2x16x16x8xf32>
    %171 = arith.select %169, %158, %170 : vector<2x16x16x8xi1>, vector<2x16x16x8xf32>
    %c15_i32_68 = arith.constant 15 : i32
    %172 = tpu.dynamic_rotate %123 by %c15_i32_68 dim 2 : vector<2x16x16x8xf32>, i32 -> vector<2x16x16x8xf32>
    %c1_i32_69 = arith.constant 1 : i32
    %173 = vector.broadcast %c1_i32_69 : i32 to vector<1x1x16x8xi32>
    %174 = arith.addi %129, %173 : vector<1x1x16x8xi32>
    %c0_i32_70 = arith.constant 0 : i32
    %175 = vector.broadcast %c0_i32_70 : i32 to vector<1x1x16x8xi32>
    %176 = arith.cmpi sge, %174, %175 : vector<1x1x16x8xi32>
    %c1_i32_71 = arith.constant 1 : i32
    %177 = vector.broadcast %c1_i32_71 : i32 to vector<1x1x16x8xi32>
    %178 = arith.addi %129, %177 : vector<1x1x16x8xi32>
    %c16_i32_72 = arith.constant 16 : i32
    %179 = vector.broadcast %c16_i32_72 : i32 to vector<1x1x16x8xi32>
    %180 = arith.cmpi slt, %178, %179 : vector<1x1x16x8xi32>
    %181 = arith.andi %176, %180 : vector<1x1x16x8xi1>
    %cst_73 = arith.constant 0.000000e+00 : f32
    %182 = vector.shape_cast %181 : vector<1x1x16x8xi1> to vector<1x1x16x8xi1>
    %183 = vector.broadcast %182 : vector<1x1x16x8xi1> to vector<2x16x16x8xi1>
    %184 = vector.broadcast %cst_73 : f32 to vector<2x16x16x8xf32>
    %185 = arith.select %183, %172, %184 : vector<2x16x16x8xi1>, vector<2x16x16x8xf32>
    %c1_i32_74 = arith.constant 1 : i32
    %186 = tpu.dynamic_rotate %128 by %c1_i32_74 dim 2 : vector<2x16x16x8xf32>, i32 -> vector<2x16x16x8xf32>
    %c-1_i32_75 = arith.constant -1 : i32
    %187 = vector.broadcast %c-1_i32_75 : i32 to vector<1x1x16x8xi32>
    %188 = arith.addi %129, %187 : vector<1x1x16x8xi32>
    %c0_i32_76 = arith.constant 0 : i32
    %189 = vector.broadcast %c0_i32_76 : i32 to vector<1x1x16x8xi32>
    %190 = arith.cmpi sge, %188, %189 : vector<1x1x16x8xi32>
    %c-1_i32_77 = arith.constant -1 : i32
    %191 = vector.broadcast %c-1_i32_77 : i32 to vector<1x1x16x8xi32>
    %192 = arith.addi %129, %191 : vector<1x1x16x8xi32>
    %c16_i32_78 = arith.constant 16 : i32
    %193 = vector.broadcast %c16_i32_78 : i32 to vector<1x1x16x8xi32>
    %194 = arith.cmpi slt, %192, %193 : vector<1x1x16x8xi32>
    %195 = arith.andi %190, %194 : vector<1x1x16x8xi1>
    %cst_79 = arith.constant 0.000000e+00 : f32
    %196 = vector.shape_cast %195 : vector<1x1x16x8xi1> to vector<1x1x16x8xi1>
    %197 = vector.broadcast %196 : vector<1x1x16x8xi1> to vector<2x16x16x8xi1>
    %198 = vector.broadcast %cst_79 : f32 to vector<2x16x16x8xf32>
    %199 = arith.select %197, %186, %198 : vector<2x16x16x8xi1>, vector<2x16x16x8xf32>
    %c15_i32_80 = arith.constant 15 : i32
    %200 = tpu.dynamic_rotate %128 by %c15_i32_80 dim 2 : vector<2x16x16x8xf32>, i32 -> vector<2x16x16x8xf32>
    %c1_i32_81 = arith.constant 1 : i32
    %201 = vector.broadcast %c1_i32_81 : i32 to vector<1x1x16x8xi32>
    %202 = arith.addi %129, %201 : vector<1x1x16x8xi32>
    %c0_i32_82 = arith.constant 0 : i32
    %203 = vector.broadcast %c0_i32_82 : i32 to vector<1x1x16x8xi32>
    %204 = arith.cmpi sge, %202, %203 : vector<1x1x16x8xi32>
    %c1_i32_83 = arith.constant 1 : i32
    %205 = vector.broadcast %c1_i32_83 : i32 to vector<1x1x16x8xi32>
    %206 = arith.addi %129, %205 : vector<1x1x16x8xi32>
    %c16_i32_84 = arith.constant 16 : i32
    %207 = vector.broadcast %c16_i32_84 : i32 to vector<1x1x16x8xi32>
    %208 = arith.cmpi slt, %206, %207 : vector<1x1x16x8xi32>
    %209 = arith.andi %204, %208 : vector<1x1x16x8xi1>
    %cst_85 = arith.constant 0.000000e+00 : f32
    %210 = vector.shape_cast %209 : vector<1x1x16x8xi1> to vector<1x1x16x8xi1>
    %211 = vector.broadcast %210 : vector<1x1x16x8xi1> to vector<2x16x16x8xi1>
    %212 = vector.broadcast %cst_85 : f32 to vector<2x16x16x8xf32>
    %213 = arith.select %211, %200, %212 : vector<2x16x16x8xi1>, vector<2x16x16x8xf32>
    %214 = tpu.concatenate %143, %126, %157, %171, %123, %185, %199, %128, %213 in 3 : vector<2x16x16x8xf32>, vector<2x16x16x8xf32>, vector<2x16x16x8xf32>, vector<2x16x16x8xf32>, vector<2x16x16x8xf32>, vector<2x16x16x8xf32>, vector<2x16x16x8xf32>, vector<2x16x16x8xf32>, vector<2x16x16x8xf32> -> vector<2x16x16x72xf32>
    %215 = vector.shape_cast %214 : vector<2x16x16x72xf32> to vector<512x72xf32>
    %c0_86 = arith.constant 0 : index
    %c0_87 = arith.constant 0 : index
    %216 = vector.load %arg5[%c0_86, %c0_87] : memref<72x8xf32, #tpu.memory_space<vmem>>, vector<72x8xf32>
    %cst_88 = arith.constant dense<0.000000e+00> : vector<512x8xf32>
    %217 = tpu.matmul %215, %216, %cst_88 {dimension_numbers = #tpu.dot_dimension_numbers<[1], [0], [0], [1], [0, 0, 1, 1], [], []>} : vector<512x72xf32>, vector<72x8xf32>, vector<512x8xf32> -> vector<512x8xf32>
    %c0_89 = arith.constant 0 : index
    %c0_90 = arith.constant 0 : index
    %218 = vector.load %arg6[%c0_89, %c0_90] : memref<1x8xf32, #tpu.memory_space<vmem>>, vector<1x8xf32>
    %219 = vector.broadcast %218 : vector<1x8xf32> to vector<512x8xf32>
    %220 = arith.addf %217, %219 : vector<512x8xf32>
    %cst_91 = arith.constant dense<0.000000e+00> : vector<8xf32>
    %221 = vector.multi_reduction <add>, %220, %cst_91 [0] : vector<512x8xf32> to vector<8xf32>
    %222 = vector.shape_cast %221 : vector<8xf32> to vector<1x8xf32>
    %223 = arith.mulf %220, %220 : vector<512x8xf32>
    %cst_92 = arith.constant dense<0.000000e+00> : vector<8xf32>
    %224 = vector.multi_reduction <add>, %223, %cst_92 [0] : vector<512x8xf32> to vector<8xf32>
    %225 = vector.shape_cast %224 : vector<8xf32> to vector<1x8xf32>
    %cst_93 = arith.constant 0.001953125 : f32
    %226 = vector.broadcast %cst_93 : f32 to vector<1x8xf32>
    %227 = arith.mulf %222, %226 : vector<1x8xf32>
    %cst_94 = arith.constant 0.001953125 : f32
    %228 = vector.broadcast %cst_94 : f32 to vector<1x8xf32>
    %229 = arith.mulf %225, %228 : vector<1x8xf32>
    %230 = arith.mulf %227, %227 : vector<1x8xf32>
    %231 = arith.subf %229, %230 : vector<1x8xf32>
    %cst_95 = arith.constant 9.99999974E-6 : f32
    %232 = vector.broadcast %cst_95 : f32 to vector<1x8xf32>
    %233 = arith.addf %231, %232 : vector<1x8xf32>
    %234 = math.rsqrt %233 : vector<1x8xf32>
    %235 = vector.broadcast %227 : vector<1x8xf32> to vector<512x8xf32>
    %236 = arith.subf %220, %235 : vector<512x8xf32>
    %c0_96 = arith.constant 0 : index
    %c0_97 = arith.constant 0 : index
    %237 = vector.load %arg7[%c0_96, %c0_97] : memref<1x8xf32, #tpu.memory_space<vmem>>, vector<1x8xf32>
    %238 = arith.mulf %234, %237 : vector<1x8xf32>
    %239 = vector.broadcast %238 : vector<1x8xf32> to vector<512x8xf32>
    %240 = arith.mulf %236, %239 : vector<512x8xf32>
    %c0_98 = arith.constant 0 : index
    %c0_99 = arith.constant 0 : index
    %241 = vector.load %arg8[%c0_98, %c0_99] : memref<1x8xf32, #tpu.memory_space<vmem>>, vector<1x8xf32>
    %242 = vector.broadcast %241 : vector<1x8xf32> to vector<512x8xf32>
    %243 = arith.addf %240, %242 : vector<512x8xf32>
    %cst_100 = arith.constant 0.000000e+00 : f32
    %244 = vector.broadcast %cst_100 : f32 to vector<512x8xf32>
    %245 = arith.maximumf %243, %244 : vector<512x8xf32>
    %246 = vector.shape_cast %245 : vector<512x8xf32> to vector<2x16x16x8xf32>
    %c0_101 = arith.constant 0 : index
    %c0_102 = arith.constant 0 : index
    %c0_103 = arith.constant 0 : index
    %c0_104 = arith.constant 0 : index
    %247 = vector.load %arg9[%c0_101, %c0_102, %c0_103, %c0_104] : memref<2x16x16x8xf32, #tpu.memory_space<vmem>>, vector<2x16x16x8xf32>
    tpu.vector_store %arg9[%c0_101, %c0_102, %c0_103, %c0_104], %246 {strides = array<i32>} : memref<2x16x16x8xf32, #tpu.memory_space<vmem>>, vector<2x16x16x8xf32>,
    return
  }
}

</mosaic_0001>

<llo_original>
// kernel: tpu_custom_call.1
$region0: #{tpu_custom_call.1}
  #allocation0 [shape = 'u32[]', space=smem, size = 0x4, offset = 0x4, fixed_abs, tag = 'smem constant byte address 0x4 - core index']
  #allocation1 [shape = 'u32[144,128]{1,0:T(1,128)}', space=vmem, size = 0x12000, scoped, tag = 'internal scratch']
  %s0 = inlined_call_operand.hbm [shape: f32[2,16,16,4], index: 0, kind: input, shape index: {}]
  %s1 = inlined_call_operand.hbm [shape: f32[36,8], index: 1, kind: input, shape index: {}]
  %s2 = inlined_call_operand.hbm [shape: f32[1,8], index: 2, kind: input, shape index: {}]
  %s3 = inlined_call_operand.hbm [shape: f32[1,8], index: 3, kind: input, shape index: {}]
  %s4 = inlined_call_operand.hbm [shape: f32[1,8], index: 4, kind: input, shape index: {}]
  %s5 = inlined_call_operand.hbm [shape: f32[72,8], index: 5, kind: input, shape index: {}]
  %s6 = inlined_call_operand.hbm [shape: f32[1,8], index: 6, kind: input, shape index: {}]
  %s7 = inlined_call_operand.hbm [shape: f32[1,8], index: 7, kind: input, shape index: {}]
  %s8 = inlined_call_operand.hbm [shape: f32[1,8], index: 8, kind: input, shape index: {}]
  %s9 = inlined_call_operand.hbm [shape: f32[2,16,16,8], index: 9, kind: output, shape index: {}]
  %s10 = sld [smem:[#allocation0]]
  $region82: #{tpu_custom_call.1} parent=0
    _
  %s12 = ssub.s32 1, %s10
  %s13 = scalar_select 0, %s12, %s10
  $region1: #{tpu_custom_call.1} parent=0
    #allocation2 [shape = 'u8[262144]{0}', space=vmem, size = 0x40000, scoped, tag = 'input window, operand 0, single buffered']
    #allocation3 [shape = 's32[1]{0}', space=sflag, size = 0x4, scoped, tag = 'scoped memory for tpu_custom_call.1']
    #allocation4 [shape = 's32[1]{0}', space=sflag, size = 0x4, scoped, tag = 'scoped memory for tpu_custom_call.1']
    #allocation5 [shape = 'u8[20480]{0}', space=vmem, size = 0x5000, scoped, tag = 'input window, operand 1, single buffered']
    #allocation6 [shape = 's32[1]{0}', space=sflag, size = 0x4, scoped, tag = 'scoped memory for tpu_custom_call.1']
    #allocation7 [shape = 'u8[512]{0}', space=vmem, size = 0x400, scoped, tag = 'input window, operand 2, single buffered']
    #allocation8 [shape = 'u8[512]{0}', space=vmem, size = 0x400, scoped, tag = 'input window, operand 3, single buffered']
    #allocation9 [shape = 's32[1]{0}', space=sflag, size = 0x4, scoped, tag = 'scoped memory for tpu_custom_call.1']
    #allocation10 [shape = 'u8[512]{0}', space=vmem, size = 0x400, scoped, tag = 'input window, operand 4, single buffered']
    #allocation11 [shape = 'u8[36864]{0}', space=vmem, size = 0x9000, scoped, tag = 'input window, operand 5, single buffered']
    #allocation12 [shape = 's32[1]{0}', space=sflag, size = 0x4, scoped, tag = 'scoped memory for tpu_custom_call.1']
    #allocation13 [shape = 'u8[512]{0}', space=vmem, size = 0x400, scoped, tag = 'input window, operand 6, single buffered']
    #allocation14 [shape = 'u8[512]{0}', space=vmem, size = 0x400, scoped, tag = 'input window, operand 7, single buffered']
    #allocation15 [shape = 's32[1]{0}', space=sflag, size = 0x4, scoped, tag = 'scoped memory for tpu_custom_call.1']
    #allocation16 [shape = 'u8[512]{0}', space=vmem, size = 0x400, scoped, tag = 'input window, operand 8, single buffered']
    #allocation17 [shape = 'u8[262144]{0}', space=vmem, size = 0x40000, scoped, tag = 'output window, operand 0, single buffered']
    %14 = vsyncpa [#allocation3], 0
    %15 = vsyncpa [#allocation6], 0
    %16 = vsyncpa [#allocation9], 0
    %17 = vsyncpa [#allocation12], 0
    %18 = vsyncpa [#allocation15], 0
    %19 = vsyncpa [#allocation4], 0
    // Predicated region
    $region2: #{tpu_custom_call.1} parent=1 // pred_check
      _
    $region3: #{tpu_custom_call.1} parent=1 // pred_check_branch
      %21 = sbr.rel (0) target = $region5
    $region4: #{tpu_custom_call.1} parent=1 // pred_region
      %s23 = ssub.s32 8192, 8192
      %24 = vsyncadd [#allocation3], %s23
      %s25 = sshll.u32 [#allocation2], 4
      %s26 = int_to_ptr.vmem [resolvable:$true] %s25
      %31 = dma.hbm_to_vmem [thread:$0]  %s0, 8192, %s26, [#allocation3], 128, 128, 8
    $region5: #{tpu_custom_call.1} parent=1 // pred_fallthru
      _
    // Predicated region
    $region6: #{tpu_custom_call.1} parent=1 // pred_check
      _
    $region7: #{tpu_custom_call.1} parent=1 // pred_check_branch
      %33 = sbr.rel (0) target = $region9
    $region8: #{tpu_custom_call.1} parent=1 // pred_region
      %s35 = ssub.s32 640, 640
      %36 = vsyncadd [#allocation6], %s35
      %s37 = sshll.u32 [#allocation5], 4
      %s38 = int_to_ptr.vmem [resolvable:$true] %s37
      %43 = dma.hbm_to_vmem [thread:$0]  %s1, 640, %s38, [#allocation6], 128, 128, 8
    $region9: #{tpu_custom_call.1} parent=1 // pred_fallthru
      _
    // Predicated region
    $region10: #{tpu_custom_call.1} parent=1 // pred_check
      _
    $region11: #{tpu_custom_call.1} parent=1 // pred_check_branch
      %45 = sbr.rel (0) target = $region13
    $region12: #{tpu_custom_call.1} parent=1 // pred_region
      %s47 = ssub.s32 16, 16
      %48 = vsyncadd [#allocation6], %s47
      %s50 = sshll.u32 [#allocation7], 4
      %s51 = int_to_ptr.vmem [resolvable:$true] %s50
      %53 = dma.hbm_to_vmem [thread:$0]  %s2, 16, %s51, [#allocation6]
    $region13: #{tpu_custom_call.1} parent=1 // pred_fallthru
      _
    // Predicated region
    $region14: #{tpu_custom_call.1} parent=1 // pred_check
      _
    $region15: #{tpu_custom_call.1} parent=1 // pred_check_branch
      %55 = sbr.rel (0) target = $region17
    $region16: #{tpu_custom_call.1} parent=1 // pred_region
      %s57 = ssub.s32 16, 16
      %58 = vsyncadd [#allocation9], %s57
      %s60 = sshll.u32 [#allocation8], 4
      %s61 = int_to_ptr.vmem [resolvable:$true] %s60
      %63 = dma.hbm_to_vmem [thread:$0]  %s3, 16, %s61, [#allocation9]
    $region17: #{tpu_custom_call.1} parent=1 // pred_fallthru
      _
    // Predicated region
    $region18: #{tpu_custom_call.1} parent=1 // pred_check
      _
    $region19: #{tpu_custom_call.1} parent=1 // pred_check_branch
      %65 = sbr.rel (0) target = $region21
    $region20: #{tpu_custom_call.1} parent=1 // pred_region
      %s67 = ssub.s32 16, 16
      %68 = vsyncadd [#allocation9], %s67
      %s70 = sshll.u32 [#allocation10], 4
      %s71 = int_to_ptr.vmem [resolvable:$true] %s70
      %73 = dma.hbm_to_vmem [thread:$0]  %s4, 16, %s71, [#allocation9]
    $region21: #{tpu_custom_call.1} parent=1 // pred_fallthru
      _
    // Predicated region
    $region22: #{tpu_custom_call.1} parent=1 // pred_check
      _
    $region23: #{tpu_custom_call.1} parent=1 // pred_check_branch
      %75 = sbr.rel (0) target = $region25
    $region24: #{tpu_custom_call.1} parent=1 // pred_region
      %s77 = ssub.s32 1152, 1152
      %78 = vsyncadd [#allocation12], %s77
      %s79 = sshll.u32 [#allocation11], 4
      %s80 = int_to_ptr.vmem [resolvable:$true] %s79
      %85 = dma.hbm_to_vmem [thread:$0]  %s5, 1152, %s80, [#allocation12], 128, 128, 8
    $region25: #{tpu_custom_call.1} parent=1 // pred_fallthru
      _
    // Predicated region
    $region26: #{tpu_custom_call.1} parent=1 // pred_check
      _
    $region27: #{tpu_custom_call.1} parent=1 // pred_check_branch
      %87 = sbr.rel (0) target = $region29
    $region28: #{tpu_custom_call.1} parent=1 // pred_region
      %s89 = ssub.s32 16, 16
      %90 = vsyncadd [#allocation12], %s89
      %s92 = sshll.u32 [#allocation13], 4
      %s93 = int_to_ptr.vmem [resolvable:$true] %s92
      %95 = dma.hbm_to_vmem [thread:$0]  %s6, 16, %s93, [#allocation12]
    $region29: #{tpu_custom_call.1} parent=1 // pred_fallthru
      _
    // Predicated region
    $region30: #{tpu_custom_call.1} parent=1 // pred_check
      _
    $region31: #{tpu_custom_call.1} parent=1 // pred_check_branch
      %97 = sbr.rel (0) target = $region33
    $region32: #{tpu_custom_call.1} parent=1 // pred_region
      %s99 = ssub.s32 16, 16
      %100 = vsyncadd [#allocation15], %s99
      %s102 = sshll.u32 [#allocation14], 4
      %s103 = int_to_ptr.vmem [resolvable:$true] %s102
      %105 = dma.hbm_to_vmem [thread:$0]  %s7, 16, %s103, [#allocation15]
    $region33: #{tpu_custom_call.1} parent=1 // pred_fallthru
      _
    // Predicated region
    $region34: #{tpu_custom_call.1} parent=1 // pred_check
      _
    $region35: #{tpu_custom_call.1} parent=1 // pred_check_branch
      %107 = sbr.rel (0) target = $region37
    $region36: #{tpu_custom_call.1} parent=1 // pred_region
      %s109 = ssub.s32 16, 16
      %110 = vsyncadd [#allocation15], %s109
      %s112 = sshll.u32 [#allocation16], 4
      %s113 = int_to_ptr.vmem [resolvable:$true] %s112
      %115 = dma.hbm_to_vmem [thread:$0]  %s8, 16, %s113, [#allocation15]
    $region37: #{tpu_custom_call.1} parent=1 // pred_fallthru
      _
    // Predicated region
    $region38: #{tpu_custom_call.1} parent=1 // pred_check
      _
    $region39: #{tpu_custom_call.1} parent=1 // pred_check_branch
      %117 = sbr.rel (0) target = $region41
    $region40: #{tpu_custom_call.1} parent=1 // pred_region
      %118 = dma.done [#allocation3], 8192
    $region41: #{tpu_custom_call.1} parent=1 // pred_fallthru
      _
    // Predicated region
    $region42: #{tpu_custom_call.1} parent=1 // pred_check
      _
    $region43: #{tpu_custom_call.1} parent=1 // pred_check_branch
      %120 = sbr.rel (0) target = $region45
    $region44: #{tpu_custom_call.1} parent=1 // pred_region
      %121 = dma.done [#allocation6], 640
    $region45: #{tpu_custom_call.1} parent=1 // pred_fallthru
      _
    // Predicated region
    $region46: #{tpu_custom_call.1} parent=1 // pred_check
      _
    $region47: #{tpu_custom_call.1} parent=1 // pred_check_branch
      %123 = sbr.rel (0) target = $region49
    $region48: #{tpu_custom_call.1} parent=1 // pred_region
      %124 = dma.done [#allocation6], 16
    $region49: #{tpu_custom_call.1} parent=1 // pred_fallthru
      _
    // Predicated region
    $region50: #{tpu_custom_call.1} parent=1 // pred_check
      _
    $region51: #{tpu_custom_call.1} parent=1 // pred_check_branch
      %126 = sbr.rel (0) target = $region53
    $region52: #{tpu_custom_call.1} parent=1 // pred_region
      %127 = dma.done [#allocation9], 16
    $region53: #{tpu_custom_call.1} parent=1 // pred_fallthru
      _
    // Predicated region
    $region54: #{tpu_custom_call.1} parent=1 // pred_check
      _
    $region55: #{tpu_custom_call.1} parent=1 // pred_check_branch
      %129 = sbr.rel (0) target = $region57
    $region56: #{tpu_custom_call.1} parent=1 // pred_region
      %130 = dma.done [#allocation9], 16
    $region57: #{tpu_custom_call.1} parent=1 // pred_fallthru
      _
    // Predicated region
    $region58: #{tpu_custom_call.1} parent=1 // pred_check
      _
    $region59: #{tpu_custom_call.1} parent=1 // pred_check_branch
      %132 = sbr.rel (0) target = $region61
    $region60: #{tpu_custom_call.1} parent=1 // pred_region
      %133 = dma.done [#allocation12], 1152
    $region61: #{tpu_custom_call.1} parent=1 // pred_fallthru
      _
    // Predicated region
    $region62: #{tpu_custom_call.1} parent=1 // pred_check
      _
    $region63: #{tpu_custom_call.1} parent=1 // pred_check_branch
      %135 = sbr.rel (0) target = $region65
    $region64: #{tpu_custom_call.1} parent=1 // pred_region
      %136 = dma.done [#allocation12], 16
    $region65: #{tpu_custom_call.1} parent=1 // pred_fallthru
      _
    // Predicated region
    $region66: #{tpu_custom_call.1} parent=1 // pred_check
      _
    $region67: #{tpu_custom_call.1} parent=1 // pred_check_branch
      %138 = sbr.rel (0) target = $region69
    $region68: #{tpu_custom_call.1} parent=1 // pred_region
      %139 = dma.done [#allocation15], 16
    $region69: #{tpu_custom_call.1} parent=1 // pred_fallthru
      _
    // Predicated region
    $region70: #{tpu_custom_call.1} parent=1 // pred_check
      _
    $region71: #{tpu_custom_call.1} parent=1 // pred_check_branch
      %141 = sbr.rel (0) target = $region73
    $region72: #{tpu_custom_call.1} parent=1 // pred_region
      %142 = dma.done [#allocation15], 16
    $region73: #{tpu_custom_call.1} parent=1 // pred_fallthru
      _
    %v143 = vld [vmem:[#allocation2] sm:$0xff]
    %v144 = vld [vmem:[#allocation2 + $0x8] sm:$0xff]
    %v145 = vld [vmem:[#allocation2 + $0x10] sm:$0xff]
    %v146 = vld [vmem:[#allocation2 + $0x18] sm:$0xff]
    %v147 = vld [vmem:[#allocation2 + $0x20] sm:$0xff]
    %v148 = vld [vmem:[#allocation2 + $0x28] sm:$0xff]
    %v149 = vld [vmem:[#allocation2 + $0x30] sm:$0xff]
    %v150 = vld [vmem:[#allocation2 + $0x38] sm:$0xff]
    %v151 = vld [vmem:[#allocation2 + $0x40] sm:$0xff]
    %v152 = vld [vmem:[#allocation2 + $0x48] sm:$0xff]
    %v153 = vld [vmem:[#allocation2 + $0x50] sm:$0xff]
    %v154 = vld [vmem:[#allocation2 + $0x58] sm:$0xff]
    %v155 = vld [vmem:[#allocation2 + $0x60] sm:$0xff]
    %v156 = vld [vmem:[#allocation2 + $0x68] sm:$0xff]
    %v157 = vld [vmem:[#allocation2 + $0x70] sm:$0xff]
    %v158 = vld [vmem:[#allocation2 + $0x78] sm:$0xff]
    %v159 = vld [vmem:[#allocation2 + $0x80] sm:$0xff]
    %v160 = vld [vmem:[#allocation2 + $0x88] sm:$0xff]
    %v161 = vld [vmem:[#allocation2 + $0x90] sm:$0xff]
    %v162 = vld [vmem:[#allocation2 + $0x98] sm:$0xff]
    %v163 = vld [vmem:[#allocation2 + $0xa0] sm:$0xff]
    %v164 = vld [vmem:[#allocation2 + $0xa8] sm:$0xff]
    %v165 = vld [vmem:[#allocation2 + $0xb0] sm:$0xff]
    %v166 = vld [vmem:[#allocation2 + $0xb8] sm:$0xff]
    %v167 = vld [vmem:[#allocation2 + $0xc0] sm:$0xff]
    %v168 = vld [vmem:[#allocation2 + $0xc8] sm:$0xff]
    %v169 = vld [vmem:[#allocation2 + $0xd0] sm:$0xff]
    %v170 = vld [vmem:[#allocation2 + $0xd8] sm:$0xff]
    %v171 = vld [vmem:[#allocation2 + $0xe0] sm:$0xff]
    %v172 = vld [vmem:[#allocation2 + $0xe8] sm:$0xff]
    %v173 = vld [vmem:[#allocation2 + $0xf0] sm:$0xff]
    %v174 = vld [vmem:[#allocation2 + $0xf8] sm:$0xff]
    %v175 = vld [vmem:[#allocation2 + $0x100] sm:$0xff]
    %v176 = vld [vmem:[#allocation2 + $0x108] sm:$0xff]
    %v177 = vld [vmem:[#allocation2 + $0x110] sm:$0xff]
    %v178 = vld [vmem:[#allocation2 + $0x118] sm:$0xff]
    %v179 = vld [vmem:[#allocation2 + $0x120] sm:$0xff]
    %v180 = vld [vmem:[#allocation2 + $0x128] sm:$0xff]
    %v181 = vld [vmem:[#allocation2 + $0x130] sm:$0xff]
    %v182 = vld [vmem:[#allocation2 + $0x138] sm:$0xff]
    %v183 = vld [vmem:[#allocation2 + $0x140] sm:$0xff]
    %v184 = vld [vmem:[#allocation2 + $0x148] sm:$0xff]
    %v185 = vld [vmem:[#allocation2 + $0x150] sm:$0xff]
    %v186 = vld [vmem:[#allocation2 + $0x158] sm:$0xff]
    %v187 = vld [vmem:[#allocation2 + $0x160] sm:$0xff]
    %v188 = vld [vmem:[#allocation2 + $0x168] sm:$0xff]
    %v189 = vld [vmem:[#allocation2 + $0x170] sm:$0xff]
    %v190 = vld [vmem:[#allocation2 + $0x178] sm:$0xff]
    %v191 = vld [vmem:[#allocation2 + $0x180] sm:$0xff]
    %v192 = vld [vmem:[#allocation2 + $0x188] sm:$0xff]
    %v193 = vld [vmem:[#allocation2 + $0x190] sm:$0xff]
    %v194 = vld [vmem:[#allocation2 + $0x198] sm:$0xff]
    %v195 = vld [vmem:[#allocation2 + $0x1a0] sm:$0xff]
    %v196 = vld [vmem:[#allocation2 + $0x1a8] sm:$0xff]
    %v197 = vld [vmem:[#allocation2 + $0x1b0] sm:$0xff]
    %v198 = vld [vmem:[#allocation2 + $0x1b8] sm:$0xff]
    %v199 = vld [vmem:[#allocation2 + $0x1c0] sm:$0xff]
    %v200 = vld [vmem:[#allocation2 + $0x1c8] sm:$0xff]
    %v201 = vld [vmem:[#allocation2 + $0x1d0] sm:$0xff]
    %v202 = vld [vmem:[#allocation2 + $0x1d8] sm:$0xff]
    %v203 = vld [vmem:[#allocation2 + $0x1e0] sm:$0xff]
    %v204 = vld [vmem:[#allocation2 + $0x1e8] sm:$0xff]
    %v205 = vld [vmem:[#allocation2 + $0x1f0] sm:$0xff]
    %v206 = vld [vmem:[#allocation2 + $0x1f8] sm:$0xff]
    %v207 = vlaneseq
    %v208 = vshrl.u32 %v207, 7
    %v209 = vadd.s32 %v208, 8
    %v210 = vrot.slane %v143, 7
    %v211 = vrot.slane %v145, 7
    %v212 = vrot.slane %v147, 7
    %v213 = vrot.slane %v149, 7
    %v214 = vrot.slane %v151, 7
    %v215 = vrot.slane %v153, 7
    %v216 = vrot.slane %v155, 7
    %v217 = vrot.slane %v157, 7
    %v218 = vrot.slane %v159, 7
    %v219 = vrot.slane %v161, 7
    %v220 = vrot.slane %v163, 7
    %v221 = vrot.slane %v165, 7
    %v222 = vrot.slane %v167, 7
    %v223 = vrot.slane %v169, 7
    %v224 = vrot.slane %v171, 7
    %v225 = vrot.slane %v175, 7
    %v226 = vrot.slane %v177, 7
    %v227 = vrot.slane %v179, 7
    %v228 = vrot.slane %v181, 7
    %v229 = vrot.slane %v183, 7
    %v230 = vrot.slane %v185, 7
    %v231 = vrot.slane %v187, 7
    %v232 = vrot.slane %v189, 7
    %v233 = vrot.slane %v191, 7
    %v234 = vrot.slane %v193, 7
    %v235 = vrot.slane %v195, 7
    %v236 = vrot.slane %v197, 7
    %v237 = vrot.slane %v199, 7
    %v238 = vrot.slane %v201, 7
    %v239 = vrot.slane %v203, 7
    %v240 = vrot.slane %v144, 7
    %v241 = vrot.slane %v146, 7
    %v242 = vrot.slane %v148, 7
    %v243 = vrot.slane %v150, 7
    %v244 = vrot.slane %v152, 7
    %v245 = vrot.slane %v154, 7
    %v246 = vrot.slane %v156, 7
    %v247 = vrot.slane %v158, 7
    %v248 = vrot.slane %v160, 7
    %v249 = vrot.slane %v162, 7
    %v250 = vrot.slane %v164, 7
    %v251 = vrot.slane %v166, 7
    %v252 = vrot.slane %v168, 7
    %v253 = vrot.slane %v170, 7
    %v254 = vrot.slane %v172, 7
    %v255 = vrot.slane %v176, 7
    %v256 = vrot.slane %v178, 7
    %v257 = vrot.slane %v180, 7
    %v258 = vrot.slane %v182, 7
    %v259 = vrot.slane %v184, 7
    %v260 = vrot.slane %v186, 7
    %v261 = vrot.slane %v188, 7
    %v262 = vrot.slane %v190, 7
    %v263 = vrot.slane %v192, 7
    %v264 = vrot.slane %v194, 7
    %v265 = vrot.slane %v196, 7
    %v266 = vrot.slane %v198, 7
    %v267 = vrot.slane %v200, 7
    %v268 = vrot.slane %v202, 7
    %v269 = vrot.slane %v204, 7
    %vm270 = vcmp.lt.s32.totalorder %v208, 1
    %v271 = vsel %vm270, %v210, %v240
    %v272 = vsel %vm270, %v211, %v241
    %v273 = vsel %vm270, %v212, %v242
    %v274 = vsel %vm270, %v213, %v243
    %v275 = vsel %vm270, %v214, %v244
    %v276 = vsel %vm270, %v215, %v245
    %v277 = vsel %vm270, %v216, %v246
    %v278 = vsel %vm270, %v217, %v247
    %v279 = vsel %vm270, %v218, %v248
    %v280 = vsel %vm270, %v219, %v249
    %v281 = vsel %vm270, %v220, %v250
    %v282 = vsel %vm270, %v221, %v251
    %v283 = vsel %vm270, %v222, %v252
    %v284 = vsel %vm270, %v223, %v253
    %v285 = vsel %vm270, %v224, %v254
    %v286 = vsel %vm270, %v225, %v255
    %v287 = vsel %vm270, %v226, %v256
    %v288 = vsel %vm270, %v227, %v257
    %v289 = vsel %vm270, %v228, %v258
    %v290 = vsel %vm270, %v229, %v259
    %v291 = vsel %vm270, %v230, %v260
    %v292 = vsel %vm270, %v231, %v261
    %v293 = vsel %vm270, %v232, %v262
    %v294 = vsel %vm270, %v233, %v263
    %v295 = vsel %vm270, %v234, %v264
    %v296 = vsel %vm270, %v235, %v265
    %v297 = vsel %vm270, %v236, %v266
    %v298 = vsel %vm270, %v237, %v267
    %v299 = vsel %vm270, %v238, %v268
    %v300 = vsel %vm270, %v239, %v269
    %v301 = vsel %vm270, %v240, %v210
    %v302 = vsel %vm270, %v241, %v211
    %v303 = vsel %vm270, %v242, %v212
    %v304 = vsel %vm270, %v243, %v213
    %v305 = vsel %vm270, %v244, %v214
    %v306 = vsel %vm270, %v245, %v215
    %v307 = vsel %vm270, %v246, %v216
    %v308 = vsel %vm270, %v247, %v217
    %v309 = vsel %vm270, %v248, %v218
    %v310 = vsel %vm270, %v249, %v219
    %v311 = vsel %vm270, %v250, %v220
    %v312 = vsel %vm270, %v251, %v221
    %v313 = vsel %vm270, %v252, %v222
    %v314 = vsel %vm270, %v253, %v223
    %v315 = vsel %vm270, %v254, %v224
    %v316 = vsel %vm270, %v255, %v225
    %v317 = vsel %vm270, %v256, %v226
    %v318 = vsel %vm270, %v257, %v227
    %v319 = vsel %vm270, %v258, %v228
    %v320 = vsel %vm270, %v259, %v229
    %v321 = vsel %vm270, %v260, %v230
    %v322 = vsel %vm270, %v261, %v231
    %v323 = vsel %vm270, %v262, %v232
    %v324 = vsel %vm270, %v263, %v233
    %v325 = vsel %vm270, %v264, %v234
    %v326 = vsel %vm270, %v265, %v235
    %v327 = vsel %vm270, %v266, %v236
    %v328 = vsel %vm270, %v267, %v237
    %v329 = vsel %vm270, %v268, %v238
    %v330 = vsel %vm270, %v269, %v239
    %v331 = vadd.s32 %v208, 4294967295
    %v332 = vadd.s32 %v209, 4294967295
    %vm333 = vcmp.ge.s32.totalorder %v331, 0
    %vm334 = vcmp.ge.s32.totalorder %v332, 0
    %vm335 = vcmp.lt.s32.totalorder %v331, 16
    %vm336 = vcmp.lt.s32.totalorder %v332, 16
    %vm337 = vmand %vm333, %vm335
    %vm338 = vmand %vm334, %vm336
    %v339 = vsel %vm337, 1, 0
    %v340 = vsel %vm338, 1, 0
    %vm341 = vcmp.eq.s32.totalorder %v339, 1
    %vm342 = vcmp.eq.s32.totalorder %v340, 1
    %v343 = vsel %vm341, 0.0, 0.0
    %v344 = vsel %vm342, 0.0, 0.0
    %v345 = vsel %vm341, %v301, 0.0
    %v346 = vsel %vm342, %v271, 0.0
    %v347 = vsel %vm341, %v302, 0.0
    %v348 = vsel %vm342, %v272, 0.0
    %v349 = vsel %vm341, %v303, 0.0
    %v350 = vsel %vm342, %v273, 0.0
    %v351 = vsel %vm341, %v304, 0.0
    %v352 = vsel %vm342, %v274, 0.0
    %v353 = vsel %vm341, %v305, 0.0
    %v354 = vsel %vm342, %v275, 0.0
    %v355 = vsel %vm341, %v306, 0.0
    %v356 = vsel %vm342, %v276, 0.0
    %v357 = vsel %vm341, %v307, 0.0
    %v358 = vsel %vm342, %v277, 0.0
    %v359 = vsel %vm341, %v308, 0.0
    %v360 = vsel %vm342, %v278, 0.0
    %v361 = vsel %vm341, %v309, 0.0
    %v362 = vsel %vm342, %v279, 0.0
    %v363 = vsel %vm341, %v310, 0.0
    %v364 = vsel %vm342, %v280, 0.0
    %v365 = vsel %vm341, %v311, 0.0
    %v366 = vsel %vm342, %v281, 0.0
    %v367 = vsel %vm341, %v312, 0.0
    %v368 = vsel %vm342, %v282, 0.0
    %v369 = vsel %vm341, %v313, 0.0
    %v370 = vsel %vm342, %v283, 0.0
    %v371 = vsel %vm341, %v314, 0.0
    %v372 = vsel %vm342, %v284, 0.0
    %v373 = vsel %vm341, %v315, 0.0
    %v374 = vsel %vm342, %v285, 0.0
    %v375 = vsel %vm341, %v316, 0.0
    %v376 = vsel %vm342, %v286, 0.0
    %v377 = vsel %vm341, %v317, 0.0
    %v378 = vsel %vm342, %v287, 0.0
    %v379 = vsel %vm341, %v318, 0.0
    %v380 = vsel %vm342, %v288, 0.0
    %v381 = vsel %vm341, %v319, 0.0
    %v382 = vsel %vm342, %v289, 0.0
    %v383 = vsel %vm341, %v320, 0.0
    %v384 = vsel %vm342, %v290, 0.0
    %v385 = vsel %vm341, %v321, 0.0
    %v386 = vsel %vm342, %v291, 0.0
    %v387 = vsel %vm341, %v322, 0.0
    %v388 = vsel %vm342, %v292, 0.0
    %v389 = vsel %vm341, %v323, 0.0
    %v390 = vsel %vm342, %v293, 0.0
    %v391 = vsel %vm341, %v324, 0.0
    %v392 = vsel %vm342, %v294, 0.0
    %v393 = vsel %vm341, %v325, 0.0
    %v394 = vsel %vm342, %v295, 0.0
    %v395 = vsel %vm341, %v326, 0.0
    %v396 = vsel %vm342, %v296, 0.0
    %v397 = vsel %vm341, %v327, 0.0
    %v398 = vsel %vm342, %v297, 0.0
    %v399 = vsel %vm341, %v328, 0.0
    %v400 = vsel %vm342, %v298, 0.0
    %v401 = vsel %vm341, %v329, 0.0
    %v402 = vsel %vm342, %v299, 0.0
    %v403 = vsel %vm341, %v330, 0.0
    %v404 = vsel %vm342, %v300, 0.0
    %v405 = vrot.slane %v143, 1
    %v406 = vrot.slane %v145, 1
    %v407 = vrot.slane %v147, 1
    %v408 = vrot.slane %v149, 1
    %v409 = vrot.slane %v151, 1
    %v410 = vrot.slane %v153, 1
    %v411 = vrot.slane %v155, 1
    %v412 = vrot.slane %v157, 1
    %v413 = vrot.slane %v159, 1
    %v414 = vrot.slane %v161, 1
    %v415 = vrot.slane %v163, 1
    %v416 = vrot.slane %v165, 1
    %v417 = vrot.slane %v167, 1
    %v418 = vrot.slane %v169, 1
    %v419 = vrot.slane %v171, 1
    %v420 = vrot.slane %v175, 1
    %v421 = vrot.slane %v177, 1
    %v422 = vrot.slane %v179, 1
    %v423 = vrot.slane %v181, 1
    %v424 = vrot.slane %v183, 1
    %v425 = vrot.slane %v185, 1
    %v426 = vrot.slane %v187, 1
    %v427 = vrot.slane %v189, 1
    %v428 = vrot.slane %v191, 1
    %v429 = vrot.slane %v193, 1
    %v430 = vrot.slane %v195, 1
    %v431 = vrot.slane %v197, 1
    %v432 = vrot.slane %v199, 1
    %v433 = vrot.slane %v201, 1
    %v434 = vrot.slane %v203, 1
    %v435 = vrot.slane %v144, 1
    %v436 = vrot.slane %v146, 1
    %v437 = vrot.slane %v148, 1
    %v438 = vrot.slane %v150, 1
    %v439 = vrot.slane %v152, 1
    %v440 = vrot.slane %v154, 1
    %v441 = vrot.slane %v156, 1
    %v442 = vrot.slane %v158, 1
    %v443 = vrot.slane %v160, 1
    %v444 = vrot.slane %v162, 1
    %v445 = vrot.slane %v164, 1
    %v446 = vrot.slane %v166, 1
    %v447 = vrot.slane %v168, 1
    %v448 = vrot.slane %v170, 1
    %v449 = vrot.slane %v172, 1
    %v450 = vrot.slane %v176, 1
    %v451 = vrot.slane %v178, 1
    %v452 = vrot.slane %v180, 1
    %v453 = vrot.slane %v182, 1
    %v454 = vrot.slane %v184, 1
    %v455 = vrot.slane %v186, 1
    %v456 = vrot.slane %v188, 1
    %v457 = vrot.slane %v190, 1
    %v458 = vrot.slane %v192, 1
    %v459 = vrot.slane %v194, 1
    %v460 = vrot.slane %v196, 1
    %v461 = vrot.slane %v198, 1
    %v462 = vrot.slane %v200, 1
    %v463 = vrot.slane %v202, 1
    %v464 = vrot.slane %v204, 1
    %vm465 = vcmp.lt.s32.totalorder %v208, 7
    %v466 = vsel %vm465, %v405, %v435
    %v467 = vsel %vm465, %v406, %v436
    %v468 = vsel %vm465, %v407, %v437
    %v469 = vsel %vm465, %v408, %v438
    %v470 = vsel %vm465, %v409, %v439
    %v471 = vsel %vm465, %v410, %v440
    %v472 = vsel %vm465, %v411, %v441
    %v473 = vsel %vm465, %v412, %v442
    %v474 = vsel %vm465, %v413, %v443
    %v475 = vsel %vm465, %v414, %v444
    %v476 = vsel %vm465, %v415, %v445
    %v477 = vsel %vm465, %v416, %v446
    %v478 = vsel %vm465, %v417, %v447
    %v479 = vsel %vm465, %v418, %v448
    %v480 = vsel %vm465, %v419, %v449
    %v481 = vsel %vm465, %v420, %v450
    %v482 = vsel %vm465, %v421, %v451
    %v483 = vsel %vm465, %v422, %v452
    %v484 = vsel %vm465, %v423, %v453
    %v485 = vsel %vm465, %v424, %v454
    %v486 = vsel %vm465, %v425, %v455
    %v487 = vsel %vm465, %v426, %v456
    %v488 = vsel %vm465, %v427, %v457
    %v489 = vsel %vm465, %v428, %v458
    %v490 = vsel %vm465, %v429, %v459
    %v491 = vsel %vm465, %v430, %v460
    %v492 = vsel %vm465, %v431, %v461
    %v493 = vsel %vm465, %v432, %v462
    %v494 = vsel %vm465, %v433, %v463
    %v495 = vsel %vm465, %v434, %v464
    %v496 = vsel %vm465, %v435, %v405
    %v497 = vsel %vm465, %v436, %v406
    %v498 = vsel %vm465, %v437, %v407
    %v499 = vsel %vm465, %v438, %v408
    %v500 = vsel %vm465, %v439, %v409
    %v501 = vsel %vm465, %v440, %v410
    %v502 = vsel %vm465, %v441, %v411
    %v503 = vsel %vm465, %v442, %v412
    %v504 = vsel %vm465, %v443, %v413
    %v505 = vsel %vm465, %v444, %v414
    %v506 = vsel %vm465, %v445, %v415
    %v507 = vsel %vm465, %v446, %v416
    %v508 = vsel %vm465, %v447, %v417
    %v509 = vsel %vm465, %v448, %v418
    %v510 = vsel %vm465, %v449, %v419
    %v511 = vsel %vm465, %v450, %v420
    %v512 = vsel %vm465, %v451, %v421
    %v513 = vsel %vm465, %v452, %v422
    %v514 = vsel %vm465, %v453, %v423
    %v515 = vsel %vm465, %v454, %v424
    %v516 = vsel %vm465, %v455, %v425
    %v517 = vsel %vm465, %v456, %v426
    %v518 = vsel %vm465, %v457, %v427
    %v519 = vsel %vm465, %v458, %v428
    %v520 = vsel %vm465, %v459, %v429
    %v521 = vsel %vm465, %v460, %v430
    %v522 = vsel %vm465, %v461, %v431
    %v523 = vsel %vm465, %v462, %v432
    %v524 = vsel %vm465, %v463, %v433
    %v525 = vsel %vm465, %v464, %v434
    %v526 = vadd.s32 %v208, 1
    %v527 = vadd.s32 %v209, 1
    %vm528 = vcmp.ge.s32.totalorder %v526, 0
    %vm529 = vcmp.ge.s32.totalorder %v527, 0
    %vm530 = vcmp.lt.s32.totalorder %v526, 16
    %vm531 = vcmp.lt.s32.totalorder %v527, 16
    %vm532 = vmand %vm528, %vm530
    %vm533 = vmand %vm529, %vm531
    %v534 = vsel %vm532, 1, 0
    %v535 = vsel %vm533, 1, 0
    %vm536 = vcmp.eq.s32.totalorder %v534, 1
    %vm537 = vcmp.eq.s32.totalorder %v535, 1
    %v538 = vsel %vm536, 0.0, 0.0
    %v539 = vsel %vm537, 0.0, 0.0
    %v540 = vsel %vm536, %v466, 0.0
    %v541 = vsel %vm537, %v496, 0.0
    %v542 = vsel %vm536, %v467, 0.0
    %v543 = vsel %vm537, %v497, 0.0
    %v544 = vsel %vm536, %v468, 0.0
    %v545 = vsel %vm537, %v498, 0.0
    %v546 = vsel %vm536, %v469, 0.0
    %v547 = vsel %vm537, %v499, 0.0
    %v548 = vsel %vm536, %v470, 0.0
    %v549 = vsel %vm537, %v500, 0.0
    %v550 = vsel %vm536, %v471, 0.0
    %v551 = vsel %vm537, %v501, 0.0
    %v552 = vsel %vm536, %v472, 0.0
    %v553 = vsel %vm537, %v502, 0.0
    %v554 = vsel %vm536, %v473, 0.0
    %v555 = vsel %vm537, %v503, 0.0
    %v556 = vsel %vm536, %v474, 0.0
    %v557 = vsel %vm537, %v504, 0.0
    %v558 = vsel %vm536, %v475, 0.0
    %v559 = vsel %vm537, %v505, 0.0
    %v560 = vsel %vm536, %v476, 0.0
    %v561 = vsel %vm537, %v506, 0.0
    %v562 = vsel %vm536, %v477, 0.0
    %v563 = vsel %vm537, %v507, 0.0
    %v564 = vsel %vm536, %v478, 0.0
    %v565 = vsel %vm537, %v508, 0.0
    %v566 = vsel %vm536, %v479, 0.0
    %v567 = vsel %vm537, %v509, 0.0
    %v568 = vsel %vm536, %v480, 0.0
    %v569 = vsel %vm537, %v510, 0.0
    %v570 = vsel %vm536, %v481, 0.0
    %v571 = vsel %vm537, %v511, 0.0
    %v572 = vsel %vm536, %v482, 0.0
    %v573 = vsel %vm537, %v512, 0.0
    %v574 = vsel %vm536, %v483, 0.0
    %v575 = vsel %vm537, %v513, 0.0
    %v576 = vsel %vm536, %v484, 0.0
    %v577 = vsel %vm537, %v514, 0.0
    %v578 = vsel %vm536, %v485, 0.0
    %v579 = vsel %vm537, %v515, 0.0
    %v580 = vsel %vm536, %v486, 0.0
    %v581 = vsel %vm537, %v516, 0.0
    %v582 = vsel %vm536, %v487, 0.0
    %v583 = vsel %vm537, %v517, 0.0
    %v584 = vsel %vm536, %v488, 0.0
    %v585 = vsel %vm537, %v518, 0.0
    %v586 = vsel %vm536, %v489, 0.0
    %v587 = vsel %vm537, %v519, 0.0
    %v588 = vsel %vm536, %v490, 0.0
    %v589 = vsel %vm537, %v520, 0.0
    %v590 = vsel %vm536, %v491, 0.0
    %v591 = vsel %vm537, %v521, 0.0
    %v592 = vsel %vm536, %v492, 0.0
    %v593 = vsel %vm537, %v522, 0.0
    %v594 = vsel %vm536, %v493, 0.0
    %v595 = vsel %vm537, %v523, 0.0
    %v596 = vsel %vm536, %v494, 0.0
    %v597 = vsel %vm537, %v524, 0.0
    %v598 = vsel %vm536, %v495, 0.0
    %v599 = vsel %vm537, %v525, 0.0
    %v600 = vrot.slane %v173, 7
    %v601 = vrot.slane %v205, 7
    %v602 = vrot.slane %v174, 7
    %v603 = vrot.slane %v206, 7
    %v604 = vsel %vm270, %v600, %v602
    %v605 = vsel %vm270, %v601, %v603
    %v606 = vsel %vm270, %v602, %v600
    %v607 = vsel %vm270, %v603, %v601
    %v608 = vsel %vm341, %v606, 0.0
    %v609 = vsel %vm342, %v604, 0.0
    %v610 = vsel %vm341, %v607, 0.0
    %v611 = vsel %vm342, %v605, 0.0
    %v612 = vrot.slane %v173, 1
    %v613 = vrot.slane %v205, 1
    %v614 = vrot.slane %v174, 1
    %v615 = vrot.slane %v206, 1
    %v616 = vsel %vm465, %v612, %v614
    %v617 = vsel %vm465, %v613, %v615
    %v618 = vsel %vm465, %v614, %v612
    %v619 = vsel %vm465, %v615, %v613
    %v620 = vsel %vm536, %v616, 0.0
    %v621 = vsel %vm537, %v618, 0.0
    %v622 = vsel %vm536, %v617, 0.0
    %v623 = vsel %vm537, %v619, 0.0
    %685 = vrot.lane.b32.xlu0 0.0, 4
    %v686 = vpop.permute.xlu0 %685
    %687 = vrot.lane.b32.xlu0 %v143, 4
    %v688 = vpop.permute.xlu0 %687
    %689 = vrot.lane.b32.xlu0 %v144, 4
    %v690 = vpop.permute.xlu0 %689
    %691 = vrot.lane.b32.xlu0 %v145, 4
    %v692 = vpop.permute.xlu0 %691
    %693 = vrot.lane.b32.xlu0 %v146, 4
    %v694 = vpop.permute.xlu0 %693
    %695 = vrot.lane.b32.xlu0 %v147, 4
    %v696 = vpop.permute.xlu0 %695
    %697 = vrot.lane.b32.xlu0 %v148, 4
    %v698 = vpop.permute.xlu0 %697
    %699 = vrot.lane.b32.xlu0 %v149, 4
    %v700 = vpop.permute.xlu0 %699
    %701 = vrot.lane.b32.xlu0 %v150, 4
    %v702 = vpop.permute.xlu0 %701
    %703 = vrot.lane.b32.xlu0 %v151, 4
    %v704 = vpop.permute.xlu0 %703
    %705 = vrot.lane.b32.xlu0 %v152, 4
    %v706 = vpop.permute.xlu0 %705
    %707 = vrot.lane.b32.xlu0 %v153, 4
    %v708 = vpop.permute.xlu0 %707
    %709 = vrot.lane.b32.xlu0 %v154, 4
    %v710 = vpop.permute.xlu0 %709
    %711 = vrot.lane.b32.xlu0 %v155, 4
    %v712 = vpop.permute.xlu0 %711
    %713 = vrot.lane.b32.xlu0 %v156, 4
    %v714 = vpop.permute.xlu0 %713
    %715 = vrot.lane.b32.xlu0 %v157, 4
    %v716 = vpop.permute.xlu0 %715
    %717 = vrot.lane.b32.xlu0 %v158, 4
    %v718 = vpop.permute.xlu0 %717
    %719 = vrot.lane.b32.xlu0 %v159, 4
    %v720 = vpop.permute.xlu0 %719
    %721 = vrot.lane.b32.xlu0 %v160, 4
    %v722 = vpop.permute.xlu0 %721
    %723 = vrot.lane.b32.xlu0 %v161, 4
    %v724 = vpop.permute.xlu0 %723
    %725 = vrot.lane.b32.xlu0 %v162, 4
    %v726 = vpop.permute.xlu0 %725
    %727 = vrot.lane.b32.xlu0 %v163, 4
    %v728 = vpop.permute.xlu0 %727
    %729 = vrot.lane.b32.xlu0 %v164, 4
    %v730 = vpop.permute.xlu0 %729
    %731 = vrot.lane.b32.xlu0 %v165, 4
    %v732 = vpop.permute.xlu0 %731
    %733 = vrot.lane.b32.xlu0 %v166, 4
    %v734 = vpop.permute.xlu0 %733
    %735 = vrot.lane.b32.xlu0 %v167, 4
    %v736 = vpop.permute.xlu0 %735
    %737 = vrot.lane.b32.xlu0 %v168, 4
    %v738 = vpop.permute.xlu0 %737
    %739 = vrot.lane.b32.xlu0 %v169, 4
    %v740 = vpop.permute.xlu0 %739
    %741 = vrot.lane.b32.xlu0 %v170, 4
    %v742 = vpop.permute.xlu0 %741
    %743 = vrot.lane.b32.xlu0 %v171, 4
    %v744 = vpop.permute.xlu0 %743
    %745 = vrot.lane.b32.xlu0 %v172, 4
    %v746 = vpop.permute.xlu0 %745
    %747 = vrot.lane.b32.xlu0 %v175, 4
    %v748 = vpop.permute.xlu0 %747
    %749 = vrot.lane.b32.xlu0 %v176, 4
    %v750 = vpop.permute.xlu0 %749
    %751 = vrot.lane.b32.xlu0 %v177, 4
    %v752 = vpop.permute.xlu0 %751
    %753 = vrot.lane.b32.xlu0 %v178, 4
    %v754 = vpop.permute.xlu0 %753
    %755 = vrot.lane.b32.xlu0 %v179, 4
    %v756 = vpop.permute.xlu0 %755
    %757 = vrot.lane.b32.xlu0 %v180, 4
    %v758 = vpop.permute.xlu0 %757
    %759 = vrot.lane.b32.xlu0 %v181, 4
    %v760 = vpop.permute.xlu0 %759
    %761 = vrot.lane.b32.xlu0 %v182, 4
    %v762 = vpop.permute.xlu0 %761
    %763 = vrot.lane.b32.xlu0 %v183, 4
    %v764 = vpop.permute.xlu0 %763
    %765 = vrot.lane.b32.xlu0 %v184, 4
    %v766 = vpop.permute.xlu0 %765
    %767 = vrot.lane.b32.xlu0 %v185, 4
    %v768 = vpop.permute.xlu0 %767
    %769 = vrot.lane.b32.xlu0 %v186, 4
    %v770 = vpop.permute.xlu0 %769
    %771 = vrot.lane.b32.xlu0 %v187, 4
    %v772 = vpop.permute.xlu0 %771
    %773 = vrot.lane.b32.xlu0 %v188, 4
    %v774 = vpop.permute.xlu0 %773
    %775 = vrot.lane.b32.xlu0 %v189, 4
    %v776 = vpop.permute.xlu0 %775
    %777 = vrot.lane.b32.xlu0 %v190, 4
    %v778 = vpop.permute.xlu0 %777
    %779 = vrot.lane.b32.xlu0 %v191, 4
    %v780 = vpop.permute.xlu0 %779
    %781 = vrot.lane.b32.xlu0 %v192, 4
    %v782 = vpop.permute.xlu0 %781
    %783 = vrot.lane.b32.xlu0 %v193, 4
    %v784 = vpop.permute.xlu0 %783
    %785 = vrot.lane.b32.xlu0 %v194, 4
    %v786 = vpop.permute.xlu0 %785
    %787 = vrot.lane.b32.xlu0 %v195, 4
    %v788 = vpop.permute.xlu0 %787
    %789 = vrot.lane.b32.xlu0 %v196, 4
    %v790 = vpop.permute.xlu0 %789
    %791 = vrot.lane.b32.xlu0 %v197, 4
    %v792 = vpop.permute.xlu0 %791
    %793 = vrot.lane.b32.xlu0 %v198, 4
    %v794 = vpop.permute.xlu0 %793
    %795 = vrot.lane.b32.xlu0 %v199, 4
    %v796 = vpop.permute.xlu0 %795
    %797 = vrot.lane.b32.xlu0 %v200, 4
    %v798 = vpop.permute.xlu0 %797
    %799 = vrot.lane.b32.xlu0 %v201, 4
    %v800 = vpop.permute.xlu0 %799
    %801 = vrot.lane.b32.xlu0 %v202, 4
    %v802 = vpop.permute.xlu0 %801
    %803 = vrot.lane.b32.xlu0 %v203, 4
    %v804 = vpop.permute.xlu0 %803
    %805 = vrot.lane.b32.xlu0 %v204, 4
    %v806 = vpop.permute.xlu0 %805
    %930 = vrot.lane.b32.xlu0 %v538, 8
    %v931 = vpop.permute.xlu0 %930
    %932 = vrot.lane.b32.xlu0 %v539, 8
    %v933 = vpop.permute.xlu0 %932
    %934 = vrot.lane.b32.xlu0 %v540, 8
    %v935 = vpop.permute.xlu0 %934
    %936 = vrot.lane.b32.xlu0 %v541, 8
    %v937 = vpop.permute.xlu0 %936
    %938 = vrot.lane.b32.xlu0 %v542, 8
    %v939 = vpop.permute.xlu0 %938
    %940 = vrot.lane.b32.xlu0 %v543, 8
    %v941 = vpop.permute.xlu0 %940
    %942 = vrot.lane.b32.xlu0 %v544, 8
    %v943 = vpop.permute.xlu0 %942
    %944 = vrot.lane.b32.xlu0 %v545, 8
    %v945 = vpop.permute.xlu0 %944
    %946 = vrot.lane.b32.xlu0 %v546, 8
    %v947 = vpop.permute.xlu0 %946
    %948 = vrot.lane.b32.xlu0 %v547, 8
    %v949 = vpop.permute.xlu0 %948
    %950 = vrot.lane.b32.xlu0 %v548, 8
    %v951 = vpop.permute.xlu0 %950
    %952 = vrot.lane.b32.xlu0 %v549, 8
    %v953 = vpop.permute.xlu0 %952
    %954 = vrot.lane.b32.xlu0 %v550, 8
    %v955 = vpop.permute.xlu0 %954
    %956 = vrot.lane.b32.xlu0 %v551, 8
    %v957 = vpop.permute.xlu0 %956
    %958 = vrot.lane.b32.xlu0 %v552, 8
    %v959 = vpop.permute.xlu0 %958
    %960 = vrot.lane.b32.xlu0 %v553, 8
    %v961 = vpop.permute.xlu0 %960
    %962 = vrot.lane.b32.xlu0 %v554, 8
    %v963 = vpop.permute.xlu0 %962
    %964 = vrot.lane.b32.xlu0 %v555, 8
    %v965 = vpop.permute.xlu0 %964
    %966 = vrot.lane.b32.xlu0 %v556, 8
    %v967 = vpop.permute.xlu0 %966
    %968 = vrot.lane.b32.xlu0 %v557, 8
    %v969 = vpop.permute.xlu0 %968
    %970 = vrot.lane.b32.xlu0 %v558, 8
    %v971 = vpop.permute.xlu0 %970
    %972 = vrot.lane.b32.xlu0 %v559, 8
    %v973 = vpop.permute.xlu0 %972
    %974 = vrot.lane.b32.xlu0 %v560, 8
    %v975 = vpop.permute.xlu0 %974
    %976 = vrot.lane.b32.xlu0 %v561, 8
    %v977 = vpop.permute.xlu0 %976
    %978 = vrot.lane.b32.xlu0 %v562, 8
    %v979 = vpop.permute.xlu0 %978
    %980 = vrot.lane.b32.xlu0 %v563, 8
    %v981 = vpop.permute.xlu0 %980
    %982 = vrot.lane.b32.xlu0 %v564, 8
    %v983 = vpop.permute.xlu0 %982
    %984 = vrot.lane.b32.xlu0 %v565, 8
    %v985 = vpop.permute.xlu0 %984
    %986 = vrot.lane.b32.xlu0 %v566, 8
    %v987 = vpop.permute.xlu0 %986
    %988 = vrot.lane.b32.xlu0 %v567, 8
    %v989 = vpop.permute.xlu0 %988
    %990 = vrot.lane.b32.xlu0 %v568, 8
    %v991 = vpop.permute.xlu0 %990
    %992 = vrot.lane.b32.xlu0 %v569, 8
    %v993 = vpop.permute.xlu0 %992
    %994 = vrot.lane.b32.xlu0 %v570, 8
    %v995 = vpop.permute.xlu0 %994
    %996 = vrot.lane.b32.xlu0 %v571, 8
    %v997 = vpop.permute.xlu0 %996
    %998 = vrot.lane.b32.xlu0 %v572, 8
    %v999 = vpop.permute.xlu0 %998
    %1000 = vrot.lane.b32.xlu0 %v573, 8
    %v1001 = vpop.permute.xlu0 %1000
    %1002 = vrot.lane.b32.xlu0 %v574, 8
    %v1003 = vpop.permute.xlu0 %1002
    %1004 = vrot.lane.b32.xlu0 %v575, 8
    %v1005 = vpop.permute.xlu0 %1004
    %1006 = vrot.lane.b32.xlu0 %v576, 8
    %v1007 = vpop.permute.xlu0 %1006
    %1008 = vrot.lane.b32.xlu0 %v577, 8
    %v1009 = vpop.permute.xlu0 %1008
    %1010 = vrot.lane.b32.xlu0 %v578, 8
    %v1011 = vpop.permute.xlu0 %1010
    %1012 = vrot.lane.b32.xlu0 %v579, 8
    %v1013 = vpop.permute.xlu0 %1012
    %1014 = vrot.lane.b32.xlu0 %v580, 8
    %v1015 = vpop.permute.xlu0 %1014
    %1016 = vrot.lane.b32.xlu0 %v581, 8
    %v1017 = vpop.permute.xlu0 %1016
    %1018 = vrot.lane.b32.xlu0 %v582, 8
    %v1019 = vpop.permute.xlu0 %1018
    %1020 = vrot.lane.b32.xlu0 %v583, 8
    %v1021 = vpop.permute.xlu0 %1020
    %1022 = vrot.lane.b32.xlu0 %v584, 8
    %v1023 = vpop.permute.xlu0 %1022
    %1024 = vrot.lane.b32.xlu0 %v585, 8
    %v1025 = vpop.permute.xlu0 %1024
    %1026 = vrot.lane.b32.xlu0 %v586, 8
    %v1027 = vpop.permute.xlu0 %1026
    %1028 = vrot.lane.b32.xlu0 %v587, 8
    %v1029 = vpop.permute.xlu0 %1028
    %1030 = vrot.lane.b32.xlu0 %v588, 8
    %v1031 = vpop.permute.xlu0 %1030
    %1032 = vrot.lane.b32.xlu0 %v589, 8
    %v1033 = vpop.permute.xlu0 %1032
    %1034 = vrot.lane.b32.xlu0 %v590, 8
    %v1035 = vpop.permute.xlu0 %1034
    %1036 = vrot.lane.b32.xlu0 %v591, 8
    %v1037 = vpop.permute.xlu0 %1036
    %1038 = vrot.lane.b32.xlu0 %v592, 8
    %v1039 = vpop.permute.xlu0 %1038
    %1040 = vrot.lane.b32.xlu0 %v593, 8
    %v1041 = vpop.permute.xlu0 %1040
    %1042 = vrot.lane.b32.xlu0 %v594, 8
    %v1043 = vpop.permute.xlu0 %1042
    %1044 = vrot.lane.b32.xlu0 %v595, 8
    %v1045 = vpop.permute.xlu0 %1044
    %1046 = vrot.lane.b32.xlu0 %v596, 8
    %v1047 = vpop.permute.xlu0 %1046
    %1048 = vrot.lane.b32.xlu0 %v597, 8
    %v1049 = vpop.permute.xlu0 %1048
    %1050 = vrot.lane.b32.xlu0 %v598, 8
    %v1051 = vpop.permute.xlu0 %1050
    %1052 = vrot.lane.b32.xlu0 %v599, 8
    %v1053 = vpop.permute.xlu0 %1052
    %1180 = vrot.lane.b32.xlu0 %v345, 12
    %v1181 = vpop.permute.xlu0 %1180
    %1182 = vrot.lane.b32.xlu0 %v346, 12
    %v1183 = vpop.permute.xlu0 %1182
    %1184 = vrot.lane.b32.xlu0 %v347, 12
    %v1185 = vpop.permute.xlu0 %1184
    %1186 = vrot.lane.b32.xlu0 %v348, 12
    %v1187 = vpop.permute.xlu0 %1186
    %1188 = vrot.lane.b32.xlu0 %v349, 12
    %v1189 = vpop.permute.xlu0 %1188
    %1190 = vrot.lane.b32.xlu0 %v350, 12
    %v1191 = vpop.permute.xlu0 %1190
    %1192 = vrot.lane.b32.xlu0 %v351, 12
    %v1193 = vpop.permute.xlu0 %1192
    %1194 = vrot.lane.b32.xlu0 %v352, 12
    %v1195 = vpop.permute.xlu0 %1194
    %1196 = vrot.lane.b32.xlu0 %v353, 12
    %v1197 = vpop.permute.xlu0 %1196
    %1198 = vrot.lane.b32.xlu0 %v354, 12
    %v1199 = vpop.permute.xlu0 %1198
    %1200 = vrot.lane.b32.xlu0 %v355, 12
    %v1201 = vpop.permute.xlu0 %1200
    %1202 = vrot.lane.b32.xlu0 %v356, 12
    %v1203 = vpop.permute.xlu0 %1202
    %1204 = vrot.lane.b32.xlu0 %v357, 12
    %v1205 = vpop.permute.xlu0 %1204
    %1206 = vrot.lane.b32.xlu0 %v358, 12
    %v1207 = vpop.permute.xlu0 %1206
    %1208 = vrot.lane.b32.xlu0 %v359, 12
    %v1209 = vpop.permute.xlu0 %1208
    %1210 = vrot.lane.b32.xlu0 %v360, 12
    %v1211 = vpop.permute.xlu0 %1210
    %1212 = vrot.lane.b32.xlu0 %v361, 12
    %v1213 = vpop.permute.xlu0 %1212
    %1214 = vrot.lane.b32.xlu0 %v362, 12
    %v1215 = vpop.permute.xlu0 %1214
    %1216 = vrot.lane.b32.xlu0 %v363, 12
    %v1217 = vpop.permute.xlu0 %1216
    %1218 = vrot.lane.b32.xlu0 %v364, 12
    %v1219 = vpop.permute.xlu0 %1218
    %1220 = vrot.lane.b32.xlu0 %v365, 12
    %v1221 = vpop.permute.xlu0 %1220
    %1222 = vrot.lane.b32.xlu0 %v366, 12
    %v1223 = vpop.permute.xlu0 %1222
    %1224 = vrot.lane.b32.xlu0 %v367, 12
    %v1225 = vpop.permute.xlu0 %1224
    %1226 = vrot.lane.b32.xlu0 %v368, 12
    %v1227 = vpop.permute.xlu0 %1226
    %1228 = vrot.lane.b32.xlu0 %v369, 12
    %v1229 = vpop.permute.xlu0 %1228
    %1230 = vrot.lane.b32.xlu0 %v370, 12
    %v1231 = vpop.permute.xlu0 %1230
    %1232 = vrot.lane.b32.xlu0 %v371, 12
    %v1233 = vpop.permute.xlu0 %1232
    %1234 = vrot.lane.b32.xlu0 %v372, 12
    %v1235 = vpop.permute.xlu0 %1234
    %1236 = vrot.lane.b32.xlu0 %v373, 12
    %v1237 = vpop.permute.xlu0 %1236
    %1238 = vrot.lane.b32.xlu0 %v374, 12
    %v1239 = vpop.permute.xlu0 %1238
    %1240 = vrot.lane.b32.xlu0 %v608, 12
    %v1241 = vpop.permute.xlu0 %1240
    %1242 = vrot.lane.b32.xlu0 %v609, 12
    %v1243 = vpop.permute.xlu0 %1242
    %1244 = vrot.lane.b32.xlu0 %v375, 12
    %v1245 = vpop.permute.xlu0 %1244
    %1246 = vrot.lane.b32.xlu0 %v376, 12
    %v1247 = vpop.permute.xlu0 %1246
    %1248 = vrot.lane.b32.xlu0 %v377, 12
    %v1249 = vpop.permute.xlu0 %1248
    %1250 = vrot.lane.b32.xlu0 %v378, 12
    %v1251 = vpop.permute.xlu0 %1250
    %1252 = vrot.lane.b32.xlu0 %v379, 12
    %v1253 = vpop.permute.xlu0 %1252
    %1254 = vrot.lane.b32.xlu0 %v380, 12
    %v1255 = vpop.permute.xlu0 %1254
    %1256 = vrot.lane.b32.xlu0 %v381, 12
    %v1257 = vpop.permute.xlu0 %1256
    %1258 = vrot.lane.b32.xlu0 %v382, 12
    %v1259 = vpop.permute.xlu0 %1258
    %1260 = vrot.lane.b32.xlu0 %v383, 12
    %v1261 = vpop.permute.xlu0 %1260
    %1262 = vrot.lane.b32.xlu0 %v384, 12
    %v1263 = vpop.permute.xlu0 %1262
    %1264 = vrot.lane.b32.xlu0 %v385, 12
    %v1265 = vpop.permute.xlu0 %1264
    %1266 = vrot.lane.b32.xlu0 %v386, 12
    %v1267 = vpop.permute.xlu0 %1266
    %1268 = vrot.lane.b32.xlu0 %v387, 12
    %v1269 = vpop.permute.xlu0 %1268
    %1270 = vrot.lane.b32.xlu0 %v388, 12
    %v1271 = vpop.permute.xlu0 %1270
    %1272 = vrot.lane.b32.xlu0 %v389, 12
    %v1273 = vpop.permute.xlu0 %1272
    %1274 = vrot.lane.b32.xlu0 %v390, 12
    %v1275 = vpop.permute.xlu0 %1274
    %1276 = vrot.lane.b32.xlu0 %v391, 12
    %v1277 = vpop.permute.xlu0 %1276
    %1278 = vrot.lane.b32.xlu0 %v392, 12
    %v1279 = vpop.permute.xlu0 %1278
    %1280 = vrot.lane.b32.xlu0 %v393, 12
    %v1281 = vpop.permute.xlu0 %1280
    %1282 = vrot.lane.b32.xlu0 %v394, 12
    %v1283 = vpop.permute.xlu0 %1282
    %1284 = vrot.lane.b32.xlu0 %v395, 12
    %v1285 = vpop.permute.xlu0 %1284
    %1286 = vrot.lane.b32.xlu0 %v396, 12
    %v1287 = vpop.permute.xlu0 %1286
    %1288 = vrot.lane.b32.xlu0 %v397, 12
    %v1289 = vpop.permute.xlu0 %1288
    %1290 = vrot.lane.b32.xlu0 %v398, 12
    %v1291 = vpop.permute.xlu0 %1290
    %1292 = vrot.lane.b32.xlu0 %v399, 12
    %v1293 = vpop.permute.xlu0 %1292
    %1294 = vrot.lane.b32.xlu0 %v400, 12
    %v1295 = vpop.permute.xlu0 %1294
    %1296 = vrot.lane.b32.xlu0 %v401, 12
    %v1297 = vpop.permute.xlu0 %1296
    %1298 = vrot.lane.b32.xlu0 %v402, 12
    %v1299 = vpop.permute.xlu0 %1298
    %1300 = vrot.lane.b32.xlu0 %v403, 12
    %v1301 = vpop.permute.xlu0 %1300
    %1302 = vrot.lane.b32.xlu0 %v404, 12
    %v1303 = vpop.permute.xlu0 %1302
    %1304 = vrot.lane.b32.xlu0 %v610, 12
    %v1305 = vpop.permute.xlu0 %1304
    %1306 = vrot.lane.b32.xlu0 %v611, 12
    %v1307 = vpop.permute.xlu0 %1306
    %1376 = vrot.lane.b32.xlu0 %v143, 16
    %v1377 = vpop.permute.xlu0 %1376
    %1378 = vrot.lane.b32.xlu0 %v144, 16
    %v1379 = vpop.permute.xlu0 %1378
    %1380 = vrot.lane.b32.xlu0 %v145, 16
    %v1381 = vpop.permute.xlu0 %1380
    %1382 = vrot.lane.b32.xlu0 %v146, 16
    %v1383 = vpop.permute.xlu0 %1382
    %1384 = vrot.lane.b32.xlu0 %v147, 16
    %v1385 = vpop.permute.xlu0 %1384
    %1386 = vrot.lane.b32.xlu0 %v148, 16
    %v1387 = vpop.permute.xlu0 %1386
    %1388 = vrot.lane.b32.xlu0 %v149, 16
    %v1389 = vpop.permute.xlu0 %1388
    %1390 = vrot.lane.b32.xlu0 %v150, 16
    %v1391 = vpop.permute.xlu0 %1390
    %1392 = vrot.lane.b32.xlu0 %v151, 16
    %v1393 = vpop.permute.xlu0 %1392
    %1394 = vrot.lane.b32.xlu0 %v152, 16
    %v1395 = vpop.permute.xlu0 %1394
    %1396 = vrot.lane.b32.xlu0 %v153, 16
    %v1397 = vpop.permute.xlu0 %1396
    %1398 = vrot.lane.b32.xlu0 %v154, 16
    %v1399 = vpop.permute.xlu0 %1398
    %1400 = vrot.lane.b32.xlu0 %v155, 16
    %v1401 = vpop.permute.xlu0 %1400
    %1402 = vrot.lane.b32.xlu0 %v156, 16
    %v1403 = vpop.permute.xlu0 %1402
    %1404 = vrot.lane.b32.xlu0 %v157, 16
    %v1405 = vpop.permute.xlu0 %1404
    %1406 = vrot.lane.b32.xlu0 %v158, 16
    %v1407 = vpop.permute.xlu0 %1406
    %1408 = vrot.lane.b32.xlu0 %v159, 16
    %v1409 = vpop.permute.xlu0 %1408
    %1410 = vrot.lane.b32.xlu0 %v160, 16
    %v1411 = vpop.permute.xlu0 %1410
    %1412 = vrot.lane.b32.xlu0 %v161, 16
    %v1413 = vpop.permute.xlu0 %1412
    %1414 = vrot.lane.b32.xlu0 %v162, 16
    %v1415 = vpop.permute.xlu0 %1414
    %1416 = vrot.lane.b32.xlu0 %v163, 16
    %v1417 = vpop.permute.xlu0 %1416
    %1418 = vrot.lane.b32.xlu0 %v164, 16
    %v1419 = vpop.permute.xlu0 %1418
    %1420 = vrot.lane.b32.xlu0 %v165, 16
    %v1421 = vpop.permute.xlu0 %1420
    %1422 = vrot.lane.b32.xlu0 %v166, 16
    %v1423 = vpop.permute.xlu0 %1422
    %1424 = vrot.lane.b32.xlu0 %v167, 16
    %v1425 = vpop.permute.xlu0 %1424
    %1426 = vrot.lane.b32.xlu0 %v168, 16
    %v1427 = vpop.permute.xlu0 %1426
    %1428 = vrot.lane.b32.xlu0 %v169, 16
    %v1429 = vpop.permute.xlu0 %1428
    %1430 = vrot.lane.b32.xlu0 %v170, 16
    %v1431 = vpop.permute.xlu0 %1430
    %1432 = vrot.lane.b32.xlu0 %v171, 16
    %v1433 = vpop.permute.xlu0 %1432
    %1434 = vrot.lane.b32.xlu0 %v172, 16
    %v1435 = vpop.permute.xlu0 %1434
    %1436 = vrot.lane.b32.xlu0 %v173, 16
    %v1437 = vpop.permute.xlu0 %1436
    %1438 = vrot.lane.b32.xlu0 %v174, 16
    %v1439 = vpop.permute.xlu0 %1438
    %1440 = vrot.lane.b32.xlu0 %v175, 16
    %v1441 = vpop.permute.xlu0 %1440
    %1442 = vrot.lane.b32.xlu0 %v176, 16
    %v1443 = vpop.permute.xlu0 %1442
    %1444 = vrot.lane.b32.xlu0 %v177, 16
    %v1445 = vpop.permute.xlu0 %1444
    %1446 = vrot.lane.b32.xlu0 %v178, 16
    %v1447 = vpop.permute.xlu0 %1446
    %1448 = vrot.lane.b32.xlu0 %v179, 16
    %v1449 = vpop.permute.xlu0 %1448
    %1450 = vrot.lane.b32.xlu0 %v180, 16
    %v1451 = vpop.permute.xlu0 %1450
    %1452 = vrot.lane.b32.xlu0 %v181, 16
    %v1453 = vpop.permute.xlu0 %1452
    %1454 = vrot.lane.b32.xlu0 %v182, 16
    %v1455 = vpop.permute.xlu0 %1454
    %1456 = vrot.lane.b32.xlu0 %v183, 16
    %v1457 = vpop.permute.xlu0 %1456
    %1458 = vrot.lane.b32.xlu0 %v184, 16
    %v1459 = vpop.permute.xlu0 %1458
    %1460 = vrot.lane.b32.xlu0 %v185, 16
    %v1461 = vpop.permute.xlu0 %1460
    %1462 = vrot.lane.b32.xlu0 %v186, 16
    %v1463 = vpop.permute.xlu0 %1462
    %1464 = vrot.lane.b32.xlu0 %v187, 16
    %v1465 = vpop.permute.xlu0 %1464
    %1466 = vrot.lane.b32.xlu0 %v188, 16
    %v1467 = vpop.permute.xlu0 %1466
    %1468 = vrot.lane.b32.xlu0 %v189, 16
    %v1469 = vpop.permute.xlu0 %1468
    %1470 = vrot.lane.b32.xlu0 %v190, 16
    %v1471 = vpop.permute.xlu0 %1470
    %1472 = vrot.lane.b32.xlu0 %v191, 16
    %v1473 = vpop.permute.xlu0 %1472
    %1474 = vrot.lane.b32.xlu0 %v192, 16
    %v1475 = vpop.permute.xlu0 %1474
    %1476 = vrot.lane.b32.xlu0 %v193, 16
    %v1477 = vpop.permute.xlu0 %1476
    %1478 = vrot.lane.b32.xlu0 %v194, 16
    %v1479 = vpop.permute.xlu0 %1478
    %1480 = vrot.lane.b32.xlu0 %v195, 16
    %v1481 = vpop.permute.xlu0 %1480
    %1482 = vrot.lane.b32.xlu0 %v196, 16
    %v1483 = vpop.permute.xlu0 %1482
    %1484 = vrot.lane.b32.xlu0 %v197, 16
    %v1485 = vpop.permute.xlu0 %1484
    %1486 = vrot.lane.b32.xlu0 %v198, 16
    %v1487 = vpop.permute.xlu0 %1486
    %1488 = vrot.lane.b32.xlu0 %v199, 16
    %v1489 = vpop.permute.xlu0 %1488
    %1490 = vrot.lane.b32.xlu0 %v200, 16
    %v1491 = vpop.permute.xlu0 %1490
    %1492 = vrot.lane.b32.xlu0 %v201, 16
    %v1493 = vpop.permute.xlu0 %1492
    %1494 = vrot.lane.b32.xlu0 %v202, 16
    %v1495 = vpop.permute.xlu0 %1494
    %1496 = vrot.lane.b32.xlu0 %v203, 16
    %v1497 = vpop.permute.xlu0 %1496
    %1498 = vrot.lane.b32.xlu0 %v204, 16
    %v1499 = vpop.permute.xlu0 %1498
    %1500 = vrot.lane.b32.xlu0 %v205, 16
    %v1501 = vpop.permute.xlu0 %1500
    %1502 = vrot.lane.b32.xlu0 %v206, 16
    %v1503 = vpop.permute.xlu0 %1502
    %1572 = vrot.lane.b32.xlu0 %v540, 20
    %v1573 = vpop.permute.xlu0 %1572
    %1574 = vrot.lane.b32.xlu0 %v541, 20
    %v1575 = vpop.permute.xlu0 %1574
    %1576 = vrot.lane.b32.xlu0 %v542, 20
    %v1577 = vpop.permute.xlu0 %1576
    %1578 = vrot.lane.b32.xlu0 %v543, 20
    %v1579 = vpop.permute.xlu0 %1578
    %1580 = vrot.lane.b32.xlu0 %v544, 20
    %v1581 = vpop.permute.xlu0 %1580
    %1582 = vrot.lane.b32.xlu0 %v545, 20
    %v1583 = vpop.permute.xlu0 %1582
    %1584 = vrot.lane.b32.xlu0 %v546, 20
    %v1585 = vpop.permute.xlu0 %1584
    %1586 = vrot.lane.b32.xlu0 %v547, 20
    %v1587 = vpop.permute.xlu0 %1586
    %1588 = vrot.lane.b32.xlu0 %v548, 20
    %v1589 = vpop.permute.xlu0 %1588
    %1590 = vrot.lane.b32.xlu0 %v549, 20
    %v1591 = vpop.permute.xlu0 %1590
    %1592 = vrot.lane.b32.xlu0 %v550, 20
    %v1593 = vpop.permute.xlu0 %1592
    %1594 = vrot.lane.b32.xlu0 %v551, 20
    %v1595 = vpop.permute.xlu0 %1594
    %1596 = vrot.lane.b32.xlu0 %v552, 20
    %v1597 = vpop.permute.xlu0 %1596
    %1598 = vrot.lane.b32.xlu0 %v553, 20
    %v1599 = vpop.permute.xlu0 %1598
    %1600 = vrot.lane.b32.xlu0 %v554, 20
    %v1601 = vpop.permute.xlu0 %1600
    %1602 = vrot.lane.b32.xlu0 %v555, 20
    %v1603 = vpop.permute.xlu0 %1602
    %1604 = vrot.lane.b32.xlu0 %v556, 20
    %v1605 = vpop.permute.xlu0 %1604
    %1606 = vrot.lane.b32.xlu0 %v557, 20
    %v1607 = vpop.permute.xlu0 %1606
    %1608 = vrot.lane.b32.xlu0 %v558, 20
    %v1609 = vpop.permute.xlu0 %1608
    %1610 = vrot.lane.b32.xlu0 %v559, 20
    %v1611 = vpop.permute.xlu0 %1610
    %1612 = vrot.lane.b32.xlu0 %v560, 20
    %v1613 = vpop.permute.xlu0 %1612
    %1614 = vrot.lane.b32.xlu0 %v561, 20
    %v1615 = vpop.permute.xlu0 %1614
    %1616 = vrot.lane.b32.xlu0 %v562, 20
    %v1617 = vpop.permute.xlu0 %1616
    %1618 = vrot.lane.b32.xlu0 %v563, 20
    %v1619 = vpop.permute.xlu0 %1618
    %1620 = vrot.lane.b32.xlu0 %v564, 20
    %v1621 = vpop.permute.xlu0 %1620
    %1622 = vrot.lane.b32.xlu0 %v565, 20
    %v1623 = vpop.permute.xlu0 %1622
    %1624 = vrot.lane.b32.xlu0 %v566, 20
    %v1625 = vpop.permute.xlu0 %1624
    %1626 = vrot.lane.b32.xlu0 %v567, 20
    %v1627 = vpop.permute.xlu0 %1626
    %1628 = vrot.lane.b32.xlu0 %v568, 20
    %v1629 = vpop.permute.xlu0 %1628
    %1630 = vrot.lane.b32.xlu0 %v569, 20
    %v1631 = vpop.permute.xlu0 %1630
    %1632 = vrot.lane.b32.xlu0 %v620, 20
    %v1633 = vpop.permute.xlu0 %1632
    %1634 = vrot.lane.b32.xlu0 %v621, 20
    %v1635 = vpop.permute.xlu0 %1634
    %1636 = vrot.lane.b32.xlu0 %v570, 20
    %v1637 = vpop.permute.xlu0 %1636
    %1638 = vrot.lane.b32.xlu0 %v571, 20
    %v1639 = vpop.permute.xlu0 %1638
    %1640 = vrot.lane.b32.xlu0 %v572, 20
    %v1641 = vpop.permute.xlu0 %1640
    %1642 = vrot.lane.b32.xlu0 %v573, 20
    %v1643 = vpop.permute.xlu0 %1642
    %1644 = vrot.lane.b32.xlu0 %v574, 20
    %v1645 = vpop.permute.xlu0 %1644
    %1646 = vrot.lane.b32.xlu0 %v575, 20
    %v1647 = vpop.permute.xlu0 %1646
    %1648 = vrot.lane.b32.xlu0 %v576, 20
    %v1649 = vpop.permute.xlu0 %1648
    %1650 = vrot.lane.b32.xlu0 %v577, 20
    %v1651 = vpop.permute.xlu0 %1650
    %1652 = vrot.lane.b32.xlu0 %v578, 20
    %v1653 = vpop.permute.xlu0 %1652
    %1654 = vrot.lane.b32.xlu0 %v579, 20
    %v1655 = vpop.permute.xlu0 %1654
    %1656 = vrot.lane.b32.xlu0 %v580, 20
    %v1657 = vpop.permute.xlu0 %1656
    %1658 = vrot.lane.b32.xlu0 %v581, 20
    %v1659 = vpop.permute.xlu0 %1658
    %1660 = vrot.lane.b32.xlu0 %v582, 20
    %v1661 = vpop.permute.xlu0 %1660
    %1662 = vrot.lane.b32.xlu0 %v583, 20
    %v1663 = vpop.permute.xlu0 %1662
    %1664 = vrot.lane.b32.xlu0 %v584, 20
    %v1665 = vpop.permute.xlu0 %1664
    %1666 = vrot.lane.b32.xlu0 %v585, 20
    %v1667 = vpop.permute.xlu0 %1666
    %1668 = vrot.lane.b32.xlu0 %v586, 20
    %v1669 = vpop.permute.xlu0 %1668
    %1670 = vrot.lane.b32.xlu0 %v587, 20
    %v1671 = vpop.permute.xlu0 %1670
    %1672 = vrot.lane.b32.xlu0 %v588, 20
    %v1673 = vpop.permute.xlu0 %1672
    %1674 = vrot.lane.b32.xlu0 %v589, 20
    %v1675 = vpop.permute.xlu0 %1674
    %1676 = vrot.lane.b32.xlu0 %v590, 20
    %v1677 = vpop.permute.xlu0 %1676
    %1678 = vrot.lane.b32.xlu0 %v591, 20
    %v1679 = vpop.permute.xlu0 %1678
    %1680 = vrot.lane.b32.xlu0 %v592, 20
    %v1681 = vpop.permute.xlu0 %1680
    %1682 = vrot.lane.b32.xlu0 %v593, 20
    %v1683 = vpop.permute.xlu0 %1682
    %1684 = vrot.lane.b32.xlu0 %v594, 20
    %v1685 = vpop.permute.xlu0 %1684
    %1686 = vrot.lane.b32.xlu0 %v595, 20
    %v1687 = vpop.permute.xlu0 %1686
    %1688 = vrot.lane.b32.xlu0 %v596, 20
    %v1689 = vpop.permute.xlu0 %1688
    %1690 = vrot.lane.b32.xlu0 %v597, 20
    %v1691 = vpop.permute.xlu0 %1690
    %1692 = vrot.lane.b32.xlu0 %v598, 20
    %v1693 = vpop.permute.xlu0 %1692
    %1694 = vrot.lane.b32.xlu0 %v599, 20
    %v1695 = vpop.permute.xlu0 %1694
    %1696 = vrot.lane.b32.xlu0 %v622, 20
    %v1697 = vpop.permute.xlu0 %1696
    %1698 = vrot.lane.b32.xlu0 %v623, 20
    %v1699 = vpop.permute.xlu0 %1698
    %1766 = vrot.lane.b32.xlu0 %v347, 24
    %v1767 = vpop.permute.xlu0 %1766
    %1768 = vrot.lane.b32.xlu0 %v348, 24
    %v1769 = vpop.permute.xlu0 %1768
    %1770 = vrot.lane.b32.xlu0 %v349, 24
    %v1771 = vpop.permute.xlu0 %1770
    %1772 = vrot.lane.b32.xlu0 %v350, 24
    %v1773 = vpop.permute.xlu0 %1772
    %1774 = vrot.lane.b32.xlu0 %v351, 24
    %v1775 = vpop.permute.xlu0 %1774
    %1776 = vrot.lane.b32.xlu0 %v352, 24
    %v1777 = vpop.permute.xlu0 %1776
    %1778 = vrot.lane.b32.xlu0 %v353, 24
    %v1779 = vpop.permute.xlu0 %1778
    %1780 = vrot.lane.b32.xlu0 %v354, 24
    %v1781 = vpop.permute.xlu0 %1780
    %1782 = vrot.lane.b32.xlu0 %v355, 24
    %v1783 = vpop.permute.xlu0 %1782
    %1784 = vrot.lane.b32.xlu0 %v356, 24
    %v1785 = vpop.permute.xlu0 %1784
    %1786 = vrot.lane.b32.xlu0 %v357, 24
    %v1787 = vpop.permute.xlu0 %1786
    %1788 = vrot.lane.b32.xlu0 %v358, 24
    %v1789 = vpop.permute.xlu0 %1788
    %1790 = vrot.lane.b32.xlu0 %v359, 24
    %v1791 = vpop.permute.xlu0 %1790
    %1792 = vrot.lane.b32.xlu0 %v360, 24
    %v1793 = vpop.permute.xlu0 %1792
    %1794 = vrot.lane.b32.xlu0 %v361, 24
    %v1795 = vpop.permute.xlu0 %1794
    %1796 = vrot.lane.b32.xlu0 %v362, 24
    %v1797 = vpop.permute.xlu0 %1796
    %1798 = vrot.lane.b32.xlu0 %v363, 24
    %v1799 = vpop.permute.xlu0 %1798
    %1800 = vrot.lane.b32.xlu0 %v364, 24
    %v1801 = vpop.permute.xlu0 %1800
    %1802 = vrot.lane.b32.xlu0 %v365, 24
    %v1803 = vpop.permute.xlu0 %1802
    %1804 = vrot.lane.b32.xlu0 %v366, 24
    %v1805 = vpop.permute.xlu0 %1804
    %1806 = vrot.lane.b32.xlu0 %v367, 24
    %v1807 = vpop.permute.xlu0 %1806
    %1808 = vrot.lane.b32.xlu0 %v368, 24
    %v1809 = vpop.permute.xlu0 %1808
    %1810 = vrot.lane.b32.xlu0 %v369, 24
    %v1811 = vpop.permute.xlu0 %1810
    %1812 = vrot.lane.b32.xlu0 %v370, 24
    %v1813 = vpop.permute.xlu0 %1812
    %1814 = vrot.lane.b32.xlu0 %v371, 24
    %v1815 = vpop.permute.xlu0 %1814
    %1816 = vrot.lane.b32.xlu0 %v372, 24
    %v1817 = vpop.permute.xlu0 %1816
    %1818 = vrot.lane.b32.xlu0 %v373, 24
    %v1819 = vpop.permute.xlu0 %1818
    %1820 = vrot.lane.b32.xlu0 %v374, 24
    %v1821 = vpop.permute.xlu0 %1820
    %1822 = vrot.lane.b32.xlu0 %v608, 24
    %v1823 = vpop.permute.xlu0 %1822
    %1824 = vrot.lane.b32.xlu0 %v609, 24
    %v1825 = vpop.permute.xlu0 %1824
    %1826 = vrot.lane.b32.xlu0 %v343, 24
    %v1827 = vpop.permute.xlu0 %1826
    %1828 = vrot.lane.b32.xlu0 %v344, 24
    %v1829 = vpop.permute.xlu0 %1828
    %1830 = vrot.lane.b32.xlu0 %v377, 24
    %v1831 = vpop.permute.xlu0 %1830
    %1832 = vrot.lane.b32.xlu0 %v378, 24
    %v1833 = vpop.permute.xlu0 %1832
    %1834 = vrot.lane.b32.xlu0 %v379, 24
    %v1835 = vpop.permute.xlu0 %1834
    %1836 = vrot.lane.b32.xlu0 %v380, 24
    %v1837 = vpop.permute.xlu0 %1836
    %1838 = vrot.lane.b32.xlu0 %v381, 24
    %v1839 = vpop.permute.xlu0 %1838
    %1840 = vrot.lane.b32.xlu0 %v382, 24
    %v1841 = vpop.permute.xlu0 %1840
    %1842 = vrot.lane.b32.xlu0 %v383, 24
    %v1843 = vpop.permute.xlu0 %1842
    %1844 = vrot.lane.b32.xlu0 %v384, 24
    %v1845 = vpop.permute.xlu0 %1844
    %1846 = vrot.lane.b32.xlu0 %v385, 24
    %v1847 = vpop.permute.xlu0 %1846
    %1848 = vrot.lane.b32.xlu0 %v386, 24
    %v1849 = vpop.permute.xlu0 %1848
    %1850 = vrot.lane.b32.xlu0 %v387, 24
    %v1851 = vpop.permute.xlu0 %1850
    %1852 = vrot.lane.b32.xlu0 %v388, 24
    %v1853 = vpop.permute.xlu0 %1852
    %1854 = vrot.lane.b32.xlu0 %v389, 24
    %v1855 = vpop.permute.xlu0 %1854
    %1856 = vrot.lane.b32.xlu0 %v390, 24
    %v1857 = vpop.permute.xlu0 %1856
    %1858 = vrot.lane.b32.xlu0 %v391, 24
    %v1859 = vpop.permute.xlu0 %1858
    %1860 = vrot.lane.b32.xlu0 %v392, 24
    %v1861 = vpop.permute.xlu0 %1860
    %1862 = vrot.lane.b32.xlu0 %v393, 24
    %v1863 = vpop.permute.xlu0 %1862
    %1864 = vrot.lane.b32.xlu0 %v394, 24
    %v1865 = vpop.permute.xlu0 %1864
    %1866 = vrot.lane.b32.xlu0 %v395, 24
    %v1867 = vpop.permute.xlu0 %1866
    %1868 = vrot.lane.b32.xlu0 %v396, 24
    %v1869 = vpop.permute.xlu0 %1868
    %1870 = vrot.lane.b32.xlu0 %v397, 24
    %v1871 = vpop.permute.xlu0 %1870
    %1872 = vrot.lane.b32.xlu0 %v398, 24
    %v1873 = vpop.permute.xlu0 %1872
    %1874 = vrot.lane.b32.xlu0 %v399, 24
    %v1875 = vpop.permute.xlu0 %1874
    %1876 = vrot.lane.b32.xlu0 %v400, 24
    %v1877 = vpop.permute.xlu0 %1876
    %1878 = vrot.lane.b32.xlu0 %v401, 24
    %v1879 = vpop.permute.xlu0 %1878
    %1880 = vrot.lane.b32.xlu0 %v402, 24
    %v1881 = vpop.permute.xlu0 %1880
    %1882 = vrot.lane.b32.xlu0 %v403, 24
    %v1883 = vpop.permute.xlu0 %1882
    %1884 = vrot.lane.b32.xlu0 %v404, 24
    %v1885 = vpop.permute.xlu0 %1884
    %1886 = vrot.lane.b32.xlu0 %v610, 24
    %v1887 = vpop.permute.xlu0 %1886
    %1888 = vrot.lane.b32.xlu0 %v611, 24
    %v1889 = vpop.permute.xlu0 %1888
    %1952 = vrot.lane.b32.xlu0 %v145, 28
    %v1953 = vpop.permute.xlu0 %1952
    %1954 = vrot.lane.b32.xlu0 %v146, 28
    %v1955 = vpop.permute.xlu0 %1954
    %1956 = vrot.lane.b32.xlu0 %v147, 28
    %v1957 = vpop.permute.xlu0 %1956
    %1958 = vrot.lane.b32.xlu0 %v148, 28
    %v1959 = vpop.permute.xlu0 %1958
    %1960 = vrot.lane.b32.xlu0 %v149, 28
    %v1961 = vpop.permute.xlu0 %1960
    %1962 = vrot.lane.b32.xlu0 %v150, 28
    %v1963 = vpop.permute.xlu0 %1962
    %1964 = vrot.lane.b32.xlu0 %v151, 28
    %v1965 = vpop.permute.xlu0 %1964
    %1966 = vrot.lane.b32.xlu0 %v152, 28
    %v1967 = vpop.permute.xlu0 %1966
    %1968 = vrot.lane.b32.xlu0 %v153, 28
    %v1969 = vpop.permute.xlu0 %1968
    %1970 = vrot.lane.b32.xlu0 %v154, 28
    %v1971 = vpop.permute.xlu0 %1970
    %1972 = vrot.lane.b32.xlu0 %v155, 28
    %v1973 = vpop.permute.xlu0 %1972
    %1974 = vrot.lane.b32.xlu0 %v156, 28
    %v1975 = vpop.permute.xlu0 %1974
    %1976 = vrot.lane.b32.xlu0 %v157, 28
    %v1977 = vpop.permute.xlu0 %1976
    %1978 = vrot.lane.b32.xlu0 %v158, 28
    %v1979 = vpop.permute.xlu0 %1978
    %1980 = vrot.lane.b32.xlu0 %v159, 28
    %v1981 = vpop.permute.xlu0 %1980
    %1982 = vrot.lane.b32.xlu0 %v160, 28
    %v1983 = vpop.permute.xlu0 %1982
    %1984 = vrot.lane.b32.xlu0 %v161, 28
    %v1985 = vpop.permute.xlu0 %1984
    %1986 = vrot.lane.b32.xlu0 %v162, 28
    %v1987 = vpop.permute.xlu0 %1986
    %1988 = vrot.lane.b32.xlu0 %v163, 28
    %v1989 = vpop.permute.xlu0 %1988
    %1990 = vrot.lane.b32.xlu0 %v164, 28
    %v1991 = vpop.permute.xlu0 %1990
    %1992 = vrot.lane.b32.xlu0 %v165, 28
    %v1993 = vpop.permute.xlu0 %1992
    %1994 = vrot.lane.b32.xlu0 %v166, 28
    %v1995 = vpop.permute.xlu0 %1994
    %1996 = vrot.lane.b32.xlu0 %v167, 28
    %v1997 = vpop.permute.xlu0 %1996
    %1998 = vrot.lane.b32.xlu0 %v168, 28
    %v1999 = vpop.permute.xlu0 %1998
    %2000 = vrot.lane.b32.xlu0 %v169, 28
    %v2001 = vpop.permute.xlu0 %2000
    %2002 = vrot.lane.b32.xlu0 %v170, 28
    %v2003 = vpop.permute.xlu0 %2002
    %2004 = vrot.lane.b32.xlu0 %v171, 28
    %v2005 = vpop.permute.xlu0 %2004
    %2006 = vrot.lane.b32.xlu0 %v172, 28
    %v2007 = vpop.permute.xlu0 %2006
    %2008 = vrot.lane.b32.xlu0 %v173, 28
    %v2009 = vpop.permute.xlu0 %2008
    %2010 = vrot.lane.b32.xlu0 %v174, 28
    %v2011 = vpop.permute.xlu0 %2010
    %2012 = vrot.lane.b32.xlu0 0.0, 28
    %v2013 = vpop.permute.xlu0 %2012
    %2014 = vrot.lane.b32.xlu0 %v177, 28
    %v2015 = vpop.permute.xlu0 %2014
    %2016 = vrot.lane.b32.xlu0 %v178, 28
    %v2017 = vpop.permute.xlu0 %2016
    %2018 = vrot.lane.b32.xlu0 %v179, 28
    %v2019 = vpop.permute.xlu0 %2018
    %2020 = vrot.lane.b32.xlu0 %v180, 28
    %v2021 = vpop.permute.xlu0 %2020
    %2022 = vrot.lane.b32.xlu0 %v181, 28
    %v2023 = vpop.permute.xlu0 %2022
    %2024 = vrot.lane.b32.xlu0 %v182, 28
    %v2025 = vpop.permute.xlu0 %2024
    %2026 = vrot.lane.b32.xlu0 %v183, 28
    %v2027 = vpop.permute.xlu0 %2026
    %2028 = vrot.lane.b32.xlu0 %v184, 28
    %v2029 = vpop.permute.xlu0 %2028
    %2030 = vrot.lane.b32.xlu0 %v185, 28
    %v2031 = vpop.permute.xlu0 %2030
    %2032 = vrot.lane.b32.xlu0 %v186, 28
    %v2033 = vpop.permute.xlu0 %2032
    %2034 = vrot.lane.b32.xlu0 %v187, 28
    %v2035 = vpop.permute.xlu0 %2034
    %2036 = vrot.lane.b32.xlu0 %v188, 28
    %v2037 = vpop.permute.xlu0 %2036
    %2038 = vrot.lane.b32.xlu0 %v189, 28
    %v2039 = vpop.permute.xlu0 %2038
    %2040 = vrot.lane.b32.xlu0 %v190, 28
    %v2041 = vpop.permute.xlu0 %2040
    %2042 = vrot.lane.b32.xlu0 %v191, 28
    %v2043 = vpop.permute.xlu0 %2042
    %2044 = vrot.lane.b32.xlu0 %v192, 28
    %v2045 = vpop.permute.xlu0 %2044
    %2046 = vrot.lane.b32.xlu0 %v193, 28
    %v2047 = vpop.permute.xlu0 %2046
    %2048 = vrot.lane.b32.xlu0 %v194, 28
    %v2049 = vpop.permute.xlu0 %2048
    %2050 = vrot.lane.b32.xlu0 %v195, 28
    %v2051 = vpop.permute.xlu0 %2050
    %2052 = vrot.lane.b32.xlu0 %v196, 28
    %v2053 = vpop.permute.xlu0 %2052
    %2054 = vrot.lane.b32.xlu0 %v197, 28
    %v2055 = vpop.permute.xlu0 %2054
    %2056 = vrot.lane.b32.xlu0 %v198, 28
    %v2057 = vpop.permute.xlu0 %2056
    %2058 = vrot.lane.b32.xlu0 %v199, 28
    %v2059 = vpop.permute.xlu0 %2058
    %2060 = vrot.lane.b32.xlu0 %v200, 28
    %v2061 = vpop.permute.xlu0 %2060
    %2062 = vrot.lane.b32.xlu0 %v201, 28
    %v2063 = vpop.permute.xlu0 %2062
    %2064 = vrot.lane.b32.xlu0 %v202, 28
    %v2065 = vpop.permute.xlu0 %2064
    %2066 = vrot.lane.b32.xlu0 %v203, 28
    %v2067 = vpop.permute.xlu0 %2066
    %2068 = vrot.lane.b32.xlu0 %v204, 28
    %v2069 = vpop.permute.xlu0 %2068
    %2070 = vrot.lane.b32.xlu0 %v205, 28
    %v2071 = vpop.permute.xlu0 %2070
    %2072 = vrot.lane.b32.xlu0 %v206, 28
    %v2073 = vpop.permute.xlu0 %2072
    %2135 = vrot.lane.b32.xlu0 %v542, 32
    %v2136 = vpop.permute.xlu0 %2135
    %2137 = vrot.lane.b32.xlu0 %v543, 32
    %v2138 = vpop.permute.xlu0 %2137
    %2139 = vrot.lane.b32.xlu0 %v544, 32
    %v2140 = vpop.permute.xlu0 %2139
    %2141 = vrot.lane.b32.xlu0 %v545, 32
    %v2142 = vpop.permute.xlu0 %2141
    %2143 = vrot.lane.b32.xlu0 %v546, 32
    %v2144 = vpop.permute.xlu0 %2143
    %2145 = vrot.lane.b32.xlu0 %v547, 32
    %v2146 = vpop.permute.xlu0 %2145
    %2147 = vrot.lane.b32.xlu0 %v548, 32
    %v2148 = vpop.permute.xlu0 %2147
    %2149 = vrot.lane.b32.xlu0 %v549, 32
    %v2150 = vpop.permute.xlu0 %2149
    %2151 = vrot.lane.b32.xlu0 %v550, 32
    %v2152 = vpop.permute.xlu0 %2151
    %2153 = vrot.lane.b32.xlu0 %v551, 32
    %v2154 = vpop.permute.xlu0 %2153
    %2155 = vrot.lane.b32.xlu0 %v552, 32
    %v2156 = vpop.permute.xlu0 %2155
    %2157 = vrot.lane.b32.xlu0 %v553, 32
    %v2158 = vpop.permute.xlu0 %2157
    %2159 = vrot.lane.b32.xlu0 %v554, 32
    %v2160 = vpop.permute.xlu0 %2159
    %2161 = vrot.lane.b32.xlu0 %v555, 32
    %v2162 = vpop.permute.xlu0 %2161
    %2163 = vrot.lane.b32.xlu0 %v556, 32
    %v2164 = vpop.permute.xlu0 %2163
    %2165 = vrot.lane.b32.xlu0 %v557, 32
    %v2166 = vpop.permute.xlu0 %2165
    %2167 = vrot.lane.b32.xlu0 %v558, 32
    %v2168 = vpop.permute.xlu0 %2167
    %2169 = vrot.lane.b32.xlu0 %v559, 32
    %v2170 = vpop.permute.xlu0 %2169
    %2171 = vrot.lane.b32.xlu0 %v560, 32
    %v2172 = vpop.permute.xlu0 %2171
    %2173 = vrot.lane.b32.xlu0 %v561, 32
    %v2174 = vpop.permute.xlu0 %2173
    %2175 = vrot.lane.b32.xlu0 %v562, 32
    %v2176 = vpop.permute.xlu0 %2175
    %2177 = vrot.lane.b32.xlu0 %v563, 32
    %v2178 = vpop.permute.xlu0 %2177
    %2179 = vrot.lane.b32.xlu0 %v564, 32
    %v2180 = vpop.permute.xlu0 %2179
    %2181 = vrot.lane.b32.xlu0 %v565, 32
    %v2182 = vpop.permute.xlu0 %2181
    %2183 = vrot.lane.b32.xlu0 %v566, 32
    %v2184 = vpop.permute.xlu0 %2183
    %2185 = vrot.lane.b32.xlu0 %v567, 32
    %v2186 = vpop.permute.xlu0 %2185
    %2187 = vrot.lane.b32.xlu0 %v568, 32
    %v2188 = vpop.permute.xlu0 %2187
    %2189 = vrot.lane.b32.xlu0 %v569, 32
    %v2190 = vpop.permute.xlu0 %2189
    %2191 = vrot.lane.b32.xlu0 %v620, 32
    %v2192 = vpop.permute.xlu0 %2191
    %2193 = vrot.lane.b32.xlu0 %v621, 32
    %v2194 = vpop.permute.xlu0 %2193
    %2195 = vrot.lane.b32.xlu0 %v538, 32
    %v2196 = vpop.permute.xlu0 %2195
    %2197 = vrot.lane.b32.xlu0 %v539, 32
    %v2198 = vpop.permute.xlu0 %2197
    %2199 = vrot.lane.b32.xlu0 %v572, 32
    %v2200 = vpop.permute.xlu0 %2199
    %2201 = vrot.lane.b32.xlu0 %v573, 32
    %v2202 = vpop.permute.xlu0 %2201
    %2203 = vrot.lane.b32.xlu0 %v574, 32
    %v2204 = vpop.permute.xlu0 %2203
    %2205 = vrot.lane.b32.xlu0 %v575, 32
    %v2206 = vpop.permute.xlu0 %2205
    %2207 = vrot.lane.b32.xlu0 %v576, 32
    %v2208 = vpop.permute.xlu0 %2207
    %2209 = vrot.lane.b32.xlu0 %v577, 32
    %v2210 = vpop.permute.xlu0 %2209
    %2211 = vrot.lane.b32.xlu0 %v578, 32
    %v2212 = vpop.permute.xlu0 %2211
    %2213 = vrot.lane.b32.xlu0 %v579, 32
    %v2214 = vpop.permute.xlu0 %2213
    %2215 = vrot.lane.b32.xlu0 %v580, 32
    %v2216 = vpop.permute.xlu0 %2215
    %2217 = vrot.lane.b32.xlu0 %v581, 32
    %v2218 = vpop.permute.xlu0 %2217
    %2219 = vrot.lane.b32.xlu0 %v582, 32
    %v2220 = vpop.permute.xlu0 %2219
    %2221 = vrot.lane.b32.xlu0 %v583, 32
    %v2222 = vpop.permute.xlu0 %2221
    %2223 = vrot.lane.b32.xlu0 %v584, 32
    %v2224 = vpop.permute.xlu0 %2223
    %2225 = vrot.lane.b32.xlu0 %v585, 32
    %v2226 = vpop.permute.xlu0 %2225
    %2227 = vrot.lane.b32.xlu0 %v586, 32
    %v2228 = vpop.permute.xlu0 %2227
    %2229 = vrot.lane.b32.xlu0 %v587, 32
    %v2230 = vpop.permute.xlu0 %2229
    %2231 = vrot.lane.b32.xlu0 %v588, 32
    %v2232 = vpop.permute.xlu0 %2231
    %2233 = vrot.lane.b32.xlu0 %v589, 32
    %v2234 = vpop.permute.xlu0 %2233
    %2235 = vrot.lane.b32.xlu0 %v590, 32
    %v2236 = vpop.permute.xlu0 %2235
    %2237 = vrot.lane.b32.xlu0 %v591, 32
    %v2238 = vpop.permute.xlu0 %2237
    %2239 = vrot.lane.b32.xlu0 %v592, 32
    %v2240 = vpop.permute.xlu0 %2239
    %2241 = vrot.lane.b32.xlu0 %v593, 32
    %v2242 = vpop.permute.xlu0 %2241
    %2243 = vrot.lane.b32.xlu0 %v594, 32
    %v2244 = vpop.permute.xlu0 %2243
    %2245 = vrot.lane.b32.xlu0 %v595, 32
    %v2246 = vpop.permute.xlu0 %2245
    %2247 = vrot.lane.b32.xlu0 %v596, 32
    %v2248 = vpop.permute.xlu0 %2247
    %2249 = vrot.lane.b32.xlu0 %v597, 32
    %v2250 = vpop.permute.xlu0 %2249
    %2251 = vrot.lane.b32.xlu0 %v598, 32
    %v2252 = vpop.permute.xlu0 %2251
    %2253 = vrot.lane.b32.xlu0 %v599, 32
    %v2254 = vpop.permute.xlu0 %2253
    %2255 = vrot.lane.b32.xlu0 %v622, 32
    %v2256 = vpop.permute.xlu0 %2255
    %2257 = vrot.lane.b32.xlu0 %v623, 32
    %v2258 = vpop.permute.xlu0 %2257
    %vm2321 = vcmask 31744
    %v2322 = vsel %vm2321, %v343, %v686
    %v2323 = vsel %vm2321, %v344, %v686
    %v2324 = vsel %vm2321, %v345, %v688
    %v2325 = vsel %vm2321, %v346, %v690
    %v2326 = vsel %vm2321, %v347, %v692
    %v2327 = vsel %vm2321, %v348, %v694
    %v2328 = vsel %vm2321, %v349, %v696
    %v2329 = vsel %vm2321, %v350, %v698
    %v2330 = vsel %vm2321, %v351, %v700
    %v2331 = vsel %vm2321, %v352, %v702
    %v2332 = vsel %vm2321, %v353, %v704
    %v2333 = vsel %vm2321, %v354, %v706
    %v2334 = vsel %vm2321, %v355, %v708
    %v2335 = vsel %vm2321, %v356, %v710
    %v2336 = vsel %vm2321, %v357, %v712
    %v2337 = vsel %vm2321, %v358, %v714
    %v2338 = vsel %vm2321, %v359, %v716
    %v2339 = vsel %vm2321, %v360, %v718
    %v2340 = vsel %vm2321, %v361, %v720
    %v2341 = vsel %vm2321, %v362, %v722
    %v2342 = vsel %vm2321, %v363, %v724
    %v2343 = vsel %vm2321, %v364, %v726
    %v2344 = vsel %vm2321, %v365, %v728
    %v2345 = vsel %vm2321, %v366, %v730
    %v2346 = vsel %vm2321, %v367, %v732
    %v2347 = vsel %vm2321, %v368, %v734
    %v2348 = vsel %vm2321, %v369, %v736
    %v2349 = vsel %vm2321, %v370, %v738
    %v2350 = vsel %vm2321, %v371, %v740
    %v2351 = vsel %vm2321, %v372, %v742
    %v2352 = vsel %vm2321, %v373, %v744
    %v2353 = vsel %vm2321, %v374, %v746
    %v2354 = vsel %vm2321, %v375, %v748
    %v2355 = vsel %vm2321, %v376, %v750
    %v2356 = vsel %vm2321, %v377, %v752
    %v2357 = vsel %vm2321, %v378, %v754
    %v2358 = vsel %vm2321, %v379, %v756
    %v2359 = vsel %vm2321, %v380, %v758
    %v2360 = vsel %vm2321, %v381, %v760
    %v2361 = vsel %vm2321, %v382, %v762
    %v2362 = vsel %vm2321, %v383, %v764
    %v2363 = vsel %vm2321, %v384, %v766
    %v2364 = vsel %vm2321, %v385, %v768
    %v2365 = vsel %vm2321, %v386, %v770
    %v2366 = vsel %vm2321, %v387, %v772
    %v2367 = vsel %vm2321, %v388, %v774
    %v2368 = vsel %vm2321, %v389, %v776
    %v2369 = vsel %vm2321, %v390, %v778
    %v2370 = vsel %vm2321, %v391, %v780
    %v2371 = vsel %vm2321, %v392, %v782
    %v2372 = vsel %vm2321, %v393, %v784
    %v2373 = vsel %vm2321, %v394, %v786
    %v2374 = vsel %vm2321, %v395, %v788
    %v2375 = vsel %vm2321, %v396, %v790
    %v2376 = vsel %vm2321, %v397, %v792
    %v2377 = vsel %vm2321, %v398, %v794
    %v2378 = vsel %vm2321, %v399, %v796
    %v2379 = vsel %vm2321, %v400, %v798
    %v2380 = vsel %vm2321, %v401, %v800
    %v2381 = vsel %vm2321, %v402, %v802
    %v2382 = vsel %vm2321, %v403, %v804
    %v2383 = vsel %vm2321, %v404, %v806
    %vm2384 = vcmask 64512
    %v2385 = vsel %vm2384, %v2322, %v931
    %v2386 = vsel %vm2384, %v2323, %v933
    %v2387 = vsel %vm2384, %v2324, %v935
    %v2388 = vsel %vm2384, %v2325, %v937
    %v2389 = vsel %vm2384, %v2326, %v939
    %v2390 = vsel %vm2384, %v2327, %v941
    %v2391 = vsel %vm2384, %v2328, %v943
    %v2392 = vsel %vm2384, %v2329, %v945
    %v2393 = vsel %vm2384, %v2330, %v947
    %v2394 = vsel %vm2384, %v2331, %v949
    %v2395 = vsel %vm2384, %v2332, %v951
    %v2396 = vsel %vm2384, %v2333, %v953
    %v2397 = vsel %vm2384, %v2334, %v955
    %v2398 = vsel %vm2384, %v2335, %v957
    %v2399 = vsel %vm2384, %v2336, %v959
    %v2400 = vsel %vm2384, %v2337, %v961
    %v2401 = vsel %vm2384, %v2338, %v963
    %v2402 = vsel %vm2384, %v2339, %v965
    %v2403 = vsel %vm2384, %v2340, %v967
    %v2404 = vsel %vm2384, %v2341, %v969
    %v2405 = vsel %vm2384, %v2342, %v971
    %v2406 = vsel %vm2384, %v2343, %v973
    %v2407 = vsel %vm2384, %v2344, %v975
    %v2408 = vsel %vm2384, %v2345, %v977
    %v2409 = vsel %vm2384, %v2346, %v979
    %v2410 = vsel %vm2384, %v2347, %v981
    %v2411 = vsel %vm2384, %v2348, %v983
    %v2412 = vsel %vm2384, %v2349, %v985
    %v2413 = vsel %vm2384, %v2350, %v987
    %v2414 = vsel %vm2384, %v2351, %v989
    %v2415 = vsel %vm2384, %v2352, %v991
    %v2416 = vsel %vm2384, %v2353, %v993
    %v2417 = vsel %vm2384, %v2354, %v995
    %v2418 = vsel %vm2384, %v2355, %v997
    %v2419 = vsel %vm2384, %v2356, %v999
    %v2420 = vsel %vm2384, %v2357, %v1001
    %v2421 = vsel %vm2384, %v2358, %v1003
    %v2422 = vsel %vm2384, %v2359, %v1005
    %v2423 = vsel %vm2384, %v2360, %v1007
    %v2424 = vsel %vm2384, %v2361, %v1009
    %v2425 = vsel %vm2384, %v2362, %v1011
    %v2426 = vsel %vm2384, %v2363, %v1013
    %v2427 = vsel %vm2384, %v2364, %v1015
    %v2428 = vsel %vm2384, %v2365, %v1017
    %v2429 = vsel %vm2384, %v2366, %v1019
    %v2430 = vsel %vm2384, %v2367, %v1021
    %v2431 = vsel %vm2384, %v2368, %v1023
    %v2432 = vsel %vm2384, %v2369, %v1025
    %v2433 = vsel %vm2384, %v2370, %v1027
    %v2434 = vsel %vm2384, %v2371, %v1029
    %v2435 = vsel %vm2384, %v2372, %v1031
    %v2436 = vsel %vm2384, %v2373, %v1033
    %v2437 = vsel %vm2384, %v2374, %v1035
    %v2438 = vsel %vm2384, %v2375, %v1037
    %v2439 = vsel %vm2384, %v2376, %v1039
    %v2440 = vsel %vm2384, %v2377, %v1041
    %v2441 = vsel %vm2384, %v2378, %v1043
    %v2442 = vsel %vm2384, %v2379, %v1045
    %v2443 = vsel %vm2384, %v2380, %v1047
    %v2444 = vsel %vm2384, %v2381, %v1049
    %v2445 = vsel %vm2384, %v2382, %v1051
    %v2446 = vsel %vm2384, %v2383, %v1053
    %vm2447 = vcmask 97280
    %v2448 = vsel %vm2447, %v2385, %v1181
    %v2449 = vsel %vm2447, %v2386, %v1183
    %v2450 = vsel %vm2447, %v2387, %v1185
    %v2451 = vsel %vm2447, %v2388, %v1187
    %v2452 = vsel %vm2447, %v2389, %v1189
    %v2453 = vsel %vm2447, %v2390, %v1191
    %v2454 = vsel %vm2447, %v2391, %v1193
    %v2455 = vsel %vm2447, %v2392, %v1195
    %v2456 = vsel %vm2447, %v2393, %v1197
    %v2457 = vsel %vm2447, %v2394, %v1199
    %v2458 = vsel %vm2447, %v2395, %v1201
    %v2459 = vsel %vm2447, %v2396, %v1203
    %v2460 = vsel %vm2447, %v2397, %v1205
    %v2461 = vsel %vm2447, %v2398, %v1207
    %v2462 = vsel %vm2447, %v2399, %v1209
    %v2463 = vsel %vm2447, %v2400, %v1211
    %v2464 = vsel %vm2447, %v2401, %v1213
    %v2465 = vsel %vm2447, %v2402, %v1215
    %v2466 = vsel %vm2447, %v2403, %v1217
    %v2467 = vsel %vm2447, %v2404, %v1219
    %v2468 = vsel %vm2447, %v2405, %v1221
    %v2469 = vsel %vm2447, %v2406, %v1223
    %v2470 = vsel %vm2447, %v2407, %v1225
    %v2471 = vsel %vm2447, %v2408, %v1227
    %v2472 = vsel %vm2447, %v2409, %v1229
    %v2473 = vsel %vm2447, %v2410, %v1231
    %v2474 = vsel %vm2447, %v2411, %v1233
    %v2475 = vsel %vm2447, %v2412, %v1235
    %v2476 = vsel %vm2447, %v2413, %v1237
    %v2477 = vsel %vm2447, %v2414, %v1239
    %v2478 = vsel %vm2447, %v2415, %v1241
    %v2479 = vsel %vm2447, %v2416, %v1243
    %v2480 = vsel %vm2447, %v2385, %v1245
    %v2481 = vsel %vm2447, %v2386, %v1247
    %v2482 = vsel %vm2447, %v2417, %v1249
    %v2483 = vsel %vm2447, %v2418, %v1251
    %v2484 = vsel %vm2447, %v2419, %v1253
    %v2485 = vsel %vm2447, %v2420, %v1255
    %v2486 = vsel %vm2447, %v2421, %v1257
    %v2487 = vsel %vm2447, %v2422, %v1259
    %v2488 = vsel %vm2447, %v2423, %v1261
    %v2489 = vsel %vm2447, %v2424, %v1263
    %v2490 = vsel %vm2447, %v2425, %v1265
    %v2491 = vsel %vm2447, %v2426, %v1267
    %v2492 = vsel %vm2447, %v2427, %v1269
    %v2493 = vsel %vm2447, %v2428, %v1271
    %v2494 = vsel %vm2447, %v2429, %v1273
    %v2495 = vsel %vm2447, %v2430, %v1275
    %v2496 = vsel %vm2447, %v2431, %v1277
    %v2497 = vsel %vm2447, %v2432, %v1279
    %v2498 = vsel %vm2447, %v2433, %v1281
    %v2499 = vsel %vm2447, %v2434, %v1283
    %v2500 = vsel %vm2447, %v2435, %v1285
    %v2501 = vsel %vm2447, %v2436, %v1287
    %v2502 = vsel %vm2447, %v2437, %v1289
    %v2503 = vsel %vm2447, %v2438, %v1291
    %v2504 = vsel %vm2447, %v2439, %v1293
    %v2505 = vsel %vm2447, %v2440, %v1295
    %v2506 = vsel %vm2447, %v2441, %v1297
    %v2507 = vsel %vm2447, %v2442, %v1299
    %v2508 = vsel %vm2447, %v2443, %v1301
    %v2509 = vsel %vm2447, %v2444, %v1303
    %v2510 = vsel %vm2447, %v2445, %v1305
    %v2511 = vsel %vm2447, %v2446, %v1307
    %vm2512 = vcmask 130048
    %v2513 = vsel %vm2512, %v2448, %v1377
    %v2514 = vsel %vm2512, %v2449, %v1379
    %v2515 = vsel %vm2512, %v2450, %v1381
    %v2516 = vsel %vm2512, %v2451, %v1383
    %v2517 = vsel %vm2512, %v2452, %v1385
    %v2518 = vsel %vm2512, %v2453, %v1387
    %v2519 = vsel %vm2512, %v2454, %v1389
    %v2520 = vsel %vm2512, %v2455, %v1391
    %v2521 = vsel %vm2512, %v2456, %v1393
    %v2522 = vsel %vm2512, %v2457, %v1395
    %v2523 = vsel %vm2512, %v2458, %v1397
    %v2524 = vsel %vm2512, %v2459, %v1399
    %v2525 = vsel %vm2512, %v2460, %v1401
    %v2526 = vsel %vm2512, %v2461, %v1403
    %v2527 = vsel %vm2512, %v2462, %v1405
    %v2528 = vsel %vm2512, %v2463, %v1407
    %v2529 = vsel %vm2512, %v2464, %v1409
    %v2530 = vsel %vm2512, %v2465, %v1411
    %v2531 = vsel %vm2512, %v2466, %v1413
    %v2532 = vsel %vm2512, %v2467, %v1415
    %v2533 = vsel %vm2512, %v2468, %v1417
    %v2534 = vsel %vm2512, %v2469, %v1419
    %v2535 = vsel %vm2512, %v2470, %v1421
    %v2536 = vsel %vm2512, %v2471, %v1423
    %v2537 = vsel %vm2512, %v2472, %v1425
    %v2538 = vsel %vm2512, %v2473, %v1427
    %v2539 = vsel %vm2512, %v2474, %v1429
    %v2540 = vsel %vm2512, %v2475, %v1431
    %v2541 = vsel %vm2512, %v2476, %v1433
    %v2542 = vsel %vm2512, %v2477, %v1435
    %v2543 = vsel %vm2512, %v2478, %v1437
    %v2544 = vsel %vm2512, %v2479, %v1439
    %v2545 = vsel %vm2512, %v2480, %v1441
    %v2546 = vsel %vm2512, %v2481, %v1443
    %v2547 = vsel %vm2512, %v2482, %v1445
    %v2548 = vsel %vm2512, %v2483, %v1447
    %v2549 = vsel %vm2512, %v2484, %v1449
    %v2550 = vsel %vm2512, %v2485, %v1451
    %v2551 = vsel %vm2512, %v2486, %v1453
    %v2552 = vsel %vm2512, %v2487, %v1455
    %v2553 = vsel %vm2512, %v2488, %v1457
    %v2554 = vsel %vm2512, %v2489, %v1459
    %v2555 = vsel %vm2512, %v2490, %v1461
    %v2556 = vsel %vm2512, %v2491, %v1463
    %v2557 = vsel %vm2512, %v2492, %v1465
    %v2558 = vsel %vm2512, %v2493, %v1467
    %v2559 = vsel %vm2512, %v2494, %v1469
    %v2560 = vsel %vm2512, %v2495, %v1471
    %v2561 = vsel %vm2512, %v2496, %v1473
    %v2562 = vsel %vm2512, %v2497, %v1475
    %v2563 = vsel %vm2512, %v2498, %v1477
    %v2564 = vsel %vm2512, %v2499, %v1479
    %v2565 = vsel %vm2512, %v2500, %v1481
    %v2566 = vsel %vm2512, %v2501, %v1483
    %v2567 = vsel %vm2512, %v2502, %v1485
    %v2568 = vsel %vm2512, %v2503, %v1487
    %v2569 = vsel %vm2512, %v2504, %v1489
    %v2570 = vsel %vm2512, %v2505, %v1491
    %v2571 = vsel %vm2512, %v2506, %v1493
    %v2572 = vsel %vm2512, %v2507, %v1495
    %v2573 = vsel %vm2512, %v2508, %v1497
    %v2574 = vsel %vm2512, %v2509, %v1499
    %v2575 = vsel %vm2512, %v2510, %v1501
    %v2576 = vsel %vm2512, %v2511, %v1503
    %vm2577 = vcmask 162816
    %v2578 = vsel %vm2577, %v2513, %v1573
    %v2579 = vsel %vm2577, %v2514, %v1575
    %v2580 = vsel %vm2577, %v2515, %v1577
    %v2581 = vsel %vm2577, %v2516, %v1579
    %v2582 = vsel %vm2577, %v2517, %v1581
    %v2583 = vsel %vm2577, %v2518, %v1583
    %v2584 = vsel %vm2577, %v2519, %v1585
    %v2585 = vsel %vm2577, %v2520, %v1587
    %v2586 = vsel %vm2577, %v2521, %v1589
    %v2587 = vsel %vm2577, %v2522, %v1591
    %v2588 = vsel %vm2577, %v2523, %v1593
    %v2589 = vsel %vm2577, %v2524, %v1595
    %v2590 = vsel %vm2577, %v2525, %v1597
    %v2591 = vsel %vm2577, %v2526, %v1599
    %v2592 = vsel %vm2577, %v2527, %v1601
    %v2593 = vsel %vm2577, %v2528, %v1603
    %v2594 = vsel %vm2577, %v2529, %v1605
    %v2595 = vsel %vm2577, %v2530, %v1607
    %v2596 = vsel %vm2577, %v2531, %v1609
    %v2597 = vsel %vm2577, %v2532, %v1611
    %v2598 = vsel %vm2577, %v2533, %v1613
    %v2599 = vsel %vm2577, %v2534, %v1615
    %v2600 = vsel %vm2577, %v2535, %v1617
    %v2601 = vsel %vm2577, %v2536, %v1619
    %v2602 = vsel %vm2577, %v2537, %v1621
    %v2603 = vsel %vm2577, %v2538, %v1623
    %v2604 = vsel %vm2577, %v2539, %v1625
    %v2605 = vsel %vm2577, %v2540, %v1627
    %v2606 = vsel %vm2577, %v2541, %v1629
    %v2607 = vsel %vm2577, %v2542, %v1631
    %v2608 = vsel %vm2577, %v2543, %v1633
    %v2609 = vsel %vm2577, %v2544, %v1635
    %v2610 = vsel %vm2577, %v2545, %v1637
    %v2611 = vsel %vm2577, %v2546, %v1639
    %v2612 = vsel %vm2577, %v2547, %v1641
    %v2613 = vsel %vm2577, %v2548, %v1643
    %v2614 = vsel %vm2577, %v2549, %v1645
    %v2615 = vsel %vm2577, %v2550, %v1647
    %v2616 = vsel %vm2577, %v2551, %v1649
    %v2617 = vsel %vm2577, %v2552, %v1651
    %v2618 = vsel %vm2577, %v2553, %v1653
    %v2619 = vsel %vm2577, %v2554, %v1655
    %v2620 = vsel %vm2577, %v2555, %v1657
    %v2621 = vsel %vm2577, %v2556, %v1659
    %v2622 = vsel %vm2577, %v2557, %v1661
    %v2623 = vsel %vm2577, %v2558, %v1663
    %v2624 = vsel %vm2577, %v2559, %v1665
    %v2625 = vsel %vm2577, %v2560, %v1667
    %v2626 = vsel %vm2577, %v2561, %v1669
    %v2627 = vsel %vm2577, %v2562, %v1671
    %v2628 = vsel %vm2577, %v2563, %v1673
    %v2629 = vsel %vm2577, %v2564, %v1675
    %v2630 = vsel %vm2577, %v2565, %v1677
    %v2631 = vsel %vm2577, %v2566, %v1679
    %v2632 = vsel %vm2577, %v2567, %v1681
    %v2633 = vsel %vm2577, %v2568, %v1683
    %v2634 = vsel %vm2577, %v2569, %v1685
    %v2635 = vsel %vm2577, %v2570, %v1687
    %v2636 = vsel %vm2577, %v2571, %v1689
    %v2637 = vsel %vm2577, %v2572, %v1691
    %v2638 = vsel %vm2577, %v2573, %v1693
    %v2639 = vsel %vm2577, %v2574, %v1695
    %v2640 = vsel %vm2577, %v2575, %v1697
    %v2641 = vsel %vm2577, %v2576, %v1699
    %vm2642 = vcmask 195584
    %v2643 = vsel %vm2642, %v2578, %v1767
    %v2644 = vsel %vm2642, %v2579, %v1769
    %v2645 = vsel %vm2642, %v2580, %v1771
    %v2646 = vsel %vm2642, %v2581, %v1773
    %v2647 = vsel %vm2642, %v2582, %v1775
    %v2648 = vsel %vm2642, %v2583, %v1777
    %v2649 = vsel %vm2642, %v2584, %v1779
    %v2650 = vsel %vm2642, %v2585, %v1781
    %v2651 = vsel %vm2642, %v2586, %v1783
    %v2652 = vsel %vm2642, %v2587, %v1785
    %v2653 = vsel %vm2642, %v2588, %v1787
    %v2654 = vsel %vm2642, %v2589, %v1789
    %v2655 = vsel %vm2642, %v2590, %v1791
    %v2656 = vsel %vm2642, %v2591, %v1793
    %v2657 = vsel %vm2642, %v2592, %v1795
    %v2658 = vsel %vm2642, %v2593, %v1797
    %v2659 = vsel %vm2642, %v2594, %v1799
    %v2660 = vsel %vm2642, %v2595, %v1801
    %v2661 = vsel %vm2642, %v2596, %v1803
    %v2662 = vsel %vm2642, %v2597, %v1805
    %v2663 = vsel %vm2642, %v2598, %v1807
    %v2664 = vsel %vm2642, %v2599, %v1809
    %v2665 = vsel %vm2642, %v2600, %v1811
    %v2666 = vsel %vm2642, %v2601, %v1813
    %v2667 = vsel %vm2642, %v2602, %v1815
    %v2668 = vsel %vm2642, %v2603, %v1817
    %v2669 = vsel %vm2642, %v2604, %v1819
    %v2670 = vsel %vm2642, %v2605, %v1821
    %v2671 = vsel %vm2642, %v2606, %v1823
    %v2672 = vsel %vm2642, %v2607, %v1825
    %v2673 = vsel %vm2642, %v2608, %v1827
    %v2674 = vsel %vm2642, %v2609, %v1829
    %v2675 = vsel %vm2642, %v2610, %v1831
    %v2676 = vsel %vm2642, %v2611, %v1833
    %v2677 = vsel %vm2642, %v2612, %v1835
    %v2678 = vsel %vm2642, %v2613, %v1837
    %v2679 = vsel %vm2642, %v2614, %v1839
    %v2680 = vsel %vm2642, %v2615, %v1841
    %v2681 = vsel %vm2642, %v2616, %v1843
    %v2682 = vsel %vm2642, %v2617, %v1845
    %v2683 = vsel %vm2642, %v2618, %v1847
    %v2684 = vsel %vm2642, %v2619, %v1849
    %v2685 = vsel %vm2642, %v2620, %v1851
    %v2686 = vsel %vm2642, %v2621, %v1853
    %v2687 = vsel %vm2642, %v2622, %v1855
    %v2688 = vsel %vm2642, %v2623, %v1857
    %v2689 = vsel %vm2642, %v2624, %v1859
    %v2690 = vsel %vm2642, %v2625, %v1861
    %v2691 = vsel %vm2642, %v2626, %v1863
    %v2692 = vsel %vm2642, %v2627, %v1865
    %v2693 = vsel %vm2642, %v2628, %v1867
    %v2694 = vsel %vm2642, %v2629, %v1869
    %v2695 = vsel %vm2642, %v2630, %v1871
    %v2696 = vsel %vm2642, %v2631, %v1873
    %v2697 = vsel %vm2642, %v2632, %v1875
    %v2698 = vsel %vm2642, %v2633, %v1877
    %v2699 = vsel %vm2642, %v2634, %v1879
    %v2700 = vsel %vm2642, %v2635, %v1881
    %v2701 = vsel %vm2642, %v2636, %v1883
    %v2702 = vsel %vm2642, %v2637, %v1885
    %v2703 = vsel %vm2642, %v2638, %v1887
    %v2704 = vsel %vm2642, %v2639, %v1889
    %v2705 = vsel %vm2642, %v2640, %v1827
    %v2706 = vsel %vm2642, %v2641, %v1829
    %vm2707 = vcmask 228352
    %v2708 = vsel %vm2707, %v2643, %v1953
    %v2709 = vsel %vm2707, %v2644, %v1955
    %v2710 = vsel %vm2707, %v2645, %v1957
    %v2711 = vsel %vm2707, %v2646, %v1959
    %v2712 = vsel %vm2707, %v2647, %v1961
    %v2713 = vsel %vm2707, %v2648, %v1963
    %v2714 = vsel %vm2707, %v2649, %v1965
    %v2715 = vsel %vm2707, %v2650, %v1967
    %v2716 = vsel %vm2707, %v2651, %v1969
    %v2717 = vsel %vm2707, %v2652, %v1971
    %v2718 = vsel %vm2707, %v2653, %v1973
    %v2719 = vsel %vm2707, %v2654, %v1975
    %v2720 = vsel %vm2707, %v2655, %v1977
    %v2721 = vsel %vm2707, %v2656, %v1979
    %v2722 = vsel %vm2707, %v2657, %v1981
    %v2723 = vsel %vm2707, %v2658, %v1983
    %v2724 = vsel %vm2707, %v2659, %v1985
    %v2725 = vsel %vm2707, %v2660, %v1987
    %v2726 = vsel %vm2707, %v2661, %v1989
    %v2727 = vsel %vm2707, %v2662, %v1991
    %v2728 = vsel %vm2707, %v2663, %v1993
    %v2729 = vsel %vm2707, %v2664, %v1995
    %v2730 = vsel %vm2707, %v2665, %v1997
    %v2731 = vsel %vm2707, %v2666, %v1999
    %v2732 = vsel %vm2707, %v2667, %v2001
    %v2733 = vsel %vm2707, %v2668, %v2003
    %v2734 = vsel %vm2707, %v2669, %v2005
    %v2735 = vsel %vm2707, %v2670, %v2007
    %v2736 = vsel %vm2707, %v2671, %v2009
    %v2737 = vsel %vm2707, %v2672, %v2011
    %v2738 = vsel %vm2707, %v2673, %v2013
    %v2739 = vsel %vm2707, %v2674, %v2013
    %v2740 = vsel %vm2707, %v2675, %v2015
    %v2741 = vsel %vm2707, %v2676, %v2017
    %v2742 = vsel %vm2707, %v2677, %v2019
    %v2743 = vsel %vm2707, %v2678, %v2021
    %v2744 = vsel %vm2707, %v2679, %v2023
    %v2745 = vsel %vm2707, %v2680, %v2025
    %v2746 = vsel %vm2707, %v2681, %v2027
    %v2747 = vsel %vm2707, %v2682, %v2029
    %v2748 = vsel %vm2707, %v2683, %v2031
    %v2749 = vsel %vm2707, %v2684, %v2033
    %v2750 = vsel %vm2707, %v2685, %v2035
    %v2751 = vsel %vm2707, %v2686, %v2037
    %v2752 = vsel %vm2707, %v2687, %v2039
    %v2753 = vsel %vm2707, %v2688, %v2041
    %v2754 = vsel %vm2707, %v2689, %v2043
    %v2755 = vsel %vm2707, %v2690, %v2045
    %v2756 = vsel %vm2707, %v2691, %v2047
    %v2757 = vsel %vm2707, %v2692, %v2049
    %v2758 = vsel %vm2707, %v2693, %v2051
    %v2759 = vsel %vm2707, %v2694, %v2053
    %v2760 = vsel %vm2707, %v2695, %v2055
    %v2761 = vsel %vm2707, %v2696, %v2057
    %v2762 = vsel %vm2707, %v2697, %v2059
    %v2763 = vsel %vm2707, %v2698, %v2061
    %v2764 = vsel %vm2707, %v2699, %v2063
    %v2765 = vsel %vm2707, %v2700, %v2065
    %v2766 = vsel %vm2707, %v2701, %v2067
    %v2767 = vsel %vm2707, %v2702, %v2069
    %v2768 = vsel %vm2707, %v2703, %v2071
    %v2769 = vsel %vm2707, %v2704, %v2073
    %v2770 = vsel %vm2707, %v2705, %v2013
    %v2771 = vsel %vm2707, %v2706, %v2013
    %vm2772 = vcmask 261120
    %v2773 = vsel %vm2772, %v2708, %v2136
    %v2774 = vsel %vm2772, %v2709, %v2138
    %v2775 = vsel %vm2772, %v2710, %v2140
    %v2776 = vsel %vm2772, %v2711, %v2142
    %v2777 = vsel %vm2772, %v2712, %v2144
    %v2778 = vsel %vm2772, %v2713, %v2146
    %v2779 = vsel %vm2772, %v2714, %v2148
    %v2780 = vsel %vm2772, %v2715, %v2150
    %v2781 = vsel %vm2772, %v2716, %v2152
    %v2782 = vsel %vm2772, %v2717, %v2154
    %v2783 = vsel %vm2772, %v2718, %v2156
    %v2784 = vsel %vm2772, %v2719, %v2158
    %v2785 = vsel %vm2772, %v2720, %v2160
    %v2786 = vsel %vm2772, %v2721, %v2162
    %v2787 = vsel %vm2772, %v2722, %v2164
    %v2788 = vsel %vm2772, %v2723, %v2166
    %v2789 = vsel %vm2772, %v2724, %v2168
    %v2790 = vsel %vm2772, %v2725, %v2170
    %v2791 = vsel %vm2772, %v2726, %v2172
    %v2792 = vsel %vm2772, %v2727, %v2174
    %v2793 = vsel %vm2772, %v2728, %v2176
    %v2794 = vsel %vm2772, %v2729, %v2178
    %v2795 = vsel %vm2772, %v2730, %v2180
    %v2796 = vsel %vm2772, %v2731, %v2182
    %v2797 = vsel %vm2772, %v2732, %v2184
    %v2798 = vsel %vm2772, %v2733, %v2186
    %v2799 = vsel %vm2772, %v2734, %v2188
    %v2800 = vsel %vm2772, %v2735, %v2190
    %v2801 = vsel %vm2772, %v2736, %v2192
    %v2802 = vsel %vm2772, %v2737, %v2194
    %v2803 = vsel %vm2772, %v2738, %v2196
    %v2804 = vsel %vm2772, %v2739, %v2198
    %v2805 = vsel %vm2772, %v2740, %v2200
    %v2806 = vsel %vm2772, %v2741, %v2202
    %v2807 = vsel %vm2772, %v2742, %v2204
    %v2808 = vsel %vm2772, %v2743, %v2206
    %v2809 = vsel %vm2772, %v2744, %v2208
    %v2810 = vsel %vm2772, %v2745, %v2210
    %v2811 = vsel %vm2772, %v2746, %v2212
    %v2812 = vsel %vm2772, %v2747, %v2214
    %v2813 = vsel %vm2772, %v2748, %v2216
    %v2814 = vsel %vm2772, %v2749, %v2218
    %v2815 = vsel %vm2772, %v2750, %v2220
    %v2816 = vsel %vm2772, %v2751, %v2222
    %v2817 = vsel %vm2772, %v2752, %v2224
    %v2818 = vsel %vm2772, %v2753, %v2226
    %v2819 = vsel %vm2772, %v2754, %v2228
    %v2820 = vsel %vm2772, %v2755, %v2230
    %v2821 = vsel %vm2772, %v2756, %v2232
    %v2822 = vsel %vm2772, %v2757, %v2234
    %v2823 = vsel %vm2772, %v2758, %v2236
    %v2824 = vsel %vm2772, %v2759, %v2238
    %v2825 = vsel %vm2772, %v2760, %v2240
    %v2826 = vsel %vm2772, %v2761, %v2242
    %v2827 = vsel %vm2772, %v2762, %v2244
    %v2828 = vsel %vm2772, %v2763, %v2246
    %v2829 = vsel %vm2772, %v2764, %v2248
    %v2830 = vsel %vm2772, %v2765, %v2250
    %v2831 = vsel %vm2772, %v2766, %v2252
    %v2832 = vsel %vm2772, %v2767, %v2254
    %v2833 = vsel %vm2772, %v2768, %v2256
    %v2834 = vsel %vm2772, %v2769, %v2258
    %v2835 = vsel %vm2772, %v2770, %v2196
    %v2836 = vsel %vm2772, %v2771, %v2198
    %v2837 = vld [vmem:[#allocation5] sm:$0xff]
    %v2838 = vld [vmem:[#allocation5 + $0x8] sm:$0xff]
    %v2839 = vld [vmem:[#allocation5 + $0x10] sm:$0xff]
    %v2840 = vld [vmem:[#allocation5 + $0x18] sm:$0xff]
    %v2841 = vld [vmem:[#allocation5 + $0x20] sm:$0xf]
    %v2842 = vld [vmem:[#allocation7] sm:$0x1]
    %v2844 = vlaneseq
    %v2845 = vshrl.u32 %v2844, 7
    %v2846 = vsub.s32 0, %v2845
    %v2847 = vrot.slane %v2842, %v2846
    %vm2849 = vcmask 293888
    %v2851 = vsel %vm2849, %v2773, 0
    %v2854 = vsel %vm2849, %v2774, 0
    %v2857 = vsel %vm2849, %v2775, 0
    %v2860 = vsel %vm2849, %v2776, 0
    %v2863 = vsel %vm2849, %v2777, 0
    %v2866 = vsel %vm2849, %v2778, 0
    %v2869 = vsel %vm2849, %v2779, 0
    %v2872 = vsel %vm2849, %v2780, 0
    %v2875 = vsel %vm2849, %v2781, 0
    %v2878 = vsel %vm2849, %v2782, 0
    %v2881 = vsel %vm2849, %v2783, 0
    %v2884 = vsel %vm2849, %v2784, 0
    %v2887 = vsel %vm2849, %v2785, 0
    %v2890 = vsel %vm2849, %v2786, 0
    %v2893 = vsel %vm2849, %v2787, 0
    %v2896 = vsel %vm2849, %v2788, 0
    %v2899 = vsel %vm2849, %v2789, 0
    %v2902 = vsel %vm2849, %v2790, 0
    %v2905 = vsel %vm2849, %v2791, 0
    %v2908 = vsel %vm2849, %v2792, 0
    %v2911 = vsel %vm2849, %v2793, 0
    %v2914 = vsel %vm2849, %v2794, 0
    %v2917 = vsel %vm2849, %v2795, 0
    %v2920 = vsel %vm2849, %v2796, 0
    %v2923 = vsel %vm2849, %v2797, 0
    %v2926 = vsel %vm2849, %v2798, 0
    %v2929 = vsel %vm2849, %v2799, 0
    %v2932 = vsel %vm2849, %v2800, 0
    %v2935 = vsel %vm2849, %v2801, 0
    %v2938 = vsel %vm2849, %v2802, 0
    %v2941 = vsel %vm2849, %v2803, 0
    %v2944 = vsel %vm2849, %v2804, 0
    %v2947 = vsel %vm2849, %v2805, 0
    %v2950 = vsel %vm2849, %v2806, 0
    %v2953 = vsel %vm2849, %v2807, 0
    %v2956 = vsel %vm2849, %v2808, 0
    %v2959 = vsel %vm2849, %v2809, 0
    %v2962 = vsel %vm2849, %v2810, 0
    %v2965 = vsel %vm2849, %v2811, 0
    %v2968 = vsel %vm2849, %v2812, 0
    %v2971 = vsel %vm2849, %v2813, 0
    %v2974 = vsel %vm2849, %v2814, 0
    %v2977 = vsel %vm2849, %v2815, 0
    %v2980 = vsel %vm2849, %v2816, 0
    %v2983 = vsel %vm2849, %v2817, 0
    %v2986 = vsel %vm2849, %v2818, 0
    %v2989 = vsel %vm2849, %v2819, 0
    %v2992 = vsel %vm2849, %v2820, 0
    %v2995 = vsel %vm2849, %v2821, 0
    %v2998 = vsel %vm2849, %v2822, 0
    %v3001 = vsel %vm2849, %v2823, 0
    %v3004 = vsel %vm2849, %v2824, 0
    %v3007 = vsel %vm2849, %v2825, 0
    %v3010 = vsel %vm2849, %v2826, 0
    %v3013 = vsel %vm2849, %v2827, 0
    %v3016 = vsel %vm2849, %v2828, 0
    %v3019 = vsel %vm2849, %v2829, 0
    %v3022 = vsel %vm2849, %v2830, 0
    %v3025 = vsel %vm2849, %v2831, 0
    %v3028 = vsel %vm2849, %v2832, 0
    %v3031 = vsel %vm2849, %v2833, 0
    %v3034 = vsel %vm2849, %v2834, 0
    %v3037 = vsel %vm2849, %v2835, 0
    %v3040 = vsel %vm2849, %v2836, 0
    %vm3042 = vcmask 1043456
    %v3044 = vsel %vm3042, %v2841, 0
    %3046 = vmatprep.subr.mxu0 0.0
    %3047 = vmatpush1.msra.mxu0 %v2837
    %3048 = vmatprep.subr.mxu0 0.0
    %3049 = vmatpush1.msra.mxu0 %v2838
    %3050 = vmatprep.subr.mxu0 0.0
    %3051 = vmatpush1.msra.mxu0 %v2839
    %3052 = vmatprep.subr.mxu0 0.0
    %3053 = vmatpush1.msra.mxu0 %v2840
    %3054 = vmatprep.subr.mxu0 0.0
    %3055 = vmatpush1.msra.mxu0 %v3044
    %3056 = vmatprep.subr.mxu0 0.0
    %3057 = vmatpush1.msra.mxu0 0.0
    %3058 = vmatprep.subr.mxu0 0.0
    %3059 = vmatpush1.msra.mxu0 0.0
    %3060 = vmatprep.subr.mxu0 0.0
    %3061 = vmatpush1.msra.mxu0 0.0
    %3062 = vmatprep.subr.mxu0 0.0
    %3063 = vmatpush1.msra.mxu0 0.0
    %3064 = vmatprep.subr.mxu0 0.0
    %3065 = vmatpush1.msra.mxu0 0.0
    %3066 = vmatprep.subr.mxu0 0.0
    %3067 = vmatpush1.msra.mxu0 0.0
    %3068 = vmatprep.subr.mxu0 0.0
    %3069 = vmatpush1.msra.mxu0 0.0
    %3070 = vmatprep.subr.mxu0 0.0
    %3071 = vmatpush1.msra.mxu0 0.0
    %3072 = vmatprep.subr.mxu0 0.0
    %3073 = vmatpush1.msra.mxu0 0.0
    %3074 = vmatprep.subr.mxu0 0.0
    %3075 = vmatpush1.msra.mxu0 0.0
    %3076 = vmatprep.subr.mxu0 0.0
    %3077 = vmatpush1.msra.mxu0 0.0
    %3078 = vmatprep.subr.mxu0 0.0
    %3079 = vmatpush1.msra.mxu0 0.0
    %3080 = vmatprep.subr.mxu0 0.0
    %3081 = vmatpush1.msra.mxu0 0.0
    %3082 = vmatprep.subr.mxu0 0.0
    %3083 = vmatpush1.msra.mxu0 0.0
    %3084 = vmatprep.subr.mxu0 0.0
    %3085 = vmatpush1.msra.mxu0 0.0
    %3086 = vmatprep.subr.mxu0 0.0
    %3087 = vmatpush1.msra.mxu0 0.0
    %3088 = vmatprep.subr.mxu0 0.0
    %3089 = vmatpush1.msra.mxu0 0.0
    %3090 = vmatprep.subr.mxu0 0.0
    %3091 = vmatpush1.msra.mxu0 0.0
    %3092 = vmatprep.subr.mxu0 0.0
    %3093 = vmatpush1.msra.mxu0 0.0
    %3094 = vmatprep.subr.mxu0 0.0
    %3095 = vmatpush1.msra.mxu0 0.0
    %3096 = vmatprep.subr.mxu0 0.0
    %3097 = vmatpush1.msra.mxu0 0.0
    %3098 = vmatprep.subr.mxu0 0.0
    %3099 = vmatpush1.msra.mxu0 0.0
    %3100 = vmatprep.subr.mxu0 0.0
    %3101 = vmatpush1.msra.mxu0 0.0
    %3102 = vmatprep.subr.mxu0 0.0
    %3103 = vmatpush1.msra.mxu0 0.0
    %3104 = vmatprep.subr.mxu0 0.0
    %3105 = vmatpush1.msra.mxu0 0.0
    %3106 = vmatprep.subr.mxu0 0.0
    %3107 = vmatpush1.msra.mxu0 0.0
    %3108 = vmatprep.subr.mxu0 0.0
    %3109 = vmatpush1.msra.mxu0 0.0
    %3110 = vmatprep.mubr.f32.mxu0 0.0
    %3111 = vmatmul.mubr.f32.gmra.mrb[0].mxu0 %v2851
    %v3112 = vpop.f32.mrb[0].mxu0
    %v3113 = vadd.f32 %v2847, %v3112
    %v3114 = vpop.f32.mrb[0].mxu0
    %3115 = vmatprep.mubr.f32.mxu0 0.0
    %3116 = vmatmul.mubr.f32.gmra.mrb[0].mxu0 %v2854
    %v3117 = vpop.f32.mrb[0].mxu0
    %v3118 = vadd.f32 %v2847, %v3117
    %v3119 = vpop.f32.mrb[0].mxu0
    %3120 = vmatprep.mubr.f32.mxu0 0.0
    %3121 = vmatmul.mubr.f32.gmra.mrb[0].mxu0 %v2857
    %v3122 = vpop.f32.mrb[0].mxu0
    %v3123 = vadd.f32 %v2847, %v3122
    %v3124 = vpop.f32.mrb[0].mxu0
    %3125 = vmatprep.mubr.f32.mxu0 0.0
    %3126 = vmatmul.mubr.f32.gmra.mrb[0].mxu0 %v2860
    %v3127 = vpop.f32.mrb[0].mxu0
    %v3128 = vadd.f32 %v2847, %v3127
    %v3129 = vpop.f32.mrb[0].mxu0
    %3130 = vmatprep.mubr.f32.mxu0 0.0
    %3131 = vmatmul.mubr.f32.gmra.mrb[0].mxu0 %v2863
    %v3132 = vpop.f32.mrb[0].mxu0
    %v3133 = vadd.f32 %v2847, %v3132
    %v3134 = vpop.f32.mrb[0].mxu0
    %3135 = vmatprep.mubr.f32.mxu0 0.0
    %3136 = vmatmul.mubr.f32.gmra.mrb[0].mxu0 %v2866
    %v3137 = vpop.f32.mrb[0].mxu0
    %v3138 = vadd.f32 %v2847, %v3137
    %v3139 = vpop.f32.mrb[0].mxu0
    %3140 = vmatprep.mubr.f32.mxu0 0.0
    %3141 = vmatmul.mubr.f32.gmra.mrb[0].mxu0 %v2869
    %v3142 = vpop.f32.mrb[0].mxu0
    %v3143 = vadd.f32 %v2847, %v3142
    %v3144 = vpop.f32.mrb[0].mxu0
    %3145 = vmatprep.mubr.f32.mxu0 0.0
    %3146 = vmatmul.mubr.f32.gmra.mrb[0].mxu0 %v2872
    %v3147 = vpop.f32.mrb[0].mxu0
    %v3148 = vadd.f32 %v2847, %v3147
    %v3149 = vpop.f32.mrb[0].mxu0
    %3150 = vmatprep.mubr.f32.mxu0 0.0
    %3151 = vmatmul.mubr.f32.gmra.mrb[0].mxu0 %v2875
    %v3152 = vpop.f32.mrb[0].mxu0
    %v3153 = vadd.f32 %v2847, %v3152
    %v3154 = vpop.f32.mrb[0].mxu0
    %3155 = vmatprep.mubr.f32.mxu0 0.0
    %3156 = vmatmul.mubr.f32.gmra.mrb[0].mxu0 %v2878
    %v3157 = vpop.f32.mrb[0].mxu0
    %v3158 = vadd.f32 %v2847, %v3157
    %v3159 = vpop.f32.mrb[0].mxu0
    %3160 = vmatprep.mubr.f32.mxu0 0.0
    %3161 = vmatmul.mubr.f32.gmra.mrb[0].mxu0 %v2881
    %v3162 = vpop.f32.mrb[0].mxu0
    %v3163 = vadd.f32 %v2847, %v3162
    %v3164 = vpop.f32.mrb[0].mxu0
    %3165 = vmatprep.mubr.f32.mxu0 0.0
    %3166 = vmatmul.mubr.f32.gmra.mrb[0].mxu0 %v2884
    %v3167 = vpop.f32.mrb[0].mxu0
    %v3168 = vadd.f32 %v2847, %v3167
    %v3169 = vpop.f32.mrb[0].mxu0
    %3170 = vmatprep.mubr.f32.mxu0 0.0
    %3171 = vmatmul.mubr.f32.gmra.mrb[0].mxu0 %v2887
    %v3172 = vpop.f32.mrb[0].mxu0
    %v3173 = vadd.f32 %v2847, %v3172
    %v3174 = vpop.f32.mrb[0].mxu0
    %3175 = vmatprep.mubr.f32.mxu0 0.0
    %3176 = vmatmul.mubr.f32.gmra.mrb[0].mxu0 %v2890
    %v3177 = vpop.f32.mrb[0].mxu0
    %v3178 = vadd.f32 %v2847, %v3177
    %v3179 = vpop.f32.mrb[0].mxu0
    %3180 = vmatprep.mubr.f32.mxu0 0.0
    %3181 = vmatmul.mubr.f32.gmra.mrb[0].mxu0 %v2893
    %v3182 = vpop.f32.mrb[0].mxu0
    %v3183 = vadd.f32 %v2847, %v3182
    %v3184 = vpop.f32.mrb[0].mxu0
    %3185 = vmatprep.mubr.f32.mxu0 0.0
    %3186 = vmatmul.mubr.f32.gmra.mrb[0].mxu0 %v2896
    %v3187 = vpop.f32.mrb[0].mxu0
    %v3188 = vadd.f32 %v2847, %v3187
    %v3189 = vpop.f32.mrb[0].mxu0
    %3190 = vmatprep.mubr.f32.mxu0 0.0
    %3191 = vmatmul.mubr.f32.gmra.mrb[0].mxu0 %v2899
    %v3192 = vpop.f32.mrb[0].mxu0
    %v3193 = vadd.f32 %v2847, %v3192
    %v3194 = vpop.f32.mrb[0].mxu0
    %3195 = vmatprep.mubr.f32.mxu0 0.0
    %3196 = vmatmul.mubr.f32.gmra.mrb[0].mxu0 %v2902
    %v3197 = vpop.f32.mrb[0].mxu0
    %v3198 = vadd.f32 %v2847, %v3197
    %v3199 = vpop.f32.mrb[0].mxu0
    %3200 = vmatprep.mubr.f32.mxu0 0.0
    %3201 = vmatmul.mubr.f32.gmra.mrb[0].mxu0 %v2905
    %v3202 = vpop.f32.mrb[0].mxu0
    %v3203 = vadd.f32 %v2847, %v3202
    %v3204 = vpop.f32.mrb[0].mxu0
    %3205 = vmatprep.mubr.f32.mxu0 0.0
    %3206 = vmatmul.mubr.f32.gmra.mrb[0].mxu0 %v2908
    %v3207 = vpop.f32.mrb[0].mxu0
    %v3208 = vadd.f32 %v2847, %v3207
    %v3209 = vpop.f32.mrb[0].mxu0
    %3210 = vmatprep.mubr.f32.mxu0 0.0
    %3211 = vmatmul.mubr.f32.gmra.mrb[0].mxu0 %v2911
    %v3212 = vpop.f32.mrb[0].mxu0
    %v3213 = vadd.f32 %v2847, %v3212
    %v3214 = vpop.f32.mrb[0].mxu0
    %3215 = vmatprep.mubr.f32.mxu0 0.0
    %3216 = vmatmul.mubr.f32.gmra.mrb[0].mxu0 %v2914
    %v3217 = vpop.f32.mrb[0].mxu0
    %v3218 = vadd.f32 %v2847, %v3217
    %v3219 = vpop.f32.mrb[0].mxu0
    %3220 = vmatprep.mubr.f32.mxu0 0.0
    %3221 = vmatmul.mubr.f32.gmra.mrb[0].mxu0 %v2917
    %v3222 = vpop.f32.mrb[0].mxu0
    %v3223 = vadd.f32 %v2847, %v3222
    %v3224 = vpop.f32.mrb[0].mxu0
    %3225 = vmatprep.mubr.f32.mxu0 0.0
    %3226 = vmatmul.mubr.f32.gmra.mrb[0].mxu0 %v2920
    %v3227 = vpop.f32.mrb[0].mxu0
    %v3228 = vadd.f32 %v2847, %v3227
    %v3229 = vpop.f32.mrb[0].mxu0
    %3230 = vmatprep.mubr.f32.mxu0 0.0
    %3231 = vmatmul.mubr.f32.gmra.mrb[0].mxu0 %v2923
    %v3232 = vpop.f32.mrb[0].mxu0
    %v3233 = vadd.f32 %v2847, %v3232
    %v3234 = vpop.f32.mrb[0].mxu0
    %3235 = vmatprep.mubr.f32.mxu0 0.0
    %3236 = vmatmul.mubr.f32.gmra.mrb[0].mxu0 %v2926
    %v3237 = vpop.f32.mrb[0].mxu0
    %v3238 = vadd.f32 %v2847, %v3237
    %v3239 = vpop.f32.mrb[0].mxu0
    %3240 = vmatprep.mubr.f32.mxu0 0.0
    %3241 = vmatmul.mubr.f32.gmra.mrb[0].mxu0 %v2929
    %v3242 = vpop.f32.mrb[0].mxu0
    %v3243 = vadd.f32 %v2847, %v3242
    %v3244 = vpop.f32.mrb[0].mxu0
    %3245 = vmatprep.mubr.f32.mxu0 0.0
    %3246 = vmatmul.mubr.f32.gmra.mrb[0].mxu0 %v2932
    %v3247 = vpop.f32.mrb[0].mxu0
    %v3248 = vadd.f32 %v2847, %v3247
    %v3249 = vpop.f32.mrb[0].mxu0
    %3250 = vmatprep.mubr.f32.mxu0 0.0
    %3251 = vmatmul.mubr.f32.gmra.mrb[0].mxu0 %v2935
    %v3252 = vpop.f32.mrb[0].mxu0
    %v3253 = vadd.f32 %v2847, %v3252
    %v3254 = vpop.f32.mrb[0].mxu0
    %3255 = vmatprep.mubr.f32.mxu0 0.0
    %3256 = vmatmul.mubr.f32.gmra.mrb[0].mxu0 %v2938
    %v3257 = vpop.f32.mrb[0].mxu0
    %v3258 = vadd.f32 %v2847, %v3257
    %v3259 = vpop.f32.mrb[0].mxu0
    %3260 = vmatprep.mubr.f32.mxu0 0.0
    %3261 = vmatmul.mubr.f32.gmra.mrb[0].mxu0 %v2941
    %v3262 = vpop.f32.mrb[0].mxu0
    %v3263 = vadd.f32 %v2847, %v3262
    %v3264 = vpop.f32.mrb[0].mxu0
    %3265 = vmatprep.mubr.f32.mxu0 0.0
    %3266 = vmatmul.mubr.f32.gmra.mrb[0].mxu0 %v2944
    %v3267 = vpop.f32.mrb[0].mxu0
    %v3268 = vadd.f32 %v2847, %v3267
    %v3269 = vpop.f32.mrb[0].mxu0
    %3270 = vmatprep.mubr.f32.mxu0 0.0
    %3271 = vmatmul.mubr.f32.gmra.mrb[0].mxu0 %v2947
    %v3272 = vpop.f32.mrb[0].mxu0
    %v3273 = vadd.f32 %v2847, %v3272
    %v3274 = vpop.f32.mrb[0].mxu0
    %3275 = vmatprep.mubr.f32.mxu0 0.0
    %3276 = vmatmul.mubr.f32.gmra.mrb[0].mxu0 %v2950
    %v3277 = vpop.f32.mrb[0].mxu0
    %v3278 = vadd.f32 %v2847, %v3277
    %v3279 = vpop.f32.mrb[0].mxu0
    %3280 = vmatprep.mubr.f32.mxu0 0.0
    %3281 = vmatmul.mubr.f32.gmra.mrb[0].mxu0 %v2953
    %v3282 = vpop.f32.mrb[0].mxu0
    %v3283 = vadd.f32 %v2847, %v3282
    %v3284 = vpop.f32.mrb[0].mxu0
    %3285 = vmatprep.mubr.f32.mxu0 0.0
    %3286 = vmatmul.mubr.f32.gmra.mrb[0].mxu0 %v2956
    %v3287 = vpop.f32.mrb[0].mxu0
    %v3288 = vadd.f32 %v2847, %v3287
    %v3289 = vpop.f32.mrb[0].mxu0
    %3290 = vmatprep.mubr.f32.mxu0 0.0
    %3291 = vmatmul.mubr.f32.gmra.mrb[0].mxu0 %v2959
    %v3292 = vpop.f32.mrb[0].mxu0
    %v3293 = vadd.f32 %v2847, %v3292
    %v3294 = vpop.f32.mrb[0].mxu0
    %3295 = vmatprep.mubr.f32.mxu0 0.0
    %3296 = vmatmul.mubr.f32.gmra.mrb[0].mxu0 %v2962
    %v3297 = vpop.f32.mrb[0].mxu0
    %v3298 = vadd.f32 %v2847, %v3297
    %v3299 = vpop.f32.mrb[0].mxu0
    %3300 = vmatprep.mubr.f32.mxu0 0.0
    %3301 = vmatmul.mubr.f32.gmra.mrb[0].mxu0 %v2965
    %v3302 = vpop.f32.mrb[0].mxu0
    %v3303 = vadd.f32 %v2847, %v3302
    %v3304 = vpop.f32.mrb[0].mxu0
    %3305 = vmatprep.mubr.f32.mxu0 0.0
    %3306 = vmatmul.mubr.f32.gmra.mrb[0].mxu0 %v2968
    %v3307 = vpop.f32.mrb[0].mxu0
    %v3308 = vadd.f32 %v2847, %v3307
    %v3309 = vpop.f32.mrb[0].mxu0
    %3310 = vmatprep.mubr.f32.mxu0 0.0
    %3311 = vmatmul.mubr.f32.gmra.mrb[0].mxu0 %v2971
    %v3312 = vpop.f32.mrb[0].mxu0
    %v3313 = vadd.f32 %v2847, %v3312
    %v3314 = vpop.f32.mrb[0].mxu0
    %3315 = vmatprep.mubr.f32.mxu0 0.0
    %3316 = vmatmul.mubr.f32.gmra.mrb[0].mxu0 %v2974
    %v3317 = vpop.f32.mrb[0].mxu0
    %v3318 = vadd.f32 %v2847, %v3317
    %v3319 = vpop.f32.mrb[0].mxu0
    %3320 = vmatprep.mubr.f32.mxu0 0.0
    %3321 = vmatmul.mubr.f32.gmra.mrb[0].mxu0 %v2977
    %v3322 = vpop.f32.mrb[0].mxu0
    %v3323 = vadd.f32 %v2847, %v3322
    %v3324 = vpop.f32.mrb[0].mxu0
    %3325 = vmatprep.mubr.f32.mxu0 0.0
    %3326 = vmatmul.mubr.f32.gmra.mrb[0].mxu0 %v2980
    %v3327 = vpop.f32.mrb[0].mxu0
    %v3328 = vadd.f32 %v2847, %v3327
    %v3329 = vpop.f32.mrb[0].mxu0
    %3330 = vmatprep.mubr.f32.mxu0 0.0
    %3331 = vmatmul.mubr.f32.gmra.mrb[0].mxu0 %v2983
    %v3332 = vpop.f32.mrb[0].mxu0
    %v3333 = vadd.f32 %v2847, %v3332
    %v3334 = vpop.f32.mrb[0].mxu0
    %3335 = vmatprep.mubr.f32.mxu0 0.0
    %3336 = vmatmul.mubr.f32.gmra.mrb[0].mxu0 %v2986
    %v3337 = vpop.f32.mrb[0].mxu0
    %v3338 = vadd.f32 %v2847, %v3337
    %v3339 = vpop.f32.mrb[0].mxu0
    %3340 = vmatprep.mubr.f32.mxu0 0.0
    %3341 = vmatmul.mubr.f32.gmra.mrb[0].mxu0 %v2989
    %v3342 = vpop.f32.mrb[0].mxu0
    %v3343 = vadd.f32 %v2847, %v3342
    %v3344 = vpop.f32.mrb[0].mxu0
    %3345 = vmatprep.mubr.f32.mxu0 0.0
    %3346 = vmatmul.mubr.f32.gmra.mrb[0].mxu0 %v2992
    %v3347 = vpop.f32.mrb[0].mxu0
    %v3348 = vadd.f32 %v2847, %v3347
    %v3349 = vpop.f32.mrb[0].mxu0
    %3350 = vmatprep.mubr.f32.mxu0 0.0
    %3351 = vmatmul.mubr.f32.gmra.mrb[0].mxu0 %v2995
    %v3352 = vpop.f32.mrb[0].mxu0
    %v3353 = vadd.f32 %v2847, %v3352
    %v3354 = vpop.f32.mrb[0].mxu0
    %3355 = vmatprep.mubr.f32.mxu0 0.0
    %3356 = vmatmul.mubr.f32.gmra.mrb[0].mxu0 %v2998
    %v3357 = vpop.f32.mrb[0].mxu0
    %v3358 = vadd.f32 %v2847, %v3357
    %v3359 = vpop.f32.mrb[0].mxu0
    %3360 = vmatprep.mubr.f32.mxu0 0.0
    %3361 = vmatmul.mubr.f32.gmra.mrb[0].mxu0 %v3001
    %v3362 = vpop.f32.mrb[0].mxu0
    %v3363 = vadd.f32 %v2847, %v3362
    %v3364 = vpop.f32.mrb[0].mxu0
    %3365 = vmatprep.mubr.f32.mxu0 0.0
    %3366 = vmatmul.mubr.f32.gmra.mrb[0].mxu0 %v3004
    %v3367 = vpop.f32.mrb[0].mxu0
    %v3368 = vadd.f32 %v2847, %v3367
    %v3369 = vpop.f32.mrb[0].mxu0
    %3370 = vmatprep.mubr.f32.mxu0 0.0
    %3371 = vmatmul.mubr.f32.gmra.mrb[0].mxu0 %v3007
    %v3372 = vpop.f32.mrb[0].mxu0
    %v3373 = vadd.f32 %v2847, %v3372
    %v3374 = vpop.f32.mrb[0].mxu0
    %3375 = vmatprep.mubr.f32.mxu0 0.0
    %3376 = vmatmul.mubr.f32.gmra.mrb[0].mxu0 %v3010
    %v3377 = vpop.f32.mrb[0].mxu0
    %v3378 = vadd.f32 %v2847, %v3377
    %v3379 = vpop.f32.mrb[0].mxu0
    %3380 = vmatprep.mubr.f32.mxu0 0.0
    %3381 = vmatmul.mubr.f32.gmra.mrb[0].mxu0 %v3013
    %v3382 = vpop.f32.mrb[0].mxu0
    %v3383 = vadd.f32 %v2847, %v3382
    %v3384 = vpop.f32.mrb[0].mxu0
    %3385 = vmatprep.mubr.f32.mxu0 0.0
    %3386 = vmatmul.mubr.f32.gmra.mrb[0].mxu0 %v3016
    %v3387 = vpop.f32.mrb[0].mxu0
    %v3388 = vadd.f32 %v2847, %v3387
    %v3389 = vpop.f32.mrb[0].mxu0
    %3390 = vmatprep.mubr.f32.mxu0 0.0
    %3391 = vmatmul.mubr.f32.gmra.mrb[0].mxu0 %v3019
    %v3392 = vpop.f32.mrb[0].mxu0
    %v3393 = vadd.f32 %v2847, %v3392
    %v3394 = vpop.f32.mrb[0].mxu0
    %3395 = vmatprep.mubr.f32.mxu0 0.0
    %3396 = vmatmul.mubr.f32.gmra.mrb[0].mxu0 %v3022
    %v3397 = vpop.f32.mrb[0].mxu0
    %v3398 = vadd.f32 %v2847, %v3397
    %v3399 = vpop.f32.mrb[0].mxu0
    %3400 = vmatprep.mubr.f32.mxu0 0.0
    %3401 = vmatmul.mubr.f32.gmra.mrb[0].mxu0 %v3025
    %v3402 = vpop.f32.mrb[0].mxu0
    %v3403 = vadd.f32 %v2847, %v3402
    %v3404 = vpop.f32.mrb[0].mxu0
    %3405 = vmatprep.mubr.f32.mxu0 0.0
    %3406 = vmatmul.mubr.f32.gmra.mrb[0].mxu0 %v3028
    %v3407 = vpop.f32.mrb[0].mxu0
    %v3408 = vadd.f32 %v2847, %v3407
    %v3409 = vpop.f32.mrb[0].mxu0
    %3410 = vmatprep.mubr.f32.mxu0 0.0
    %3411 = vmatmul.mubr.f32.gmra.mrb[0].mxu0 %v3031
    %v3412 = vpop.f32.mrb[0].mxu0
    %v3413 = vadd.f32 %v2847, %v3412
    %v3414 = vpop.f32.mrb[0].mxu0
    %3415 = vmatprep.mubr.f32.mxu0 0.0
    %3416 = vmatmul.mubr.f32.gmra.mrb[0].mxu0 %v3034
    %v3417 = vpop.f32.mrb[0].mxu0
    %v3418 = vadd.f32 %v2847, %v3417
    %v3419 = vpop.f32.mrb[0].mxu0
    %3420 = vmatprep.mubr.f32.mxu0 0.0
    %3421 = vmatmul.mubr.f32.gmra.mrb[0].mxu0 %v3037
    %v3422 = vpop.f32.mrb[0].mxu0
    %v3423 = vadd.f32 %v2847, %v3422
    %v3424 = vpop.f32.mrb[0].mxu0
    %3425 = vmatprep.mubr.f32.mxu0 0.0
    %3426 = vmatmul.mubr.f32.gmra.mrb[0].mxu0 %v3040
    %v3427 = vpop.f32.mrb[0].mxu0
    %v3428 = vadd.f32 %v2847, %v3427
    %v3429 = vpop.f32.mrb[0].mxu0
    %3430 = vdwg.mxu0
    %v3431 = vsel %vm2384, %v3113, 0.0
    %v3432 = vsel %vm2384, %v3118, 0.0
    %v3433 = vadd.f32 %v3431, %v3432
    %v3434 = vsel %vm2384, %v3123, 0.0
    %v3435 = vadd.f32 %v3433, %v3434
    %v3436 = vsel %vm2384, %v3128, 0.0
    %v3437 = vadd.f32 %v3435, %v3436
    %v3438 = vsel %vm2384, %v3133, 0.0
    %v3439 = vadd.f32 %v3437, %v3438
    %v3440 = vsel %vm2384, %v3138, 0.0
    %v3441 = vadd.f32 %v3439, %v3440
    %v3442 = vsel %vm2384, %v3143, 0.0
    %v3443 = vadd.f32 %v3441, %v3442
    %v3444 = vsel %vm2384, %v3148, 0.0
    %v3445 = vadd.f32 %v3443, %v3444
    %v3446 = vsel %vm2384, %v3153, 0.0
    %v3447 = vadd.f32 %v3445, %v3446
    %v3448 = vsel %vm2384, %v3158, 0.0
    %v3449 = vadd.f32 %v3447, %v3448
    %v3450 = vsel %vm2384, %v3163, 0.0
    %v3451 = vadd.f32 %v3449, %v3450
    %v3452 = vsel %vm2384, %v3168, 0.0
    %v3453 = vadd.f32 %v3451, %v3452
    %v3454 = vsel %vm2384, %v3173, 0.0
    %v3455 = vadd.f32 %v3453, %v3454
    %v3456 = vsel %vm2384, %v3178, 0.0
    %v3457 = vadd.f32 %v3455, %v3456
    %v3458 = vsel %vm2384, %v3183, 0.0
    %v3459 = vadd.f32 %v3457, %v3458
    %v3460 = vsel %vm2384, %v3188, 0.0
    %v3461 = vadd.f32 %v3459, %v3460
    %v3462 = vsel %vm2384, %v3193, 0.0
    %v3463 = vadd.f32 %v3461, %v3462
    %v3464 = vsel %vm2384, %v3198, 0.0
    %v3465 = vadd.f32 %v3463, %v3464
    %v3466 = vsel %vm2384, %v3203, 0.0
    %v3467 = vadd.f32 %v3465, %v3466
    %v3468 = vsel %vm2384, %v3208, 0.0
    %v3469 = vadd.f32 %v3467, %v3468
    %v3470 = vsel %vm2384, %v3213, 0.0
    %v3471 = vadd.f32 %v3469, %v3470
    %v3472 = vsel %vm2384, %v3218, 0.0
    %v3473 = vadd.f32 %v3471, %v3472
    %v3474 = vsel %vm2384, %v3223, 0.0
    %v3475 = vadd.f32 %v3473, %v3474
    %v3476 = vsel %vm2384, %v3228, 0.0
    %v3477 = vadd.f32 %v3475, %v3476
    %v3478 = vsel %vm2384, %v3233, 0.0
    %v3479 = vadd.f32 %v3477, %v3478
    %v3480 = vsel %vm2384, %v3238, 0.0
    %v3481 = vadd.f32 %v3479, %v3480
    %v3482 = vsel %vm2384, %v3243, 0.0
    %v3483 = vadd.f32 %v3481, %v3482
    %v3484 = vsel %vm2384, %v3248, 0.0
    %v3485 = vadd.f32 %v3483, %v3484
    %v3486 = vsel %vm2384, %v3253, 0.0
    %v3487 = vadd.f32 %v3485, %v3486
    %v3488 = vsel %vm2384, %v3258, 0.0
    %v3489 = vadd.f32 %v3487, %v3488
    %v3490 = vsel %vm2384, %v3263, 0.0
    %v3491 = vadd.f32 %v3489, %v3490
    %v3492 = vsel %vm2384, %v3268, 0.0
    %v3493 = vadd.f32 %v3491, %v3492
    %v3494 = vsel %vm2384, %v3273, 0.0
    %v3495 = vadd.f32 %v3493, %v3494
    %v3496 = vsel %vm2384, %v3278, 0.0
    %v3497 = vadd.f32 %v3495, %v3496
    %v3498 = vsel %vm2384, %v3283, 0.0
    %v3499 = vadd.f32 %v3497, %v3498
    %v3500 = vsel %vm2384, %v3288, 0.0
    %v3501 = vadd.f32 %v3499, %v3500
    %v3502 = vsel %vm2384, %v3293, 0.0
    %v3503 = vadd.f32 %v3501, %v3502
    %v3504 = vsel %vm2384, %v3298, 0.0
    %v3505 = vadd.f32 %v3503, %v3504
    %v3506 = vsel %vm2384, %v3303, 0.0
    %v3507 = vadd.f32 %v3505, %v3506
    %v3508 = vsel %vm2384, %v3308, 0.0
    %v3509 = vadd.f32 %v3507, %v3508
    %v3510 = vsel %vm2384, %v3313, 0.0
    %v3511 = vadd.f32 %v3509, %v3510
    %v3512 = vsel %vm2384, %v3318, 0.0
    %v3513 = vadd.f32 %v3511, %v3512
    %v3514 = vsel %vm2384, %v3323, 0.0
    %v3515 = vadd.f32 %v3513, %v3514
    %v3516 = vsel %vm2384, %v3328, 0.0
    %v3517 = vadd.f32 %v3515, %v3516
    %v3518 = vsel %vm2384, %v3333, 0.0
    %v3519 = vadd.f32 %v3517, %v3518
    %v3520 = vsel %vm2384, %v3338, 0.0
    %v3521 = vadd.f32 %v3519, %v3520
    %v3522 = vsel %vm2384, %v3343, 0.0
    %v3523 = vadd.f32 %v3521, %v3522
    %v3524 = vsel %vm2384, %v3348, 0.0
    %v3525 = vadd.f32 %v3523, %v3524
    %v3526 = vsel %vm2384, %v3353, 0.0
    %v3527 = vadd.f32 %v3525, %v3526
    %v3528 = vsel %vm2384, %v3358, 0.0
    %v3529 = vadd.f32 %v3527, %v3528
    %v3530 = vsel %vm2384, %v3363, 0.0
    %v3531 = vadd.f32 %v3529, %v3530
    %v3532 = vsel %vm2384, %v3368, 0.0
    %v3533 = vadd.f32 %v3531, %v3532
    %v3534 = vsel %vm2384, %v3373, 0.0
    %v3535 = vadd.f32 %v3533, %v3534
    %v3536 = vsel %vm2384, %v3378, 0.0
    %v3537 = vadd.f32 %v3535, %v3536
    %v3538 = vsel %vm2384, %v3383, 0.0
    %v3539 = vadd.f32 %v3537, %v3538
    %v3540 = vsel %vm2384, %v3388, 0.0
    %v3541 = vadd.f32 %v3539, %v3540
    %v3542 = vsel %vm2384, %v3393, 0.0
    %v3543 = vadd.f32 %v3541, %v3542
    %v3544 = vsel %vm2384, %v3398, 0.0
    %v3545 = vadd.f32 %v3543, %v3544
    %v3546 = vsel %vm2384, %v3403, 0.0
    %v3547 = vadd.f32 %v3545, %v3546
    %v3548 = vsel %vm2384, %v3408, 0.0
    %v3549 = vadd.f32 %v3547, %v3548
    %v3550 = vsel %vm2384, %v3413, 0.0
    %v3551 = vadd.f32 %v3549, %v3550
    %v3552 = vsel %vm2384, %v3418, 0.0
    %v3553 = vadd.f32 %v3551, %v3552
    %v3554 = vsel %vm2384, %v3423, 0.0
    %v3555 = vadd.f32 %v3553, %v3554
    %v3556 = vsel %vm2384, %v3428, 0.0
    %v3557 = vadd.f32 %v3555, %v3556
    %v3558 = vrot.slane %v3557, 4
    %v3559 = vadd.f32 %v3557, %v3558
    %v3560 = vrot.slane %v3559, 2
    %v3561 = vadd.f32 %v3559, %v3560
    %v3562 = vrot.slane %v3561, 1
    %v3563 = vadd.f32 %v3561, %v3562
    %v3564 = vmul.f32 %v3113, %v3113
    %v3565 = vmul.f32 %v3118, %v3118
    %v3566 = vmul.f32 %v3123, %v3123
    %v3567 = vmul.f32 %v3128, %v3128
    %v3568 = vmul.f32 %v3133, %v3133
    %v3569 = vmul.f32 %v3138, %v3138
    %v3570 = vmul.f32 %v3143, %v3143
    %v3571 = vmul.f32 %v3148, %v3148
    %v3572 = vmul.f32 %v3153, %v3153
    %v3573 = vmul.f32 %v3158, %v3158
    %v3574 = vmul.f32 %v3163, %v3163
    %v3575 = vmul.f32 %v3168, %v3168
    %v3576 = vmul.f32 %v3173, %v3173
    %v3577 = vmul.f32 %v3178, %v3178
    %v3578 = vmul.f32 %v3183, %v3183
    %v3579 = vmul.f32 %v3188, %v3188
    %v3580 = vmul.f32 %v3193, %v3193
    %v3581 = vmul.f32 %v3198, %v3198
    %v3582 = vmul.f32 %v3203, %v3203
    %v3583 = vmul.f32 %v3208, %v3208
    %v3584 = vmul.f32 %v3213, %v3213
    %v3585 = vmul.f32 %v3218, %v3218
    %v3586 = vmul.f32 %v3223, %v3223
    %v3587 = vmul.f32 %v3228, %v3228
    %v3588 = vmul.f32 %v3233, %v3233
    %v3589 = vmul.f32 %v3238, %v3238
    %v3590 = vmul.f32 %v3243, %v3243
    %v3591 = vmul.f32 %v3248, %v3248
    %v3592 = vmul.f32 %v3253, %v3253
    %v3593 = vmul.f32 %v3258, %v3258
    %v3594 = vmul.f32 %v3263, %v3263
    %v3595 = vmul.f32 %v3268, %v3268
    %v3596 = vmul.f32 %v3273, %v3273
    %v3597 = vmul.f32 %v3278, %v3278
    %v3598 = vmul.f32 %v3283, %v3283
    %v3599 = vmul.f32 %v3288, %v3288
    %v3600 = vmul.f32 %v3293, %v3293
    %v3601 = vmul.f32 %v3298, %v3298
    %v3602 = vmul.f32 %v3303, %v3303
    %v3603 = vmul.f32 %v3308, %v3308
    %v3604 = vmul.f32 %v3313, %v3313
    %v3605 = vmul.f32 %v3318, %v3318
    %v3606 = vmul.f32 %v3323, %v3323
    %v3607 = vmul.f32 %v3328, %v3328
    %v3608 = vmul.f32 %v3333, %v3333
    %v3609 = vmul.f32 %v3338, %v3338
    %v3610 = vmul.f32 %v3343, %v3343
    %v3611 = vmul.f32 %v3348, %v3348
    %v3612 = vmul.f32 %v3353, %v3353
    %v3613 = vmul.f32 %v3358, %v3358
    %v3614 = vmul.f32 %v3363, %v3363
    %v3615 = vmul.f32 %v3368, %v3368
    %v3616 = vmul.f32 %v3373, %v3373
    %v3617 = vmul.f32 %v3378, %v3378
    %v3618 = vmul.f32 %v3383, %v3383
    %v3619 = vmul.f32 %v3388, %v3388
    %v3620 = vmul.f32 %v3393, %v3393
    %v3621 = vmul.f32 %v3398, %v3398
    %v3622 = vmul.f32 %v3403, %v3403
    %v3623 = vmul.f32 %v3408, %v3408
    %v3624 = vmul.f32 %v3413, %v3413
    %v3625 = vmul.f32 %v3418, %v3418
    %v3626 = vmul.f32 %v3423, %v3423
    %v3627 = vmul.f32 %v3428, %v3428
    %v3628 = vsel %vm2384, %v3564, 0.0
    %v3629 = vsel %vm2384, %v3565, 0.0
    %v3630 = vadd.f32 %v3628, %v3629
    %v3631 = vsel %vm2384, %v3566, 0.0
    %v3632 = vadd.f32 %v3630, %v3631
    %v3633 = vsel %vm2384, %v3567, 0.0
    %v3634 = vadd.f32 %v3632, %v3633
    %v3635 = vsel %vm2384, %v3568, 0.0
    %v3636 = vadd.f32 %v3634, %v3635
    %v3637 = vsel %vm2384, %v3569, 0.0
    %v3638 = vadd.f32 %v3636, %v3637
    %v3639 = vsel %vm2384, %v3570, 0.0
    %v3640 = vadd.f32 %v3638, %v3639
    %v3641 = vsel %vm2384, %v3571, 0.0
    %v3642 = vadd.f32 %v3640, %v3641
    %v3643 = vsel %vm2384, %v3572, 0.0
    %v3644 = vadd.f32 %v3642, %v3643
    %v3645 = vsel %vm2384, %v3573, 0.0
    %v3646 = vadd.f32 %v3644, %v3645
    %v3647 = vsel %vm2384, %v3574, 0.0
    %v3648 = vadd.f32 %v3646, %v3647
    %v3649 = vsel %vm2384, %v3575, 0.0
    %v3650 = vadd.f32 %v3648, %v3649
    %v3651 = vsel %vm2384, %v3576, 0.0
    %v3652 = vadd.f32 %v3650, %v3651
    %v3653 = vsel %vm2384, %v3577, 0.0
    %v3654 = vadd.f32 %v3652, %v3653
    %v3655 = vsel %vm2384, %v3578, 0.0
    %v3656 = vadd.f32 %v3654, %v3655
    %v3657 = vsel %vm2384, %v3579, 0.0
    %v3658 = vadd.f32 %v3656, %v3657
    %v3659 = vsel %vm2384, %v3580, 0.0
    %v3660 = vadd.f32 %v3658, %v3659
    %v3661 = vsel %vm2384, %v3581, 0.0
    %v3662 = vadd.f32 %v3660, %v3661
    %v3663 = vsel %vm2384, %v3582, 0.0
    %v3664 = vadd.f32 %v3662, %v3663
    %v3665 = vsel %vm2384, %v3583, 0.0
    %v3666 = vadd.f32 %v3664, %v3665
    %v3667 = vsel %vm2384, %v3584, 0.0
    %v3668 = vadd.f32 %v3666, %v3667
    %v3669 = vsel %vm2384, %v3585, 0.0
    %v3670 = vadd.f32 %v3668, %v3669
    %v3671 = vsel %vm2384, %v3586, 0.0
    %v3672 = vadd.f32 %v3670, %v3671
    %v3673 = vsel %vm2384, %v3587, 0.0
    %v3674 = vadd.f32 %v3672, %v3673
    %v3675 = vsel %vm2384, %v3588, 0.0
    %v3676 = vadd.f32 %v3674, %v3675
    %v3677 = vsel %vm2384, %v3589, 0.0
    %v3678 = vadd.f32 %v3676, %v3677
    %v3679 = vsel %vm2384, %v3590, 0.0
    %v3680 = vadd.f32 %v3678, %v3679
    %v3681 = vsel %vm2384, %v3591, 0.0
    %v3682 = vadd.f32 %v3680, %v3681
    %v3683 = vsel %vm2384, %v3592, 0.0
    %v3684 = vadd.f32 %v3682, %v3683
    %v3685 = vsel %vm2384, %v3593, 0.0
    %v3686 = vadd.f32 %v3684, %v3685
    %v3687 = vsel %vm2384, %v3594, 0.0
    %v3688 = vadd.f32 %v3686, %v3687
    %v3689 = vsel %vm2384, %v3595, 0.0
    %v3690 = vadd.f32 %v3688, %v3689
    %v3691 = vsel %vm2384, %v3596, 0.0
    %v3692 = vadd.f32 %v3690, %v3691
    %v3693 = vsel %vm2384, %v3597, 0.0
    %v3694 = vadd.f32 %v3692, %v3693
    %v3695 = vsel %vm2384, %v3598, 0.0
    %v3696 = vadd.f32 %v3694, %v3695
    %v3697 = vsel %vm2384, %v3599, 0.0
    %v3698 = vadd.f32 %v3696, %v3697
    %v3699 = vsel %vm2384, %v3600, 0.0
    %v3700 = vadd.f32 %v3698, %v3699
    %v3701 = vsel %vm2384, %v3601, 0.0
    %v3702 = vadd.f32 %v3700, %v3701
    %v3703 = vsel %vm2384, %v3602, 0.0
    %v3704 = vadd.f32 %v3702, %v3703
    %v3705 = vsel %vm2384, %v3603, 0.0
    %v3706 = vadd.f32 %v3704, %v3705
    %v3707 = vsel %vm2384, %v3604, 0.0
    %v3708 = vadd.f32 %v3706, %v3707
    %v3709 = vsel %vm2384, %v3605, 0.0
    %v3710 = vadd.f32 %v3708, %v3709
    %v3711 = vsel %vm2384, %v3606, 0.0
    %v3712 = vadd.f32 %v3710, %v3711
    %v3713 = vsel %vm2384, %v3607, 0.0
    %v3714 = vadd.f32 %v3712, %v3713
    %v3715 = vsel %vm2384, %v3608, 0.0
    %v3716 = vadd.f32 %v3714, %v3715
    %v3717 = vsel %vm2384, %v3609, 0.0
    %v3718 = vadd.f32 %v3716, %v3717
    %v3719 = vsel %vm2384, %v3610, 0.0
    %v3720 = vadd.f32 %v3718, %v3719
    %v3721 = vsel %vm2384, %v3611, 0.0
    %v3722 = vadd.f32 %v3720, %v3721
    %v3723 = vsel %vm2384, %v3612, 0.0
    %v3724 = vadd.f32 %v3722, %v3723
    %v3725 = vsel %vm2384, %v3613, 0.0
    %v3726 = vadd.f32 %v3724, %v3725
    %v3727 = vsel %vm2384, %v3614, 0.0
    %v3728 = vadd.f32 %v3726, %v3727
    %v3729 = vsel %vm2384, %v3615, 0.0
    %v3730 = vadd.f32 %v3728, %v3729
    %v3731 = vsel %vm2384, %v3616, 0.0
    %v3732 = vadd.f32 %v3730, %v3731
    %v3733 = vsel %vm2384, %v3617, 0.0
    %v3734 = vadd.f32 %v3732, %v3733
    %v3735 = vsel %vm2384, %v3618, 0.0
    %v3736 = vadd.f32 %v3734, %v3735
    %v3737 = vsel %vm2384, %v3619, 0.0
    %v3738 = vadd.f32 %v3736, %v3737
    %v3739 = vsel %vm2384, %v3620, 0.0
    %v3740 = vadd.f32 %v3738, %v3739
    %v3741 = vsel %vm2384, %v3621, 0.0
    %v3742 = vadd.f32 %v3740, %v3741
    %v3743 = vsel %vm2384, %v3622, 0.0
    %v3744 = vadd.f32 %v3742, %v3743
    %v3745 = vsel %vm2384, %v3623, 0.0
    %v3746 = vadd.f32 %v3744, %v3745
    %v3747 = vsel %vm2384, %v3624, 0.0
    %v3748 = vadd.f32 %v3746, %v3747
    %v3749 = vsel %vm2384, %v3625, 0.0
    %v3750 = vadd.f32 %v3748, %v3749
    %v3751 = vsel %vm2384, %v3626, 0.0
    %v3752 = vadd.f32 %v3750, %v3751
    %v3753 = vsel %vm2384, %v3627, 0.0
    %v3754 = vadd.f32 %v3752, %v3753
    %v3755 = vrot.slane %v3754, 4
    %v3756 = vadd.f32 %v3754, %v3755
    %v3757 = vrot.slane %v3756, 2
    %v3758 = vadd.f32 %v3756, %v3757
    %v3759 = vrot.slane %v3758, 1
    %v3760 = vadd.f32 %v3758, %v3759
    %v3761 = vmul.f32 %v3563, 0.001953125
    %v3762 = vmul.f32 %v3760, 0.001953125
    %v3763 = vmul.f32 %v3761, %v3761
    %v3764 = vsub.f32 %v3762, %v3763
    %v3765 = vadd.f32 %v3764, 1e-05
    %v3766 = vrsqrt.pop %v3765
    %v3767 = vsub.f32 %v3113, %v3761
    %v3768 = vsub.f32 %v3118, %v3761
    %v3769 = vsub.f32 %v3123, %v3761
    %v3770 = vsub.f32 %v3128, %v3761
    %v3771 = vsub.f32 %v3133, %v3761
    %v3772 = vsub.f32 %v3138, %v3761
    %v3773 = vsub.f32 %v3143, %v3761
    %v3774 = vsub.f32 %v3148, %v3761
    %v3775 = vsub.f32 %v3153, %v3761
    %v3776 = vsub.f32 %v3158, %v3761
    %v3777 = vsub.f32 %v3163, %v3761
    %v3778 = vsub.f32 %v3168, %v3761
    %v3779 = vsub.f32 %v3173, %v3761
    %v3780 = vsub.f32 %v3178, %v3761
    %v3781 = vsub.f32 %v3183, %v3761
    %v3782 = vsub.f32 %v3188, %v3761
    %v3783 = vsub.f32 %v3193, %v3761
    %v3784 = vsub.f32 %v3198, %v3761
    %v3785 = vsub.f32 %v3203, %v3761
    %v3786 = vsub.f32 %v3208, %v3761
    %v3787 = vsub.f32 %v3213, %v3761
    %v3788 = vsub.f32 %v3218, %v3761
    %v3789 = vsub.f32 %v3223, %v3761
    %v3790 = vsub.f32 %v3228, %v3761
    %v3791 = vsub.f32 %v3233, %v3761
    %v3792 = vsub.f32 %v3238, %v3761
    %v3793 = vsub.f32 %v3243, %v3761
    %v3794 = vsub.f32 %v3248, %v3761
    %v3795 = vsub.f32 %v3253, %v3761
    %v3796 = vsub.f32 %v3258, %v3761
    %v3797 = vsub.f32 %v3263, %v3761
    %v3798 = vsub.f32 %v3268, %v3761
    %v3799 = vsub.f32 %v3273, %v3761
    %v3800 = vsub.f32 %v3278, %v3761
    %v3801 = vsub.f32 %v3283, %v3761
    %v3802 = vsub.f32 %v3288, %v3761
    %v3803 = vsub.f32 %v3293, %v3761
    %v3804 = vsub.f32 %v3298, %v3761
    %v3805 = vsub.f32 %v3303, %v3761
    %v3806 = vsub.f32 %v3308, %v3761
    %v3807 = vsub.f32 %v3313, %v3761
    %v3808 = vsub.f32 %v3318, %v3761
    %v3809 = vsub.f32 %v3323, %v3761
    %v3810 = vsub.f32 %v3328, %v3761
    %v3811 = vsub.f32 %v3333, %v3761
    %v3812 = vsub.f32 %v3338, %v3761
    %v3813 = vsub.f32 %v3343, %v3761
    %v3814 = vsub.f32 %v3348, %v3761
    %v3815 = vsub.f32 %v3353, %v3761
    %v3816 = vsub.f32 %v3358, %v3761
    %v3817 = vsub.f32 %v3363, %v3761
    %v3818 = vsub.f32 %v3368, %v3761
    %v3819 = vsub.f32 %v3373, %v3761
    %v3820 = vsub.f32 %v3378, %v3761
    %v3821 = vsub.f32 %v3383, %v3761
    %v3822 = vsub.f32 %v3388, %v3761
    %v3823 = vsub.f32 %v3393, %v3761
    %v3824 = vsub.f32 %v3398, %v3761
    %v3825 = vsub.f32 %v3403, %v3761
    %v3826 = vsub.f32 %v3408, %v3761
    %v3827 = vsub.f32 %v3413, %v3761
    %v3828 = vsub.f32 %v3418, %v3761
    %v3829 = vsub.f32 %v3423, %v3761
    %v3830 = vsub.f32 %v3428, %v3761
    %v3831 = vld [vmem:[#allocation8] sm:$0x1]
    %v3832 = vmul.f32 %v3766, %v3831
    %v3833 = vlaneseq
    %v3834 = vshrl.u32 %v3833, 7
    %v3835 = vsub.s32 0, %v3834
    %v3836 = vrot.slane %v3832, %v3835
    %v3837 = vmul.f32 %v3767, %v3836
    %v3838 = vmul.f32 %v3768, %v3836
    %v3839 = vmul.f32 %v3769, %v3836
    %v3840 = vmul.f32 %v3770, %v3836
    %v3841 = vmul.f32 %v3771, %v3836
    %v3842 = vmul.f32 %v3772, %v3836
    %v3843 = vmul.f32 %v3773, %v3836
    %v3844 = vmul.f32 %v3774, %v3836
    %v3845 = vmul.f32 %v3775, %v3836
    %v3846 = vmul.f32 %v3776, %v3836
    %v3847 = vmul.f32 %v3777, %v3836
    %v3848 = vmul.f32 %v3778, %v3836
    %v3849 = vmul.f32 %v3779, %v3836
    %v3850 = vmul.f32 %v3780, %v3836
    %v3851 = vmul.f32 %v3781, %v3836
    %v3852 = vmul.f32 %v3782, %v3836
    %v3853 = vmul.f32 %v3783, %v3836
    %v3854 = vmul.f32 %v3784, %v3836
    %v3855 = vmul.f32 %v3785, %v3836
    %v3856 = vmul.f32 %v3786, %v3836
    %v3857 = vmul.f32 %v3787, %v3836
    %v3858 = vmul.f32 %v3788, %v3836
    %v3859 = vmul.f32 %v3789, %v3836
    %v3860 = vmul.f32 %v3790, %v3836
    %v3861 = vmul.f32 %v3791, %v3836
    %v3862 = vmul.f32 %v3792, %v3836
    %v3863 = vmul.f32 %v3793, %v3836
    %v3864 = vmul.f32 %v3794, %v3836
    %v3865 = vmul.f32 %v3795, %v3836
    %v3866 = vmul.f32 %v3796, %v3836
    %v3867 = vmul.f32 %v3797, %v3836
    %v3868 = vmul.f32 %v3798, %v3836
    %v3869 = vmul.f32 %v3799, %v3836
    %v3870 = vmul.f32 %v3800, %v3836
    %v3871 = vmul.f32 %v3801, %v3836
    %v3872 = vmul.f32 %v3802, %v3836
    %v3873 = vmul.f32 %v3803, %v3836
    %v3874 = vmul.f32 %v3804, %v3836
    %v3875 = vmul.f32 %v3805, %v3836
    %v3876 = vmul.f32 %v3806, %v3836
    %v3877 = vmul.f32 %v3807, %v3836
    %v3878 = vmul.f32 %v3808, %v3836
    %v3879 = vmul.f32 %v3809, %v3836
    %v3880 = vmul.f32 %v3810, %v3836
    %v3881 = vmul.f32 %v3811, %v3836
    %v3882 = vmul.f32 %v3812, %v3836
    %v3883 = vmul.f32 %v3813, %v3836
    %v3884 = vmul.f32 %v3814, %v3836
    %v3885 = vmul.f32 %v3815, %v3836
    %v3886 = vmul.f32 %v3816, %v3836
    %v3887 = vmul.f32 %v3817, %v3836
    %v3888 = vmul.f32 %v3818, %v3836
    %v3889 = vmul.f32 %v3819, %v3836
    %v3890 = vmul.f32 %v3820, %v3836
    %v3891 = vmul.f32 %v3821, %v3836
    %v3892 = vmul.f32 %v3822, %v3836
    %v3893 = vmul.f32 %v3823, %v3836
    %v3894 = vmul.f32 %v3824, %v3836
    %v3895 = vmul.f32 %v3825, %v3836
    %v3896 = vmul.f32 %v3826, %v3836
    %v3897 = vmul.f32 %v3827, %v3836
    %v3898 = vmul.f32 %v3828, %v3836
    %v3899 = vmul.f32 %v3829, %v3836
    %v3900 = vmul.f32 %v3830, %v3836
    %v3901 = vld [vmem:[#allocation10] sm:$0x1]
    %v3903 = vlaneseq
    %v3904 = vshrl.u32 %v3903, 7
    %v3905 = vsub.s32 0, %v3904
    %v3906 = vrot.slane %v3901, %v3905
    %v3908 = vadd.f32 %v3837, %v3906
    %v3909 = vadd.f32 %v3838, %v3906
    %v3910 = vadd.f32 %v3839, %v3906
    %v3911 = vadd.f32 %v3840, %v3906
    %v3912 = vadd.f32 %v3841, %v3906
    %v3913 = vadd.f32 %v3842, %v3906
    %v3914 = vadd.f32 %v3843, %v3906
    %v3915 = vadd.f32 %v3844, %v3906
    %v3916 = vadd.f32 %v3845, %v3906
    %v3917 = vadd.f32 %v3846, %v3906
    %v3918 = vadd.f32 %v3847, %v3906
    %v3919 = vadd.f32 %v3848, %v3906
    %v3920 = vadd.f32 %v3849, %v3906
    %v3921 = vadd.f32 %v3850, %v3906
    %v3922 = vadd.f32 %v3851, %v3906
    %v3923 = vadd.f32 %v3852, %v3906
    %v3924 = vadd.f32 %v3853, %v3906
    %v3925 = vadd.f32 %v3854, %v3906
    %v3926 = vadd.f32 %v3855, %v3906
    %v3927 = vadd.f32 %v3856, %v3906
    %v3928 = vadd.f32 %v3857, %v3906
    %v3929 = vadd.f32 %v3858, %v3906
    %v3930 = vadd.f32 %v3859, %v3906
    %v3931 = vadd.f32 %v3860, %v3906
    %v3932 = vadd.f32 %v3861, %v3906
    %v3933 = vadd.f32 %v3862, %v3906
    %v3934 = vadd.f32 %v3863, %v3906
    %v3935 = vadd.f32 %v3864, %v3906
    %v3936 = vadd.f32 %v3865, %v3906
    %v3937 = vadd.f32 %v3866, %v3906
    %v3938 = vadd.f32 %v3867, %v3906
    %v3939 = vadd.f32 %v3868, %v3906
    %v3940 = vadd.f32 %v3869, %v3906
    %v3941 = vadd.f32 %v3870, %v3906
    %v3942 = vadd.f32 %v3871, %v3906
    %v3943 = vadd.f32 %v3872, %v3906
    %v3944 = vadd.f32 %v3873, %v3906
    %v3945 = vadd.f32 %v3874, %v3906
    %v3946 = vadd.f32 %v3875, %v3906
    %v3947 = vadd.f32 %v3876, %v3906
    %v3948 = vadd.f32 %v3877, %v3906
    %v3949 = vadd.f32 %v3878, %v3906
    %v3950 = vadd.f32 %v3879, %v3906
    %v3951 = vadd.f32 %v3880, %v3906
    %v3952 = vadd.f32 %v3881, %v3906
    %v3953 = vadd.f32 %v3882, %v3906
    %v3954 = vadd.f32 %v3883, %v3906
    %v3955 = vadd.f32 %v3884, %v3906
    %v3956 = vadd.f32 %v3885, %v3906
    %v3957 = vadd.f32 %v3886, %v3906
    %v3958 = vadd.f32 %v3887, %v3906
    %v3959 = vadd.f32 %v3888, %v3906
    %v3960 = vadd.f32 %v3889, %v3906
    %v3961 = vadd.f32 %v3890, %v3906
    %v3962 = vadd.f32 %v3891, %v3906
    %v3963 = vadd.f32 %v3892, %v3906
    %v3964 = vadd.f32 %v3893, %v3906
    %v3965 = vadd.f32 %v3894, %v3906
    %v3966 = vadd.f32 %v3895, %v3906
    %v3967 = vadd.f32 %v3896, %v3906
    %v3968 = vadd.f32 %v3897, %v3906
    %v3969 = vadd.f32 %v3898, %v3906
    %v3970 = vadd.f32 %v3899, %v3906
    %v3971 = vadd.f32 %v3900, %v3906
    %v3972 = vmax.f32 %v3908, 0.0
    %v3973 = vmax.f32 %v3909, 0.0
    %v3974 = vmax.f32 %v3910, 0.0
    %v3975 = vmax.f32 %v3911, 0.0
    %v3976 = vmax.f32 %v3912, 0.0
    %v3977 = vmax.f32 %v3913, 0.0
    %v3978 = vmax.f32 %v3914, 0.0
    %v3979 = vmax.f32 %v3915, 0.0
    %v3980 = vmax.f32 %v3916, 0.0
    %v3981 = vmax.f32 %v3917, 0.0
    %v3982 = vmax.f32 %v3918, 0.0
    %v3983 = vmax.f32 %v3919, 0.0
    %v3984 = vmax.f32 %v3920, 0.0
    %v3985 = vmax.f32 %v3921, 0.0
    %v3986 = vmax.f32 %v3922, 0.0
    %v3987 = vmax.f32 %v3923, 0.0
    %v3988 = vmax.f32 %v3924, 0.0
    %v3989 = vmax.f32 %v3925, 0.0
    %v3990 = vmax.f32 %v3926, 0.0
    %v3991 = vmax.f32 %v3927, 0.0
    %v3992 = vmax.f32 %v3928, 0.0
    %v3993 = vmax.f32 %v3929, 0.0
    %v3994 = vmax.f32 %v3930, 0.0
    %v3995 = vmax.f32 %v3931, 0.0
    %v3996 = vmax.f32 %v3932, 0.0
    %v3997 = vmax.f32 %v3933, 0.0
    %v3998 = vmax.f32 %v3934, 0.0
    %v3999 = vmax.f32 %v3935, 0.0
    %v4000 = vmax.f32 %v3936, 0.0
    %v4001 = vmax.f32 %v3937, 0.0
    %v4002 = vmax.f32 %v3938, 0.0
    %v4003 = vmax.f32 %v3939, 0.0
    %v4004 = vmax.f32 %v3940, 0.0
    %v4005 = vmax.f32 %v3941, 0.0
    %v4006 = vmax.f32 %v3942, 0.0
    %v4007 = vmax.f32 %v3943, 0.0
    %v4008 = vmax.f32 %v3944, 0.0
    %v4009 = vmax.f32 %v3945, 0.0
    %v4010 = vmax.f32 %v3946, 0.0
    %v4011 = vmax.f32 %v3947, 0.0
    %v4012 = vmax.f32 %v3948, 0.0
    %v4013 = vmax.f32 %v3949, 0.0
    %v4014 = vmax.f32 %v3950, 0.0
    %v4015 = vmax.f32 %v3951, 0.0
    %v4016 = vmax.f32 %v3952, 0.0
    %v4017 = vmax.f32 %v3953, 0.0
    %v4018 = vmax.f32 %v3954, 0.0
    %v4019 = vmax.f32 %v3955, 0.0
    %v4020 = vmax.f32 %v3956, 0.0
    %v4021 = vmax.f32 %v3957, 0.0
    %v4022 = vmax.f32 %v3958, 0.0
    %v4023 = vmax.f32 %v3959, 0.0
    %v4024 = vmax.f32 %v3960, 0.0
    %v4025 = vmax.f32 %v3961, 0.0
    %v4026 = vmax.f32 %v3962, 0.0
    %v4027 = vmax.f32 %v3963, 0.0
    %v4028 = vmax.f32 %v3964, 0.0
    %v4029 = vmax.f32 %v3965, 0.0
    %v4030 = vmax.f32 %v3966, 0.0
    %v4031 = vmax.f32 %v3967, 0.0
    %v4032 = vmax.f32 %v3968, 0.0
    %v4033 = vmax.f32 %v3969, 0.0
    %v4034 = vmax.f32 %v3970, 0.0
    %v4035 = vmax.f32 %v3971, 0.0
    %v4036 = vrot.slane %v3972, 7
    %v4037 = vrot.slane %v3974, 7
    %v4038 = vrot.slane %v3976, 7
    %v4039 = vrot.slane %v3978, 7
    %v4040 = vrot.slane %v3980, 7
    %v4041 = vrot.slane %v3982, 7
    %v4042 = vrot.slane %v3984, 7
    %v4043 = vrot.slane %v3986, 7
    %v4044 = vrot.slane %v3988, 7
    %v4045 = vrot.slane %v3990, 7
    %v4046 = vrot.slane %v3992, 7
    %v4047 = vrot.slane %v3994, 7
    %v4048 = vrot.slane %v3996, 7
    %v4049 = vrot.slane %v3998, 7
    %v4050 = vrot.slane %v4000, 7
    %v4051 = vrot.slane %v4004, 7
    %v4052 = vrot.slane %v4006, 7
    %v4053 = vrot.slane %v4008, 7
    %v4054 = vrot.slane %v4010, 7
    %v4055 = vrot.slane %v4012, 7
    %v4056 = vrot.slane %v4014, 7
    %v4057 = vrot.slane %v4016, 7
    %v4058 = vrot.slane %v4018, 7
    %v4059 = vrot.slane %v4020, 7
    %v4060 = vrot.slane %v4022, 7
    %v4061 = vrot.slane %v4024, 7
    %v4062 = vrot.slane %v4026, 7
    %v4063 = vrot.slane %v4028, 7
    %v4064 = vrot.slane %v4030, 7
    %v4065 = vrot.slane %v4032, 7
    %v4066 = vrot.slane %v3973, 7
    %v4067 = vrot.slane %v3975, 7
    %v4068 = vrot.slane %v3977, 7
    %v4069 = vrot.slane %v3979, 7
    %v4070 = vrot.slane %v3981, 7
    %v4071 = vrot.slane %v3983, 7
    %v4072 = vrot.slane %v3985, 7
    %v4073 = vrot.slane %v3987, 7
    %v4074 = vrot.slane %v3989, 7
    %v4075 = vrot.slane %v3991, 7
    %v4076 = vrot.slane %v3993, 7
    %v4077 = vrot.slane %v3995, 7
    %v4078 = vrot.slane %v3997, 7
    %v4079 = vrot.slane %v3999, 7
    %v4080 = vrot.slane %v4001, 7
    %v4081 = vrot.slane %v4005, 7
    %v4082 = vrot.slane %v4007, 7
    %v4083 = vrot.slane %v4009, 7
    %v4084 = vrot.slane %v4011, 7
    %v4085 = vrot.slane %v4013, 7
    %v4086 = vrot.slane %v4015, 7
    %v4087 = vrot.slane %v4017, 7
    %v4088 = vrot.slane %v4019, 7
    %v4089 = vrot.slane %v4021, 7
    %v4090 = vrot.slane %v4023, 7
    %v4091 = vrot.slane %v4025, 7
    %v4092 = vrot.slane %v4027, 7
    %v4093 = vrot.slane %v4029, 7
    %v4094 = vrot.slane %v4031, 7
    %v4095 = vrot.slane %v4033, 7
    %v4096 = vsel %vm270, %v4036, %v4066
    %v4097 = vsel %vm270, %v4037, %v4067
    %v4098 = vsel %vm270, %v4038, %v4068
    %v4099 = vsel %vm270, %v4039, %v4069
    %v4100 = vsel %vm270, %v4040, %v4070
    %v4101 = vsel %vm270, %v4041, %v4071
    %v4102 = vsel %vm270, %v4042, %v4072
    %v4103 = vsel %vm270, %v4043, %v4073
    %v4104 = vsel %vm270, %v4044, %v4074
    %v4105 = vsel %vm270, %v4045, %v4075
    %v4106 = vsel %vm270, %v4046, %v4076
    %v4107 = vsel %vm270, %v4047, %v4077
    %v4108 = vsel %vm270, %v4048, %v4078
    %v4109 = vsel %vm270, %v4049, %v4079
    %v4110 = vsel %vm270, %v4050, %v4080
    %v4111 = vsel %vm270, %v4051, %v4081
    %v4112 = vsel %vm270, %v4052, %v4082
    %v4113 = vsel %vm270, %v4053, %v4083
    %v4114 = vsel %vm270, %v4054, %v4084
    %v4115 = vsel %vm270, %v4055, %v4085
    %v4116 = vsel %vm270, %v4056, %v4086
    %v4117 = vsel %vm270, %v4057, %v4087
    %v4118 = vsel %vm270, %v4058, %v4088
    %v4119 = vsel %vm270, %v4059, %v4089
    %v4120 = vsel %vm270, %v4060, %v4090
    %v4121 = vsel %vm270, %v4061, %v4091
    %v4122 = vsel %vm270, %v4062, %v4092
    %v4123 = vsel %vm270, %v4063, %v4093
    %v4124 = vsel %vm270, %v4064, %v4094
    %v4125 = vsel %vm270, %v4065, %v4095
    %v4126 = vsel %vm270, %v4066, %v4036
    %v4127 = vsel %vm270, %v4067, %v4037
    %v4128 = vsel %vm270, %v4068, %v4038
    %v4129 = vsel %vm270, %v4069, %v4039
    %v4130 = vsel %vm270, %v4070, %v4040
    %v4131 = vsel %vm270, %v4071, %v4041
    %v4132 = vsel %vm270, %v4072, %v4042
    %v4133 = vsel %vm270, %v4073, %v4043
    %v4134 = vsel %vm270, %v4074, %v4044
    %v4135 = vsel %vm270, %v4075, %v4045
    %v4136 = vsel %vm270, %v4076, %v4046
    %v4137 = vsel %vm270, %v4077, %v4047
    %v4138 = vsel %vm270, %v4078, %v4048
    %v4139 = vsel %vm270, %v4079, %v4049
    %v4140 = vsel %vm270, %v4080, %v4050
    %v4141 = vsel %vm270, %v4081, %v4051
    %v4142 = vsel %vm270, %v4082, %v4052
    %v4143 = vsel %vm270, %v4083, %v4053
    %v4144 = vsel %vm270, %v4084, %v4054
    %v4145 = vsel %vm270, %v4085, %v4055
    %v4146 = vsel %vm270, %v4086, %v4056
    %v4147 = vsel %vm270, %v4087, %v4057
    %v4148 = vsel %vm270, %v4088, %v4058
    %v4149 = vsel %vm270, %v4089, %v4059
    %v4150 = vsel %vm270, %v4090, %v4060
    %v4151 = vsel %vm270, %v4091, %v4061
    %v4152 = vsel %vm270, %v4092, %v4062
    %v4153 = vsel %vm270, %v4093, %v4063
    %v4154 = vsel %vm270, %v4094, %v4064
    %v4155 = vsel %vm270, %v4095, %v4065
    %v4156 = vsel %vm341, %v4126, 0.0
    %v4157 = vsel %vm342, %v4096, 0.0
    %v4158 = vsel %vm341, %v4127, 0.0
    %v4159 = vsel %vm342, %v4097, 0.0
    %v4160 = vsel %vm341, %v4128, 0.0
    %v4161 = vsel %vm342, %v4098, 0.0
    %v4162 = vsel %vm341, %v4129, 0.0
    %v4163 = vsel %vm342, %v4099, 0.0
    %v4164 = vsel %vm341, %v4130, 0.0
    %v4165 = vsel %vm342, %v4100, 0.0
    %v4166 = vsel %vm341, %v4131, 0.0
    %v4167 = vsel %vm342, %v4101, 0.0
    %v4168 = vsel %vm341, %v4132, 0.0
    %v4169 = vsel %vm342, %v4102, 0.0
    %v4170 = vsel %vm341, %v4133, 0.0
    %v4171 = vsel %vm342, %v4103, 0.0
    %v4172 = vsel %vm341, %v4134, 0.0
    %v4173 = vsel %vm342, %v4104, 0.0
    %v4174 = vsel %vm341, %v4135, 0.0
    %v4175 = vsel %vm342, %v4105, 0.0
    %v4176 = vsel %vm341, %v4136, 0.0
    %v4177 = vsel %vm342, %v4106, 0.0
    %v4178 = vsel %vm341, %v4137, 0.0
    %v4179 = vsel %vm342, %v4107, 0.0
    %v4180 = vsel %vm341, %v4138, 0.0
    %v4181 = vsel %vm342, %v4108, 0.0
    %v4182 = vsel %vm341, %v4139, 0.0
    %v4183 = vsel %vm342, %v4109, 0.0
    %v4184 = vsel %vm341, %v4140, 0.0
    %v4185 = vsel %vm342, %v4110, 0.0
    %v4186 = vsel %vm341, %v4141, 0.0
    %v4187 = vsel %vm342, %v4111, 0.0
    %v4188 = vsel %vm341, %v4142, 0.0
    %v4189 = vsel %vm342, %v4112, 0.0
    %v4190 = vsel %vm341, %v4143, 0.0
    %v4191 = vsel %vm342, %v4113, 0.0
    %v4192 = vsel %vm341, %v4144, 0.0
    %v4193 = vsel %vm342, %v4114, 0.0
    %v4194 = vsel %vm341, %v4145, 0.0
    %v4195 = vsel %vm342, %v4115, 0.0
    %v4196 = vsel %vm341, %v4146, 0.0
    %v4197 = vsel %vm342, %v4116, 0.0
    %v4198 = vsel %vm341, %v4147, 0.0
    %v4199 = vsel %vm342, %v4117, 0.0
    %v4200 = vsel %vm341, %v4148, 0.0
    %v4201 = vsel %vm342, %v4118, 0.0
    %v4202 = vsel %vm341, %v4149, 0.0
    %v4203 = vsel %vm342, %v4119, 0.0
    %v4204 = vsel %vm341, %v4150, 0.0
    %v4205 = vsel %vm342, %v4120, 0.0
    %v4206 = vsel %vm341, %v4151, 0.0
    %v4207 = vsel %vm342, %v4121, 0.0
    %v4208 = vsel %vm341, %v4152, 0.0
    %v4209 = vsel %vm342, %v4122, 0.0
    %v4210 = vsel %vm341, %v4153, 0.0
    %v4211 = vsel %vm342, %v4123, 0.0
    %v4212 = vsel %vm341, %v4154, 0.0
    %v4213 = vsel %vm342, %v4124, 0.0
    %v4214 = vsel %vm341, %v4155, 0.0
    %v4215 = vsel %vm342, %v4125, 0.0
    %v4216 = vrot.slane %v3972, 1
    %v4217 = vrot.slane %v3974, 1
    %v4218 = vrot.slane %v3976, 1
    %v4219 = vrot.slane %v3978, 1
    %v4220 = vrot.slane %v3980, 1
    %v4221 = vrot.slane %v3982, 1
    %v4222 = vrot.slane %v3984, 1
    %v4223 = vrot.slane %v3986, 1
    %v4224 = vrot.slane %v3988, 1
    %v4225 = vrot.slane %v3990, 1
    %v4226 = vrot.slane %v3992, 1
    %v4227 = vrot.slane %v3994, 1
    %v4228 = vrot.slane %v3996, 1
    %v4229 = vrot.slane %v3998, 1
    %v4230 = vrot.slane %v4000, 1
    %v4231 = vrot.slane %v4004, 1
    %v4232 = vrot.slane %v4006, 1
    %v4233 = vrot.slane %v4008, 1
    %v4234 = vrot.slane %v4010, 1
    %v4235 = vrot.slane %v4012, 1
    %v4236 = vrot.slane %v4014, 1
    %v4237 = vrot.slane %v4016, 1
    %v4238 = vrot.slane %v4018, 1
    %v4239 = vrot.slane %v4020, 1
    %v4240 = vrot.slane %v4022, 1
    %v4241 = vrot.slane %v4024, 1
    %v4242 = vrot.slane %v4026, 1
    %v4243 = vrot.slane %v4028, 1
    %v4244 = vrot.slane %v4030, 1
    %v4245 = vrot.slane %v4032, 1
    %v4246 = vrot.slane %v3973, 1
    %v4247 = vrot.slane %v3975, 1
    %v4248 = vrot.slane %v3977, 1
    %v4249 = vrot.slane %v3979, 1
    %v4250 = vrot.slane %v3981, 1
    %v4251 = vrot.slane %v3983, 1
    %v4252 = vrot.slane %v3985, 1
    %v4253 = vrot.slane %v3987, 1
    %v4254 = vrot.slane %v3989, 1
    %v4255 = vrot.slane %v3991, 1
    %v4256 = vrot.slane %v3993, 1
    %v4257 = vrot.slane %v3995, 1
    %v4258 = vrot.slane %v3997, 1
    %v4259 = vrot.slane %v3999, 1
    %v4260 = vrot.slane %v4001, 1
    %v4261 = vrot.slane %v4005, 1
    %v4262 = vrot.slane %v4007, 1
    %v4263 = vrot.slane %v4009, 1
    %v4264 = vrot.slane %v4011, 1
    %v4265 = vrot.slane %v4013, 1
    %v4266 = vrot.slane %v4015, 1
    %v4267 = vrot.slane %v4017, 1
    %v4268 = vrot.slane %v4019, 1
    %v4269 = vrot.slane %v4021, 1
    %v4270 = vrot.slane %v4023, 1
    %v4271 = vrot.slane %v4025, 1
    %v4272 = vrot.slane %v4027, 1
    %v4273 = vrot.slane %v4029, 1
    %v4274 = vrot.slane %v4031, 1
    %v4275 = vrot.slane %v4033, 1
    %v4276 = vsel %vm465, %v4216, %v4246
    %v4277 = vsel %vm465, %v4217, %v4247
    %v4278 = vsel %vm465, %v4218, %v4248
    %v4279 = vsel %vm465, %v4219, %v4249
    %v4280 = vsel %vm465, %v4220, %v4250
    %v4281 = vsel %vm465, %v4221, %v4251
    %v4282 = vsel %vm465, %v4222, %v4252
    %v4283 = vsel %vm465, %v4223, %v4253
    %v4284 = vsel %vm465, %v4224, %v4254
    %v4285 = vsel %vm465, %v4225, %v4255
    %v4286 = vsel %vm465, %v4226, %v4256
    %v4287 = vsel %vm465, %v4227, %v4257
    %v4288 = vsel %vm465, %v4228, %v4258
    %v4289 = vsel %vm465, %v4229, %v4259
    %v4290 = vsel %vm465, %v4230, %v4260
    %v4291 = vsel %vm465, %v4231, %v4261
    %v4292 = vsel %vm465, %v4232, %v4262
    %v4293 = vsel %vm465, %v4233, %v4263
    %v4294 = vsel %vm465, %v4234, %v4264
    %v4295 = vsel %vm465, %v4235, %v4265
    %v4296 = vsel %vm465, %v4236, %v4266
    %v4297 = vsel %vm465, %v4237, %v4267
    %v4298 = vsel %vm465, %v4238, %v4268
    %v4299 = vsel %vm465, %v4239, %v4269
    %v4300 = vsel %vm465, %v4240, %v4270
    %v4301 = vsel %vm465, %v4241, %v4271
    %v4302 = vsel %vm465, %v4242, %v4272
    %v4303 = vsel %vm465, %v4243, %v4273
    %v4304 = vsel %vm465, %v4244, %v4274
    %v4305 = vsel %vm465, %v4245, %v4275
    %v4306 = vsel %vm465, %v4246, %v4216
    %v4307 = vsel %vm465, %v4247, %v4217
    %v4308 = vsel %vm465, %v4248, %v4218
    %v4309 = vsel %vm465, %v4249, %v4219
    %v4310 = vsel %vm465, %v4250, %v4220
    %v4311 = vsel %vm465, %v4251, %v4221
    %v4312 = vsel %vm465, %v4252, %v4222
    %v4313 = vsel %vm465, %v4253, %v4223
    %v4314 = vsel %vm465, %v4254, %v4224
    %v4315 = vsel %vm465, %v4255, %v4225
    %v4316 = vsel %vm465, %v4256, %v4226
    %v4317 = vsel %vm465, %v4257, %v4227
    %v4318 = vsel %vm465, %v4258, %v4228
    %v4319 = vsel %vm465, %v4259, %v4229
    %v4320 = vsel %vm465, %v4260, %v4230
    %v4321 = vsel %vm465, %v4261, %v4231
    %v4322 = vsel %vm465, %v4262, %v4232
    %v4323 = vsel %vm465, %v4263, %v4233
    %v4324 = vsel %vm465, %v4264, %v4234
    %v4325 = vsel %vm465, %v4265, %v4235
    %v4326 = vsel %vm465, %v4266, %v4236
    %v4327 = vsel %vm465, %v4267, %v4237
    %v4328 = vsel %vm465, %v4268, %v4238
    %v4329 = vsel %vm465, %v4269, %v4239
    %v4330 = vsel %vm465, %v4270, %v4240
    %v4331 = vsel %vm465, %v4271, %v4241
    %v4332 = vsel %vm465, %v4272, %v4242
    %v4333 = vsel %vm465, %v4273, %v4243
    %v4334 = vsel %vm465, %v4274, %v4244
    %v4335 = vsel %vm465, %v4275, %v4245
    %v4336 = vsel %vm536, %v4276, 0.0
    %v4337 = vsel %vm537, %v4306, 0.0
    %v4338 = vsel %vm536, %v4277, 0.0
    %v4339 = vsel %vm537, %v4307, 0.0
    %v4340 = vsel %vm536, %v4278, 0.0
    %v4341 = vsel %vm537, %v4308, 0.0
    %v4342 = vsel %vm536, %v4279, 0.0
    %v4343 = vsel %vm537, %v4309, 0.0
    %v4344 = vsel %vm536, %v4280, 0.0
    %v4345 = vsel %vm537, %v4310, 0.0
    %v4346 = vsel %vm536, %v4281, 0.0
    %v4347 = vsel %vm537, %v4311, 0.0
    %v4348 = vsel %vm536, %v4282, 0.0
    %v4349 = vsel %vm537, %v4312, 0.0
    %v4350 = vsel %vm536, %v4283, 0.0
    %v4351 = vsel %vm537, %v4313, 0.0
    %v4352 = vsel %vm536, %v4284, 0.0
    %v4353 = vsel %vm537, %v4314, 0.0
    %v4354 = vsel %vm536, %v4285, 0.0
    %v4355 = vsel %vm537, %v4315, 0.0
    %v4356 = vsel %vm536, %v4286, 0.0
    %v4357 = vsel %vm537, %v4316, 0.0
    %v4358 = vsel %vm536, %v4287, 0.0
    %v4359 = vsel %vm537, %v4317, 0.0
    %v4360 = vsel %vm536, %v4288, 0.0
    %v4361 = vsel %vm537, %v4318, 0.0
    %v4362 = vsel %vm536, %v4289, 0.0
    %v4363 = vsel %vm537, %v4319, 0.0
    %v4364 = vsel %vm536, %v4290, 0.0
    %v4365 = vsel %vm537, %v4320, 0.0
    %v4366 = vsel %vm536, %v4291, 0.0
    %v4367 = vsel %vm537, %v4321, 0.0
    %v4368 = vsel %vm536, %v4292, 0.0
    %v4369 = vsel %vm537, %v4322, 0.0
    %v4370 = vsel %vm536, %v4293, 0.0
    %v4371 = vsel %vm537, %v4323, 0.0
    %v4372 = vsel %vm536, %v4294, 0.0
    %v4373 = vsel %vm537, %v4324, 0.0
    %v4374 = vsel %vm536, %v4295, 0.0
    %v4375 = vsel %vm537, %v4325, 0.0
    %v4376 = vsel %vm536, %v4296, 0.0
    %v4377 = vsel %vm537, %v4326, 0.0
    %v4378 = vsel %vm536, %v4297, 0.0
    %v4379 = vsel %vm537, %v4327, 0.0
    %v4380 = vsel %vm536, %v4298, 0.0
    %v4381 = vsel %vm537, %v4328, 0.0
    %v4382 = vsel %vm536, %v4299, 0.0
    %v4383 = vsel %vm537, %v4329, 0.0
    %v4384 = vsel %vm536, %v4300, 0.0
    %v4385 = vsel %vm537, %v4330, 0.0
    %v4386 = vsel %vm536, %v4301, 0.0
    %v4387 = vsel %vm537, %v4331, 0.0
    %v4388 = vsel %vm536, %v4302, 0.0
    %v4389 = vsel %vm537, %v4332, 0.0
    %v4390 = vsel %vm536, %v4303, 0.0
    %v4391 = vsel %vm537, %v4333, 0.0
    %v4392 = vsel %vm536, %v4304, 0.0
    %v4393 = vsel %vm537, %v4334, 0.0
    %v4394 = vsel %vm536, %v4305, 0.0
    %v4395 = vsel %vm537, %v4335, 0.0
    %v4396 = vrot.slane %v4002, 7
    %v4397 = vrot.slane %v4034, 7
    %v4398 = vrot.slane %v4003, 7
    %v4399 = vrot.slane %v4035, 7
    %v4400 = vsel %vm270, %v4396, %v4398
    %v4401 = vsel %vm270, %v4397, %v4399
    %v4402 = vsel %vm270, %v4398, %v4396
    %v4403 = vsel %vm270, %v4399, %v4397
    %v4404 = vsel %vm341, %v4402, 0.0
    %v4405 = vsel %vm342, %v4400, 0.0
    %v4406 = vsel %vm341, %v4403, 0.0
    %v4407 = vsel %vm342, %v4401, 0.0
    %v4408 = vrot.slane %v4002, 1
    %v4409 = vrot.slane %v4034, 1
    %v4410 = vrot.slane %v4003, 1
    %v4411 = vrot.slane %v4035, 1
    %v4412 = vsel %vm465, %v4408, %v4410
    %v4413 = vsel %vm465, %v4409, %v4411
    %v4414 = vsel %vm465, %v4410, %v4408
    %v4415 = vsel %vm465, %v4411, %v4409
    %v4416 = vsel %vm536, %v4412, 0.0
    %v4417 = vsel %vm537, %v4414, 0.0
    %v4418 = vsel %vm536, %v4413, 0.0
    %v4419 = vsel %vm537, %v4415, 0.0
    %4480 = vrot.lane.b32.xlu0 0.0, 8
    %v4481 = vpop.permute.xlu0 %4480
    %4482 = vrot.lane.b32.xlu0 %v3972, 8
    %v4483 = vpop.permute.xlu0 %4482
    %4484 = vrot.lane.b32.xlu0 %v3973, 8
    %v4485 = vpop.permute.xlu0 %4484
    %4486 = vrot.lane.b32.xlu0 %v3974, 8
    %v4487 = vpop.permute.xlu0 %4486
    %4488 = vrot.lane.b32.xlu0 %v3975, 8
    %v4489 = vpop.permute.xlu0 %4488
    %4490 = vrot.lane.b32.xlu0 %v3976, 8
    %v4491 = vpop.permute.xlu0 %4490
    %4492 = vrot.lane.b32.xlu0 %v3977, 8
    %v4493 = vpop.permute.xlu0 %4492
    %4494 = vrot.lane.b32.xlu0 %v3978, 8
    %v4495 = vpop.permute.xlu0 %4494
    %4496 = vrot.lane.b32.xlu0 %v3979, 8
    %v4497 = vpop.permute.xlu0 %4496
    %4498 = vrot.lane.b32.xlu0 %v3980, 8
    %v4499 = vpop.permute.xlu0 %4498
    %4500 = vrot.lane.b32.xlu0 %v3981, 8
    %v4501 = vpop.permute.xlu0 %4500
    %4502 = vrot.lane.b32.xlu0 %v3982, 8
    %v4503 = vpop.permute.xlu0 %4502
    %4504 = vrot.lane.b32.xlu0 %v3983, 8
    %v4505 = vpop.permute.xlu0 %4504
    %4506 = vrot.lane.b32.xlu0 %v3984, 8
    %v4507 = vpop.permute.xlu0 %4506
    %4508 = vrot.lane.b32.xlu0 %v3985, 8
    %v4509 = vpop.permute.xlu0 %4508
    %4510 = vrot.lane.b32.xlu0 %v3986, 8
    %v4511 = vpop.permute.xlu0 %4510
    %4512 = vrot.lane.b32.xlu0 %v3987, 8
    %v4513 = vpop.permute.xlu0 %4512
    %4514 = vrot.lane.b32.xlu0 %v3988, 8
    %v4515 = vpop.permute.xlu0 %4514
    %4516 = vrot.lane.b32.xlu0 %v3989, 8
    %v4517 = vpop.permute.xlu0 %4516
    %4518 = vrot.lane.b32.xlu0 %v3990, 8
    %v4519 = vpop.permute.xlu0 %4518
    %4520 = vrot.lane.b32.xlu0 %v3991, 8
    %v4521 = vpop.permute.xlu0 %4520
    %4522 = vrot.lane.b32.xlu0 %v3992, 8
    %v4523 = vpop.permute.xlu0 %4522
    %4524 = vrot.lane.b32.xlu0 %v3993, 8
    %v4525 = vpop.permute.xlu0 %4524
    %4526 = vrot.lane.b32.xlu0 %v3994, 8
    %v4527 = vpop.permute.xlu0 %4526
    %4528 = vrot.lane.b32.xlu0 %v3995, 8
    %v4529 = vpop.permute.xlu0 %4528
    %4530 = vrot.lane.b32.xlu0 %v3996, 8
    %v4531 = vpop.permute.xlu0 %4530
    %4532 = vrot.lane.b32.xlu0 %v3997, 8
    %v4533 = vpop.permute.xlu0 %4532
    %4534 = vrot.lane.b32.xlu0 %v3998, 8
    %v4535 = vpop.permute.xlu0 %4534
    %4536 = vrot.lane.b32.xlu0 %v3999, 8
    %v4537 = vpop.permute.xlu0 %4536
    %4538 = vrot.lane.b32.xlu0 %v4000, 8
    %v4539 = vpop.permute.xlu0 %4538
    %4540 = vrot.lane.b32.xlu0 %v4001, 8
    %v4541 = vpop.permute.xlu0 %4540
    %4542 = vrot.lane.b32.xlu0 %v4004, 8
    %v4543 = vpop.permute.xlu0 %4542
    %4544 = vrot.lane.b32.xlu0 %v4005, 8
    %v4545 = vpop.permute.xlu0 %4544
    %4546 = vrot.lane.b32.xlu0 %v4006, 8
    %v4547 = vpop.permute.xlu0 %4546
    %4548 = vrot.lane.b32.xlu0 %v4007, 8
    %v4549 = vpop.permute.xlu0 %4548
    %4550 = vrot.lane.b32.xlu0 %v4008, 8
    %v4551 = vpop.permute.xlu0 %4550
    %4552 = vrot.lane.b32.xlu0 %v4009, 8
    %v4553 = vpop.permute.xlu0 %4552
    %4554 = vrot.lane.b32.xlu0 %v4010, 8
    %v4555 = vpop.permute.xlu0 %4554
    %4556 = vrot.lane.b32.xlu0 %v4011, 8
    %v4557 = vpop.permute.xlu0 %4556
    %4558 = vrot.lane.b32.xlu0 %v4012, 8
    %v4559 = vpop.permute.xlu0 %4558
    %4560 = vrot.lane.b32.xlu0 %v4013, 8
    %v4561 = vpop.permute.xlu0 %4560
    %4562 = vrot.lane.b32.xlu0 %v4014, 8
    %v4563 = vpop.permute.xlu0 %4562
    %4564 = vrot.lane.b32.xlu0 %v4015, 8
    %v4565 = vpop.permute.xlu0 %4564
    %4566 = vrot.lane.b32.xlu0 %v4016, 8
    %v4567 = vpop.permute.xlu0 %4566
    %4568 = vrot.lane.b32.xlu0 %v4017, 8
    %v4569 = vpop.permute.xlu0 %4568
    %4570 = vrot.lane.b32.xlu0 %v4018, 8
    %v4571 = vpop.permute.xlu0 %4570
    %4572 = vrot.lane.b32.xlu0 %v4019, 8
    %v4573 = vpop.permute.xlu0 %4572
    %4574 = vrot.lane.b32.xlu0 %v4020, 8
    %v4575 = vpop.permute.xlu0 %4574
    %4576 = vrot.lane.b32.xlu0 %v4021, 8
    %v4577 = vpop.permute.xlu0 %4576
    %4578 = vrot.lane.b32.xlu0 %v4022, 8
    %v4579 = vpop.permute.xlu0 %4578
    %4580 = vrot.lane.b32.xlu0 %v4023, 8
    %v4581 = vpop.permute.xlu0 %4580
    %4582 = vrot.lane.b32.xlu0 %v4024, 8
    %v4583 = vpop.permute.xlu0 %4582
    %4584 = vrot.lane.b32.xlu0 %v4025, 8
    %v4585 = vpop.permute.xlu0 %4584
    %4586 = vrot.lane.b32.xlu0 %v4026, 8
    %v4587 = vpop.permute.xlu0 %4586
    %4588 = vrot.lane.b32.xlu0 %v4027, 8
    %v4589 = vpop.permute.xlu0 %4588
    %4590 = vrot.lane.b32.xlu0 %v4028, 8
    %v4591 = vpop.permute.xlu0 %4590
    %4592 = vrot.lane.b32.xlu0 %v4029, 8
    %v4593 = vpop.permute.xlu0 %4592
    %4594 = vrot.lane.b32.xlu0 %v4030, 8
    %v4595 = vpop.permute.xlu0 %4594
    %4596 = vrot.lane.b32.xlu0 %v4031, 8
    %v4597 = vpop.permute.xlu0 %4596
    %4598 = vrot.lane.b32.xlu0 %v4032, 8
    %v4599 = vpop.permute.xlu0 %4598
    %4600 = vrot.lane.b32.xlu0 %v4033, 8
    %v4601 = vpop.permute.xlu0 %4600
    %4723 = vrot.lane.b32.xlu0 %v538, 16
    %v4724 = vpop.permute.xlu0 %4723
    %4725 = vrot.lane.b32.xlu0 %v539, 16
    %v4726 = vpop.permute.xlu0 %4725
    %4727 = vrot.lane.b32.xlu0 %v4336, 16
    %v4728 = vpop.permute.xlu0 %4727
    %4729 = vrot.lane.b32.xlu0 %v4337, 16
    %v4730 = vpop.permute.xlu0 %4729
    %4731 = vrot.lane.b32.xlu0 %v4338, 16
    %v4732 = vpop.permute.xlu0 %4731
    %4733 = vrot.lane.b32.xlu0 %v4339, 16
    %v4734 = vpop.permute.xlu0 %4733
    %4735 = vrot.lane.b32.xlu0 %v4340, 16
    %v4736 = vpop.permute.xlu0 %4735
    %4737 = vrot.lane.b32.xlu0 %v4341, 16
    %v4738 = vpop.permute.xlu0 %4737
    %4739 = vrot.lane.b32.xlu0 %v4342, 16
    %v4740 = vpop.permute.xlu0 %4739
    %4741 = vrot.lane.b32.xlu0 %v4343, 16
    %v4742 = vpop.permute.xlu0 %4741
    %4743 = vrot.lane.b32.xlu0 %v4344, 16
    %v4744 = vpop.permute.xlu0 %4743
    %4745 = vrot.lane.b32.xlu0 %v4345, 16
    %v4746 = vpop.permute.xlu0 %4745
    %4747 = vrot.lane.b32.xlu0 %v4346, 16
    %v4748 = vpop.permute.xlu0 %4747
    %4749 = vrot.lane.b32.xlu0 %v4347, 16
    %v4750 = vpop.permute.xlu0 %4749
    %4751 = vrot.lane.b32.xlu0 %v4348, 16
    %v4752 = vpop.permute.xlu0 %4751
    %4753 = vrot.lane.b32.xlu0 %v4349, 16
    %v4754 = vpop.permute.xlu0 %4753
    %4755 = vrot.lane.b32.xlu0 %v4350, 16
    %v4756 = vpop.permute.xlu0 %4755
    %4757 = vrot.lane.b32.xlu0 %v4351, 16
    %v4758 = vpop.permute.xlu0 %4757
    %4759 = vrot.lane.b32.xlu0 %v4352, 16
    %v4760 = vpop.permute.xlu0 %4759
    %4761 = vrot.lane.b32.xlu0 %v4353, 16
    %v4762 = vpop.permute.xlu0 %4761
    %4763 = vrot.lane.b32.xlu0 %v4354, 16
    %v4764 = vpop.permute.xlu0 %4763
    %4765 = vrot.lane.b32.xlu0 %v4355, 16
    %v4766 = vpop.permute.xlu0 %4765
    %4767 = vrot.lane.b32.xlu0 %v4356, 16
    %v4768 = vpop.permute.xlu0 %4767
    %4769 = vrot.lane.b32.xlu0 %v4357, 16
    %v4770 = vpop.permute.xlu0 %4769
    %4771 = vrot.lane.b32.xlu0 %v4358, 16
    %v4772 = vpop.permute.xlu0 %4771
    %4773 = vrot.lane.b32.xlu0 %v4359, 16
    %v4774 = vpop.permute.xlu0 %4773
    %4775 = vrot.lane.b32.xlu0 %v4360, 16
    %v4776 = vpop.permute.xlu0 %4775
    %4777 = vrot.lane.b32.xlu0 %v4361, 16
    %v4778 = vpop.permute.xlu0 %4777
    %4779 = vrot.lane.b32.xlu0 %v4362, 16
    %v4780 = vpop.permute.xlu0 %4779
    %4781 = vrot.lane.b32.xlu0 %v4363, 16
    %v4782 = vpop.permute.xlu0 %4781
    %4783 = vrot.lane.b32.xlu0 %v4364, 16
    %v4784 = vpop.permute.xlu0 %4783
    %4785 = vrot.lane.b32.xlu0 %v4365, 16
    %v4786 = vpop.permute.xlu0 %4785
    %4787 = vrot.lane.b32.xlu0 %v4366, 16
    %v4788 = vpop.permute.xlu0 %4787
    %4789 = vrot.lane.b32.xlu0 %v4367, 16
    %v4790 = vpop.permute.xlu0 %4789
    %4791 = vrot.lane.b32.xlu0 %v4368, 16
    %v4792 = vpop.permute.xlu0 %4791
    %4793 = vrot.lane.b32.xlu0 %v4369, 16
    %v4794 = vpop.permute.xlu0 %4793
    %4795 = vrot.lane.b32.xlu0 %v4370, 16
    %v4796 = vpop.permute.xlu0 %4795
    %4797 = vrot.lane.b32.xlu0 %v4371, 16
    %v4798 = vpop.permute.xlu0 %4797
    %4799 = vrot.lane.b32.xlu0 %v4372, 16
    %v4800 = vpop.permute.xlu0 %4799
    %4801 = vrot.lane.b32.xlu0 %v4373, 16
    %v4802 = vpop.permute.xlu0 %4801
    %4803 = vrot.lane.b32.xlu0 %v4374, 16
    %v4804 = vpop.permute.xlu0 %4803
    %4805 = vrot.lane.b32.xlu0 %v4375, 16
    %v4806 = vpop.permute.xlu0 %4805
    %4807 = vrot.lane.b32.xlu0 %v4376, 16
    %v4808 = vpop.permute.xlu0 %4807
    %4809 = vrot.lane.b32.xlu0 %v4377, 16
    %v4810 = vpop.permute.xlu0 %4809
    %4811 = vrot.lane.b32.xlu0 %v4378, 16
    %v4812 = vpop.permute.xlu0 %4811
    %4813 = vrot.lane.b32.xlu0 %v4379, 16
    %v4814 = vpop.permute.xlu0 %4813
    %4815 = vrot.lane.b32.xlu0 %v4380, 16
    %v4816 = vpop.permute.xlu0 %4815
    %4817 = vrot.lane.b32.xlu0 %v4381, 16
    %v4818 = vpop.permute.xlu0 %4817
    %4819 = vrot.lane.b32.xlu0 %v4382, 16
    %v4820 = vpop.permute.xlu0 %4819
    %4821 = vrot.lane.b32.xlu0 %v4383, 16
    %v4822 = vpop.permute.xlu0 %4821
    %4823 = vrot.lane.b32.xlu0 %v4384, 16
    %v4824 = vpop.permute.xlu0 %4823
    %4825 = vrot.lane.b32.xlu0 %v4385, 16
    %v4826 = vpop.permute.xlu0 %4825
    %4827 = vrot.lane.b32.xlu0 %v4386, 16
    %v4828 = vpop.permute.xlu0 %4827
    %4829 = vrot.lane.b32.xlu0 %v4387, 16
    %v4830 = vpop.permute.xlu0 %4829
    %4831 = vrot.lane.b32.xlu0 %v4388, 16
    %v4832 = vpop.permute.xlu0 %4831
    %4833 = vrot.lane.b32.xlu0 %v4389, 16
    %v4834 = vpop.permute.xlu0 %4833
    %4835 = vrot.lane.b32.xlu0 %v4390, 16
    %v4836 = vpop.permute.xlu0 %4835
    %4837 = vrot.lane.b32.xlu0 %v4391, 16
    %v4838 = vpop.permute.xlu0 %4837
    %4839 = vrot.lane.b32.xlu0 %v4392, 16
    %v4840 = vpop.permute.xlu0 %4839
    %4841 = vrot.lane.b32.xlu0 %v4393, 16
    %v4842 = vpop.permute.xlu0 %4841
    %4843 = vrot.lane.b32.xlu0 %v4394, 16
    %v4844 = vpop.permute.xlu0 %4843
    %4845 = vrot.lane.b32.xlu0 %v4395, 16
    %v4846 = vpop.permute.xlu0 %4845
    %4973 = vrot.lane.b32.xlu0 %v4156, 24
    %v4974 = vpop.permute.xlu0 %4973
    %4975 = vrot.lane.b32.xlu0 %v4157, 24
    %v4976 = vpop.permute.xlu0 %4975
    %4977 = vrot.lane.b32.xlu0 %v4158, 24
    %v4978 = vpop.permute.xlu0 %4977
    %4979 = vrot.lane.b32.xlu0 %v4159, 24
    %v4980 = vpop.permute.xlu0 %4979
    %4981 = vrot.lane.b32.xlu0 %v4160, 24
    %v4982 = vpop.permute.xlu0 %4981
    %4983 = vrot.lane.b32.xlu0 %v4161, 24
    %v4984 = vpop.permute.xlu0 %4983
    %4985 = vrot.lane.b32.xlu0 %v4162, 24
    %v4986 = vpop.permute.xlu0 %4985
    %4987 = vrot.lane.b32.xlu0 %v4163, 24
    %v4988 = vpop.permute.xlu0 %4987
    %4989 = vrot.lane.b32.xlu0 %v4164, 24
    %v4990 = vpop.permute.xlu0 %4989
    %4991 = vrot.lane.b32.xlu0 %v4165, 24
    %v4992 = vpop.permute.xlu0 %4991
    %4993 = vrot.lane.b32.xlu0 %v4166, 24
    %v4994 = vpop.permute.xlu0 %4993
    %4995 = vrot.lane.b32.xlu0 %v4167, 24
    %v4996 = vpop.permute.xlu0 %4995
    %4997 = vrot.lane.b32.xlu0 %v4168, 24
    %v4998 = vpop.permute.xlu0 %4997
    %4999 = vrot.lane.b32.xlu0 %v4169, 24
    %v5000 = vpop.permute.xlu0 %4999
    %5001 = vrot.lane.b32.xlu0 %v4170, 24
    %v5002 = vpop.permute.xlu0 %5001
    %5003 = vrot.lane.b32.xlu0 %v4171, 24
    %v5004 = vpop.permute.xlu0 %5003
    %5005 = vrot.lane.b32.xlu0 %v4172, 24
    %v5006 = vpop.permute.xlu0 %5005
    %5007 = vrot.lane.b32.xlu0 %v4173, 24
    %v5008 = vpop.permute.xlu0 %5007
    %5009 = vrot.lane.b32.xlu0 %v4174, 24
    %v5010 = vpop.permute.xlu0 %5009
    %5011 = vrot.lane.b32.xlu0 %v4175, 24
    %v5012 = vpop.permute.xlu0 %5011
    %5013 = vrot.lane.b32.xlu0 %v4176, 24
    %v5014 = vpop.permute.xlu0 %5013
    %5015 = vrot.lane.b32.xlu0 %v4177, 24
    %v5016 = vpop.permute.xlu0 %5015
    %5017 = vrot.lane.b32.xlu0 %v4178, 24
    %v5018 = vpop.permute.xlu0 %5017
    %5019 = vrot.lane.b32.xlu0 %v4179, 24
    %v5020 = vpop.permute.xlu0 %5019
    %5021 = vrot.lane.b32.xlu0 %v4180, 24
    %v5022 = vpop.permute.xlu0 %5021
    %5023 = vrot.lane.b32.xlu0 %v4181, 24
    %v5024 = vpop.permute.xlu0 %5023
    %5025 = vrot.lane.b32.xlu0 %v4182, 24
    %v5026 = vpop.permute.xlu0 %5025
    %5027 = vrot.lane.b32.xlu0 %v4183, 24
    %v5028 = vpop.permute.xlu0 %5027
    %5029 = vrot.lane.b32.xlu0 %v4184, 24
    %v5030 = vpop.permute.xlu0 %5029
    %5031 = vrot.lane.b32.xlu0 %v4185, 24
    %v5032 = vpop.permute.xlu0 %5031
    %5033 = vrot.lane.b32.xlu0 %v4404, 24
    %v5034 = vpop.permute.xlu0 %5033
    %5035 = vrot.lane.b32.xlu0 %v4405, 24
    %v5036 = vpop.permute.xlu0 %5035
    %5037 = vrot.lane.b32.xlu0 %v4186, 24
    %v5038 = vpop.permute.xlu0 %5037
    %5039 = vrot.lane.b32.xlu0 %v4187, 24
    %v5040 = vpop.permute.xlu0 %5039
    %5041 = vrot.lane.b32.xlu0 %v4188, 24
    %v5042 = vpop.permute.xlu0 %5041
    %5043 = vrot.lane.b32.xlu0 %v4189, 24
    %v5044 = vpop.permute.xlu0 %5043
    %5045 = vrot.lane.b32.xlu0 %v4190, 24
    %v5046 = vpop.permute.xlu0 %5045
    %5047 = vrot.lane.b32.xlu0 %v4191, 24
    %v5048 = vpop.permute.xlu0 %5047
    %5049 = vrot.lane.b32.xlu0 %v4192, 24
    %v5050 = vpop.permute.xlu0 %5049
    %5051 = vrot.lane.b32.xlu0 %v4193, 24
    %v5052 = vpop.permute.xlu0 %5051
    %5053 = vrot.lane.b32.xlu0 %v4194, 24
    %v5054 = vpop.permute.xlu0 %5053
    %5055 = vrot.lane.b32.xlu0 %v4195, 24
    %v5056 = vpop.permute.xlu0 %5055
    %5057 = vrot.lane.b32.xlu0 %v4196, 24
    %v5058 = vpop.permute.xlu0 %5057
    %5059 = vrot.lane.b32.xlu0 %v4197, 24
    %v5060 = vpop.permute.xlu0 %5059
    %5061 = vrot.lane.b32.xlu0 %v4198, 24
    %v5062 = vpop.permute.xlu0 %5061
    %5063 = vrot.lane.b32.xlu0 %v4199, 24
    %v5064 = vpop.permute.xlu0 %5063
    %5065 = vrot.lane.b32.xlu0 %v4200, 24
    %v5066 = vpop.permute.xlu0 %5065
    %5067 = vrot.lane.b32.xlu0 %v4201, 24
    %v5068 = vpop.permute.xlu0 %5067
    %5069 = vrot.lane.b32.xlu0 %v4202, 24
    %v5070 = vpop.permute.xlu0 %5069
    %5071 = vrot.lane.b32.xlu0 %v4203, 24
    %v5072 = vpop.permute.xlu0 %5071
    %5073 = vrot.lane.b32.xlu0 %v4204, 24
    %v5074 = vpop.permute.xlu0 %5073
    %5075 = vrot.lane.b32.xlu0 %v4205, 24
    %v5076 = vpop.permute.xlu0 %5075
    %5077 = vrot.lane.b32.xlu0 %v4206, 24
    %v5078 = vpop.permute.xlu0 %5077
    %5079 = vrot.lane.b32.xlu0 %v4207, 24
    %v5080 = vpop.permute.xlu0 %5079
    %5081 = vrot.lane.b32.xlu0 %v4208, 24
    %v5082 = vpop.permute.xlu0 %5081
    %5083 = vrot.lane.b32.xlu0 %v4209, 24
    %v5084 = vpop.permute.xlu0 %5083
    %5085 = vrot.lane.b32.xlu0 %v4210, 24
    %v5086 = vpop.permute.xlu0 %5085
    %5087 = vrot.lane.b32.xlu0 %v4211, 24
    %v5088 = vpop.permute.xlu0 %5087
    %5089 = vrot.lane.b32.xlu0 %v4212, 24
    %v5090 = vpop.permute.xlu0 %5089
    %5091 = vrot.lane.b32.xlu0 %v4213, 24
    %v5092 = vpop.permute.xlu0 %5091
    %5093 = vrot.lane.b32.xlu0 %v4214, 24
    %v5094 = vpop.permute.xlu0 %5093
    %5095 = vrot.lane.b32.xlu0 %v4215, 24
    %v5096 = vpop.permute.xlu0 %5095
    %5097 = vrot.lane.b32.xlu0 %v4406, 24
    %v5098 = vpop.permute.xlu0 %5097
    %5099 = vrot.lane.b32.xlu0 %v4407, 24
    %v5100 = vpop.permute.xlu0 %5099
    %5169 = vrot.lane.b32.xlu0 %v3972, 32
    %v5170 = vpop.permute.xlu0 %5169
    %5171 = vrot.lane.b32.xlu0 %v3973, 32
    %v5172 = vpop.permute.xlu0 %5171
    %5173 = vrot.lane.b32.xlu0 %v3974, 32
    %v5174 = vpop.permute.xlu0 %5173
    %5175 = vrot.lane.b32.xlu0 %v3975, 32
    %v5176 = vpop.permute.xlu0 %5175
    %5177 = vrot.lane.b32.xlu0 %v3976, 32
    %v5178 = vpop.permute.xlu0 %5177
    %5179 = vrot.lane.b32.xlu0 %v3977, 32
    %v5180 = vpop.permute.xlu0 %5179
    %5181 = vrot.lane.b32.xlu0 %v3978, 32
    %v5182 = vpop.permute.xlu0 %5181
    %5183 = vrot.lane.b32.xlu0 %v3979, 32
    %v5184 = vpop.permute.xlu0 %5183
    %5185 = vrot.lane.b32.xlu0 %v3980, 32
    %v5186 = vpop.permute.xlu0 %5185
    %5187 = vrot.lane.b32.xlu0 %v3981, 32
    %v5188 = vpop.permute.xlu0 %5187
    %5189 = vrot.lane.b32.xlu0 %v3982, 32
    %v5190 = vpop.permute.xlu0 %5189
    %5191 = vrot.lane.b32.xlu0 %v3983, 32
    %v5192 = vpop.permute.xlu0 %5191
    %5193 = vrot.lane.b32.xlu0 %v3984, 32
    %v5194 = vpop.permute.xlu0 %5193
    %5195 = vrot.lane.b32.xlu0 %v3985, 32
    %v5196 = vpop.permute.xlu0 %5195
    %5197 = vrot.lane.b32.xlu0 %v3986, 32
    %v5198 = vpop.permute.xlu0 %5197
    %5199 = vrot.lane.b32.xlu0 %v3987, 32
    %v5200 = vpop.permute.xlu0 %5199
    %5201 = vrot.lane.b32.xlu0 %v3988, 32
    %v5202 = vpop.permute.xlu0 %5201
    %5203 = vrot.lane.b32.xlu0 %v3989, 32
    %v5204 = vpop.permute.xlu0 %5203
    %5205 = vrot.lane.b32.xlu0 %v3990, 32
    %v5206 = vpop.permute.xlu0 %5205
    %5207 = vrot.lane.b32.xlu0 %v3991, 32
    %v5208 = vpop.permute.xlu0 %5207
    %5209 = vrot.lane.b32.xlu0 %v3992, 32
    %v5210 = vpop.permute.xlu0 %5209
    %5211 = vrot.lane.b32.xlu0 %v3993, 32
    %v5212 = vpop.permute.xlu0 %5211
    %5213 = vrot.lane.b32.xlu0 %v3994, 32
    %v5214 = vpop.permute.xlu0 %5213
    %5215 = vrot.lane.b32.xlu0 %v3995, 32
    %v5216 = vpop.permute.xlu0 %5215
    %5217 = vrot.lane.b32.xlu0 %v3996, 32
    %v5218 = vpop.permute.xlu0 %5217
    %5219 = vrot.lane.b32.xlu0 %v3997, 32
    %v5220 = vpop.permute.xlu0 %5219
    %5221 = vrot.lane.b32.xlu0 %v3998, 32
    %v5222 = vpop.permute.xlu0 %5221
    %5223 = vrot.lane.b32.xlu0 %v3999, 32
    %v5224 = vpop.permute.xlu0 %5223
    %5225 = vrot.lane.b32.xlu0 %v4000, 32
    %v5226 = vpop.permute.xlu0 %5225
    %5227 = vrot.lane.b32.xlu0 %v4001, 32
    %v5228 = vpop.permute.xlu0 %5227
    %5229 = vrot.lane.b32.xlu0 %v4002, 32
    %v5230 = vpop.permute.xlu0 %5229
    %5231 = vrot.lane.b32.xlu0 %v4003, 32
    %v5232 = vpop.permute.xlu0 %5231
    %5233 = vrot.lane.b32.xlu0 %v4004, 32
    %v5234 = vpop.permute.xlu0 %5233
    %5235 = vrot.lane.b32.xlu0 %v4005, 32
    %v5236 = vpop.permute.xlu0 %5235
    %5237 = vrot.lane.b32.xlu0 %v4006, 32
    %v5238 = vpop.permute.xlu0 %5237
    %5239 = vrot.lane.b32.xlu0 %v4007, 32
    %v5240 = vpop.permute.xlu0 %5239
    %5241 = vrot.lane.b32.xlu0 %v4008, 32
    %v5242 = vpop.permute.xlu0 %5241
    %5243 = vrot.lane.b32.xlu0 %v4009, 32
    %v5244 = vpop.permute.xlu0 %5243
    %5245 = vrot.lane.b32.xlu0 %v4010, 32
    %v5246 = vpop.permute.xlu0 %5245
    %5247 = vrot.lane.b32.xlu0 %v4011, 32
    %v5248 = vpop.permute.xlu0 %5247
    %5249 = vrot.lane.b32.xlu0 %v4012, 32
    %v5250 = vpop.permute.xlu0 %5249
    %5251 = vrot.lane.b32.xlu0 %v4013, 32
    %v5252 = vpop.permute.xlu0 %5251
    %5253 = vrot.lane.b32.xlu0 %v4014, 32
    %v5254 = vpop.permute.xlu0 %5253
    %5255 = vrot.lane.b32.xlu0 %v4015, 32
    %v5256 = vpop.permute.xlu0 %5255
    %5257 = vrot.lane.b32.xlu0 %v4016, 32
    %v5258 = vpop.permute.xlu0 %5257
    %5259 = vrot.lane.b32.xlu0 %v4017, 32
    %v5260 = vpop.permute.xlu0 %5259
    %5261 = vrot.lane.b32.xlu0 %v4018, 32
    %v5262 = vpop.permute.xlu0 %5261
    %5263 = vrot.lane.b32.xlu0 %v4019, 32
    %v5264 = vpop.permute.xlu0 %5263
    %5265 = vrot.lane.b32.xlu0 %v4020, 32
    %v5266 = vpop.permute.xlu0 %5265
    %5267 = vrot.lane.b32.xlu0 %v4021, 32
    %v5268 = vpop.permute.xlu0 %5267
    %5269 = vrot.lane.b32.xlu0 %v4022, 32
    %v5270 = vpop.permute.xlu0 %5269
    %5271 = vrot.lane.b32.xlu0 %v4023, 32
    %v5272 = vpop.permute.xlu0 %5271
    %5273 = vrot.lane.b32.xlu0 %v4024, 32
    %v5274 = vpop.permute.xlu0 %5273
    %5275 = vrot.lane.b32.xlu0 %v4025, 32
    %v5276 = vpop.permute.xlu0 %5275
    %5277 = vrot.lane.b32.xlu0 %v4026, 32
    %v5278 = vpop.permute.xlu0 %5277
    %5279 = vrot.lane.b32.xlu0 %v4027, 32
    %v5280 = vpop.permute.xlu0 %5279
    %5281 = vrot.lane.b32.xlu0 %v4028, 32
    %v5282 = vpop.permute.xlu0 %5281
    %5283 = vrot.lane.b32.xlu0 %v4029, 32
    %v5284 = vpop.permute.xlu0 %5283
    %5285 = vrot.lane.b32.xlu0 %v4030, 32
    %v5286 = vpop.permute.xlu0 %5285
    %5287 = vrot.lane.b32.xlu0 %v4031, 32
    %v5288 = vpop.permute.xlu0 %5287
    %5289 = vrot.lane.b32.xlu0 %v4032, 32
    %v5290 = vpop.permute.xlu0 %5289
    %5291 = vrot.lane.b32.xlu0 %v4033, 32
    %v5292 = vpop.permute.xlu0 %5291
    %5293 = vrot.lane.b32.xlu0 %v4034, 32
    %v5294 = vpop.permute.xlu0 %5293
    %5295 = vrot.lane.b32.xlu0 %v4035, 32
    %v5296 = vpop.permute.xlu0 %5295
    %5365 = vrot.lane.b32.xlu0 %v4336, 40
    %v5366 = vpop.permute.xlu0 %5365
    %5367 = vrot.lane.b32.xlu0 %v4337, 40
    %v5368 = vpop.permute.xlu0 %5367
    %5369 = vrot.lane.b32.xlu0 %v4338, 40
    %v5370 = vpop.permute.xlu0 %5369
    %5371 = vrot.lane.b32.xlu0 %v4339, 40
    %v5372 = vpop.permute.xlu0 %5371
    %5373 = vrot.lane.b32.xlu0 %v4340, 40
    %v5374 = vpop.permute.xlu0 %5373
    %5375 = vrot.lane.b32.xlu0 %v4341, 40
    %v5376 = vpop.permute.xlu0 %5375
    %5377 = vrot.lane.b32.xlu0 %v4342, 40
    %v5378 = vpop.permute.xlu0 %5377
    %5379 = vrot.lane.b32.xlu0 %v4343, 40
    %v5380 = vpop.permute.xlu0 %5379
    %5381 = vrot.lane.b32.xlu0 %v4344, 40
    %v5382 = vpop.permute.xlu0 %5381
    %5383 = vrot.lane.b32.xlu0 %v4345, 40
    %v5384 = vpop.permute.xlu0 %5383
    %5385 = vrot.lane.b32.xlu0 %v4346, 40
    %v5386 = vpop.permute.xlu0 %5385
    %5387 = vrot.lane.b32.xlu0 %v4347, 40
    %v5388 = vpop.permute.xlu0 %5387
    %5389 = vrot.lane.b32.xlu0 %v4348, 40
    %v5390 = vpop.permute.xlu0 %5389
    %5391 = vrot.lane.b32.xlu0 %v4349, 40
    %v5392 = vpop.permute.xlu0 %5391
    %5393 = vrot.lane.b32.xlu0 %v4350, 40
    %v5394 = vpop.permute.xlu0 %5393
    %5395 = vrot.lane.b32.xlu0 %v4351, 40
    %v5396 = vpop.permute.xlu0 %5395
    %5397 = vrot.lane.b32.xlu0 %v4352, 40
    %v5398 = vpop.permute.xlu0 %5397
    %5399 = vrot.lane.b32.xlu0 %v4353, 40
    %v5400 = vpop.permute.xlu0 %5399
    %5401 = vrot.lane.b32.xlu0 %v4354, 40
    %v5402 = vpop.permute.xlu0 %5401
    %5403 = vrot.lane.b32.xlu0 %v4355, 40
    %v5404 = vpop.permute.xlu0 %5403
    %5405 = vrot.lane.b32.xlu0 %v4356, 40
    %v5406 = vpop.permute.xlu0 %5405
    %5407 = vrot.lane.b32.xlu0 %v4357, 40
    %v5408 = vpop.permute.xlu0 %5407
    %5409 = vrot.lane.b32.xlu0 %v4358, 40
    %v5410 = vpop.permute.xlu0 %5409
    %5411 = vrot.lane.b32.xlu0 %v4359, 40
    %v5412 = vpop.permute.xlu0 %5411
    %5413 = vrot.lane.b32.xlu0 %v4360, 40
    %v5414 = vpop.permute.xlu0 %5413
    %5415 = vrot.lane.b32.xlu0 %v4361, 40
    %v5416 = vpop.permute.xlu0 %5415
    %5417 = vrot.lane.b32.xlu0 %v4362, 40
    %v5418 = vpop.permute.xlu0 %5417
    %5419 = vrot.lane.b32.xlu0 %v4363, 40
    %v5420 = vpop.permute.xlu0 %5419
    %5421 = vrot.lane.b32.xlu0 %v4364, 40
    %v5422 = vpop.permute.xlu0 %5421
    %5423 = vrot.lane.b32.xlu0 %v4365, 40
    %v5424 = vpop.permute.xlu0 %5423
    %5425 = vrot.lane.b32.xlu0 %v4416, 40
    %v5426 = vpop.permute.xlu0 %5425
    %5427 = vrot.lane.b32.xlu0 %v4417, 40
    %v5428 = vpop.permute.xlu0 %5427
    %5429 = vrot.lane.b32.xlu0 %v4366, 40
    %v5430 = vpop.permute.xlu0 %5429
    %5431 = vrot.lane.b32.xlu0 %v4367, 40
    %v5432 = vpop.permute.xlu0 %5431
    %5433 = vrot.lane.b32.xlu0 %v4368, 40
    %v5434 = vpop.permute.xlu0 %5433
    %5435 = vrot.lane.b32.xlu0 %v4369, 40
    %v5436 = vpop.permute.xlu0 %5435
    %5437 = vrot.lane.b32.xlu0 %v4370, 40
    %v5438 = vpop.permute.xlu0 %5437
    %5439 = vrot.lane.b32.xlu0 %v4371, 40
    %v5440 = vpop.permute.xlu0 %5439
    %5441 = vrot.lane.b32.xlu0 %v4372, 40
    %v5442 = vpop.permute.xlu0 %5441
    %5443 = vrot.lane.b32.xlu0 %v4373, 40
    %v5444 = vpop.permute.xlu0 %5443
    %5445 = vrot.lane.b32.xlu0 %v4374, 40
    %v5446 = vpop.permute.xlu0 %5445
    %5447 = vrot.lane.b32.xlu0 %v4375, 40
    %v5448 = vpop.permute.xlu0 %5447
    %5449 = vrot.lane.b32.xlu0 %v4376, 40
    %v5450 = vpop.permute.xlu0 %5449
    %5451 = vrot.lane.b32.xlu0 %v4377, 40
    %v5452 = vpop.permute.xlu0 %5451
    %5453 = vrot.lane.b32.xlu0 %v4378, 40
    %v5454 = vpop.permute.xlu0 %5453
    %5455 = vrot.lane.b32.xlu0 %v4379, 40
    %v5456 = vpop.permute.xlu0 %5455
    %5457 = vrot.lane.b32.xlu0 %v4380, 40
    %v5458 = vpop.permute.xlu0 %5457
    %5459 = vrot.lane.b32.xlu0 %v4381, 40
    %v5460 = vpop.permute.xlu0 %5459
    %5461 = vrot.lane.b32.xlu0 %v4382, 40
    %v5462 = vpop.permute.xlu0 %5461
    %5463 = vrot.lane.b32.xlu0 %v4383, 40
    %v5464 = vpop.permute.xlu0 %5463
    %5465 = vrot.lane.b32.xlu0 %v4384, 40
    %v5466 = vpop.permute.xlu0 %5465
    %5467 = vrot.lane.b32.xlu0 %v4385, 40
    %v5468 = vpop.permute.xlu0 %5467
    %5469 = vrot.lane.b32.xlu0 %v4386, 40
    %v5470 = vpop.permute.xlu0 %5469
    %5471 = vrot.lane.b32.xlu0 %v4387, 40
    %v5472 = vpop.permute.xlu0 %5471
    %5473 = vrot.lane.b32.xlu0 %v4388, 40
    %v5474 = vpop.permute.xlu0 %5473
    %5475 = vrot.lane.b32.xlu0 %v4389, 40
    %v5476 = vpop.permute.xlu0 %5475
    %5477 = vrot.lane.b32.xlu0 %v4390, 40
    %v5478 = vpop.permute.xlu0 %5477
    %5479 = vrot.lane.b32.xlu0 %v4391, 40
    %v5480 = vpop.permute.xlu0 %5479
    %5481 = vrot.lane.b32.xlu0 %v4392, 40
    %v5482 = vpop.permute.xlu0 %5481
    %5483 = vrot.lane.b32.xlu0 %v4393, 40
    %v5484 = vpop.permute.xlu0 %5483
    %5485 = vrot.lane.b32.xlu0 %v4394, 40
    %v5486 = vpop.permute.xlu0 %5485
    %5487 = vrot.lane.b32.xlu0 %v4395, 40
    %v5488 = vpop.permute.xlu0 %5487
    %5489 = vrot.lane.b32.xlu0 %v4418, 40
    %v5490 = vpop.permute.xlu0 %5489
    %5491 = vrot.lane.b32.xlu0 %v4419, 40
    %v5492 = vpop.permute.xlu0 %5491
    %5557 = vrot.lane.b32.xlu0 %v4158, 48
    %v5558 = vpop.permute.xlu0 %5557
    %5559 = vrot.lane.b32.xlu0 %v4159, 48
    %v5560 = vpop.permute.xlu0 %5559
    %5561 = vrot.lane.b32.xlu0 %v4160, 48
    %v5562 = vpop.permute.xlu0 %5561
    %5563 = vrot.lane.b32.xlu0 %v4161, 48
    %v5564 = vpop.permute.xlu0 %5563
    %5565 = vrot.lane.b32.xlu0 %v4162, 48
    %v5566 = vpop.permute.xlu0 %5565
    %5567 = vrot.lane.b32.xlu0 %v4163, 48
    %v5568 = vpop.permute.xlu0 %5567
    %5569 = vrot.lane.b32.xlu0 %v4164, 48
    %v5570 = vpop.permute.xlu0 %5569
    %5571 = vrot.lane.b32.xlu0 %v4165, 48
    %v5572 = vpop.permute.xlu0 %5571
    %5573 = vrot.lane.b32.xlu0 %v4166, 48
    %v5574 = vpop.permute.xlu0 %5573
    %5575 = vrot.lane.b32.xlu0 %v4167, 48
    %v5576 = vpop.permute.xlu0 %5575
    %5577 = vrot.lane.b32.xlu0 %v4168, 48
    %v5578 = vpop.permute.xlu0 %5577
    %5579 = vrot.lane.b32.xlu0 %v4169, 48
    %v5580 = vpop.permute.xlu0 %5579
    %5581 = vrot.lane.b32.xlu0 %v4170, 48
    %v5582 = vpop.permute.xlu0 %5581
    %5583 = vrot.lane.b32.xlu0 %v4171, 48
    %v5584 = vpop.permute.xlu0 %5583
    %5585 = vrot.lane.b32.xlu0 %v4172, 48
    %v5586 = vpop.permute.xlu0 %5585
    %5587 = vrot.lane.b32.xlu0 %v4173, 48
    %v5588 = vpop.permute.xlu0 %5587
    %5589 = vrot.lane.b32.xlu0 %v4174, 48
    %v5590 = vpop.permute.xlu0 %5589
    %5591 = vrot.lane.b32.xlu0 %v4175, 48
    %v5592 = vpop.permute.xlu0 %5591
    %5593 = vrot.lane.b32.xlu0 %v4176, 48
    %v5594 = vpop.permute.xlu0 %5593
    %5595 = vrot.lane.b32.xlu0 %v4177, 48
    %v5596 = vpop.permute.xlu0 %5595
    %5597 = vrot.lane.b32.xlu0 %v4178, 48
    %v5598 = vpop.permute.xlu0 %5597
    %5599 = vrot.lane.b32.xlu0 %v4179, 48
    %v5600 = vpop.permute.xlu0 %5599
    %5601 = vrot.lane.b32.xlu0 %v4180, 48
    %v5602 = vpop.permute.xlu0 %5601
    %5603 = vrot.lane.b32.xlu0 %v4181, 48
    %v5604 = vpop.permute.xlu0 %5603
    %5605 = vrot.lane.b32.xlu0 %v4182, 48
    %v5606 = vpop.permute.xlu0 %5605
    %5607 = vrot.lane.b32.xlu0 %v4183, 48
    %v5608 = vpop.permute.xlu0 %5607
    %5609 = vrot.lane.b32.xlu0 %v4184, 48
    %v5610 = vpop.permute.xlu0 %5609
    %5611 = vrot.lane.b32.xlu0 %v4185, 48
    %v5612 = vpop.permute.xlu0 %5611
    %5613 = vrot.lane.b32.xlu0 %v4404, 48
    %v5614 = vpop.permute.xlu0 %5613
    %5615 = vrot.lane.b32.xlu0 %v4405, 48
    %v5616 = vpop.permute.xlu0 %5615
    %5617 = vrot.lane.b32.xlu0 %v343, 48
    %v5618 = vpop.permute.xlu0 %5617
    %5619 = vrot.lane.b32.xlu0 %v344, 48
    %v5620 = vpop.permute.xlu0 %5619
    %5621 = vrot.lane.b32.xlu0 %v4188, 48
    %v5622 = vpop.permute.xlu0 %5621
    %5623 = vrot.lane.b32.xlu0 %v4189, 48
    %v5624 = vpop.permute.xlu0 %5623
    %5625 = vrot.lane.b32.xlu0 %v4190, 48
    %v5626 = vpop.permute.xlu0 %5625
    %5627 = vrot.lane.b32.xlu0 %v4191, 48
    %v5628 = vpop.permute.xlu0 %5627
    %5629 = vrot.lane.b32.xlu0 %v4192, 48
    %v5630 = vpop.permute.xlu0 %5629
    %5631 = vrot.lane.b32.xlu0 %v4193, 48
    %v5632 = vpop.permute.xlu0 %5631
    %5633 = vrot.lane.b32.xlu0 %v4194, 48
    %v5634 = vpop.permute.xlu0 %5633
    %5635 = vrot.lane.b32.xlu0 %v4195, 48
    %v5636 = vpop.permute.xlu0 %5635
    %5637 = vrot.lane.b32.xlu0 %v4196, 48
    %v5638 = vpop.permute.xlu0 %5637
    %5639 = vrot.lane.b32.xlu0 %v4197, 48
    %v5640 = vpop.permute.xlu0 %5639
    %5641 = vrot.lane.b32.xlu0 %v4198, 48
    %v5642 = vpop.permute.xlu0 %5641
    %5643 = vrot.lane.b32.xlu0 %v4199, 48
    %v5644 = vpop.permute.xlu0 %5643
    %5645 = vrot.lane.b32.xlu0 %v4200, 48
    %v5646 = vpop.permute.xlu0 %5645
    %5647 = vrot.lane.b32.xlu0 %v4201, 48
    %v5648 = vpop.permute.xlu0 %5647
    %5649 = vrot.lane.b32.xlu0 %v4202, 48
    %v5650 = vpop.permute.xlu0 %5649
    %5651 = vrot.lane.b32.xlu0 %v4203, 48
    %v5652 = vpop.permute.xlu0 %5651
    %5653 = vrot.lane.b32.xlu0 %v4204, 48
    %v5654 = vpop.permute.xlu0 %5653
    %5655 = vrot.lane.b32.xlu0 %v4205, 48
    %v5656 = vpop.permute.xlu0 %5655
    %5657 = vrot.lane.b32.xlu0 %v4206, 48
    %v5658 = vpop.permute.xlu0 %5657
    %5659 = vrot.lane.b32.xlu0 %v4207, 48
    %v5660 = vpop.permute.xlu0 %5659
    %5661 = vrot.lane.b32.xlu0 %v4208, 48
    %v5662 = vpop.permute.xlu0 %5661
    %5663 = vrot.lane.b32.xlu0 %v4209, 48
    %v5664 = vpop.permute.xlu0 %5663
    %5665 = vrot.lane.b32.xlu0 %v4210, 48
    %v5666 = vpop.permute.xlu0 %5665
    %5667 = vrot.lane.b32.xlu0 %v4211, 48
    %v5668 = vpop.permute.xlu0 %5667
    %5669 = vrot.lane.b32.xlu0 %v4212, 48
    %v5670 = vpop.permute.xlu0 %5669
    %5671 = vrot.lane.b32.xlu0 %v4213, 48
    %v5672 = vpop.permute.xlu0 %5671
    %5673 = vrot.lane.b32.xlu0 %v4214, 48
    %v5674 = vpop.permute.xlu0 %5673
    %5675 = vrot.lane.b32.xlu0 %v4215, 48
    %v5676 = vpop.permute.xlu0 %5675
    %5677 = vrot.lane.b32.xlu0 %v4406, 48
    %v5678 = vpop.permute.xlu0 %5677
    %5679 = vrot.lane.b32.xlu0 %v4407, 48
    %v5680 = vpop.permute.xlu0 %5679
    %5743 = vrot.lane.b32.xlu0 %v3974, 56
    %v5744 = vpop.permute.xlu0 %5743
    %5745 = vrot.lane.b32.xlu0 %v3975, 56
    %v5746 = vpop.permute.xlu0 %5745
    %5747 = vrot.lane.b32.xlu0 %v3976, 56
    %v5748 = vpop.permute.xlu0 %5747
    %5749 = vrot.lane.b32.xlu0 %v3977, 56
    %v5750 = vpop.permute.xlu0 %5749
    %5751 = vrot.lane.b32.xlu0 %v3978, 56
    %v5752 = vpop.permute.xlu0 %5751
    %5753 = vrot.lane.b32.xlu0 %v3979, 56
    %v5754 = vpop.permute.xlu0 %5753
    %5755 = vrot.lane.b32.xlu0 %v3980, 56
    %v5756 = vpop.permute.xlu0 %5755
    %5757 = vrot.lane.b32.xlu0 %v3981, 56
    %v5758 = vpop.permute.xlu0 %5757
    %5759 = vrot.lane.b32.xlu0 %v3982, 56
    %v5760 = vpop.permute.xlu0 %5759
    %5761 = vrot.lane.b32.xlu0 %v3983, 56
    %v5762 = vpop.permute.xlu0 %5761
    %5763 = vrot.lane.b32.xlu0 %v3984, 56
    %v5764 = vpop.permute.xlu0 %5763
    %5765 = vrot.lane.b32.xlu0 %v3985, 56
    %v5766 = vpop.permute.xlu0 %5765
    %5767 = vrot.lane.b32.xlu0 %v3986, 56
    %v5768 = vpop.permute.xlu0 %5767
    %5769 = vrot.lane.b32.xlu0 %v3987, 56
    %v5770 = vpop.permute.xlu0 %5769
    %5771 = vrot.lane.b32.xlu0 %v3988, 56
    %v5772 = vpop.permute.xlu0 %5771
    %5773 = vrot.lane.b32.xlu0 %v3989, 56
    %v5774 = vpop.permute.xlu0 %5773
    %5775 = vrot.lane.b32.xlu0 %v3990, 56
    %v5776 = vpop.permute.xlu0 %5775
    %5777 = vrot.lane.b32.xlu0 %v3991, 56
    %v5778 = vpop.permute.xlu0 %5777
    %5779 = vrot.lane.b32.xlu0 %v3992, 56
    %v5780 = vpop.permute.xlu0 %5779
    %5781 = vrot.lane.b32.xlu0 %v3993, 56
    %v5782 = vpop.permute.xlu0 %5781
    %5783 = vrot.lane.b32.xlu0 %v3994, 56
    %v5784 = vpop.permute.xlu0 %5783
    %5785 = vrot.lane.b32.xlu0 %v3995, 56
    %v5786 = vpop.permute.xlu0 %5785
    %5787 = vrot.lane.b32.xlu0 %v3996, 56
    %v5788 = vpop.permute.xlu0 %5787
    %5789 = vrot.lane.b32.xlu0 %v3997, 56
    %v5790 = vpop.permute.xlu0 %5789
    %5791 = vrot.lane.b32.xlu0 %v3998, 56
    %v5792 = vpop.permute.xlu0 %5791
    %5793 = vrot.lane.b32.xlu0 %v3999, 56
    %v5794 = vpop.permute.xlu0 %5793
    %5795 = vrot.lane.b32.xlu0 %v4000, 56
    %v5796 = vpop.permute.xlu0 %5795
    %5797 = vrot.lane.b32.xlu0 %v4001, 56
    %v5798 = vpop.permute.xlu0 %5797
    %5799 = vrot.lane.b32.xlu0 %v4002, 56
    %v5800 = vpop.permute.xlu0 %5799
    %5801 = vrot.lane.b32.xlu0 %v4003, 56
    %v5802 = vpop.permute.xlu0 %5801
    %5803 = vrot.lane.b32.xlu0 0.0, 56
    %v5804 = vpop.permute.xlu0 %5803
    %5805 = vrot.lane.b32.xlu0 %v4006, 56
    %v5806 = vpop.permute.xlu0 %5805
    %5807 = vrot.lane.b32.xlu0 %v4007, 56
    %v5808 = vpop.permute.xlu0 %5807
    %5809 = vrot.lane.b32.xlu0 %v4008, 56
    %v5810 = vpop.permute.xlu0 %5809
    %5811 = vrot.lane.b32.xlu0 %v4009, 56
    %v5812 = vpop.permute.xlu0 %5811
    %5813 = vrot.lane.b32.xlu0 %v4010, 56
    %v5814 = vpop.permute.xlu0 %5813
    %5815 = vrot.lane.b32.xlu0 %v4011, 56
    %v5816 = vpop.permute.xlu0 %5815
    %5817 = vrot.lane.b32.xlu0 %v4012, 56
    %v5818 = vpop.permute.xlu0 %5817
    %5819 = vrot.lane.b32.xlu0 %v4013, 56
    %v5820 = vpop.permute.xlu0 %5819
    %5821 = vrot.lane.b32.xlu0 %v4014, 56
    %v5822 = vpop.permute.xlu0 %5821
    %5823 = vrot.lane.b32.xlu0 %v4015, 56
    %v5824 = vpop.permute.xlu0 %5823
    %5825 = vrot.lane.b32.xlu0 %v4016, 56
    %v5826 = vpop.permute.xlu0 %5825
    %5827 = vrot.lane.b32.xlu0 %v4017, 56
    %v5828 = vpop.permute.xlu0 %5827
    %5829 = vrot.lane.b32.xlu0 %v4018, 56
    %v5830 = vpop.permute.xlu0 %5829
    %5831 = vrot.lane.b32.xlu0 %v4019, 56
    %v5832 = vpop.permute.xlu0 %5831
    %5833 = vrot.lane.b32.xlu0 %v4020, 56
    %v5834 = vpop.permute.xlu0 %5833
    %5835 = vrot.lane.b32.xlu0 %v4021, 56
    %v5836 = vpop.permute.xlu0 %5835
    %5837 = vrot.lane.b32.xlu0 %v4022, 56
    %v5838 = vpop.permute.xlu0 %5837
    %5839 = vrot.lane.b32.xlu0 %v4023, 56
    %v5840 = vpop.permute.xlu0 %5839
    %5841 = vrot.lane.b32.xlu0 %v4024, 56
    %v5842 = vpop.permute.xlu0 %5841
    %5843 = vrot.lane.b32.xlu0 %v4025, 56
    %v5844 = vpop.permute.xlu0 %5843
    %5845 = vrot.lane.b32.xlu0 %v4026, 56
    %v5846 = vpop.permute.xlu0 %5845
    %5847 = vrot.lane.b32.xlu0 %v4027, 56
    %v5848 = vpop.permute.xlu0 %5847
    %5849 = vrot.lane.b32.xlu0 %v4028, 56
    %v5850 = vpop.permute.xlu0 %5849
    %5851 = vrot.lane.b32.xlu0 %v4029, 56
    %v5852 = vpop.permute.xlu0 %5851
    %5853 = vrot.lane.b32.xlu0 %v4030, 56
    %v5854 = vpop.permute.xlu0 %5853
    %5855 = vrot.lane.b32.xlu0 %v4031, 56
    %v5856 = vpop.permute.xlu0 %5855
    %5857 = vrot.lane.b32.xlu0 %v4032, 56
    %v5858 = vpop.permute.xlu0 %5857
    %5859 = vrot.lane.b32.xlu0 %v4033, 56
    %v5860 = vpop.permute.xlu0 %5859
    %5861 = vrot.lane.b32.xlu0 %v4034, 56
    %v5862 = vpop.permute.xlu0 %5861
    %5863 = vrot.lane.b32.xlu0 %v4035, 56
    %v5864 = vpop.permute.xlu0 %5863
    %5926 = vrot.lane.b32.xlu0 %v4338, 64
    %v5927 = vpop.permute.xlu0 %5926
    %5928 = vrot.lane.b32.xlu0 %v4339, 64
    %v5929 = vpop.permute.xlu0 %5928
    %5930 = vrot.lane.b32.xlu0 %v4340, 64
    %v5931 = vpop.permute.xlu0 %5930
    %5932 = vrot.lane.b32.xlu0 %v4341, 64
    %v5933 = vpop.permute.xlu0 %5932
    %5934 = vrot.lane.b32.xlu0 %v4342, 64
    %v5935 = vpop.permute.xlu0 %5934
    %5936 = vrot.lane.b32.xlu0 %v4343, 64
    %v5937 = vpop.permute.xlu0 %5936
    %5938 = vrot.lane.b32.xlu0 %v4344, 64
    %v5939 = vpop.permute.xlu0 %5938
    %5940 = vrot.lane.b32.xlu0 %v4345, 64
    %v5941 = vpop.permute.xlu0 %5940
    %5942 = vrot.lane.b32.xlu0 %v4346, 64
    %v5943 = vpop.permute.xlu0 %5942
    %5944 = vrot.lane.b32.xlu0 %v4347, 64
    %v5945 = vpop.permute.xlu0 %5944
    %5946 = vrot.lane.b32.xlu0 %v4348, 64
    %v5947 = vpop.permute.xlu0 %5946
    %5948 = vrot.lane.b32.xlu0 %v4349, 64
    %v5949 = vpop.permute.xlu0 %5948
    %5950 = vrot.lane.b32.xlu0 %v4350, 64
    %v5951 = vpop.permute.xlu0 %5950
    %5952 = vrot.lane.b32.xlu0 %v4351, 64
    %v5953 = vpop.permute.xlu0 %5952
    %5954 = vrot.lane.b32.xlu0 %v4352, 64
    %v5955 = vpop.permute.xlu0 %5954
    %5956 = vrot.lane.b32.xlu0 %v4353, 64
    %v5957 = vpop.permute.xlu0 %5956
    %5958 = vrot.lane.b32.xlu0 %v4354, 64
    %v5959 = vpop.permute.xlu0 %5958
    %5960 = vrot.lane.b32.xlu0 %v4355, 64
    %v5961 = vpop.permute.xlu0 %5960
    %5962 = vrot.lane.b32.xlu0 %v4356, 64
    %v5963 = vpop.permute.xlu0 %5962
    %5964 = vrot.lane.b32.xlu0 %v4357, 64
    %v5965 = vpop.permute.xlu0 %5964
    %5966 = vrot.lane.b32.xlu0 %v4358, 64
    %v5967 = vpop.permute.xlu0 %5966
    %5968 = vrot.lane.b32.xlu0 %v4359, 64
    %v5969 = vpop.permute.xlu0 %5968
    %5970 = vrot.lane.b32.xlu0 %v4360, 64
    %v5971 = vpop.permute.xlu0 %5970
    %5972 = vrot.lane.b32.xlu0 %v4361, 64
    %v5973 = vpop.permute.xlu0 %5972
    %5974 = vrot.lane.b32.xlu0 %v4362, 64
    %v5975 = vpop.permute.xlu0 %5974
    %5976 = vrot.lane.b32.xlu0 %v4363, 64
    %v5977 = vpop.permute.xlu0 %5976
    %5978 = vrot.lane.b32.xlu0 %v4364, 64
    %v5979 = vpop.permute.xlu0 %5978
    %5980 = vrot.lane.b32.xlu0 %v4365, 64
    %v5981 = vpop.permute.xlu0 %5980
    %5982 = vrot.lane.b32.xlu0 %v4416, 64
    %v5983 = vpop.permute.xlu0 %5982
    %5984 = vrot.lane.b32.xlu0 %v4417, 64
    %v5985 = vpop.permute.xlu0 %5984
    %5986 = vrot.lane.b32.xlu0 %v538, 64
    %v5987 = vpop.permute.xlu0 %5986
    %5988 = vrot.lane.b32.xlu0 %v539, 64
    %v5989 = vpop.permute.xlu0 %5988
    %5990 = vrot.lane.b32.xlu0 %v4368, 64
    %v5991 = vpop.permute.xlu0 %5990
    %5992 = vrot.lane.b32.xlu0 %v4369, 64
    %v5993 = vpop.permute.xlu0 %5992
    %5994 = vrot.lane.b32.xlu0 %v4370, 64
    %v5995 = vpop.permute.xlu0 %5994
    %5996 = vrot.lane.b32.xlu0 %v4371, 64
    %v5997 = vpop.permute.xlu0 %5996
    %5998 = vrot.lane.b32.xlu0 %v4372, 64
    %v5999 = vpop.permute.xlu0 %5998
    %6000 = vrot.lane.b32.xlu0 %v4373, 64
    %v6001 = vpop.permute.xlu0 %6000
    %6002 = vrot.lane.b32.xlu0 %v4374, 64
    %v6003 = vpop.permute.xlu0 %6002
    %6004 = vrot.lane.b32.xlu0 %v4375, 64
    %v6005 = vpop.permute.xlu0 %6004
    %6006 = vrot.lane.b32.xlu0 %v4376, 64
    %v6007 = vpop.permute.xlu0 %6006
    %6008 = vrot.lane.b32.xlu0 %v4377, 64
    %v6009 = vpop.permute.xlu0 %6008
    %6010 = vrot.lane.b32.xlu0 %v4378, 64
    %v6011 = vpop.permute.xlu0 %6010
    %6012 = vrot.lane.b32.xlu0 %v4379, 64
    %v6013 = vpop.permute.xlu0 %6012
    %6014 = vrot.lane.b32.xlu0 %v4380, 64
    %v6015 = vpop.permute.xlu0 %6014
    %6016 = vrot.lane.b32.xlu0 %v4381, 64
    %v6017 = vpop.permute.xlu0 %6016
    %6018 = vrot.lane.b32.xlu0 %v4382, 64
    %v6019 = vpop.permute.xlu0 %6018
    %6020 = vrot.lane.b32.xlu0 %v4383, 64
    %v6021 = vpop.permute.xlu0 %6020
    %6022 = vrot.lane.b32.xlu0 %v4384, 64
    %v6023 = vpop.permute.xlu0 %6022
    %6024 = vrot.lane.b32.xlu0 %v4385, 64
    %v6025 = vpop.permute.xlu0 %6024
    %6026 = vrot.lane.b32.xlu0 %v4386, 64
    %v6027 = vpop.permute.xlu0 %6026
    %6028 = vrot.lane.b32.xlu0 %v4387, 64
    %v6029 = vpop.permute.xlu0 %6028
    %6030 = vrot.lane.b32.xlu0 %v4388, 64
    %v6031 = vpop.permute.xlu0 %6030
    %6032 = vrot.lane.b32.xlu0 %v4389, 64
    %v6033 = vpop.permute.xlu0 %6032
    %6034 = vrot.lane.b32.xlu0 %v4390, 64
    %v6035 = vpop.permute.xlu0 %6034
    %6036 = vrot.lane.b32.xlu0 %v4391, 64
    %v6037 = vpop.permute.xlu0 %6036
    %6038 = vrot.lane.b32.xlu0 %v4392, 64
    %v6039 = vpop.permute.xlu0 %6038
    %6040 = vrot.lane.b32.xlu0 %v4393, 64
    %v6041 = vpop.permute.xlu0 %6040
    %6042 = vrot.lane.b32.xlu0 %v4394, 64
    %v6043 = vpop.permute.xlu0 %6042
    %6044 = vrot.lane.b32.xlu0 %v4395, 64
    %v6045 = vpop.permute.xlu0 %6044
    %6046 = vrot.lane.b32.xlu0 %v4418, 64
    %v6047 = vpop.permute.xlu0 %6046
    %6048 = vrot.lane.b32.xlu0 %v4419, 64
    %v6049 = vpop.permute.xlu0 %6048
    %v6112 = vsel %vm2384, %v343, %v4481
    %v6113 = vsel %vm2384, %v344, %v4481
    %v6114 = vsel %vm2384, %v4156, %v4483
    %v6115 = vsel %vm2384, %v4157, %v4485
    %v6116 = vsel %vm2384, %v4158, %v4487
    %v6117 = vsel %vm2384, %v4159, %v4489
    %v6118 = vsel %vm2384, %v4160, %v4491
    %v6119 = vsel %vm2384, %v4161, %v4493
    %v6120 = vsel %vm2384, %v4162, %v4495
    %v6121 = vsel %vm2384, %v4163, %v4497
    %v6122 = vsel %vm2384, %v4164, %v4499
    %v6123 = vsel %vm2384, %v4165, %v4501
    %v6124 = vsel %vm2384, %v4166, %v4503
    %v6125 = vsel %vm2384, %v4167, %v4505
    %v6126 = vsel %vm2384, %v4168, %v4507
    %v6127 = vsel %vm2384, %v4169, %v4509
    %v6128 = vsel %vm2384, %v4170, %v4511
    %v6129 = vsel %vm2384, %v4171, %v4513
    %v6130 = vsel %vm2384, %v4172, %v4515
    %v6131 = vsel %vm2384, %v4173, %v4517
    %v6132 = vsel %vm2384, %v4174, %v4519
    %v6133 = vsel %vm2384, %v4175, %v4521
    %v6134 = vsel %vm2384, %v4176, %v4523
    %v6135 = vsel %vm2384, %v4177, %v4525
    %v6136 = vsel %vm2384, %v4178, %v4527
    %v6137 = vsel %vm2384, %v4179, %v4529
    %v6138 = vsel %vm2384, %v4180, %v4531
    %v6139 = vsel %vm2384, %v4181, %v4533
    %v6140 = vsel %vm2384, %v4182, %v4535
    %v6141 = vsel %vm2384, %v4183, %v4537
    %v6142 = vsel %vm2384, %v4184, %v4539
    %v6143 = vsel %vm2384, %v4185, %v4541
    %v6144 = vsel %vm2384, %v4186, %v4543
    %v6145 = vsel %vm2384, %v4187, %v4545
    %v6146 = vsel %vm2384, %v4188, %v4547
    %v6147 = vsel %vm2384, %v4189, %v4549
    %v6148 = vsel %vm2384, %v4190, %v4551
    %v6149 = vsel %vm2384, %v4191, %v4553
    %v6150 = vsel %vm2384, %v4192, %v4555
    %v6151 = vsel %vm2384, %v4193, %v4557
    %v6152 = vsel %vm2384, %v4194, %v4559
    %v6153 = vsel %vm2384, %v4195, %v4561
    %v6154 = vsel %vm2384, %v4196, %v4563
    %v6155 = vsel %vm2384, %v4197, %v4565
    %v6156 = vsel %vm2384, %v4198, %v4567
    %v6157 = vsel %vm2384, %v4199, %v4569
    %v6158 = vsel %vm2384, %v4200, %v4571
    %v6159 = vsel %vm2384, %v4201, %v4573
    %v6160 = vsel %vm2384, %v4202, %v4575
    %v6161 = vsel %vm2384, %v4203, %v4577
    %v6162 = vsel %vm2384, %v4204, %v4579
    %v6163 = vsel %vm2384, %v4205, %v4581
    %v6164 = vsel %vm2384, %v4206, %v4583
    %v6165 = vsel %vm2384, %v4207, %v4585
    %v6166 = vsel %vm2384, %v4208, %v4587
    %v6167 = vsel %vm2384, %v4209, %v4589
    %v6168 = vsel %vm2384, %v4210, %v4591
    %v6169 = vsel %vm2384, %v4211, %v4593
    %v6170 = vsel %vm2384, %v4212, %v4595
    %v6171 = vsel %vm2384, %v4213, %v4597
    %v6172 = vsel %vm2384, %v4214, %v4599
    %v6173 = vsel %vm2384, %v4215, %v4601
    %v6174 = vsel %vm2512, %v6112, %v4724
    %v6175 = vsel %vm2512, %v6113, %v4726
    %v6176 = vsel %vm2512, %v6114, %v4728
    %v6177 = vsel %vm2512, %v6115, %v4730
    %v6178 = vsel %vm2512, %v6116, %v4732
    %v6179 = vsel %vm2512, %v6117, %v4734
    %v6180 = vsel %vm2512, %v6118, %v4736
    %v6181 = vsel %vm2512, %v6119, %v4738
    %v6182 = vsel %vm2512, %v6120, %v4740
    %v6183 = vsel %vm2512, %v6121, %v4742
    %v6184 = vsel %vm2512, %v6122, %v4744
    %v6185 = vsel %vm2512, %v6123, %v4746
    %v6186 = vsel %vm2512, %v6124, %v4748
    %v6187 = vsel %vm2512, %v6125, %v4750
    %v6188 = vsel %vm2512, %v6126, %v4752
    %v6189 = vsel %vm2512, %v6127, %v4754
    %v6190 = vsel %vm2512, %v6128, %v4756
    %v6191 = vsel %vm2512, %v6129, %v4758
    %v6192 = vsel %vm2512, %v6130, %v4760
    %v6193 = vsel %vm2512, %v6131, %v4762
    %v6194 = vsel %vm2512, %v6132, %v4764
    %v6195 = vsel %vm2512, %v6133, %v4766
    %v6196 = vsel %vm2512, %v6134, %v4768
    %v6197 = vsel %vm2512, %v6135, %v4770
    %v6198 = vsel %vm2512, %v6136, %v4772
    %v6199 = vsel %vm2512, %v6137, %v4774
    %v6200 = vsel %vm2512, %v6138, %v4776
    %v6201 = vsel %vm2512, %v6139, %v4778
    %v6202 = vsel %vm2512, %v6140, %v4780
    %v6203 = vsel %vm2512, %v6141, %v4782
    %v6204 = vsel %vm2512, %v6142, %v4784
    %v6205 = vsel %vm2512, %v6143, %v4786
    %v6206 = vsel %vm2512, %v6144, %v4788
    %v6207 = vsel %vm2512, %v6145, %v4790
    %v6208 = vsel %vm2512, %v6146, %v4792
    %v6209 = vsel %vm2512, %v6147, %v4794
    %v6210 = vsel %vm2512, %v6148, %v4796
    %v6211 = vsel %vm2512, %v6149, %v4798
    %v6212 = vsel %vm2512, %v6150, %v4800
    %v6213 = vsel %vm2512, %v6151, %v4802
    %v6214 = vsel %vm2512, %v6152, %v4804
    %v6215 = vsel %vm2512, %v6153, %v4806
    %v6216 = vsel %vm2512, %v6154, %v4808
    %v6217 = vsel %vm2512, %v6155, %v4810
    %v6218 = vsel %vm2512, %v6156, %v4812
    %v6219 = vsel %vm2512, %v6157, %v4814
    %v6220 = vsel %vm2512, %v6158, %v4816
    %v6221 = vsel %vm2512, %v6159, %v4818
    %v6222 = vsel %vm2512, %v6160, %v4820
    %v6223 = vsel %vm2512, %v6161, %v4822
    %v6224 = vsel %vm2512, %v6162, %v4824
    %v6225 = vsel %vm2512, %v6163, %v4826
    %v6226 = vsel %vm2512, %v6164, %v4828
    %v6227 = vsel %vm2512, %v6165, %v4830
    %v6228 = vsel %vm2512, %v6166, %v4832
    %v6229 = vsel %vm2512, %v6167, %v4834
    %v6230 = vsel %vm2512, %v6168, %v4836
    %v6231 = vsel %vm2512, %v6169, %v4838
    %v6232 = vsel %vm2512, %v6170, %v4840
    %v6233 = vsel %vm2512, %v6171, %v4842
    %v6234 = vsel %vm2512, %v6172, %v4844
    %v6235 = vsel %vm2512, %v6173, %v4846
    %v6236 = vsel %vm2642, %v6174, %v4974
    %v6237 = vsel %vm2642, %v6175, %v4976
    %v6238 = vsel %vm2642, %v6176, %v4978
    %v6239 = vsel %vm2642, %v6177, %v4980
    %v6240 = vsel %vm2642, %v6178, %v4982
    %v6241 = vsel %vm2642, %v6179, %v4984
    %v6242 = vsel %vm2642, %v6180, %v4986
    %v6243 = vsel %vm2642, %v6181, %v4988
    %v6244 = vsel %vm2642, %v6182, %v4990
    %v6245 = vsel %vm2642, %v6183, %v4992
    %v6246 = vsel %vm2642, %v6184, %v4994
    %v6247 = vsel %vm2642, %v6185, %v4996
    %v6248 = vsel %vm2642, %v6186, %v4998
    %v6249 = vsel %vm2642, %v6187, %v5000
    %v6250 = vsel %vm2642, %v6188, %v5002
    %v6251 = vsel %vm2642, %v6189, %v5004
    %v6252 = vsel %vm2642, %v6190, %v5006
    %v6253 = vsel %vm2642, %v6191, %v5008
    %v6254 = vsel %vm2642, %v6192, %v5010
    %v6255 = vsel %vm2642, %v6193, %v5012
    %v6256 = vsel %vm2642, %v6194, %v5014
    %v6257 = vsel %vm2642, %v6195, %v5016
    %v6258 = vsel %vm2642, %v6196, %v5018
    %v6259 = vsel %vm2642, %v6197, %v5020
    %v6260 = vsel %vm2642, %v6198, %v5022
    %v6261 = vsel %vm2642, %v6199, %v5024
    %v6262 = vsel %vm2642, %v6200, %v5026
    %v6263 = vsel %vm2642, %v6201, %v5028
    %v6264 = vsel %vm2642, %v6202, %v5030
    %v6265 = vsel %vm2642, %v6203, %v5032
    %v6266 = vsel %vm2642, %v6204, %v5034
    %v6267 = vsel %vm2642, %v6205, %v5036
    %v6268 = vsel %vm2642, %v6174, %v5038
    %v6269 = vsel %vm2642, %v6175, %v5040
    %v6270 = vsel %vm2642, %v6206, %v5042
    %v6271 = vsel %vm2642, %v6207, %v5044
    %v6272 = vsel %vm2642, %v6208, %v5046
    %v6273 = vsel %vm2642, %v6209, %v5048
    %v6274 = vsel %vm2642, %v6210, %v5050
    %v6275 = vsel %vm2642, %v6211, %v5052
    %v6276 = vsel %vm2642, %v6212, %v5054
    %v6277 = vsel %vm2642, %v6213, %v5056
    %v6278 = vsel %vm2642, %v6214, %v5058
    %v6279 = vsel %vm2642, %v6215, %v5060
    %v6280 = vsel %vm2642, %v6216, %v5062
    %v6281 = vsel %vm2642, %v6217, %v5064
    %v6282 = vsel %vm2642, %v6218, %v5066
    %v6283 = vsel %vm2642, %v6219, %v5068
    %v6284 = vsel %vm2642, %v6220, %v5070
    %v6285 = vsel %vm2642, %v6221, %v5072
    %v6286 = vsel %vm2642, %v6222, %v5074
    %v6287 = vsel %vm2642, %v6223, %v5076
    %v6288 = vsel %vm2642, %v6224, %v5078
    %v6289 = vsel %vm2642, %v6225, %v5080
    %v6290 = vsel %vm2642, %v6226, %v5082
    %v6291 = vsel %vm2642, %v6227, %v5084
    %v6292 = vsel %vm2642, %v6228, %v5086
    %v6293 = vsel %vm2642, %v6229, %v5088
    %v6294 = vsel %vm2642, %v6230, %v5090
    %v6295 = vsel %vm2642, %v6231, %v5092
    %v6296 = vsel %vm2642, %v6232, %v5094
    %v6297 = vsel %vm2642, %v6233, %v5096
    %v6298 = vsel %vm2642, %v6234, %v5098
    %v6299 = vsel %vm2642, %v6235, %v5100
    %v6300 = vsel %vm2772, %v6236, %v5170
    %v6301 = vsel %vm2772, %v6237, %v5172
    %v6302 = vsel %vm2772, %v6238, %v5174
    %v6303 = vsel %vm2772, %v6239, %v5176
    %v6304 = vsel %vm2772, %v6240, %v5178
    %v6305 = vsel %vm2772, %v6241, %v5180
    %v6306 = vsel %vm2772, %v6242, %v5182
    %v6307 = vsel %vm2772, %v6243, %v5184
    %v6308 = vsel %vm2772, %v6244, %v5186
    %v6309 = vsel %vm2772, %v6245, %v5188
    %v6310 = vsel %vm2772, %v6246, %v5190
    %v6311 = vsel %vm2772, %v6247, %v5192
    %v6312 = vsel %vm2772, %v6248, %v5194
    %v6313 = vsel %vm2772, %v6249, %v5196
    %v6314 = vsel %vm2772, %v6250, %v5198
    %v6315 = vsel %vm2772, %v6251, %v5200
    %v6316 = vsel %vm2772, %v6252, %v5202
    %v6317 = vsel %vm2772, %v6253, %v5204
    %v6318 = vsel %vm2772, %v6254, %v5206
    %v6319 = vsel %vm2772, %v6255, %v5208
    %v6320 = vsel %vm2772, %v6256, %v5210
    %v6321 = vsel %vm2772, %v6257, %v5212
    %v6322 = vsel %vm2772, %v6258, %v5214
    %v6323 = vsel %vm2772, %v6259, %v5216
    %v6324 = vsel %vm2772, %v6260, %v5218
    %v6325 = vsel %vm2772, %v6261, %v5220
    %v6326 = vsel %vm2772, %v6262, %v5222
    %v6327 = vsel %vm2772, %v6263, %v5224
    %v6328 = vsel %vm2772, %v6264, %v5226
    %v6329 = vsel %vm2772, %v6265, %v5228
    %v6330 = vsel %vm2772, %v6266, %v5230
    %v6331 = vsel %vm2772, %v6267, %v5232
    %v6332 = vsel %vm2772, %v6268, %v5234
    %v6333 = vsel %vm2772, %v6269, %v5236
    %v6334 = vsel %vm2772, %v6270, %v5238
    %v6335 = vsel %vm2772, %v6271, %v5240
    %v6336 = vsel %vm2772, %v6272, %v5242
    %v6337 = vsel %vm2772, %v6273, %v5244
    %v6338 = vsel %vm2772, %v6274, %v5246
    %v6339 = vsel %vm2772, %v6275, %v5248
    %v6340 = vsel %vm2772, %v6276, %v5250
    %v6341 = vsel %vm2772, %v6277, %v5252
    %v6342 = vsel %vm2772, %v6278, %v5254
    %v6343 = vsel %vm2772, %v6279, %v5256
    %v6344 = vsel %vm2772, %v6280, %v5258
    %v6345 = vsel %vm2772, %v6281, %v5260
    %v6346 = vsel %vm2772, %v6282, %v5262
    %v6347 = vsel %vm2772, %v6283, %v5264
    %v6348 = vsel %vm2772, %v6284, %v5266
    %v6349 = vsel %vm2772, %v6285, %v5268
    %v6350 = vsel %vm2772, %v6286, %v5270
    %v6351 = vsel %vm2772, %v6287, %v5272
    %v6352 = vsel %vm2772, %v6288, %v5274
    %v6353 = vsel %vm2772, %v6289, %v5276
    %v6354 = vsel %vm2772, %v6290, %v5278
    %v6355 = vsel %vm2772, %v6291, %v5280
    %v6356 = vsel %vm2772, %v6292, %v5282
    %v6357 = vsel %vm2772, %v6293, %v5284
    %v6358 = vsel %vm2772, %v6294, %v5286
    %v6359 = vsel %vm2772, %v6295, %v5288
    %v6360 = vsel %vm2772, %v6296, %v5290
    %v6361 = vsel %vm2772, %v6297, %v5292
    %v6362 = vsel %vm2772, %v6298, %v5294
    %v6363 = vsel %vm2772, %v6299, %v5296
    %vm6364 = vcmask 326656
    %v6365 = vsel %vm6364, %v6300, %v5366
    %v6366 = vsel %vm6364, %v6301, %v5368
    %v6367 = vsel %vm6364, %v6302, %v5370
    %v6368 = vsel %vm6364, %v6303, %v5372
    %v6369 = vsel %vm6364, %v6304, %v5374
    %v6370 = vsel %vm6364, %v6305, %v5376
    %v6371 = vsel %vm6364, %v6306, %v5378
    %v6372 = vsel %vm6364, %v6307, %v5380
    %v6373 = vsel %vm6364, %v6308, %v5382
    %v6374 = vsel %vm6364, %v6309, %v5384
    %v6375 = vsel %vm6364, %v6310, %v5386
    %v6376 = vsel %vm6364, %v6311, %v5388
    %v6377 = vsel %vm6364, %v6312, %v5390
    %v6378 = vsel %vm6364, %v6313, %v5392
    %v6379 = vsel %vm6364, %v6314, %v5394
    %v6380 = vsel %vm6364, %v6315, %v5396
    %v6381 = vsel %vm6364, %v6316, %v5398
    %v6382 = vsel %vm6364, %v6317, %v5400
    %v6383 = vsel %vm6364, %v6318, %v5402
    %v6384 = vsel %vm6364, %v6319, %v5404
    %v6385 = vsel %vm6364, %v6320, %v5406
    %v6386 = vsel %vm6364, %v6321, %v5408
    %v6387 = vsel %vm6364, %v6322, %v5410
    %v6388 = vsel %vm6364, %v6323, %v5412
    %v6389 = vsel %vm6364, %v6324, %v5414
    %v6390 = vsel %vm6364, %v6325, %v5416
    %v6391 = vsel %vm6364, %v6326, %v5418
    %v6392 = vsel %vm6364, %v6327, %v5420
    %v6393 = vsel %vm6364, %v6328, %v5422
    %v6394 = vsel %vm6364, %v6329, %v5424
    %v6395 = vsel %vm6364, %v6330, %v5426
    %v6396 = vsel %vm6364, %v6331, %v5428
    %v6397 = vsel %vm6364, %v6332, %v5430
    %v6398 = vsel %vm6364, %v6333, %v5432
    %v6399 = vsel %vm6364, %v6334, %v5434
    %v6400 = vsel %vm6364, %v6335, %v5436
    %v6401 = vsel %vm6364, %v6336, %v5438
    %v6402 = vsel %vm6364, %v6337, %v5440
    %v6403 = vsel %vm6364, %v6338, %v5442
    %v6404 = vsel %vm6364, %v6339, %v5444
    %v6405 = vsel %vm6364, %v6340, %v5446
    %v6406 = vsel %vm6364, %v6341, %v5448
    %v6407 = vsel %vm6364, %v6342, %v5450
    %v6408 = vsel %vm6364, %v6343, %v5452
    %v6409 = vsel %vm6364, %v6344, %v5454
    %v6410 = vsel %vm6364, %v6345, %v5456
    %v6411 = vsel %vm6364, %v6346, %v5458
    %v6412 = vsel %vm6364, %v6347, %v5460
    %v6413 = vsel %vm6364, %v6348, %v5462
    %v6414 = vsel %vm6364, %v6349, %v5464
    %v6415 = vsel %vm6364, %v6350, %v5466
    %v6416 = vsel %vm6364, %v6351, %v5468
    %v6417 = vsel %vm6364, %v6352, %v5470
    %v6418 = vsel %vm6364, %v6353, %v5472
    %v6419 = vsel %vm6364, %v6354, %v5474
    %v6420 = vsel %vm6364, %v6355, %v5476
    %v6421 = vsel %vm6364, %v6356, %v5478
    %v6422 = vsel %vm6364, %v6357, %v5480
    %v6423 = vsel %vm6364, %v6358, %v5482
    %v6424 = vsel %vm6364, %v6359, %v5484
    %v6425 = vsel %vm6364, %v6360, %v5486
    %v6426 = vsel %vm6364, %v6361, %v5488
    %v6427 = vsel %vm6364, %v6362, %v5490
    %v6428 = vsel %vm6364, %v6363, %v5492
    %vm6429 = vcmask 392192
    %v6430 = vsel %vm6429, %v6365, %v5558
    %v6431 = vsel %vm6429, %v6366, %v5560
    %v6432 = vsel %vm6429, %v6367, %v5562
    %v6433 = vsel %vm6429, %v6368, %v5564
    %v6434 = vsel %vm6429, %v6369, %v5566
    %v6435 = vsel %vm6429, %v6370, %v5568
    %v6436 = vsel %vm6429, %v6371, %v5570
    %v6437 = vsel %vm6429, %v6372, %v5572
    %v6438 = vsel %vm6429, %v6373, %v5574
    %v6439 = vsel %vm6429, %v6374, %v5576
    %v6440 = vsel %vm6429, %v6375, %v5578
    %v6441 = vsel %vm6429, %v6376, %v5580
    %v6442 = vsel %vm6429, %v6377, %v5582
    %v6443 = vsel %vm6429, %v6378, %v5584
    %v6444 = vsel %vm6429, %v6379, %v5586
    %v6445 = vsel %vm6429, %v6380, %v5588
    %v6446 = vsel %vm6429, %v6381, %v5590
    %v6447 = vsel %vm6429, %v6382, %v5592
    %v6448 = vsel %vm6429, %v6383, %v5594
    %v6449 = vsel %vm6429, %v6384, %v5596
    %v6450 = vsel %vm6429, %v6385, %v5598
    %v6451 = vsel %vm6429, %v6386, %v5600
    %v6452 = vsel %vm6429, %v6387, %v5602
    %v6453 = vsel %vm6429, %v6388, %v5604
    %v6454 = vsel %vm6429, %v6389, %v5606
    %v6455 = vsel %vm6429, %v6390, %v5608
    %v6456 = vsel %vm6429, %v6391, %v5610
    %v6457 = vsel %vm6429, %v6392, %v5612
    %v6458 = vsel %vm6429, %v6393, %v5614
    %v6459 = vsel %vm6429, %v6394, %v5616
    %v6460 = vsel %vm6429, %v6395, %v5618
    %v6461 = vsel %vm6429, %v6396, %v5620
    %v6462 = vsel %vm6429, %v6397, %v5622
    %v6463 = vsel %vm6429, %v6398, %v5624
    %v6464 = vsel %vm6429, %v6399, %v5626
    %v6465 = vsel %vm6429, %v6400, %v5628
    %v6466 = vsel %vm6429, %v6401, %v5630
    %v6467 = vsel %vm6429, %v6402, %v5632
    %v6468 = vsel %vm6429, %v6403, %v5634
    %v6469 = vsel %vm6429, %v6404, %v5636
    %v6470 = vsel %vm6429, %v6405, %v5638
    %v6471 = vsel %vm6429, %v6406, %v5640
    %v6472 = vsel %vm6429, %v6407, %v5642
    %v6473 = vsel %vm6429, %v6408, %v5644
    %v6474 = vsel %vm6429, %v6409, %v5646
    %v6475 = vsel %vm6429, %v6410, %v5648
    %v6476 = vsel %vm6429, %v6411, %v5650
    %v6477 = vsel %vm6429, %v6412, %v5652
    %v6478 = vsel %vm6429, %v6413, %v5654
    %v6479 = vsel %vm6429, %v6414, %v5656
    %v6480 = vsel %vm6429, %v6415, %v5658
    %v6481 = vsel %vm6429, %v6416, %v5660
    %v6482 = vsel %vm6429, %v6417, %v5662
    %v6483 = vsel %vm6429, %v6418, %v5664
    %v6484 = vsel %vm6429, %v6419, %v5666
    %v6485 = vsel %vm6429, %v6420, %v5668
    %v6486 = vsel %vm6429, %v6421, %v5670
    %v6487 = vsel %vm6429, %v6422, %v5672
    %v6488 = vsel %vm6429, %v6423, %v5674
    %v6489 = vsel %vm6429, %v6424, %v5676
    %v6490 = vsel %vm6429, %v6425, %v5678
    %v6491 = vsel %vm6429, %v6426, %v5680
    %v6492 = vsel %vm6429, %v6427, %v5618
    %v6493 = vsel %vm6429, %v6428, %v5620
    %vm6494 = vcmask 457728
    %v6495 = vsel %vm6494, %v6430, %v5744
    %v6496 = vsel %vm6494, %v6431, %v5746
    %v6497 = vsel %vm6494, %v6432, %v5748
    %v6498 = vsel %vm6494, %v6433, %v5750
    %v6499 = vsel %vm6494, %v6434, %v5752
    %v6500 = vsel %vm6494, %v6435, %v5754
    %v6501 = vsel %vm6494, %v6436, %v5756
    %v6502 = vsel %vm6494, %v6437, %v5758
    %v6503 = vsel %vm6494, %v6438, %v5760
    %v6504 = vsel %vm6494, %v6439, %v5762
    %v6505 = vsel %vm6494, %v6440, %v5764
    %v6506 = vsel %vm6494, %v6441, %v5766
    %v6507 = vsel %vm6494, %v6442, %v5768
    %v6508 = vsel %vm6494, %v6443, %v5770
    %v6509 = vsel %vm6494, %v6444, %v5772
    %v6510 = vsel %vm6494, %v6445, %v5774
    %v6511 = vsel %vm6494, %v6446, %v5776
    %v6512 = vsel %vm6494, %v6447, %v5778
    %v6513 = vsel %vm6494, %v6448, %v5780
    %v6514 = vsel %vm6494, %v6449, %v5782
    %v6515 = vsel %vm6494, %v6450, %v5784
    %v6516 = vsel %vm6494, %v6451, %v5786
    %v6517 = vsel %vm6494, %v6452, %v5788
    %v6518 = vsel %vm6494, %v6453, %v5790
    %v6519 = vsel %vm6494, %v6454, %v5792
    %v6520 = vsel %vm6494, %v6455, %v5794
    %v6521 = vsel %vm6494, %v6456, %v5796
    %v6522 = vsel %vm6494, %v6457, %v5798
    %v6523 = vsel %vm6494, %v6458, %v5800
    %v6524 = vsel %vm6494, %v6459, %v5802
    %v6525 = vsel %vm6494, %v6460, %v5804
    %v6526 = vsel %vm6494, %v6461, %v5804
    %v6527 = vsel %vm6494, %v6462, %v5806
    %v6528 = vsel %vm6494, %v6463, %v5808
    %v6529 = vsel %vm6494, %v6464, %v5810
    %v6530 = vsel %vm6494, %v6465, %v5812
    %v6531 = vsel %vm6494, %v6466, %v5814
    %v6532 = vsel %vm6494, %v6467, %v5816
    %v6533 = vsel %vm6494, %v6468, %v5818
    %v6534 = vsel %vm6494, %v6469, %v5820
    %v6535 = vsel %vm6494, %v6470, %v5822
    %v6536 = vsel %vm6494, %v6471, %v5824
    %v6537 = vsel %vm6494, %v6472, %v5826
    %v6538 = vsel %vm6494, %v6473, %v5828
    %v6539 = vsel %vm6494, %v6474, %v5830
    %v6540 = vsel %vm6494, %v6475, %v5832
    %v6541 = vsel %vm6494, %v6476, %v5834
    %v6542 = vsel %vm6494, %v6477, %v5836
    %v6543 = vsel %vm6494, %v6478, %v5838
    %v6544 = vsel %vm6494, %v6479, %v5840
    %v6545 = vsel %vm6494, %v6480, %v5842
    %v6546 = vsel %vm6494, %v6481, %v5844
    %v6547 = vsel %vm6494, %v6482, %v5846
    %v6548 = vsel %vm6494, %v6483, %v5848
    %v6549 = vsel %vm6494, %v6484, %v5850
    %v6550 = vsel %vm6494, %v6485, %v5852
    %v6551 = vsel %vm6494, %v6486, %v5854
    %v6552 = vsel %vm6494, %v6487, %v5856
    %v6553 = vsel %vm6494, %v6488, %v5858
    %v6554 = vsel %vm6494, %v6489, %v5860
    %v6555 = vsel %vm6494, %v6490, %v5862
    %v6556 = vsel %vm6494, %v6491, %v5864
    %v6557 = vsel %vm6494, %v6492, %v5804
    %v6558 = vsel %vm6494, %v6493, %v5804
    %vm6559 = vcmask 523264
    %v6560 = vsel %vm6559, %v6495, %v5927
    %v6561 = vsel %vm6559, %v6496, %v5929
    %v6562 = vsel %vm6559, %v6497, %v5931
    %v6563 = vsel %vm6559, %v6498, %v5933
    %v6564 = vsel %vm6559, %v6499, %v5935
    %v6565 = vsel %vm6559, %v6500, %v5937
    %v6566 = vsel %vm6559, %v6501, %v5939
    %v6567 = vsel %vm6559, %v6502, %v5941
    %v6568 = vsel %vm6559, %v6503, %v5943
    %v6569 = vsel %vm6559, %v6504, %v5945
    %v6570 = vsel %vm6559, %v6505, %v5947
    %v6571 = vsel %vm6559, %v6506, %v5949
    %v6572 = vsel %vm6559, %v6507, %v5951
    %v6573 = vsel %vm6559, %v6508, %v5953
    %v6574 = vsel %vm6559, %v6509, %v5955
    %v6575 = vsel %vm6559, %v6510, %v5957
    %v6576 = vsel %vm6559, %v6511, %v5959
    %v6577 = vsel %vm6559, %v6512, %v5961
    %v6578 = vsel %vm6559, %v6513, %v5963
    %v6579 = vsel %vm6559, %v6514, %v5965
    %v6580 = vsel %vm6559, %v6515, %v5967
    %v6581 = vsel %vm6559, %v6516, %v5969
    %v6582 = vsel %vm6559, %v6517, %v5971
    %v6583 = vsel %vm6559, %v6518, %v5973
    %v6584 = vsel %vm6559, %v6519, %v5975
    %v6585 = vsel %vm6559, %v6520, %v5977
    %v6586 = vsel %vm6559, %v6521, %v5979
    %v6587 = vsel %vm6559, %v6522, %v5981
    %v6588 = vsel %vm6559, %v6523, %v5983
    %v6589 = vsel %vm6559, %v6524, %v5985
    %v6590 = vsel %vm6559, %v6525, %v5987
    %v6591 = vsel %vm6559, %v6526, %v5989
    %v6592 = vsel %vm6559, %v6527, %v5991
    %v6593 = vsel %vm6559, %v6528, %v5993
    %v6594 = vsel %vm6559, %v6529, %v5995
    %v6595 = vsel %vm6559, %v6530, %v5997
    %v6596 = vsel %vm6559, %v6531, %v5999
    %v6597 = vsel %vm6559, %v6532, %v6001
    %v6598 = vsel %vm6559, %v6533, %v6003
    %v6599 = vsel %vm6559, %v6534, %v6005
    %v6600 = vsel %vm6559, %v6535, %v6007
    %v6601 = vsel %vm6559, %v6536, %v6009
    %v6602 = vsel %vm6559, %v6537, %v6011
    %v6603 = vsel %vm6559, %v6538, %v6013
    %v6604 = vsel %vm6559, %v6539, %v6015
    %v6605 = vsel %vm6559, %v6540, %v6017
    %v6606 = vsel %vm6559, %v6541, %v6019
    %v6607 = vsel %vm6559, %v6542, %v6021
    %v6608 = vsel %vm6559, %v6543, %v6023
    %v6609 = vsel %vm6559, %v6544, %v6025
    %v6610 = vsel %vm6559, %v6545, %v6027
    %v6611 = vsel %vm6559, %v6546, %v6029
    %v6612 = vsel %vm6559, %v6547, %v6031
    %v6613 = vsel %vm6559, %v6548, %v6033
    %v6614 = vsel %vm6559, %v6549, %v6035
    %v6615 = vsel %vm6559, %v6550, %v6037
    %v6616 = vsel %vm6559, %v6551, %v6039
    %v6617 = vsel %vm6559, %v6552, %v6041
    %v6618 = vsel %vm6559, %v6553, %v6043
    %v6619 = vsel %vm6559, %v6554, %v6045
    %v6620 = vsel %vm6559, %v6555, %v6047
    %v6621 = vsel %vm6559, %v6556, %v6049
    %v6622 = vsel %vm6559, %v6557, %v5987
    %v6623 = vsel %vm6559, %v6558, %v5989
    %v6624 = vld [vmem:[#allocation11] sm:$0xff]
    %v6625 = vld [vmem:[#allocation11 + $0x8] sm:$0xff]
    %v6626 = vld [vmem:[#allocation11 + $0x10] sm:$0xff]
    %v6627 = vld [vmem:[#allocation11 + $0x18] sm:$0xff]
    %v6628 = vld [vmem:[#allocation11 + $0x20] sm:$0xff]
    %v6629 = vld [vmem:[#allocation11 + $0x28] sm:$0xff]
    %v6630 = vld [vmem:[#allocation11 + $0x30] sm:$0xff]
    %v6631 = vld [vmem:[#allocation11 + $0x38] sm:$0xff]
    %v6632 = vld [vmem:[#allocation11 + $0x40] sm:$0xff]
    %v6633 = vld [vmem:[#allocation13] sm:$0x1]
    %v6635 = vlaneseq
    %v6636 = vshrl.u32 %v6635, 7
    %v6637 = vsub.s32 0, %v6636
    %v6638 = vrot.slane %v6633, %v6637
    %vm6640 = vcmask 588800
    %v6642 = vsel %vm6640, %v6560, 0
    %v6645 = vsel %vm6640, %v6561, 0
    %v6648 = vsel %vm6640, %v6562, 0
    %v6651 = vsel %vm6640, %v6563, 0
    %v6654 = vsel %vm6640, %v6564, 0
    %v6657 = vsel %vm6640, %v6565, 0
    %v6660 = vsel %vm6640, %v6566, 0
    %v6663 = vsel %vm6640, %v6567, 0
    %v6666 = vsel %vm6640, %v6568, 0
    %v6669 = vsel %vm6640, %v6569, 0
    %v6672 = vsel %vm6640, %v6570, 0
    %v6675 = vsel %vm6640, %v6571, 0
    %v6678 = vsel %vm6640, %v6572, 0
    %v6681 = vsel %vm6640, %v6573, 0
    %v6684 = vsel %vm6640, %v6574, 0
    %v6687 = vsel %vm6640, %v6575, 0
    %v6690 = vsel %vm6640, %v6576, 0
    %v6693 = vsel %vm6640, %v6577, 0
    %v6696 = vsel %vm6640, %v6578, 0
    %v6699 = vsel %vm6640, %v6579, 0
    %v6702 = vsel %vm6640, %v6580, 0
    %v6705 = vsel %vm6640, %v6581, 0
    %v6708 = vsel %vm6640, %v6582, 0
    %v6711 = vsel %vm6640, %v6583, 0
    %v6714 = vsel %vm6640, %v6584, 0
    %v6717 = vsel %vm6640, %v6585, 0
    %v6720 = vsel %vm6640, %v6586, 0
    %v6723 = vsel %vm6640, %v6587, 0
    %v6726 = vsel %vm6640, %v6588, 0
    %v6729 = vsel %vm6640, %v6589, 0
    %v6732 = vsel %vm6640, %v6590, 0
    %v6735 = vsel %vm6640, %v6591, 0
    %v6738 = vsel %vm6640, %v6592, 0
    %v6741 = vsel %vm6640, %v6593, 0
    %v6744 = vsel %vm6640, %v6594, 0
    %v6747 = vsel %vm6640, %v6595, 0
    %v6750 = vsel %vm6640, %v6596, 0
    %v6753 = vsel %vm6640, %v6597, 0
    %v6756 = vsel %vm6640, %v6598, 0
    %v6759 = vsel %vm6640, %v6599, 0
    %v6762 = vsel %vm6640, %v6600, 0
    %v6765 = vsel %vm6640, %v6601, 0
    %v6768 = vsel %vm6640, %v6602, 0
    %v6771 = vsel %vm6640, %v6603, 0
    %v6774 = vsel %vm6640, %v6604, 0
    %v6777 = vsel %vm6640, %v6605, 0
    %v6780 = vsel %vm6640, %v6606, 0
    %v6783 = vsel %vm6640, %v6607, 0
    %v6786 = vsel %vm6640, %v6608, 0
    %v6789 = vsel %vm6640, %v6609, 0
    %v6792 = vsel %vm6640, %v6610, 0
    %v6795 = vsel %vm6640, %v6611, 0
    %v6798 = vsel %vm6640, %v6612, 0
    %v6801 = vsel %vm6640, %v6613, 0
    %v6804 = vsel %vm6640, %v6614, 0
    %v6807 = vsel %vm6640, %v6615, 0
    %v6810 = vsel %vm6640, %v6616, 0
    %v6813 = vsel %vm6640, %v6617, 0
    %v6816 = vsel %vm6640, %v6618, 0
    %v6819 = vsel %vm6640, %v6619, 0
    %v6822 = vsel %vm6640, %v6620, 0
    %v6825 = vsel %vm6640, %v6621, 0
    %v6828 = vsel %vm6640, %v6622, 0
    %v6831 = vsel %vm6640, %v6623, 0
    %6833 = vmatprep.subr.mxu0 0.0
    %6834 = vmatpush1.msra.mxu0 %v6624
    %6835 = vmatprep.subr.mxu0 0.0
    %6836 = vmatpush1.msra.mxu0 %v6625
    %6837 = vmatprep.subr.mxu0 0.0
    %6838 = vmatpush1.msra.mxu0 %v6626
    %6839 = vmatprep.subr.mxu0 0.0
    %6840 = vmatpush1.msra.mxu0 %v6627
    %6841 = vmatprep.subr.mxu0 0.0
    %6842 = vmatpush1.msra.mxu0 %v6628
    %6843 = vmatprep.subr.mxu0 0.0
    %6844 = vmatpush1.msra.mxu0 %v6629
    %6845 = vmatprep.subr.mxu0 0.0
    %6846 = vmatpush1.msra.mxu0 %v6630
    %6847 = vmatprep.subr.mxu0 0.0
    %6848 = vmatpush1.msra.mxu0 %v6631
    %6849 = vmatprep.subr.mxu0 0.0
    %6850 = vmatpush1.msra.mxu0 %v6632
    %6851 = vmatprep.subr.mxu0 0.0
    %6852 = vmatpush1.msra.mxu0 0.0
    %6853 = vmatprep.subr.mxu0 0.0
    %6854 = vmatpush1.msra.mxu0 0.0
    %6855 = vmatprep.subr.mxu0 0.0
    %6856 = vmatpush1.msra.mxu0 0.0
    %6857 = vmatprep.subr.mxu0 0.0
    %6858 = vmatpush1.msra.mxu0 0.0
    %6859 = vmatprep.subr.mxu0 0.0
    %6860 = vmatpush1.msra.mxu0 0.0
    %6861 = vmatprep.subr.mxu0 0.0
    %6862 = vmatpush1.msra.mxu0 0.0
    %6863 = vmatprep.subr.mxu0 0.0
    %6864 = vmatpush1.msra.mxu0 0.0
    %6865 = vmatprep.subr.mxu0 0.0
    %6866 = vmatpush1.msra.mxu0 0.0
    %6867 = vmatprep.subr.mxu0 0.0
    %6868 = vmatpush1.msra.mxu0 0.0
    %6869 = vmatprep.subr.mxu0 0.0
    %6870 = vmatpush1.msra.mxu0 0.0
    %6871 = vmatprep.subr.mxu0 0.0
    %6872 = vmatpush1.msra.mxu0 0.0
    %6873 = vmatprep.subr.mxu0 0.0
    %6874 = vmatpush1.msra.mxu0 0.0
    %6875 = vmatprep.subr.mxu0 0.0
    %6876 = vmatpush1.msra.mxu0 0.0
    %6877 = vmatprep.subr.mxu0 0.0
    %6878 = vmatpush1.msra.mxu0 0.0
    %6879 = vmatprep.subr.mxu0 0.0
    %6880 = vmatpush1.msra.mxu0 0.0
    %6881 = vmatprep.subr.mxu0 0.0
    %6882 = vmatpush1.msra.mxu0 0.0
    %6883 = vmatprep.subr.mxu0 0.0
    %6884 = vmatpush1.msra.mxu0 0.0
    %6885 = vmatprep.subr.mxu0 0.0
    %6886 = vmatpush1.msra.mxu0 0.0
    %6887 = vmatprep.subr.mxu0 0.0
    %6888 = vmatpush1.msra.mxu0 0.0
    %6889 = vmatprep.subr.mxu0 0.0
    %6890 = vmatpush1.msra.mxu0 0.0
    %6891 = vmatprep.subr.mxu0 0.0
    %6892 = vmatpush1.msra.mxu0 0.0
    %6893 = vmatprep.subr.mxu0 0.0
    %6894 = vmatpush1.msra.mxu0 0.0
    %6895 = vmatprep.subr.mxu0 0.0
    %6896 = vmatpush1.msra.mxu0 0.0
    %6897 = vmatprep.mubr.f32.mxu0 0.0
    %6898 = vmatmul.mubr.f32.gmra.mrb[0].mxu0 %v6642
    %v6899 = vpop.f32.mrb[0].mxu0
    %v6900 = vadd.f32 %v6638, %v6899
    %v6901 = vpop.f32.mrb[0].mxu0
    %6902 = vmatprep.mubr.f32.mxu0 0.0
    %6903 = vmatmul.mubr.f32.gmra.mrb[0].mxu0 %v6645
    %v6904 = vpop.f32.mrb[0].mxu0
    %v6905 = vadd.f32 %v6638, %v6904
    %v6906 = vpop.f32.mrb[0].mxu0
    %6907 = vmatprep.mubr.f32.mxu0 0.0
    %6908 = vmatmul.mubr.f32.gmra.mrb[0].mxu0 %v6648
    %v6909 = vpop.f32.mrb[0].mxu0
    %v6910 = vadd.f32 %v6638, %v6909
    %v6911 = vpop.f32.mrb[0].mxu0
    %6912 = vmatprep.mubr.f32.mxu0 0.0
    %6913 = vmatmul.mubr.f32.gmra.mrb[0].mxu0 %v6651
    %v6914 = vpop.f32.mrb[0].mxu0
    %v6915 = vadd.f32 %v6638, %v6914
    %v6916 = vpop.f32.mrb[0].mxu0
    %6917 = vmatprep.mubr.f32.mxu0 0.0
    %6918 = vmatmul.mubr.f32.gmra.mrb[0].mxu0 %v6654
    %v6919 = vpop.f32.mrb[0].mxu0
    %v6920 = vadd.f32 %v6638, %v6919
    %v6921 = vpop.f32.mrb[0].mxu0
    %6922 = vmatprep.mubr.f32.mxu0 0.0
    %6923 = vmatmul.mubr.f32.gmra.mrb[0].mxu0 %v6657
    %v6924 = vpop.f32.mrb[0].mxu0
    %v6925 = vadd.f32 %v6638, %v6924
    %v6926 = vpop.f32.mrb[0].mxu0
    %6927 = vmatprep.mubr.f32.mxu0 0.0
    %6928 = vmatmul.mubr.f32.gmra.mrb[0].mxu0 %v6660
    %v6929 = vpop.f32.mrb[0].mxu0
    %v6930 = vadd.f32 %v6638, %v6929
    %v6931 = vpop.f32.mrb[0].mxu0
    %6932 = vmatprep.mubr.f32.mxu0 0.0
    %6933 = vmatmul.mubr.f32.gmra.mrb[0].mxu0 %v6663
    %v6934 = vpop.f32.mrb[0].mxu0
    %v6935 = vadd.f32 %v6638, %v6934
    %v6936 = vpop.f32.mrb[0].mxu0
    %6937 = vmatprep.mubr.f32.mxu0 0.0
    %6938 = vmatmul.mubr.f32.gmra.mrb[0].mxu0 %v6666
    %v6939 = vpop.f32.mrb[0].mxu0
    %v6940 = vadd.f32 %v6638, %v6939
    %v6941 = vpop.f32.mrb[0].mxu0
    %6942 = vmatprep.mubr.f32.mxu0 0.0
    %6943 = vmatmul.mubr.f32.gmra.mrb[0].mxu0 %v6669
    %v6944 = vpop.f32.mrb[0].mxu0
    %v6945 = vadd.f32 %v6638, %v6944
    %v6946 = vpop.f32.mrb[0].mxu0
    %6947 = vmatprep.mubr.f32.mxu0 0.0
    %6948 = vmatmul.mubr.f32.gmra.mrb[0].mxu0 %v6672
    %v6949 = vpop.f32.mrb[0].mxu0
    %v6950 = vadd.f32 %v6638, %v6949
    %v6951 = vpop.f32.mrb[0].mxu0
    %6952 = vmatprep.mubr.f32.mxu0 0.0
    %6953 = vmatmul.mubr.f32.gmra.mrb[0].mxu0 %v6675
    %v6954 = vpop.f32.mrb[0].mxu0
    %v6955 = vadd.f32 %v6638, %v6954
    %v6956 = vpop.f32.mrb[0].mxu0
    %6957 = vmatprep.mubr.f32.mxu0 0.0
    %6958 = vmatmul.mubr.f32.gmra.mrb[0].mxu0 %v6678
    %v6959 = vpop.f32.mrb[0].mxu0
    %v6960 = vadd.f32 %v6638, %v6959
    %v6961 = vpop.f32.mrb[0].mxu0
    %6962 = vmatprep.mubr.f32.mxu0 0.0
    %6963 = vmatmul.mubr.f32.gmra.mrb[0].mxu0 %v6681
    %v6964 = vpop.f32.mrb[0].mxu0
    %v6965 = vadd.f32 %v6638, %v6964
    %v6966 = vpop.f32.mrb[0].mxu0
    %6967 = vmatprep.mubr.f32.mxu0 0.0
    %6968 = vmatmul.mubr.f32.gmra.mrb[0].mxu0 %v6684
    %v6969 = vpop.f32.mrb[0].mxu0
    %v6970 = vadd.f32 %v6638, %v6969
    %v6971 = vpop.f32.mrb[0].mxu0
    %6972 = vmatprep.mubr.f32.mxu0 0.0
    %6973 = vmatmul.mubr.f32.gmra.mrb[0].mxu0 %v6687
    %v6974 = vpop.f32.mrb[0].mxu0
    %v6975 = vadd.f32 %v6638, %v6974
    %v6976 = vpop.f32.mrb[0].mxu0
    %6977 = vmatprep.mubr.f32.mxu0 0.0
    %6978 = vmatmul.mubr.f32.gmra.mrb[0].mxu0 %v6690
    %v6979 = vpop.f32.mrb[0].mxu0
    %v6980 = vadd.f32 %v6638, %v6979
    %v6981 = vpop.f32.mrb[0].mxu0
    %6982 = vmatprep.mubr.f32.mxu0 0.0
    %6983 = vmatmul.mubr.f32.gmra.mrb[0].mxu0 %v6693
    %v6984 = vpop.f32.mrb[0].mxu0
    %v6985 = vadd.f32 %v6638, %v6984
    %v6986 = vpop.f32.mrb[0].mxu0
    %6987 = vmatprep.mubr.f32.mxu0 0.0
    %6988 = vmatmul.mubr.f32.gmra.mrb[0].mxu0 %v6696
    %v6989 = vpop.f32.mrb[0].mxu0
    %v6990 = vadd.f32 %v6638, %v6989
    %v6991 = vpop.f32.mrb[0].mxu0
    %6992 = vmatprep.mubr.f32.mxu0 0.0
    %6993 = vmatmul.mubr.f32.gmra.mrb[0].mxu0 %v6699
    %v6994 = vpop.f32.mrb[0].mxu0
    %v6995 = vadd.f32 %v6638, %v6994
    %v6996 = vpop.f32.mrb[0].mxu0
    %6997 = vmatprep.mubr.f32.mxu0 0.0
    %6998 = vmatmul.mubr.f32.gmra.mrb[0].mxu0 %v6702
    %v6999 = vpop.f32.mrb[0].mxu0
    %v7000 = vadd.f32 %v6638, %v6999
    %v7001 = vpop.f32.mrb[0].mxu0
    %7002 = vmatprep.mubr.f32.mxu0 0.0
    %7003 = vmatmul.mubr.f32.gmra.mrb[0].mxu0 %v6705
    %v7004 = vpop.f32.mrb[0].mxu0
    %v7005 = vadd.f32 %v6638, %v7004
    %v7006 = vpop.f32.mrb[0].mxu0
    %7007 = vmatprep.mubr.f32.mxu0 0.0
    %7008 = vmatmul.mubr.f32.gmra.mrb[0].mxu0 %v6708
    %v7009 = vpop.f32.mrb[0].mxu0
    %v7010 = vadd.f32 %v6638, %v7009
    %v7011 = vpop.f32.mrb[0].mxu0
    %7012 = vmatprep.mubr.f32.mxu0 0.0
    %7013 = vmatmul.mubr.f32.gmra.mrb[0].mxu0 %v6711
    %v7014 = vpop.f32.mrb[0].mxu0
    %v7015 = vadd.f32 %v6638, %v7014
    %v7016 = vpop.f32.mrb[0].mxu0
    %7017 = vmatprep.mubr.f32.mxu0 0.0
    %7018 = vmatmul.mubr.f32.gmra.mrb[0].mxu0 %v6714
    %v7019 = vpop.f32.mrb[0].mxu0
    %v7020 = vadd.f32 %v6638, %v7019
    %v7021 = vpop.f32.mrb[0].mxu0
    %7022 = vmatprep.mubr.f32.mxu0 0.0
    %7023 = vmatmul.mubr.f32.gmra.mrb[0].mxu0 %v6717
    %v7024 = vpop.f32.mrb[0].mxu0
    %v7025 = vadd.f32 %v6638, %v7024
    %v7026 = vpop.f32.mrb[0].mxu0
    %7027 = vmatprep.mubr.f32.mxu0 0.0
    %7028 = vmatmul.mubr.f32.gmra.mrb[0].mxu0 %v6720
    %v7029 = vpop.f32.mrb[0].mxu0
    %v7030 = vadd.f32 %v6638, %v7029
    %v7031 = vpop.f32.mrb[0].mxu0
    %7032 = vmatprep.mubr.f32.mxu0 0.0
    %7033 = vmatmul.mubr.f32.gmra.mrb[0].mxu0 %v6723
    %v7034 = vpop.f32.mrb[0].mxu0
    %v7035 = vadd.f32 %v6638, %v7034
    %v7036 = vpop.f32.mrb[0].mxu0
    %7037 = vmatprep.mubr.f32.mxu0 0.0
    %7038 = vmatmul.mubr.f32.gmra.mrb[0].mxu0 %v6726
    %v7039 = vpop.f32.mrb[0].mxu0
    %v7040 = vadd.f32 %v6638, %v7039
    %v7041 = vpop.f32.mrb[0].mxu0
    %7042 = vmatprep.mubr.f32.mxu0 0.0
    %7043 = vmatmul.mubr.f32.gmra.mrb[0].mxu0 %v6729
    %v7044 = vpop.f32.mrb[0].mxu0
    %v7045 = vadd.f32 %v6638, %v7044
    %v7046 = vpop.f32.mrb[0].mxu0
    %7047 = vmatprep.mubr.f32.mxu0 0.0
    %7048 = vmatmul.mubr.f32.gmra.mrb[0].mxu0 %v6732
    %v7049 = vpop.f32.mrb[0].mxu0
    %v7050 = vadd.f32 %v6638, %v7049
    %v7051 = vpop.f32.mrb[0].mxu0
    %7052 = vmatprep.mubr.f32.mxu0 0.0
    %7053 = vmatmul.mubr.f32.gmra.mrb[0].mxu0 %v6735
    %v7054 = vpop.f32.mrb[0].mxu0
    %v7055 = vadd.f32 %v6638, %v7054
    %v7056 = vpop.f32.mrb[0].mxu0
    %7057 = vmatprep.mubr.f32.mxu0 0.0
    %7058 = vmatmul.mubr.f32.gmra.mrb[0].mxu0 %v6738
    %v7059 = vpop.f32.mrb[0].mxu0
    %v7060 = vadd.f32 %v6638, %v7059
    %v7061 = vpop.f32.mrb[0].mxu0
    %7062 = vmatprep.mubr.f32.mxu0 0.0
    %7063 = vmatmul.mubr.f32.gmra.mrb[0].mxu0 %v6741
    %v7064 = vpop.f32.mrb[0].mxu0
    %v7065 = vadd.f32 %v6638, %v7064
    %v7066 = vpop.f32.mrb[0].mxu0
    %7067 = vmatprep.mubr.f32.mxu0 0.0
    %7068 = vmatmul.mubr.f32.gmra.mrb[0].mxu0 %v6744
    %v7069 = vpop.f32.mrb[0].mxu0
    %v7070 = vadd.f32 %v6638, %v7069
    %v7071 = vpop.f32.mrb[0].mxu0
    %7072 = vmatprep.mubr.f32.mxu0 0.0
    %7073 = vmatmul.mubr.f32.gmra.mrb[0].mxu0 %v6747
    %v7074 = vpop.f32.mrb[0].mxu0
    %v7075 = vadd.f32 %v6638, %v7074
    %v7076 = vpop.f32.mrb[0].mxu0
    %7077 = vmatprep.mubr.f32.mxu0 0.0
    %7078 = vmatmul.mubr.f32.gmra.mrb[0].mxu0 %v6750
    %v7079 = vpop.f32.mrb[0].mxu0
    %v7080 = vadd.f32 %v6638, %v7079
    %v7081 = vpop.f32.mrb[0].mxu0
    %7082 = vmatprep.mubr.f32.mxu0 0.0
    %7083 = vmatmul.mubr.f32.gmra.mrb[0].mxu0 %v6753
    %v7084 = vpop.f32.mrb[0].mxu0
    %v7085 = vadd.f32 %v6638, %v7084
    %v7086 = vpop.f32.mrb[0].mxu0
    %7087 = vmatprep.mubr.f32.mxu0 0.0
    %7088 = vmatmul.mubr.f32.gmra.mrb[0].mxu0 %v6756
    %v7089 = vpop.f32.mrb[0].mxu0
    %v7090 = vadd.f32 %v6638, %v7089
    %v7091 = vpop.f32.mrb[0].mxu0
    %7092 = vmatprep.mubr.f32.mxu0 0.0
    %7093 = vmatmul.mubr.f32.gmra.mrb[0].mxu0 %v6759
    %v7094 = vpop.f32.mrb[0].mxu0
    %v7095 = vadd.f32 %v6638, %v7094
    %v7096 = vpop.f32.mrb[0].mxu0
    %7097 = vmatprep.mubr.f32.mxu0 0.0
    %7098 = vmatmul.mubr.f32.gmra.mrb[0].mxu0 %v6762
    %v7099 = vpop.f32.mrb[0].mxu0
    %v7100 = vadd.f32 %v6638, %v7099
    %v7101 = vpop.f32.mrb[0].mxu0
    %7102 = vmatprep.mubr.f32.mxu0 0.0
    %7103 = vmatmul.mubr.f32.gmra.mrb[0].mxu0 %v6765
    %v7104 = vpop.f32.mrb[0].mxu0
    %v7105 = vadd.f32 %v6638, %v7104
    %v7106 = vpop.f32.mrb[0].mxu0
    %7107 = vmatprep.mubr.f32.mxu0 0.0
    %7108 = vmatmul.mubr.f32.gmra.mrb[0].mxu0 %v6768
    %v7109 = vpop.f32.mrb[0].mxu0
    %v7110 = vadd.f32 %v6638, %v7109
    %v7111 = vpop.f32.mrb[0].mxu0
    %7112 = vmatprep.mubr.f32.mxu0 0.0
    %7113 = vmatmul.mubr.f32.gmra.mrb[0].mxu0 %v6771
    %v7114 = vpop.f32.mrb[0].mxu0
    %v7115 = vadd.f32 %v6638, %v7114
    %v7116 = vpop.f32.mrb[0].mxu0
    %7117 = vmatprep.mubr.f32.mxu0 0.0
    %7118 = vmatmul.mubr.f32.gmra.mrb[0].mxu0 %v6774
    %v7119 = vpop.f32.mrb[0].mxu0
    %v7120 = vadd.f32 %v6638, %v7119
    %v7121 = vpop.f32.mrb[0].mxu0
    %7122 = vmatprep.mubr.f32.mxu0 0.0
    %7123 = vmatmul.mubr.f32.gmra.mrb[0].mxu0 %v6777
    %v7124 = vpop.f32.mrb[0].mxu0
    %v7125 = vadd.f32 %v6638, %v7124
    %v7126 = vpop.f32.mrb[0].mxu0
    %7127 = vmatprep.mubr.f32.mxu0 0.0
    %7128 = vmatmul.mubr.f32.gmra.mrb[0].mxu0 %v6780
    %v7129 = vpop.f32.mrb[0].mxu0
    %v7130 = vadd.f32 %v6638, %v7129
    %v7131 = vpop.f32.mrb[0].mxu0
    %7132 = vmatprep.mubr.f32.mxu0 0.0
    %7133 = vmatmul.mubr.f32.gmra.mrb[0].mxu0 %v6783
    %v7134 = vpop.f32.mrb[0].mxu0
    %v7135 = vadd.f32 %v6638, %v7134
    %v7136 = vpop.f32.mrb[0].mxu0
    %7137 = vmatprep.mubr.f32.mxu0 0.0
    %7138 = vmatmul.mubr.f32.gmra.mrb[0].mxu0 %v6786
    %v7139 = vpop.f32.mrb[0].mxu0
    %v7140 = vadd.f32 %v6638, %v7139
    %v7141 = vpop.f32.mrb[0].mxu0
    %7142 = vmatprep.mubr.f32.mxu0 0.0
    %7143 = vmatmul.mubr.f32.gmra.mrb[0].mxu0 %v6789
    %v7144 = vpop.f32.mrb[0].mxu0
    %v7145 = vadd.f32 %v6638, %v7144
    %v7146 = vpop.f32.mrb[0].mxu0
    %7147 = vmatprep.mubr.f32.mxu0 0.0
    %7148 = vmatmul.mubr.f32.gmra.mrb[0].mxu0 %v6792
    %v7149 = vpop.f32.mrb[0].mxu0
    %v7150 = vadd.f32 %v6638, %v7149
    %v7151 = vpop.f32.mrb[0].mxu0
    %7152 = vmatprep.mubr.f32.mxu0 0.0
    %7153 = vmatmul.mubr.f32.gmra.mrb[0].mxu0 %v6795
    %v7154 = vpop.f32.mrb[0].mxu0
    %v7155 = vadd.f32 %v6638, %v7154
    %v7156 = vpop.f32.mrb[0].mxu0
    %7157 = vmatprep.mubr.f32.mxu0 0.0
    %7158 = vmatmul.mubr.f32.gmra.mrb[0].mxu0 %v6798
    %v7159 = vpop.f32.mrb[0].mxu0
    %v7160 = vadd.f32 %v6638, %v7159
    %v7161 = vpop.f32.mrb[0].mxu0
    %7162 = vmatprep.mubr.f32.mxu0 0.0
    %7163 = vmatmul.mubr.f32.gmra.mrb[0].mxu0 %v6801
    %v7164 = vpop.f32.mrb[0].mxu0
    %v7165 = vadd.f32 %v6638, %v7164
    %v7166 = vpop.f32.mrb[0].mxu0
    %7167 = vmatprep.mubr.f32.mxu0 0.0
    %7168 = vmatmul.mubr.f32.gmra.mrb[0].mxu0 %v6804
    %v7169 = vpop.f32.mrb[0].mxu0
    %v7170 = vadd.f32 %v6638, %v7169
    %v7171 = vpop.f32.mrb[0].mxu0
    %7172 = vmatprep.mubr.f32.mxu0 0.0
    %7173 = vmatmul.mubr.f32.gmra.mrb[0].mxu0 %v6807
    %v7174 = vpop.f32.mrb[0].mxu0
    %v7175 = vadd.f32 %v6638, %v7174
    %v7176 = vpop.f32.mrb[0].mxu0
    %7177 = vmatprep.mubr.f32.mxu0 0.0
    %7178 = vmatmul.mubr.f32.gmra.mrb[0].mxu0 %v6810
    %v7179 = vpop.f32.mrb[0].mxu0
    %v7180 = vadd.f32 %v6638, %v7179
    %v7181 = vpop.f32.mrb[0].mxu0
    %7182 = vmatprep.mubr.f32.mxu0 0.0
    %7183 = vmatmul.mubr.f32.gmra.mrb[0].mxu0 %v6813
    %v7184 = vpop.f32.mrb[0].mxu0
    %v7185 = vadd.f32 %v6638, %v7184
    %v7186 = vpop.f32.mrb[0].mxu0
    %7187 = vmatprep.mubr.f32.mxu0 0.0
    %7188 = vmatmul.mubr.f32.gmra.mrb[0].mxu0 %v6816
    %v7189 = vpop.f32.mrb[0].mxu0
    %v7190 = vadd.f32 %v6638, %v7189
    %v7191 = vpop.f32.mrb[0].mxu0
    %7192 = vmatprep.mubr.f32.mxu0 0.0
    %7193 = vmatmul.mubr.f32.gmra.mrb[0].mxu0 %v6819
    %v7194 = vpop.f32.mrb[0].mxu0
    %v7195 = vadd.f32 %v6638, %v7194
    %v7196 = vpop.f32.mrb[0].mxu0
    %7197 = vmatprep.mubr.f32.mxu0 0.0
    %7198 = vmatmul.mubr.f32.gmra.mrb[0].mxu0 %v6822
    %v7199 = vpop.f32.mrb[0].mxu0
    %v7200 = vadd.f32 %v6638, %v7199
    %v7201 = vpop.f32.mrb[0].mxu0
    %7202 = vmatprep.mubr.f32.mxu0 0.0
    %7203 = vmatmul.mubr.f32.gmra.mrb[0].mxu0 %v6825
    %v7204 = vpop.f32.mrb[0].mxu0
    %v7205 = vadd.f32 %v6638, %v7204
    %v7206 = vpop.f32.mrb[0].mxu0
    %7207 = vmatprep.mubr.f32.mxu0 0.0
    %7208 = vmatmul.mubr.f32.gmra.mrb[0].mxu0 %v6828
    %v7209 = vpop.f32.mrb[0].mxu0
    %v7210 = vadd.f32 %v6638, %v7209
    %v7211 = vpop.f32.mrb[0].mxu0
    %7212 = vmatprep.mubr.f32.mxu0 0.0
    %7213 = vmatmul.mubr.f32.gmra.mrb[0].mxu0 %v6831
    %v7214 = vpop.f32.mrb[0].mxu0
    %v7215 = vadd.f32 %v6638, %v7214
    %v7216 = vpop.f32.mrb[0].mxu0
    %7217 = vdwg.mxu0
    %v7218 = vsel %vm2384, %v6900, 0.0
    %v7219 = vsel %vm2384, %v6905, 0.0
    %v7220 = vadd.f32 %v7218, %v7219
    %v7221 = vsel %vm2384, %v6910, 0.0
    %v7222 = vadd.f32 %v7220, %v7221
    %v7223 = vsel %vm2384, %v6915, 0.0
    %v7224 = vadd.f32 %v7222, %v7223
    %v7225 = vsel %vm2384, %v6920, 0.0
    %v7226 = vadd.f32 %v7224, %v7225
    %v7227 = vsel %vm2384, %v6925, 0.0
    %v7228 = vadd.f32 %v7226, %v7227
    %v7229 = vsel %vm2384, %v6930, 0.0
    %v7230 = vadd.f32 %v7228, %v7229
    %v7231 = vsel %vm2384, %v6935, 0.0
    %v7232 = vadd.f32 %v7230, %v7231
    %v7233 = vsel %vm2384, %v6940, 0.0
    %v7234 = vadd.f32 %v7232, %v7233
    %v7235 = vsel %vm2384, %v6945, 0.0
    %v7236 = vadd.f32 %v7234, %v7235
    %v7237 = vsel %vm2384, %v6950, 0.0
    %v7238 = vadd.f32 %v7236, %v7237
    %v7239 = vsel %vm2384, %v6955, 0.0
    %v7240 = vadd.f32 %v7238, %v7239
    %v7241 = vsel %vm2384, %v6960, 0.0
    %v7242 = vadd.f32 %v7240, %v7241
    %v7243 = vsel %vm2384, %v6965, 0.0
    %v7244 = vadd.f32 %v7242, %v7243
    %v7245 = vsel %vm2384, %v6970, 0.0
    %v7246 = vadd.f32 %v7244, %v7245
    %v7247 = vsel %vm2384, %v6975, 0.0
    %v7248 = vadd.f32 %v7246, %v7247
    %v7249 = vsel %vm2384, %v6980, 0.0
    %v7250 = vadd.f32 %v7248, %v7249
    %v7251 = vsel %vm2384, %v6985, 0.0
    %v7252 = vadd.f32 %v7250, %v7251
    %v7253 = vsel %vm2384, %v6990, 0.0
    %v7254 = vadd.f32 %v7252, %v7253
    %v7255 = vsel %vm2384, %v6995, 0.0
    %v7256 = vadd.f32 %v7254, %v7255
    %v7257 = vsel %vm2384, %v7000, 0.0
    %v7258 = vadd.f32 %v7256, %v7257
    %v7259 = vsel %vm2384, %v7005, 0.0
    %v7260 = vadd.f32 %v7258, %v7259
    %v7261 = vsel %vm2384, %v7010, 0.0
    %v7262 = vadd.f32 %v7260, %v7261
    %v7263 = vsel %vm2384, %v7015, 0.0
    %v7264 = vadd.f32 %v7262, %v7263
    %v7265 = vsel %vm2384, %v7020, 0.0
    %v7266 = vadd.f32 %v7264, %v7265
    %v7267 = vsel %vm2384, %v7025, 0.0
    %v7268 = vadd.f32 %v7266, %v7267
    %v7269 = vsel %vm2384, %v7030, 0.0
    %v7270 = vadd.f32 %v7268, %v7269
    %v7271 = vsel %vm2384, %v7035, 0.0
    %v7272 = vadd.f32 %v7270, %v7271
    %v7273 = vsel %vm2384, %v7040, 0.0
    %v7274 = vadd.f32 %v7272, %v7273
    %v7275 = vsel %vm2384, %v7045, 0.0
    %v7276 = vadd.f32 %v7274, %v7275
    %v7277 = vsel %vm2384, %v7050, 0.0
    %v7278 = vadd.f32 %v7276, %v7277
    %v7279 = vsel %vm2384, %v7055, 0.0
    %v7280 = vadd.f32 %v7278, %v7279
    %v7281 = vsel %vm2384, %v7060, 0.0
    %v7282 = vadd.f32 %v7280, %v7281
    %v7283 = vsel %vm2384, %v7065, 0.0
    %v7284 = vadd.f32 %v7282, %v7283
    %v7285 = vsel %vm2384, %v7070, 0.0
    %v7286 = vadd.f32 %v7284, %v7285
    %v7287 = vsel %vm2384, %v7075, 0.0
    %v7288 = vadd.f32 %v7286, %v7287
    %v7289 = vsel %vm2384, %v7080, 0.0
    %v7290 = vadd.f32 %v7288, %v7289
    %v7291 = vsel %vm2384, %v7085, 0.0
    %v7292 = vadd.f32 %v7290, %v7291
    %v7293 = vsel %vm2384, %v7090, 0.0
    %v7294 = vadd.f32 %v7292, %v7293
    %v7295 = vsel %vm2384, %v7095, 0.0
    %v7296 = vadd.f32 %v7294, %v7295
    %v7297 = vsel %vm2384, %v7100, 0.0
    %v7298 = vadd.f32 %v7296, %v7297
    %v7299 = vsel %vm2384, %v7105, 0.0
    %v7300 = vadd.f32 %v7298, %v7299
    %v7301 = vsel %vm2384, %v7110, 0.0
    %v7302 = vadd.f32 %v7300, %v7301
    %v7303 = vsel %vm2384, %v7115, 0.0
    %v7304 = vadd.f32 %v7302, %v7303
    %v7305 = vsel %vm2384, %v7120, 0.0
    %v7306 = vadd.f32 %v7304, %v7305
    %v7307 = vsel %vm2384, %v7125, 0.0
    %v7308 = vadd.f32 %v7306, %v7307
    %v7309 = vsel %vm2384, %v7130, 0.0
    %v7310 = vadd.f32 %v7308, %v7309
    %v7311 = vsel %vm2384, %v7135, 0.0
    %v7312 = vadd.f32 %v7310, %v7311
    %v7313 = vsel %vm2384, %v7140, 0.0
    %v7314 = vadd.f32 %v7312, %v7313
    %v7315 = vsel %vm2384, %v7145, 0.0
    %v7316 = vadd.f32 %v7314, %v7315
    %v7317 = vsel %vm2384, %v7150, 0.0
    %v7318 = vadd.f32 %v7316, %v7317
    %v7319 = vsel %vm2384, %v7155, 0.0
    %v7320 = vadd.f32 %v7318, %v7319
    %v7321 = vsel %vm2384, %v7160, 0.0
    %v7322 = vadd.f32 %v7320, %v7321
    %v7323 = vsel %vm2384, %v7165, 0.0
    %v7324 = vadd.f32 %v7322, %v7323
    %v7325 = vsel %vm2384, %v7170, 0.0
    %v7326 = vadd.f32 %v7324, %v7325
    %v7327 = vsel %vm2384, %v7175, 0.0
    %v7328 = vadd.f32 %v7326, %v7327
    %v7329 = vsel %vm2384, %v7180, 0.0
    %v7330 = vadd.f32 %v7328, %v7329
    %v7331 = vsel %vm2384, %v7185, 0.0
    %v7332 = vadd.f32 %v7330, %v7331
    %v7333 = vsel %vm2384, %v7190, 0.0
    %v7334 = vadd.f32 %v7332, %v7333
    %v7335 = vsel %vm2384, %v7195, 0.0
    %v7336 = vadd.f32 %v7334, %v7335
    %v7337 = vsel %vm2384, %v7200, 0.0
    %v7338 = vadd.f32 %v7336, %v7337
    %v7339 = vsel %vm2384, %v7205, 0.0
    %v7340 = vadd.f32 %v7338, %v7339
    %v7341 = vsel %vm2384, %v7210, 0.0
    %v7342 = vadd.f32 %v7340, %v7341
    %v7343 = vsel %vm2384, %v7215, 0.0
    %v7344 = vadd.f32 %v7342, %v7343
    %v7345 = vrot.slane %v7344, 4
    %v7346 = vadd.f32 %v7344, %v7345
    %v7347 = vrot.slane %v7346, 2
    %v7348 = vadd.f32 %v7346, %v7347
    %v7349 = vrot.slane %v7348, 1
    %v7350 = vadd.f32 %v7348, %v7349
    %v7351 = vmul.f32 %v6900, %v6900
    %v7352 = vmul.f32 %v6905, %v6905
    %v7353 = vmul.f32 %v6910, %v6910
    %v7354 = vmul.f32 %v6915, %v6915
    %v7355 = vmul.f32 %v6920, %v6920
    %v7356 = vmul.f32 %v6925, %v6925
    %v7357 = vmul.f32 %v6930, %v6930
    %v7358 = vmul.f32 %v6935, %v6935
    %v7359 = vmul.f32 %v6940, %v6940
    %v7360 = vmul.f32 %v6945, %v6945
    %v7361 = vmul.f32 %v6950, %v6950
    %v7362 = vmul.f32 %v6955, %v6955
    %v7363 = vmul.f32 %v6960, %v6960
    %v7364 = vmul.f32 %v6965, %v6965
    %v7365 = vmul.f32 %v6970, %v6970
    %v7366 = vmul.f32 %v6975, %v6975
    %v7367 = vmul.f32 %v6980, %v6980
    %v7368 = vmul.f32 %v6985, %v6985
    %v7369 = vmul.f32 %v6990, %v6990
    %v7370 = vmul.f32 %v6995, %v6995
    %v7371 = vmul.f32 %v7000, %v7000
    %v7372 = vmul.f32 %v7005, %v7005
    %v7373 = vmul.f32 %v7010, %v7010
    %v7374 = vmul.f32 %v7015, %v7015
    %v7375 = vmul.f32 %v7020, %v7020
    %v7376 = vmul.f32 %v7025, %v7025
    %v7377 = vmul.f32 %v7030, %v7030
    %v7378 = vmul.f32 %v7035, %v7035
    %v7379 = vmul.f32 %v7040, %v7040
    %v7380 = vmul.f32 %v7045, %v7045
    %v7381 = vmul.f32 %v7050, %v7050
    %v7382 = vmul.f32 %v7055, %v7055
    %v7383 = vmul.f32 %v7060, %v7060
    %v7384 = vmul.f32 %v7065, %v7065
    %v7385 = vmul.f32 %v7070, %v7070
    %v7386 = vmul.f32 %v7075, %v7075
    %v7387 = vmul.f32 %v7080, %v7080
    %v7388 = vmul.f32 %v7085, %v7085
    %v7389 = vmul.f32 %v7090, %v7090
    %v7390 = vmul.f32 %v7095, %v7095
    %v7391 = vmul.f32 %v7100, %v7100
    %v7392 = vmul.f32 %v7105, %v7105
    %v7393 = vmul.f32 %v7110, %v7110
    %v7394 = vmul.f32 %v7115, %v7115
    %v7395 = vmul.f32 %v7120, %v7120
    %v7396 = vmul.f32 %v7125, %v7125
    %v7397 = vmul.f32 %v7130, %v7130
    %v7398 = vmul.f32 %v7135, %v7135
    %v7399 = vmul.f32 %v7140, %v7140
    %v7400 = vmul.f32 %v7145, %v7145
    %v7401 = vmul.f32 %v7150, %v7150
    %v7402 = vmul.f32 %v7155, %v7155
    %v7403 = vmul.f32 %v7160, %v7160
    %v7404 = vmul.f32 %v7165, %v7165
    %v7405 = vmul.f32 %v7170, %v7170
    %v7406 = vmul.f32 %v7175, %v7175
    %v7407 = vmul.f32 %v7180, %v7180
    %v7408 = vmul.f32 %v7185, %v7185
    %v7409 = vmul.f32 %v7190, %v7190
    %v7410 = vmul.f32 %v7195, %v7195
    %v7411 = vmul.f32 %v7200, %v7200
    %v7412 = vmul.f32 %v7205, %v7205
    %v7413 = vmul.f32 %v7210, %v7210
    %v7414 = vmul.f32 %v7215, %v7215
    %v7415 = vsel %vm2384, %v7351, 0.0
    %v7416 = vsel %vm2384, %v7352, 0.0
    %v7417 = vadd.f32 %v7415, %v7416
    %v7418 = vsel %vm2384, %v7353, 0.0
    %v7419 = vadd.f32 %v7417, %v7418
    %v7420 = vsel %vm2384, %v7354, 0.0
    %v7421 = vadd.f32 %v7419, %v7420
    %v7422 = vsel %vm2384, %v7355, 0.0
    %v7423 = vadd.f32 %v7421, %v7422
    %v7424 = vsel %vm2384, %v7356, 0.0
    %v7425 = vadd.f32 %v7423, %v7424
    %v7426 = vsel %vm2384, %v7357, 0.0
    %v7427 = vadd.f32 %v7425, %v7426
    %v7428 = vsel %vm2384, %v7358, 0.0
    %v7429 = vadd.f32 %v7427, %v7428
    %v7430 = vsel %vm2384, %v7359, 0.0
    %v7431 = vadd.f32 %v7429, %v7430
    %v7432 = vsel %vm2384, %v7360, 0.0
    %v7433 = vadd.f32 %v7431, %v7432
    %v7434 = vsel %vm2384, %v7361, 0.0
    %v7435 = vadd.f32 %v7433, %v7434
    %v7436 = vsel %vm2384, %v7362, 0.0
    %v7437 = vadd.f32 %v7435, %v7436
    %v7438 = vsel %vm2384, %v7363, 0.0
    %v7439 = vadd.f32 %v7437, %v7438
    %v7440 = vsel %vm2384, %v7364, 0.0
    %v7441 = vadd.f32 %v7439, %v7440
    %v7442 = vsel %vm2384, %v7365, 0.0
    %v7443 = vadd.f32 %v7441, %v7442
    %v7444 = vsel %vm2384, %v7366, 0.0
    %v7445 = vadd.f32 %v7443, %v7444
    %v7446 = vsel %vm2384, %v7367, 0.0
    %v7447 = vadd.f32 %v7445, %v7446
    %v7448 = vsel %vm2384, %v7368, 0.0
    %v7449 = vadd.f32 %v7447, %v7448
    %v7450 = vsel %vm2384, %v7369, 0.0
    %v7451 = vadd.f32 %v7449, %v7450
    %v7452 = vsel %vm2384, %v7370, 0.0
    %v7453 = vadd.f32 %v7451, %v7452
    %v7454 = vsel %vm2384, %v7371, 0.0
    %v7455 = vadd.f32 %v7453, %v7454
    %v7456 = vsel %vm2384, %v7372, 0.0
    %v7457 = vadd.f32 %v7455, %v7456
    %v7458 = vsel %vm2384, %v7373, 0.0
    %v7459 = vadd.f32 %v7457, %v7458
    %v7460 = vsel %vm2384, %v7374, 0.0
    %v7461 = vadd.f32 %v7459, %v7460
    %v7462 = vsel %vm2384, %v7375, 0.0
    %v7463 = vadd.f32 %v7461, %v7462
    %v7464 = vsel %vm2384, %v7376, 0.0
    %v7465 = vadd.f32 %v7463, %v7464
    %v7466 = vsel %vm2384, %v7377, 0.0
    %v7467 = vadd.f32 %v7465, %v7466
    %v7468 = vsel %vm2384, %v7378, 0.0
    %v7469 = vadd.f32 %v7467, %v7468
    %v7470 = vsel %vm2384, %v7379, 0.0
    %v7471 = vadd.f32 %v7469, %v7470
    %v7472 = vsel %vm2384, %v7380, 0.0
    %v7473 = vadd.f32 %v7471, %v7472
    %v7474 = vsel %vm2384, %v7381, 0.0
    %v7475 = vadd.f32 %v7473, %v7474
    %v7476 = vsel %vm2384, %v7382, 0.0
    %v7477 = vadd.f32 %v7475, %v7476
    %v7478 = vsel %vm2384, %v7383, 0.0
    %v7479 = vadd.f32 %v7477, %v7478
    %v7480 = vsel %vm2384, %v7384, 0.0
    %v7481 = vadd.f32 %v7479, %v7480
    %v7482 = vsel %vm2384, %v7385, 0.0
    %v7483 = vadd.f32 %v7481, %v7482
    %v7484 = vsel %vm2384, %v7386, 0.0
    %v7485 = vadd.f32 %v7483, %v7484
    %v7486 = vsel %vm2384, %v7387, 0.0
    %v7487 = vadd.f32 %v7485, %v7486
    %v7488 = vsel %vm2384, %v7388, 0.0
    %v7489 = vadd.f32 %v7487, %v7488
    %v7490 = vsel %vm2384, %v7389, 0.0
    %v7491 = vadd.f32 %v7489, %v7490
    %v7492 = vsel %vm2384, %v7390, 0.0
    %v7493 = vadd.f32 %v7491, %v7492
    %v7494 = vsel %vm2384, %v7391, 0.0
    %v7495 = vadd.f32 %v7493, %v7494
    %v7496 = vsel %vm2384, %v7392, 0.0
    %v7497 = vadd.f32 %v7495, %v7496
    %v7498 = vsel %vm2384, %v7393, 0.0
    %v7499 = vadd.f32 %v7497, %v7498
    %v7500 = vsel %vm2384, %v7394, 0.0
    %v7501 = vadd.f32 %v7499, %v7500
    %v7502 = vsel %vm2384, %v7395, 0.0
    %v7503 = vadd.f32 %v7501, %v7502
    %v7504 = vsel %vm2384, %v7396, 0.0
    %v7505 = vadd.f32 %v7503, %v7504
    %v7506 = vsel %vm2384, %v7397, 0.0
    %v7507 = vadd.f32 %v7505, %v7506
    %v7508 = vsel %vm2384, %v7398, 0.0
    %v7509 = vadd.f32 %v7507, %v7508
    %v7510 = vsel %vm2384, %v7399, 0.0
    %v7511 = vadd.f32 %v7509, %v7510
    %v7512 = vsel %vm2384, %v7400, 0.0
    %v7513 = vadd.f32 %v7511, %v7512
    %v7514 = vsel %vm2384, %v7401, 0.0
    %v7515 = vadd.f32 %v7513, %v7514
    %v7516 = vsel %vm2384, %v7402, 0.0
    %v7517 = vadd.f32 %v7515, %v7516
    %v7518 = vsel %vm2384, %v7403, 0.0
    %v7519 = vadd.f32 %v7517, %v7518
    %v7520 = vsel %vm2384, %v7404, 0.0
    %v7521 = vadd.f32 %v7519, %v7520
    %v7522 = vsel %vm2384, %v7405, 0.0
    %v7523 = vadd.f32 %v7521, %v7522
    %v7524 = vsel %vm2384, %v7406, 0.0
    %v7525 = vadd.f32 %v7523, %v7524
    %v7526 = vsel %vm2384, %v7407, 0.0
    %v7527 = vadd.f32 %v7525, %v7526
    %v7528 = vsel %vm2384, %v7408, 0.0
    %v7529 = vadd.f32 %v7527, %v7528
    %v7530 = vsel %vm2384, %v7409, 0.0
    %v7531 = vadd.f32 %v7529, %v7530
    %v7532 = vsel %vm2384, %v7410, 0.0
    %v7533 = vadd.f32 %v7531, %v7532
    %v7534 = vsel %vm2384, %v7411, 0.0
    %v7535 = vadd.f32 %v7533, %v7534
    %v7536 = vsel %vm2384, %v7412, 0.0
    %v7537 = vadd.f32 %v7535, %v7536
    %v7538 = vsel %vm2384, %v7413, 0.0
    %v7539 = vadd.f32 %v7537, %v7538
    %v7540 = vsel %vm2384, %v7414, 0.0
    %v7541 = vadd.f32 %v7539, %v7540
    %v7542 = vrot.slane %v7541, 4
    %v7543 = vadd.f32 %v7541, %v7542
    %v7544 = vrot.slane %v7543, 2
    %v7545 = vadd.f32 %v7543, %v7544
    %v7546 = vrot.slane %v7545, 1
    %v7547 = vadd.f32 %v7545, %v7546
    %v7548 = vmul.f32 %v7350, 0.001953125
    %v7549 = vmul.f32 %v7547, 0.001953125
    %v7550 = vmul.f32 %v7548, %v7548
    %v7551 = vsub.f32 %v7549, %v7550
    %v7552 = vadd.f32 %v7551, 1e-05
    %v7553 = vrsqrt.pop %v7552
    %v7554 = vsub.f32 %v6900, %v7548
    %v7555 = vsub.f32 %v6905, %v7548
    %v7556 = vsub.f32 %v6910, %v7548
    %v7557 = vsub.f32 %v6915, %v7548
    %v7558 = vsub.f32 %v6920, %v7548
    %v7559 = vsub.f32 %v6925, %v7548
    %v7560 = vsub.f32 %v6930, %v7548
    %v7561 = vsub.f32 %v6935, %v7548
    %v7562 = vsub.f32 %v6940, %v7548
    %v7563 = vsub.f32 %v6945, %v7548
    %v7564 = vsub.f32 %v6950, %v7548
    %v7565 = vsub.f32 %v6955, %v7548
    %v7566 = vsub.f32 %v6960, %v7548
    %v7567 = vsub.f32 %v6965, %v7548
    %v7568 = vsub.f32 %v6970, %v7548
    %v7569 = vsub.f32 %v6975, %v7548
    %v7570 = vsub.f32 %v6980, %v7548
    %v7571 = vsub.f32 %v6985, %v7548
    %v7572 = vsub.f32 %v6990, %v7548
    %v7573 = vsub.f32 %v6995, %v7548
    %v7574 = vsub.f32 %v7000, %v7548
    %v7575 = vsub.f32 %v7005, %v7548
    %v7576 = vsub.f32 %v7010, %v7548
    %v7577 = vsub.f32 %v7015, %v7548
    %v7578 = vsub.f32 %v7020, %v7548
    %v7579 = vsub.f32 %v7025, %v7548
    %v7580 = vsub.f32 %v7030, %v7548
    %v7581 = vsub.f32 %v7035, %v7548
    %v7582 = vsub.f32 %v7040, %v7548
    %v7583 = vsub.f32 %v7045, %v7548
    %v7584 = vsub.f32 %v7050, %v7548
    %v7585 = vsub.f32 %v7055, %v7548
    %v7586 = vsub.f32 %v7060, %v7548
    %v7587 = vsub.f32 %v7065, %v7548
    %v7588 = vsub.f32 %v7070, %v7548
    %v7589 = vsub.f32 %v7075, %v7548
    %v7590 = vsub.f32 %v7080, %v7548
    %v7591 = vsub.f32 %v7085, %v7548
    %v7592 = vsub.f32 %v7090, %v7548
    %v7593 = vsub.f32 %v7095, %v7548
    %v7594 = vsub.f32 %v7100, %v7548
    %v7595 = vsub.f32 %v7105, %v7548
    %v7596 = vsub.f32 %v7110, %v7548
    %v7597 = vsub.f32 %v7115, %v7548
    %v7598 = vsub.f32 %v7120, %v7548
    %v7599 = vsub.f32 %v7125, %v7548
    %v7600 = vsub.f32 %v7130, %v7548
    %v7601 = vsub.f32 %v7135, %v7548
    %v7602 = vsub.f32 %v7140, %v7548
    %v7603 = vsub.f32 %v7145, %v7548
    %v7604 = vsub.f32 %v7150, %v7548
    %v7605 = vsub.f32 %v7155, %v7548
    %v7606 = vsub.f32 %v7160, %v7548
    %v7607 = vsub.f32 %v7165, %v7548
    %v7608 = vsub.f32 %v7170, %v7548
    %v7609 = vsub.f32 %v7175, %v7548
    %v7610 = vsub.f32 %v7180, %v7548
    %v7611 = vsub.f32 %v7185, %v7548
    %v7612 = vsub.f32 %v7190, %v7548
    %v7613 = vsub.f32 %v7195, %v7548
    %v7614 = vsub.f32 %v7200, %v7548
    %v7615 = vsub.f32 %v7205, %v7548
    %v7616 = vsub.f32 %v7210, %v7548
    %v7617 = vsub.f32 %v7215, %v7548
    %v7618 = vld [vmem:[#allocation14] sm:$0x1]
    %v7619 = vmul.f32 %v7553, %v7618
    %v7620 = vlaneseq
    %v7621 = vshrl.u32 %v7620, 7
    %v7622 = vsub.s32 0, %v7621
    %v7623 = vrot.slane %v7619, %v7622
    %v7624 = vmul.f32 %v7554, %v7623
    %v7625 = vmul.f32 %v7555, %v7623
    %v7626 = vmul.f32 %v7556, %v7623
    %v7627 = vmul.f32 %v7557, %v7623
    %v7628 = vmul.f32 %v7558, %v7623
    %v7629 = vmul.f32 %v7559, %v7623
    %v7630 = vmul.f32 %v7560, %v7623
    %v7631 = vmul.f32 %v7561, %v7623
    %v7632 = vmul.f32 %v7562, %v7623
    %v7633 = vmul.f32 %v7563, %v7623
    %v7634 = vmul.f32 %v7564, %v7623
    %v7635 = vmul.f32 %v7565, %v7623
    %v7636 = vmul.f32 %v7566, %v7623
    %v7637 = vmul.f32 %v7567, %v7623
    %v7638 = vmul.f32 %v7568, %v7623
    %v7639 = vmul.f32 %v7569, %v7623
    %v7640 = vmul.f32 %v7570, %v7623
    %v7641 = vmul.f32 %v7571, %v7623
    %v7642 = vmul.f32 %v7572, %v7623
    %v7643 = vmul.f32 %v7573, %v7623
    %v7644 = vmul.f32 %v7574, %v7623
    %v7645 = vmul.f32 %v7575, %v7623
    %v7646 = vmul.f32 %v7576, %v7623
    %v7647 = vmul.f32 %v7577, %v7623
    %v7648 = vmul.f32 %v7578, %v7623
    %v7649 = vmul.f32 %v7579, %v7623
    %v7650 = vmul.f32 %v7580, %v7623
    %v7651 = vmul.f32 %v7581, %v7623
    %v7652 = vmul.f32 %v7582, %v7623
    %v7653 = vmul.f32 %v7583, %v7623
    %v7654 = vmul.f32 %v7584, %v7623
    %v7655 = vmul.f32 %v7585, %v7623
    %v7656 = vmul.f32 %v7586, %v7623
    %v7657 = vmul.f32 %v7587, %v7623
    %v7658 = vmul.f32 %v7588, %v7623
    %v7659 = vmul.f32 %v7589, %v7623
    %v7660 = vmul.f32 %v7590, %v7623
    %v7661 = vmul.f32 %v7591, %v7623
    %v7662 = vmul.f32 %v7592, %v7623
    %v7663 = vmul.f32 %v7593, %v7623
    %v7664 = vmul.f32 %v7594, %v7623
    %v7665 = vmul.f32 %v7595, %v7623
    %v7666 = vmul.f32 %v7596, %v7623
    %v7667 = vmul.f32 %v7597, %v7623
    %v7668 = vmul.f32 %v7598, %v7623
    %v7669 = vmul.f32 %v7599, %v7623
    %v7670 = vmul.f32 %v7600, %v7623
    %v7671 = vmul.f32 %v7601, %v7623
    %v7672 = vmul.f32 %v7602, %v7623
    %v7673 = vmul.f32 %v7603, %v7623
    %v7674 = vmul.f32 %v7604, %v7623
    %v7675 = vmul.f32 %v7605, %v7623
    %v7676 = vmul.f32 %v7606, %v7623
    %v7677 = vmul.f32 %v7607, %v7623
    %v7678 = vmul.f32 %v7608, %v7623
    %v7679 = vmul.f32 %v7609, %v7623
    %v7680 = vmul.f32 %v7610, %v7623
    %v7681 = vmul.f32 %v7611, %v7623
    %v7682 = vmul.f32 %v7612, %v7623
    %v7683 = vmul.f32 %v7613, %v7623
    %v7684 = vmul.f32 %v7614, %v7623
    %v7685 = vmul.f32 %v7615, %v7623
    %v7686 = vmul.f32 %v7616, %v7623
    %v7687 = vmul.f32 %v7617, %v7623
    %v7688 = vld [vmem:[#allocation16] sm:$0x1]
    %v7690 = vlaneseq
    %v7691 = vshrl.u32 %v7690, 7
    %v7692 = vsub.s32 0, %v7691
    %v7693 = vrot.slane %v7688, %v7692
    %v7695 = vadd.f32 %v7624, %v7693
    %v7696 = vadd.f32 %v7625, %v7693
    %v7697 = vadd.f32 %v7626, %v7693
    %v7698 = vadd.f32 %v7627, %v7693
    %v7699 = vadd.f32 %v7628, %v7693
    %v7700 = vadd.f32 %v7629, %v7693
    %v7701 = vadd.f32 %v7630, %v7693
    %v7702 = vadd.f32 %v7631, %v7693
    %v7703 = vadd.f32 %v7632, %v7693
    %v7704 = vadd.f32 %v7633, %v7693
    %v7705 = vadd.f32 %v7634, %v7693
    %v7706 = vadd.f32 %v7635, %v7693
    %v7707 = vadd.f32 %v7636, %v7693
    %v7708 = vadd.f32 %v7637, %v7693
    %v7709 = vadd.f32 %v7638, %v7693
    %v7710 = vadd.f32 %v7639, %v7693
    %v7711 = vadd.f32 %v7640, %v7693
    %v7712 = vadd.f32 %v7641, %v7693
    %v7713 = vadd.f32 %v7642, %v7693
    %v7714 = vadd.f32 %v7643, %v7693
    %v7715 = vadd.f32 %v7644, %v7693
    %v7716 = vadd.f32 %v7645, %v7693
    %v7717 = vadd.f32 %v7646, %v7693
    %v7718 = vadd.f32 %v7647, %v7693
    %v7719 = vadd.f32 %v7648, %v7693
    %v7720 = vadd.f32 %v7649, %v7693
    %v7721 = vadd.f32 %v7650, %v7693
    %v7722 = vadd.f32 %v7651, %v7693
    %v7723 = vadd.f32 %v7652, %v7693
    %v7724 = vadd.f32 %v7653, %v7693
    %v7725 = vadd.f32 %v7654, %v7693
    %v7726 = vadd.f32 %v7655, %v7693
    %v7727 = vadd.f32 %v7656, %v7693
    %v7728 = vadd.f32 %v7657, %v7693
    %v7729 = vadd.f32 %v7658, %v7693
    %v7730 = vadd.f32 %v7659, %v7693
    %v7731 = vadd.f32 %v7660, %v7693
    %v7732 = vadd.f32 %v7661, %v7693
    %v7733 = vadd.f32 %v7662, %v7693
    %v7734 = vadd.f32 %v7663, %v7693
    %v7735 = vadd.f32 %v7664, %v7693
    %v7736 = vadd.f32 %v7665, %v7693
    %v7737 = vadd.f32 %v7666, %v7693
    %v7738 = vadd.f32 %v7667, %v7693
    %v7739 = vadd.f32 %v7668, %v7693
    %v7740 = vadd.f32 %v7669, %v7693
    %v7741 = vadd.f32 %v7670, %v7693
    %v7742 = vadd.f32 %v7671, %v7693
    %v7743 = vadd.f32 %v7672, %v7693
    %v7744 = vadd.f32 %v7673, %v7693
    %v7745 = vadd.f32 %v7674, %v7693
    %v7746 = vadd.f32 %v7675, %v7693
    %v7747 = vadd.f32 %v7676, %v7693
    %v7748 = vadd.f32 %v7677, %v7693
    %v7749 = vadd.f32 %v7678, %v7693
    %v7750 = vadd.f32 %v7679, %v7693
    %v7751 = vadd.f32 %v7680, %v7693
    %v7752 = vadd.f32 %v7681, %v7693
    %v7753 = vadd.f32 %v7682, %v7693
    %v7754 = vadd.f32 %v7683, %v7693
    %v7755 = vadd.f32 %v7684, %v7693
    %v7756 = vadd.f32 %v7685, %v7693
    %v7757 = vadd.f32 %v7686, %v7693
    %v7758 = vadd.f32 %v7687, %v7693
    %v7759 = vmax.f32 %v7695, 0.0
    %v7760 = vmax.f32 %v7696, 0.0
    %v7761 = vmax.f32 %v7697, 0.0
    %v7762 = vmax.f32 %v7698, 0.0
    %v7763 = vmax.f32 %v7699, 0.0
    %v7764 = vmax.f32 %v7700, 0.0
    %v7765 = vmax.f32 %v7701, 0.0
    %v7766 = vmax.f32 %v7702, 0.0
    %v7767 = vmax.f32 %v7703, 0.0
    %v7768 = vmax.f32 %v7704, 0.0
    %v7769 = vmax.f32 %v7705, 0.0
    %v7770 = vmax.f32 %v7706, 0.0
    %v7771 = vmax.f32 %v7707, 0.0
    %v7772 = vmax.f32 %v7708, 0.0
    %v7773 = vmax.f32 %v7709, 0.0
    %v7774 = vmax.f32 %v7710, 0.0
    %v7775 = vmax.f32 %v7711, 0.0
    %v7776 = vmax.f32 %v7712, 0.0
    %v7777 = vmax.f32 %v7713, 0.0
    %v7778 = vmax.f32 %v7714, 0.0
    %v7779 = vmax.f32 %v7715, 0.0
    %v7780 = vmax.f32 %v7716, 0.0
    %v7781 = vmax.f32 %v7717, 0.0
    %v7782 = vmax.f32 %v7718, 0.0
    %v7783 = vmax.f32 %v7719, 0.0
    %v7784 = vmax.f32 %v7720, 0.0
    %v7785 = vmax.f32 %v7721, 0.0
    %v7786 = vmax.f32 %v7722, 0.0
    %v7787 = vmax.f32 %v7723, 0.0
    %v7788 = vmax.f32 %v7724, 0.0
    %v7789 = vmax.f32 %v7725, 0.0
    %v7790 = vmax.f32 %v7726, 0.0
    %v7791 = vmax.f32 %v7727, 0.0
    %v7792 = vmax.f32 %v7728, 0.0
    %v7793 = vmax.f32 %v7729, 0.0
    %v7794 = vmax.f32 %v7730, 0.0
    %v7795 = vmax.f32 %v7731, 0.0
    %v7796 = vmax.f32 %v7732, 0.0
    %v7797 = vmax.f32 %v7733, 0.0
    %v7798 = vmax.f32 %v7734, 0.0
    %v7799 = vmax.f32 %v7735, 0.0
    %v7800 = vmax.f32 %v7736, 0.0
    %v7801 = vmax.f32 %v7737, 0.0
    %v7802 = vmax.f32 %v7738, 0.0
    %v7803 = vmax.f32 %v7739, 0.0
    %v7804 = vmax.f32 %v7740, 0.0
    %v7805 = vmax.f32 %v7741, 0.0
    %v7806 = vmax.f32 %v7742, 0.0
    %v7807 = vmax.f32 %v7743, 0.0
    %v7808 = vmax.f32 %v7744, 0.0
    %v7809 = vmax.f32 %v7745, 0.0
    %v7810 = vmax.f32 %v7746, 0.0
    %v7811 = vmax.f32 %v7747, 0.0
    %v7812 = vmax.f32 %v7748, 0.0
    %v7813 = vmax.f32 %v7749, 0.0
    %v7814 = vmax.f32 %v7750, 0.0
    %v7815 = vmax.f32 %v7751, 0.0
    %v7816 = vmax.f32 %v7752, 0.0
    %v7817 = vmax.f32 %v7753, 0.0
    %v7818 = vmax.f32 %v7754, 0.0
    %v7819 = vmax.f32 %v7755, 0.0
    %v7820 = vmax.f32 %v7756, 0.0
    %v7821 = vmax.f32 %v7757, 0.0
    %v7822 = vmax.f32 %v7758, 0.0
    %7823 = vst.msk [vmem:[#allocation17] sm:$0xff] %vm2384, %v7759
    %7824 = vst.msk [vmem:[#allocation17 + $0x8] sm:$0xff] %vm2384, %v7760
    %7825 = vst.msk [vmem:[#allocation17 + $0x10] sm:$0xff] %vm2384, %v7761
    %7826 = vst.msk [vmem:[#allocation17 + $0x18] sm:$0xff] %vm2384, %v7762
    %7827 = vst.msk [vmem:[#allocation17 + $0x20] sm:$0xff] %vm2384, %v7763
    %7828 = vst.msk [vmem:[#allocation17 + $0x28] sm:$0xff] %vm2384, %v7764
    %7829 = vst.msk [vmem:[#allocation17 + $0x30] sm:$0xff] %vm2384, %v7765
    %7830 = vst.msk [vmem:[#allocation17 + $0x38] sm:$0xff] %vm2384, %v7766
    %7831 = vst.msk [vmem:[#allocation17 + $0x40] sm:$0xff] %vm2384, %v7767
    %7832 = vst.msk [vmem:[#allocation17 + $0x48] sm:$0xff] %vm2384, %v7768
    %7833 = vst.msk [vmem:[#allocation17 + $0x50] sm:$0xff] %vm2384, %v7769
    %7834 = vst.msk [vmem:[#allocation17 + $0x58] sm:$0xff] %vm2384, %v7770
    %7835 = vst.msk [vmem:[#allocation17 + $0x60] sm:$0xff] %vm2384, %v7771
    %7836 = vst.msk [vmem:[#allocation17 + $0x68] sm:$0xff] %vm2384, %v7772
    %7837 = vst.msk [vmem:[#allocation17 + $0x70] sm:$0xff] %vm2384, %v7773
    %7838 = vst.msk [vmem:[#allocation17 + $0x78] sm:$0xff] %vm2384, %v7774
    %7839 = vst.msk [vmem:[#allocation17 + $0x80] sm:$0xff] %vm2384, %v7775
    %7840 = vst.msk [vmem:[#allocation17 + $0x88] sm:$0xff] %vm2384, %v7776
    %7841 = vst.msk [vmem:[#allocation17 + $0x90] sm:$0xff] %vm2384, %v7777
    %7842 = vst.msk [vmem:[#allocation17 + $0x98] sm:$0xff] %vm2384, %v7778
    %7843 = vst.msk [vmem:[#allocation17 + $0xa0] sm:$0xff] %vm2384, %v7779
    %7844 = vst.msk [vmem:[#allocation17 + $0xa8] sm:$0xff] %vm2384, %v7780
    %7845 = vst.msk [vmem:[#allocation17 + $0xb0] sm:$0xff] %vm2384, %v7781
    %7846 = vst.msk [vmem:[#allocation17 + $0xb8] sm:$0xff] %vm2384, %v7782
    %7847 = vst.msk [vmem:[#allocation17 + $0xc0] sm:$0xff] %vm2384, %v7783
    %7848 = vst.msk [vmem:[#allocation17 + $0xc8] sm:$0xff] %vm2384, %v7784
    %7849 = vst.msk [vmem:[#allocation17 + $0xd0] sm:$0xff] %vm2384, %v7785
    %7850 = vst.msk [vmem:[#allocation17 + $0xd8] sm:$0xff] %vm2384, %v7786
    %7851 = vst.msk [vmem:[#allocation17 + $0xe0] sm:$0xff] %vm2384, %v7787
    %7852 = vst.msk [vmem:[#allocation17 + $0xe8] sm:$0xff] %vm2384, %v7788
    %7853 = vst.msk [vmem:[#allocation17 + $0xf0] sm:$0xff] %vm2384, %v7789
    %7854 = vst.msk [vmem:[#allocation17 + $0xf8] sm:$0xff] %vm2384, %v7790
    %7855 = vst.msk [vmem:[#allocation17 + $0x100] sm:$0xff] %vm2384, %v7791
    %7856 = vst.msk [vmem:[#allocation17 + $0x108] sm:$0xff] %vm2384, %v7792
    %7857 = vst.msk [vmem:[#allocation17 + $0x110] sm:$0xff] %vm2384, %v7793
    %7858 = vst.msk [vmem:[#allocation17 + $0x118] sm:$0xff] %vm2384, %v7794
    %7859 = vst.msk [vmem:[#allocation17 + $0x120] sm:$0xff] %vm2384, %v7795
    %7860 = vst.msk [vmem:[#allocation17 + $0x128] sm:$0xff] %vm2384, %v7796
    %7861 = vst.msk [vmem:[#allocation17 + $0x130] sm:$0xff] %vm2384, %v7797
    %7862 = vst.msk [vmem:[#allocation17 + $0x138] sm:$0xff] %vm2384, %v7798
    %7863 = vst.msk [vmem:[#allocation17 + $0x140] sm:$0xff] %vm2384, %v7799
    %7864 = vst.msk [vmem:[#allocation17 + $0x148] sm:$0xff] %vm2384, %v7800
    %7865 = vst.msk [vmem:[#allocation17 + $0x150] sm:$0xff] %vm2384, %v7801
    %7866 = vst.msk [vmem:[#allocation17 + $0x158] sm:$0xff] %vm2384, %v7802
    %7867 = vst.msk [vmem:[#allocation17 + $0x160] sm:$0xff] %vm2384, %v7803
    %7868 = vst.msk [vmem:[#allocation17 + $0x168] sm:$0xff] %vm2384, %v7804
    %7869 = vst.msk [vmem:[#allocation17 + $0x170] sm:$0xff] %vm2384, %v7805
    %7870 = vst.msk [vmem:[#allocation17 + $0x178] sm:$0xff] %vm2384, %v7806
    %7871 = vst.msk [vmem:[#allocation17 + $0x180] sm:$0xff] %vm2384, %v7807
    %7872 = vst.msk [vmem:[#allocation17 + $0x188] sm:$0xff] %vm2384, %v7808
    %7873 = vst.msk [vmem:[#allocation17 + $0x190] sm:$0xff] %vm2384, %v7809
    %7874 = vst.msk [vmem:[#allocation17 + $0x198] sm:$0xff] %vm2384, %v7810
    %7875 = vst.msk [vmem:[#allocation17 + $0x1a0] sm:$0xff] %vm2384, %v7811
    %7876 = vst.msk [vmem:[#allocation17 + $0x1a8] sm:$0xff] %vm2384, %v7812
    %7877 = vst.msk [vmem:[#allocation17 + $0x1b0] sm:$0xff] %vm2384, %v7813
    %7878 = vst.msk [vmem:[#allocation17 + $0x1b8] sm:$0xff] %vm2384, %v7814
    %7879 = vst.msk [vmem:[#allocation17 + $0x1c0] sm:$0xff] %vm2384, %v7815
    %7880 = vst.msk [vmem:[#allocation17 + $0x1c8] sm:$0xff] %vm2384, %v7816
    %7881 = vst.msk [vmem:[#allocation17 + $0x1d0] sm:$0xff] %vm2384, %v7817
    %7882 = vst.msk [vmem:[#allocation17 + $0x1d8] sm:$0xff] %vm2384, %v7818
    %7883 = vst.msk [vmem:[#allocation17 + $0x1e0] sm:$0xff] %vm2384, %v7819
    %7884 = vst.msk [vmem:[#allocation17 + $0x1e8] sm:$0xff] %vm2384, %v7820
    %7885 = vst.msk [vmem:[#allocation17 + $0x1f0] sm:$0xff] %vm2384, %v7821
    %7886 = vst.msk [vmem:[#allocation17 + $0x1f8] sm:$0xff] %vm2384, %v7822
    // Predicated region
    $region74: #{tpu_custom_call.1} parent=1 // pred_check
      _
    $region75: #{tpu_custom_call.1} parent=1 // pred_check_branch
      %7888 = sbr.rel (0) target = $region77
    $region76: #{tpu_custom_call.1} parent=1 // pred_region
      %s7890 = ssub.s32 8192, 8192
      %7891 = vsyncadd [#allocation4], %s7890
      %s7892 = sshll.u32 [#allocation17], 4
      %s7893 = int_to_ptr.vmem [resolvable:$true] %s7892
      %7898 = dma.vmem_to_hbm [thread:$0]  %s7893, 8192, %s9, [#allocation4], 128, 128, 8
    $region77: #{tpu_custom_call.1} parent=1 // pred_fallthru
      _
    // Predicated region
    $region78: #{tpu_custom_call.1} parent=1 // pred_check
      _
    $region79: #{tpu_custom_call.1} parent=1 // pred_check_branch
      %7900 = sbr.rel (0) target = $region81
    $region80: #{tpu_custom_call.1} parent=1 // pred_region
      %7901 = dma.done [#allocation4], 8192
    $region81: #{tpu_custom_call.1} parent=1 // pred_fallthru
      _
    %7902 = vsyncpa [#allocation3], 1
    %7903 = vsyncpa [#allocation6], 1
    %7904 = vsyncpa [#allocation9], 1
    %7905 = vsyncpa [#allocation12], 1
    %7906 = vsyncpa [#allocation15], 1
    %7907 = vsyncpa [#allocation4], 1

</llo_original>
